<compile_context>
chip_gen: v5e
topology: v5e:2x2
jax: 0.10.0
libtpu: 0.0.40
codegen_flags: <defaults>
</compile_context>

<pallas_src>
import jax
import jax.numpy as jnp
from jax import lax
from jax.experimental import pallas as pl
from jax.experimental.pallas import tpu as pltpu

# ---------------- configuration (small synthetic shapes) ----------------
BATCH = 2
IN_CH = 3
IMG = 16
PATCH = 4
GRID = IMG // PATCH                    # 4
NUM_PATCHES = GRID * GRID              # 16
PATCH_DIM = IN_CH * PATCH * PATCH      # 48
EMBED = 32
HEADS = 2
HEAD_DIM = EMBED // HEADS              # 16
SCALE = HEAD_DIM ** -0.5               # 0.25 (exact in bf16)
MLP_HIDDEN = EMBED * 4                 # mlp_ratio = 4
DEPTH_T = 3
DEPTH_S = 3
TEACHERS = (1, 2, 3)                   # teacher block indices returned (NCHW)
NECK = (2, 3)                          # teacher block indices fed to fusion
STUDENTS = (1, 2, 3)                   # student block indices returned (NCHW, reversed)
FUSION_MUL = len(NECK)
LN_EPS = 1e-6
SEQ_T = NUM_PATCHES + 1                # 17 = patches + cls (cls stored LAST)

MXU_DT = jnp.bfloat16                  # MXU matmul input dtype (f32 accumulation)
ACC_DT = jnp.float32                   # elementwise / accumulation dtype

N_FEATS = len(TEACHERS) + len(STUDENTS)   # 6 features of width EMBED
N_SLOTS = 8                               # pad to 8*32 = 256 lanes (multiple of 128)

BLOCK_PARAM_ORDER = ('ln1g', 'ln1b', 'wqkv', 'bqkv', 'wproj', 'bproj',
                     'ln2g', 'ln2b', 'w1', 'b1', 'w2', 'b2')
MATMUL_WEIGHTS = ('wqkv', 'wproj', 'w1', 'w2')


# ---------------- in-kernel helpers ----------------
def _layernorm(x, gamma, beta, eps=LN_EPS):
    mean = jnp.mean(x, axis=-1, keepdims=True)
    var = jnp.mean((x - mean) ** 2, axis=-1, keepdims=True)
    return (x - mean) * jax.lax.rsqrt(var + eps) * gamma + beta


def _vit_block(x, params, d):
    """Pre-norm timm ViT block on one batch element's tokens x: [L, EMBED] (f32)."""
    (ln1g, ln1b, wqkv, bqkv, wproj, bproj,
     ln2g, ln2b, w1, b1, w2, b2) = params

    # ---- attention (SCALE pre-folded into the Q columns of wqkv / bqkv) ----
    h = _layernorm(x, ln1g[d], ln1b[d]).astype(MXU_DT)
    qkv = jnp.dot(h, wqkv[d], preferred_element_type=ACC_DT) + bqkv[d]       # [L, 3C] f32

    # per-head work on 2-D lane-slices of qkv (no [H,L,dh] stack / einsum copies)
    o_heads = []
    for hd in range(HEADS):
        q = qkv[:, 0 * EMBED + hd * HEAD_DIM: 0 * EMBED + (hd + 1) * HEAD_DIM].astype(MXU_DT)
        k = qkv[:, 1 * EMBED + hd * HEAD_DIM: 1 * EMBED + (hd + 1) * HEAD_DIM].astype(MXU_DT)
        v = qkv[:, 2 * EMBED + hd * HEAD_DIM: 2 * EMBED + (hd + 1) * HEAD_DIM].astype(MXU_DT)
        # q @ k^T without an explicit transpose: contract the feature dim of both.
        s = lax.dot_general(q, k, (((1,), (1,)), ((), ())),
                            preferred_element_type=ACC_DT)                   # [L, L] f32
        s = s - jnp.max(s, axis=-1, keepdims=True)
        p = jnp.exp(s)
        inv = pl.reciprocal(jnp.sum(p, axis=-1, keepdims=True), approx=True)  # EUP
        p = (p * inv).astype(MXU_DT)
        o_heads.append(jnp.dot(p, v, preferred_element_type=ACC_DT))          # [L, dh] f32

    # per-head output projection folded into the proj matmul (no head-concat buffer):
    #   concat(o_h) @ Wproj == sum_h o_h @ Wproj[h*dh:(h+1)*dh, :]
    # The HEADS dots are kept back-to-back (no interleaved VALU ops) so v7x's MRB can
    # accumulate them in place; neutral on v5e/v6e.
    wp = wproj[d]
    proj = None
    for hd in range(HEADS):
        t = jnp.dot(o_heads[hd].astype(MXU_DT),
                    wp[hd * HEAD_DIM:(hd + 1) * HEAD_DIM, :],
                    preferred_element_type=ACC_DT)
        proj = t if proj is None else proj + t
    x = x + (proj + bproj[d])

    # ---- mlp ----
    h2 = _layernorm(x, ln2g[d], ln2b[d]).astype(MXU_DT)
    h2 = jnp.dot(h2, w1[d], preferred_element_type=ACC_DT) + b1[d]
    # TODO(synk): PyTorch nn.GELU defaults to exact erf; tanh approximation used here
    #             (EUP instead of VPU polynomial) per perf review -- tiny numeric delta.
    h2 = jax.nn.gelu(h2, approximate=True)
    h2 = jnp.dot(h2.astype(MXU_DT), w2[d], preferred_element_type=ACC_DT) + b2[d]
    return x + h2


# ---------------- fused ViTAD kernel (one grid step = NB batch elements) ----------------
def vitad_kernel(*refs):
    nbp = len(BLOCK_PARAM_ORDER)
    patches_ref, patch_w, patch_b, cls_tok, pos_t = refs[0:5]
    t_params = refs[5:5 + nbp]
    fusion_w, fusion_b, pos_s = refs[5 + nbp:8 + nbp]
    s_params = refs[8 + nbp:8 + 2 * nbp]
    out_ref = refs[8 + 2 * nbp]

    nb = patches_ref.shape[0]          # batch elements handled by this grid step
    for bi in range(nb):
        # zero the 2 pad slots once; feature slots are written eagerly below
        out_ref[bi, :, N_FEATS * EMBED:] = jnp.zeros(
            (NUM_PATCHES, (N_SLOTS - N_FEATS) * EMBED), out_ref.dtype)

        # --- teacher encoder: patch embed + cls token (appended LAST) + pos embed ---
        patches = patches_ref[bi]                                             # [16, 48]
        x = jnp.dot(patches.astype(MXU_DT), patch_w[...],
                    preferred_element_type=ACC_DT) + patch_b[...]             # [16, C]
        x = jnp.concatenate([x, cls_tok[...]], axis=0)                        # [17, C]
        x = x + pos_t[...]          # pos rows laid out patches-first, cls-last

        necks = []
        for d in range(DEPTH_T):
            x = _vit_block(x, t_params, d)
            fea = x[:NUM_PATCHES, :]                        # tile-aligned (cls is last)
            if d + 1 in NECK:
                necks.append(fea)
            if d + 1 in TEACHERS:
                slot = TEACHERS.index(d + 1)
                out_ref[bi, :, slot * EMBED:(slot + 1) * EMBED] = fea.astype(out_ref.dtype)

        # --- fusion FC, consumed per neck chunk (no lane concat); dots back-to-back ---
        xs = None
        for j in range(FUSION_MUL):
            t = jnp.dot(necks[j].astype(MXU_DT),
                        fusion_w[j * EMBED:(j + 1) * EMBED, :],
                        preferred_element_type=ACC_DT)
            xs = t if xs is None else xs + t
        xs = xs + fusion_b[...]                                               # [16, C]

        # --- student decoder ---
        xs = xs + pos_s[...]
        for d in range(DEPTH_S):
            xs = _vit_block(xs, s_params, d)
            if d + 1 in STUDENTS:
                slot = len(TEACHERS) + STUDENTS.index(d + 1)
                out_ref[bi, :, slot * EMBED:(slot + 1) * EMBED] = xs.astype(out_ref.dtype)


# ---------------- parameter init (deterministic, synthetic) ----------------
# TODO(synk): pretrained-checkpoint loading / dropout / grad-checkpointing are inference
#             no-ops here; only the numerical forward is reproduced with synthetic weights.
def init_block_params(key, C, hidden):
    ks = jax.random.split(key, 4)
    f32 = jnp.float32
    return dict(
        ln1g=jnp.ones((1, C), f32), ln1b=jnp.zeros((1, C), f32),
        wqkv=jax.random.normal(ks[0], (C, 3 * C), f32) * 0.02,
        bqkv=jnp.zeros((1, 3 * C), f32),
        wproj=jax.random.normal(ks[1], (C, C), f32) * 0.02,
        bproj=jnp.zeros((1, C), f32),
        ln2g=jnp.ones((1, C), f32), ln2b=jnp.zeros((1, C), f32),
        w1=jax.random.normal(ks[2], (C, hidden), f32) * 0.02,
        b1=jnp.zeros((1, hidden), f32),
        w2=jax.random.normal(ks[3], (hidden, C), f32) * 0.02,
        b2=jnp.zeros((1, C), f32),
    )


def stack_block_params(block_list):
    """Stack per-block params along a leading depth axis.

    The attention SCALE (head_dim**-0.5) is folded into the Q columns of wqkv / bqkv
    (free host-side transform instead of a per-block VALU multiply on the score tensor),
    and matmul weights are cast to bf16 for the MXU.
    """
    stacked = []
    for name in BLOCK_PARAM_ORDER:
        arrs = [bp[name] for bp in block_list]
        if name in ('wqkv', 'bqkv'):
            arrs = [a.at[:, :EMBED].multiply(SCALE) for a in arrs]   # scale Q part only
        arr = jnp.stack(arrs, axis=0)
        if name in MATMUL_WEIGHTS:
            arr = arr.astype(MXU_DT)
        stacked.append(arr)
    return tuple(stacked)


def init_params(key):
    f32 = jnp.float32
    kt, kf, ks = jax.random.split(key, 3)
    kt_sub = jax.random.split(kt, DEPTH_T + 3)
    teacher = dict(
        patch_w=(jax.random.normal(kt_sub[0], (PATCH_DIM, EMBED), f32) * 0.02).astype(MXU_DT),
        patch_b=jnp.zeros((1, EMBED), f32),
        cls=jax.random.normal(kt_sub[1], (1, EMBED), f32) * 0.02,
        # pos rows laid out [patch tokens..., cls] to match the cls-last token layout
        pos=jax.random.normal(kt_sub[2], (SEQ_T, EMBED), f32) * 0.02,
        blocks=stack_block_params(
            [init_block_params(kt_sub[3 + i], EMBED, MLP_HIDDEN) for i in range(DEPTH_T)]),
    )
    fusion = dict(
        w=(jax.random.normal(kf, (EMBED * FUSION_MUL, EMBED), f32) * 0.02).astype(MXU_DT),
        b=jnp.zeros((1, EMBED), f32),
    )
    ks_sub = jax.random.split(ks, DEPTH_S + 1)
    student = dict(
        pos=jax.random.normal(ks_sub[0], (NUM_PATCHES, EMBED), f32) * 0.02,
        blocks=stack_block_params(
            [init_block_params(ks_sub[1 + i], EMBED, MLP_HIDDEN) for i in range(DEPTH_S)]),
    )
    return dict(teacher=teacher, fusion=fusion, student=student)


# ---------------- forward (glue in plain JAX, whole network in one pallas_call) ----------------
def patchify(x, p):
    # NCHW -> [B, L, Cin*p*p] (matches Conv2d(kernel=stride=p) weight flattening order)
    B, Cin, H, W = x.shape
    hg, wg = H // p, W // p
    x = x.reshape(B, Cin, hg, p, wg, p)
    x = x.transpose(0, 2, 4, 1, 3, 5)
    return x.reshape(B, hg * wg, Cin * p * p)


def _full_spec(shape):
    n = len(shape)
    return pl.BlockSpec(shape, lambda g, _n=n: (0,) * _n)


def _tensorcores_per_device():
    """Best-effort TensorCore count per device.  >=2 (v7x / megacore) -> keep grid=(B,)
    parallel so each TC owns one batch element; 1 (v5e/v6e) -> fold the batch into a
    single grid step to halve per-step overhead.  Never raises."""
    try:
        info = pltpu.get_tpu_info()
        for attr in ("num_cores", "core_count", "tensorcore_count", "num_tensorcores"):
            v = getattr(info, attr, None)
            if isinstance(v, int) and v > 0:
                return v
    except Exception:
        pass
    try:
        kind = jax.devices()[0].device_kind.lower()
        if ("v4" in kind) or ("v5p" in kind) or ("v7" in kind):
            return 2
    except Exception:
        pass
    return 1


def vitad_forward(imgs, params):
    B = imgs.shape[0]
    nb = B if _tensorcores_per_device() < 2 else 1     # batch elements per grid step
    if B % nb:
        nb = 1
    tp, fp, sp = params['teacher'], params['fusion'], params['student']
    patches = patchify(imgs, PATCH)                                    # [B, 16, 48]

    inputs = (patches, tp['patch_w'], tp['patch_b'], tp['cls'], tp['pos'],
              *tp['blocks'], fp['w'], fp['b'], sp['pos'], *sp['blocks'])

    in_specs = [pl.BlockSpec((nb, NUM_PATCHES, PATCH_DIM), lambda g: (g, 0, 0))]
    in_specs += [_full_spec(a.shape) for a in inputs[1:]]              # weights: resident

    slab = pl.pallas_call(
        vitad_kernel,
        grid=(B // nb,),
        in_specs=in_specs,
        out_specs=pl.BlockSpec((nb, NUM_PATCHES, N_SLOTS * EMBED), lambda g: (g, 0, 0)),
        out_shape=jax.ShapeDtypeStruct((B, NUM_PATCHES, N_SLOTS * EMBED), jnp.float32),
        compiler_params=pltpu.CompilerParams(
            dimension_semantics=("parallel",)),    # batch -> v7x's 2 TensorCores
    )(*inputs)

    def to_nchw(slot):
        f = slab[:, :, slot * EMBED:(slot + 1) * EMBED]                # [B, 16, C]
        return f.reshape(B, GRID, GRID, EMBED).transpose(0, 3, 1, 2)   # [B, C, H, W]

    feats_t = [to_nchw(i) for i in range(len(TEACHERS))]
    feats_s = [to_nchw(len(TEACHERS) + i) for i in range(len(STUDENTS))]
    return feats_t, feats_s[::-1]                                      # student list reversed


# ---------------- main ----------------
if __name__ == "__main__":
    key = jax.random.PRNGKey(0)
    k_img, k_par = jax.random.split(key)
    imgs = jax.random.normal(k_img, (BATCH, IN_CH, IMG, IMG), jnp.float32)
    params = init_params(k_par)

    feats_t, feats_s = jax.jit(vitad_forward)(imgs, params)
    jax.block_until_ready(feats_t)
    jax.block_until_ready(feats_s)

    # sanity: teacher & student spatial features, NCHW
    assert len(feats_t) == len(TEACHERS) and len(feats_s) == len(STUDENTS)
    assert all(f.shape == (BATCH, EMBED, GRID, GRID) for f in feats_t)
    assert all(f.shape == (BATCH, EMBED, GRID, GRID) for f in feats_s)
    assert all(bool(jnp.all(jnp.isfinite(f))) for f in feats_t + feats_s)

    print("KERNEL_OK")
</pallas_src>

<mosaic_0001>
module attributes {stable_mosaic.version = 11 : i64} {
  func.func @vitad_kernel(%arg0: i32, %arg1: memref<2x16x48xf32, #tpu.memory_space<vmem>>, %arg2: memref<48x32xbf16, #tpu.memory_space<vmem>>, %arg3: memref<1x32xf32, #tpu.memory_space<vmem>>, %arg4: memref<1x32xf32, #tpu.memory_space<vmem>>, %arg5: memref<17x32xf32, #tpu.memory_space<vmem>>, %arg6: memref<3x1x32xf32, #tpu.memory_space<vmem>>, %arg7: memref<3x1x32xf32, #tpu.memory_space<vmem>>, %arg8: memref<3x32x96xbf16, #tpu.memory_space<vmem>>, %arg9: memref<3x1x96xf32, #tpu.memory_space<vmem>>, %arg10: memref<3x32x32xbf16, #tpu.memory_space<vmem>>, %arg11: memref<3x1x32xf32, #tpu.memory_space<vmem>>, %arg12: memref<3x1x32xf32, #tpu.memory_space<vmem>>, %arg13: memref<3x1x32xf32, #tpu.memory_space<vmem>>, %arg14: memref<3x32x128xbf16, #tpu.memory_space<vmem>>, %arg15: memref<3x1x128xf32, #tpu.memory_space<vmem>>, %arg16: memref<3x128x32xbf16, #tpu.memory_space<vmem>>, %arg17: memref<3x1x32xf32, #tpu.memory_space<vmem>>, %arg18: memref<64x32xbf16, #tpu.memory_space<vmem>>, %arg19: memref<1x32xf32, #tpu.memory_space<vmem>>, %arg20: memref<16x32xf32, #tpu.memory_space<vmem>>, %arg21: memref<3x1x32xf32, #tpu.memory_space<vmem>>, %arg22: memref<3x1x32xf32, #tpu.memory_space<vmem>>, %arg23: memref<3x32x96xbf16, #tpu.memory_space<vmem>>, %arg24: memref<3x1x96xf32, #tpu.memory_space<vmem>>, %arg25: memref<3x32x32xbf16, #tpu.memory_space<vmem>>, %arg26: memref<3x1x32xf32, #tpu.memory_space<vmem>>, %arg27: memref<3x1x32xf32, #tpu.memory_space<vmem>>, %arg28: memref<3x1x32xf32, #tpu.memory_space<vmem>>, %arg29: memref<3x32x128xbf16, #tpu.memory_space<vmem>>, %arg30: memref<3x1x128xf32, #tpu.memory_space<vmem>>, %arg31: memref<3x128x32xbf16, #tpu.memory_space<vmem>>, %arg32: memref<3x1x32xf32, #tpu.memory_space<vmem>>, %arg33: memref<2x16x256xf32, #tpu.memory_space<vmem>>) attributes {dimension_semantics = [#tpu.dimension_semantics<parallel>], iteration_bounds = array<i64: 1>, scalar_prefetch = 0 : i64, scratch_operands = 0 : i64, tpu.core_type = #tpu.core_type<tc>, window_params = [{transform_indices = @transform_0, window_bounds = array<i64: 2, 16, 48>}, {pipeline_mode = #tpu.pipeline_mode<synchronous>, transform_indices = @transform_1, window_bounds = array<i64: 48, 32>}, {pipeline_mode = #tpu.pipeline_mode<synchronous>, transform_indices = @transform_2, window_bounds = array<i64: 1, 32>}, {pipeline_mode = #tpu.pipeline_mode<synchronous>, transform_indices = @transform_3, window_bounds = array<i64: 1, 32>}, {pipeline_mode = #tpu.pipeline_mode<synchronous>, transform_indices = @transform_4, window_bounds = array<i64: 17, 32>}, {pipeline_mode = #tpu.pipeline_mode<synchronous>, transform_indices = @transform_5, window_bounds = array<i64: 3, 1, 32>}, {pipeline_mode = #tpu.pipeline_mode<synchronous>, transform_indices = @transform_6, window_bounds = array<i64: 3, 1, 32>}, {pipeline_mode = #tpu.pipeline_mode<synchronous>, transform_indices = @transform_7, window_bounds = array<i64: 3, 32, 96>}, {pipeline_mode = #tpu.pipeline_mode<synchronous>, transform_indices = @transform_8, window_bounds = array<i64: 3, 1, 96>}, {pipeline_mode = #tpu.pipeline_mode<synchronous>, transform_indices = @transform_9, window_bounds = array<i64: 3, 32, 32>}, {pipeline_mode = #tpu.pipeline_mode<synchronous>, transform_indices = @transform_10, window_bounds = array<i64: 3, 1, 32>}, {pipeline_mode = #tpu.pipeline_mode<synchronous>, transform_indices = @transform_11, window_bounds = array<i64: 3, 1, 32>}, {pipeline_mode = #tpu.pipeline_mode<synchronous>, transform_indices = @transform_12, window_bounds = array<i64: 3, 1, 32>}, {pipeline_mode = #tpu.pipeline_mode<synchronous>, transform_indices = @transform_13, window_bounds = array<i64: 3, 32, 128>}, {pipeline_mode = #tpu.pipeline_mode<synchronous>, transform_indices = @transform_14, window_bounds = array<i64: 3, 1, 128>}, {pipeline_mode = #tpu.pipeline_mode<synchronous>, transform_indices = @transform_15, window_bounds = array<i64: 3, 128, 32>}, {pipeline_mode = #tpu.pipeline_mode<synchronous>, transform_indices = @transform_16, window_bounds = array<i64: 3, 1, 32>}, {pipeline_mode = #tpu.pipeline_mode<synchronous>, transform_indices = @transform_17, window_bounds = array<i64: 64, 32>}, {pipeline_mode = #tpu.pipeline_mode<synchronous>, transform_indices = @transform_18, window_bounds = array<i64: 1, 32>}, {pipeline_mode = #tpu.pipeline_mode<synchronous>, transform_indices = @transform_19, window_bounds = array<i64: 16, 32>}, {pipeline_mode = #tpu.pipeline_mode<synchronous>, transform_indices = @transform_20, window_bounds = array<i64: 3, 1, 32>}, {pipeline_mode = #tpu.pipeline_mode<synchronous>, transform_indices = @transform_21, window_bounds = array<i64: 3, 1, 32>}, {pipeline_mode = #tpu.pipeline_mode<synchronous>, transform_indices = @transform_22, window_bounds = array<i64: 3, 32, 96>}, {pipeline_mode = #tpu.pipeline_mode<synchronous>, transform_indices = @transform_23, window_bounds = array<i64: 3, 1, 96>}, {pipeline_mode = #tpu.pipeline_mode<synchronous>, transform_indices = @transform_24, window_bounds = array<i64: 3, 32, 32>}, {pipeline_mode = #tpu.pipeline_mode<synchronous>, transform_indices = @transform_25, window_bounds = array<i64: 3, 1, 32>}, {pipeline_mode = #tpu.pipeline_mode<synchronous>, transform_indices = @transform_26, window_bounds = array<i64: 3, 1, 32>}, {pipeline_mode = #tpu.pipeline_mode<synchronous>, transform_indices = @transform_27, window_bounds = array<i64: 3, 1, 32>}, {pipeline_mode = #tpu.pipeline_mode<synchronous>, transform_indices = @transform_28, window_bounds = array<i64: 3, 32, 128>}, {pipeline_mode = #tpu.pipeline_mode<synchronous>, transform_indices = @transform_29, window_bounds = array<i64: 3, 1, 128>}, {pipeline_mode = #tpu.pipeline_mode<synchronous>, transform_indices = @transform_30, window_bounds = array<i64: 3, 128, 32>}, {pipeline_mode = #tpu.pipeline_mode<synchronous>, transform_indices = @transform_31, window_bounds = array<i64: 3, 1, 32>}, {transform_indices = @transform_32, window_bounds = array<i64: 2, 16, 256>}]} {
    %cst = arith.constant 0.000000e+00 : f32
    %0 = vector.broadcast %cst : f32 to vector<16x64xf32>
    %c0 = arith.constant 0 : index
    %c0_0 = arith.constant 0 : index
    %c192 = arith.constant 192 : index
    %1 = vector.load %arg33[%c0, %c0_0, %c192] : memref<2x16x256xf32, #tpu.memory_space<vmem>>, vector<1x16x64xf32>
    %2 = vector.shape_cast %1 : vector<1x16x64xf32> to vector<16x64xf32>
    %3 = vector.shape_cast %0 : vector<16x64xf32> to vector<1x16x64xf32>
    tpu.vector_store %arg33[%c0, %c0_0, %c192], %3 {strides = array<i32>} : memref<2x16x256xf32, #tpu.memory_space<vmem>>, vector<1x16x64xf32>,
    %c0_1 = arith.constant 0 : index
    %c0_2 = arith.constant 0 : index
    %c0_3 = arith.constant 0 : index
    %4 = vector.load %arg1[%c0_1, %c0_2, %c0_3] : memref<2x16x48xf32, #tpu.memory_space<vmem>>, vector<1x16x48xf32>
    %5 = vector.shape_cast %4 : vector<1x16x48xf32> to vector<16x48xf32>
    %6 = arith.truncf %5 : vector<16x48xf32> to vector<16x48xbf16>
    %c0_4 = arith.constant 0 : index
    %c0_5 = arith.constant 0 : index
    %7 = vector.load %arg2[%c0_4, %c0_5] : memref<48x32xbf16, #tpu.memory_space<vmem>>, vector<48x32xbf16>
    %cst_6 = arith.constant dense<0.000000e+00> : vector<16x32xf32>
    %8 = tpu.matmul %6, %7, %cst_6 {dimension_numbers = #tpu.dot_dimension_numbers<[1], [0], [0], [1], [0, 0, 1, 1], [], []>} : vector<16x48xbf16>, vector<48x32xbf16>, vector<16x32xf32> -> vector<16x32xf32>
    %c0_7 = arith.constant 0 : index
    %c0_8 = arith.constant 0 : index
    %9 = vector.load %arg3[%c0_7, %c0_8] : memref<1x32xf32, #tpu.memory_space<vmem>>, vector<1x32xf32>
    %10 = vector.broadcast %9 : vector<1x32xf32> to vector<16x32xf32>
    %11 = arith.addf %8, %10 : vector<16x32xf32>
    %c0_9 = arith.constant 0 : index
    %c0_10 = arith.constant 0 : index
    %12 = vector.load %arg4[%c0_9, %c0_10] : memref<1x32xf32, #tpu.memory_space<vmem>>, vector<1x32xf32>
    %13 = tpu.concatenate %11, %12 in 0 : vector<16x32xf32>, vector<1x32xf32> -> vector<17x32xf32>
    %c0_11 = arith.constant 0 : index
    %c0_12 = arith.constant 0 : index
    %14 = vector.load %arg5[%c0_11, %c0_12] : memref<17x32xf32, #tpu.memory_space<vmem>>, vector<17x32xf32>
    %15 = arith.addf %13, %14 : vector<17x32xf32>
    %c0_13 = arith.constant 0 : index
    %c0_14 = arith.constant 0 : index
    %c0_15 = arith.constant 0 : index
    %16 = vector.load %arg6[%c0_13, %c0_14, %c0_15] : memref<3x1x32xf32, #tpu.memory_space<vmem>>, vector<1x1x32xf32>
    %17 = vector.shape_cast %16 : vector<1x1x32xf32> to vector<1x32xf32>
    %c0_16 = arith.constant 0 : index
    %c0_17 = arith.constant 0 : index
    %c0_18 = arith.constant 0 : index
    %18 = vector.load %arg7[%c0_16, %c0_17, %c0_18] : memref<3x1x32xf32, #tpu.memory_space<vmem>>, vector<1x1x32xf32>
    %19 = vector.shape_cast %18 : vector<1x1x32xf32> to vector<1x32xf32>
    %cst_19 = arith.constant dense<0.000000e+00> : vector<17xf32>
    %20 = vector.multi_reduction <add>, %15, %cst_19 [1] : vector<17x32xf32> to vector<17xf32>
    %21 = vector.shape_cast %20 : vector<17xf32> to vector<17x1xf32>
    %cst_20 = arith.constant 3.200000e+01 : f32
    %22 = vector.broadcast %cst_20 : f32 to vector<17x1xf32>
    %23 = arith.divf %21, %22 : vector<17x1xf32>
    %24 = vector.broadcast %23 : vector<17x1xf32> to vector<17x32xf32>
    %25 = arith.subf %15, %24 : vector<17x32xf32>
    %26 = arith.mulf %25, %25 : vector<17x32xf32>
    %cst_21 = arith.constant dense<0.000000e+00> : vector<17xf32>
    %27 = vector.multi_reduction <add>, %26, %cst_21 [1] : vector<17x32xf32> to vector<17xf32>
    %28 = vector.shape_cast %27 : vector<17xf32> to vector<17x1xf32>
    %cst_22 = arith.constant 3.200000e+01 : f32
    %29 = vector.broadcast %cst_22 : f32 to vector<17x1xf32>
    %30 = arith.divf %28, %29 : vector<17x1xf32>
    %31 = vector.broadcast %23 : vector<17x1xf32> to vector<17x32xf32>
    %32 = arith.subf %15, %31 : vector<17x32xf32>
    %cst_23 = arith.constant 9.99999997E-7 : f32
    %33 = vector.broadcast %cst_23 : f32 to vector<17x1xf32>
    %34 = arith.addf %30, %33 : vector<17x1xf32>
    %35 = math.rsqrt %34 : vector<17x1xf32>
    %36 = vector.broadcast %35 : vector<17x1xf32> to vector<17x32xf32>
    %37 = arith.mulf %32, %36 : vector<17x32xf32>
    %38 = vector.broadcast %17 : vector<1x32xf32> to vector<17x32xf32>
    %39 = arith.mulf %37, %38 : vector<17x32xf32>
    %40 = vector.broadcast %19 : vector<1x32xf32> to vector<17x32xf32>
    %41 = arith.addf %39, %40 : vector<17x32xf32>
    %42 = arith.truncf %41 : vector<17x32xf32> to vector<17x32xbf16>
    %c0_24 = arith.constant 0 : index
    %c0_25 = arith.constant 0 : index
    %c0_26 = arith.constant 0 : index
    %43 = vector.load %arg8[%c0_24, %c0_25, %c0_26] : memref<3x32x96xbf16, #tpu.memory_space<vmem>>, vector<1x32x96xbf16>
    %44 = vector.shape_cast %43 : vector<1x32x96xbf16> to vector<32x96xbf16>
    %cst_27 = arith.constant dense<0.000000e+00> : vector<17x96xf32>
    %45 = tpu.matmul %42, %44, %cst_27 {dimension_numbers = #tpu.dot_dimension_numbers<[1], [0], [0], [1], [0, 0, 1, 1], [], []>} : vector<17x32xbf16>, vector<32x96xbf16>, vector<17x96xf32> -> vector<17x96xf32>
    %c0_28 = arith.constant 0 : index
    %c0_29 = arith.constant 0 : index
    %c0_30 = arith.constant 0 : index
    %46 = vector.load %arg9[%c0_28, %c0_29, %c0_30] : memref<3x1x96xf32, #tpu.memory_space<vmem>>, vector<1x1x96xf32>
    %47 = vector.shape_cast %46 : vector<1x1x96xf32> to vector<1x96xf32>
    %48 = vector.broadcast %47 : vector<1x96xf32> to vector<17x96xf32>
    %49 = arith.addf %45, %48 : vector<17x96xf32>
    %50 = vector.extract_strided_slice %49 {offsets = [0, 0], sizes = [17, 16], strides = [1, 1]} : vector<17x96xf32> to vector<17x16xf32>
    %51 = arith.truncf %50 : vector<17x16xf32> to vector<17x16xbf16>
    %52 = vector.extract_strided_slice %49 {offsets = [0, 32], sizes = [17, 16], strides = [1, 1]} : vector<17x96xf32> to vector<17x16xf32>
    %53 = arith.truncf %52 : vector<17x16xf32> to vector<17x16xbf16>
    %54 = vector.extract_strided_slice %49 {offsets = [0, 64], sizes = [17, 16], strides = [1, 1]} : vector<17x96xf32> to vector<17x16xf32>
    %55 = arith.truncf %54 : vector<17x16xf32> to vector<17x16xbf16>
    %cst_31 = arith.constant dense<0.000000e+00> : vector<17x17xf32>
    %56 = tpu.matmul %51, %53, %cst_31 {dimension_numbers = #tpu.dot_dimension_numbers<[1], [1], [0], [0], [0, 0, 1, 0], [], []>} : vector<17x16xbf16>, vector<17x16xbf16>, vector<17x17xf32> -> vector<17x17xf32>
    %cst_32 = arith.constant dense<0xFF800000> : vector<17xf32>
    %57 = vector.multi_reduction <maximumf>, %56, %cst_32 [1] : vector<17x17xf32> to vector<17xf32>
    %58 = vector.shape_cast %57 : vector<17xf32> to vector<17x1xf32>
    %59 = vector.broadcast %58 : vector<17x1xf32> to vector<17x17xf32>
    %60 = arith.subf %56, %59 : vector<17x17xf32>
    %61 = math.exp %60 : vector<17x17xf32>
    %cst_33 = arith.constant dense<0.000000e+00> : vector<17xf32>
    %62 = vector.multi_reduction <add>, %61, %cst_33 [1] : vector<17x17xf32> to vector<17xf32>
    %63 = vector.shape_cast %62 : vector<17xf32> to vector<17x1xf32>
    %64 = tpu.reciprocal %63 {approx = true} : vector<17x1xf32> -> vector<17x1xf32>
    %65 = vector.broadcast %64 : vector<17x1xf32> to vector<17x17xf32>
    %66 = arith.mulf %61, %65 : vector<17x17xf32>
    %67 = arith.truncf %66 : vector<17x17xf32> to vector<17x17xbf16>
    %cst_34 = arith.constant dense<0.000000e+00> : vector<17x16xf32>
    %68 = tpu.matmul %67, %55, %cst_34 {dimension_numbers = #tpu.dot_dimension_numbers<[1], [0], [0], [1], [0, 0, 1, 1], [], []>} : vector<17x17xbf16>, vector<17x16xbf16>, vector<17x16xf32> -> vector<17x16xf32>
    %69 = vector.extract_strided_slice %49 {offsets = [0, 16], sizes = [17, 16], strides = [1, 1]} : vector<17x96xf32> to vector<17x16xf32>
    %70 = arith.truncf %69 : vector<17x16xf32> to vector<17x16xbf16>
    %71 = vector.extract_strided_slice %49 {offsets = [0, 48], sizes = [17, 16], strides = [1, 1]} : vector<17x96xf32> to vector<17x16xf32>
    %72 = arith.truncf %71 : vector<17x16xf32> to vector<17x16xbf16>
    %73 = vector.extract_strided_slice %49 {offsets = [0, 80], sizes = [17, 16], strides = [1, 1]} : vector<17x96xf32> to vector<17x16xf32>
    %74 = arith.truncf %73 : vector<17x16xf32> to vector<17x16xbf16>
    %cst_35 = arith.constant dense<0.000000e+00> : vector<17x17xf32>
    %75 = tpu.matmul %70, %72, %cst_35 {dimension_numbers = #tpu.dot_dimension_numbers<[1], [1], [0], [0], [0, 0, 1, 0], [], []>} : vector<17x16xbf16>, vector<17x16xbf16>, vector<17x17xf32> -> vector<17x17xf32>
    %cst_36 = arith.constant dense<0xFF800000> : vector<17xf32>
    %76 = vector.multi_reduction <maximumf>, %75, %cst_36 [1] : vector<17x17xf32> to vector<17xf32>
    %77 = vector.shape_cast %76 : vector<17xf32> to vector<17x1xf32>
    %78 = vector.broadcast %77 : vector<17x1xf32> to vector<17x17xf32>
    %79 = arith.subf %75, %78 : vector<17x17xf32>
    %80 = math.exp %79 : vector<17x17xf32>
    %cst_37 = arith.constant dense<0.000000e+00> : vector<17xf32>
    %81 = vector.multi_reduction <add>, %80, %cst_37 [1] : vector<17x17xf32> to vector<17xf32>
    %82 = vector.shape_cast %81 : vector<17xf32> to vector<17x1xf32>
    %83 = tpu.reciprocal %82 {approx = true} : vector<17x1xf32> -> vector<17x1xf32>
    %84 = vector.broadcast %83 : vector<17x1xf32> to vector<17x17xf32>
    %85 = arith.mulf %80, %84 : vector<17x17xf32>
    %86 = arith.truncf %85 : vector<17x17xf32> to vector<17x17xbf16>
    %cst_38 = arith.constant dense<0.000000e+00> : vector<17x16xf32>
    %87 = tpu.matmul %86, %74, %cst_38 {dimension_numbers = #tpu.dot_dimension_numbers<[1], [0], [0], [1], [0, 0, 1, 1], [], []>} : vector<17x17xbf16>, vector<17x16xbf16>, vector<17x16xf32> -> vector<17x16xf32>
    %c0_39 = arith.constant 0 : index
    %c0_40 = arith.constant 0 : index
    %c0_41 = arith.constant 0 : index
    %88 = vector.load %arg10[%c0_39, %c0_40, %c0_41] : memref<3x32x32xbf16, #tpu.memory_space<vmem>>, vector<1x32x32xbf16>
    %89 = vector.shape_cast %88 : vector<1x32x32xbf16> to vector<32x32xbf16>
    %90 = arith.truncf %68 : vector<17x16xf32> to vector<17x16xbf16>
    %91 = vector.extract_strided_slice %89 {offsets = [0, 0], sizes = [16, 32], strides = [1, 1]} : vector<32x32xbf16> to vector<16x32xbf16>
    %cst_42 = arith.constant dense<0.000000e+00> : vector<17x32xf32>
    %92 = tpu.matmul %90, %91, %cst_42 {dimension_numbers = #tpu.dot_dimension_numbers<[1], [0], [0], [1], [0, 0, 1, 1], [], []>} : vector<17x16xbf16>, vector<16x32xbf16>, vector<17x32xf32> -> vector<17x32xf32>
    %93 = arith.truncf %87 : vector<17x16xf32> to vector<17x16xbf16>
    %94 = vector.extract_strided_slice %89 {offsets = [16, 0], sizes = [16, 32], strides = [1, 1]} : vector<32x32xbf16> to vector<16x32xbf16>
    %cst_43 = arith.constant dense<0.000000e+00> : vector<17x32xf32>
    %95 = tpu.matmul %93, %94, %cst_43 {dimension_numbers = #tpu.dot_dimension_numbers<[1], [0], [0], [1], [0, 0, 1, 1], [], []>} : vector<17x16xbf16>, vector<16x32xbf16>, vector<17x32xf32> -> vector<17x32xf32>
    %96 = arith.addf %92, %95 : vector<17x32xf32>
    %c0_44 = arith.constant 0 : index
    %c0_45 = arith.constant 0 : index
    %c0_46 = arith.constant 0 : index
    %97 = vector.load %arg11[%c0_44, %c0_45, %c0_46] : memref<3x1x32xf32, #tpu.memory_space<vmem>>, vector<1x1x32xf32>
    %98 = vector.shape_cast %97 : vector<1x1x32xf32> to vector<1x32xf32>
    %99 = vector.broadcast %98 : vector<1x32xf32> to vector<17x32xf32>
    %100 = arith.addf %96, %99 : vector<17x32xf32>
    %101 = arith.addf %15, %100 : vector<17x32xf32>
    %c0_47 = arith.constant 0 : index
    %c0_48 = arith.constant 0 : index
    %c0_49 = arith.constant 0 : index
    %102 = vector.load %arg12[%c0_47, %c0_48, %c0_49] : memref<3x1x32xf32, #tpu.memory_space<vmem>>, vector<1x1x32xf32>
    %103 = vector.shape_cast %102 : vector<1x1x32xf32> to vector<1x32xf32>
    %c0_50 = arith.constant 0 : index
    %c0_51 = arith.constant 0 : index
    %c0_52 = arith.constant 0 : index
    %104 = vector.load %arg13[%c0_50, %c0_51, %c0_52] : memref<3x1x32xf32, #tpu.memory_space<vmem>>, vector<1x1x32xf32>
    %105 = vector.shape_cast %104 : vector<1x1x32xf32> to vector<1x32xf32>
    %cst_53 = arith.constant dense<0.000000e+00> : vector<17xf32>
    %106 = vector.multi_reduction <add>, %101, %cst_53 [1] : vector<17x32xf32> to vector<17xf32>
    %107 = vector.shape_cast %106 : vector<17xf32> to vector<17x1xf32>
    %cst_54 = arith.constant 3.200000e+01 : f32
    %108 = vector.broadcast %cst_54 : f32 to vector<17x1xf32>
    %109 = arith.divf %107, %108 : vector<17x1xf32>
    %110 = vector.broadcast %109 : vector<17x1xf32> to vector<17x32xf32>
    %111 = arith.subf %101, %110 : vector<17x32xf32>
    %112 = arith.mulf %111, %111 : vector<17x32xf32>
    %cst_55 = arith.constant dense<0.000000e+00> : vector<17xf32>
    %113 = vector.multi_reduction <add>, %112, %cst_55 [1] : vector<17x32xf32> to vector<17xf32>
    %114 = vector.shape_cast %113 : vector<17xf32> to vector<17x1xf32>
    %cst_56 = arith.constant 3.200000e+01 : f32
    %115 = vector.broadcast %cst_56 : f32 to vector<17x1xf32>
    %116 = arith.divf %114, %115 : vector<17x1xf32>
    %117 = vector.broadcast %109 : vector<17x1xf32> to vector<17x32xf32>
    %118 = arith.subf %101, %117 : vector<17x32xf32>
    %cst_57 = arith.constant 9.99999997E-7 : f32
    %119 = vector.broadcast %cst_57 : f32 to vector<17x1xf32>
    %120 = arith.addf %116, %119 : vector<17x1xf32>
    %121 = math.rsqrt %120 : vector<17x1xf32>
    %122 = vector.broadcast %121 : vector<17x1xf32> to vector<17x32xf32>
    %123 = arith.mulf %118, %122 : vector<17x32xf32>
    %124 = vector.broadcast %103 : vector<1x32xf32> to vector<17x32xf32>
    %125 = arith.mulf %123, %124 : vector<17x32xf32>
    %126 = vector.broadcast %105 : vector<1x32xf32> to vector<17x32xf32>
    %127 = arith.addf %125, %126 : vector<17x32xf32>
    %128 = arith.truncf %127 : vector<17x32xf32> to vector<17x32xbf16>
    %c0_58 = arith.constant 0 : index
    %c0_59 = arith.constant 0 : index
    %c0_60 = arith.constant 0 : index
    %129 = vector.load %arg14[%c0_58, %c0_59, %c0_60] : memref<3x32x128xbf16, #tpu.memory_space<vmem>>, vector<1x32x128xbf16>
    %130 = vector.shape_cast %129 : vector<1x32x128xbf16> to vector<32x128xbf16>
    %cst_61 = arith.constant dense<0.000000e+00> : vector<17x128xf32>
    %131 = tpu.matmul %128, %130, %cst_61 {dimension_numbers = #tpu.dot_dimension_numbers<[1], [0], [0], [1], [0, 0, 1, 1], [], []>} : vector<17x32xbf16>, vector<32x128xbf16>, vector<17x128xf32> -> vector<17x128xf32>
    %c0_62 = arith.constant 0 : index
    %c0_63 = arith.constant 0 : index
    %c0_64 = arith.constant 0 : index
    %132 = vector.load %arg15[%c0_62, %c0_63, %c0_64] : memref<3x1x128xf32, #tpu.memory_space<vmem>>, vector<1x1x128xf32>
    %133 = vector.shape_cast %132 : vector<1x1x128xf32> to vector<1x128xf32>
    %134 = vector.broadcast %133 : vector<1x128xf32> to vector<17x128xf32>
    %135 = arith.addf %131, %134 : vector<17x128xf32>
    %136 = arith.mulf %135, %135 : vector<17x128xf32>
    %137 = arith.mulf %135, %136 : vector<17x128xf32>
    %cst_65 = arith.constant 4.471500e-02 : f32
    %138 = vector.broadcast %cst_65 : f32 to vector<17x128xf32>
    %139 = arith.mulf %138, %137 : vector<17x128xf32>
    %140 = arith.addf %135, %139 : vector<17x128xf32>
    %cst_66 = arith.constant 0.797884583 : f32
    %141 = vector.broadcast %cst_66 : f32 to vector<17x128xf32>
    %142 = arith.mulf %141, %140 : vector<17x128xf32>
    %143 = math.tanh %142 : vector<17x128xf32>
    %cst_67 = arith.constant 1.000000e+00 : f32
    %144 = vector.broadcast %cst_67 : f32 to vector<17x128xf32>
    %145 = arith.addf %144, %143 : vector<17x128xf32>
    %cst_68 = arith.constant 5.000000e-01 : f32
    %146 = vector.broadcast %cst_68 : f32 to vector<17x128xf32>
    %147 = arith.mulf %146, %145 : vector<17x128xf32>
    %148 = arith.mulf %135, %147 : vector<17x128xf32>
    %149 = arith.truncf %148 : vector<17x128xf32> to vector<17x128xbf16>
    %c0_69 = arith.constant 0 : index
    %c0_70 = arith.constant 0 : index
    %c0_71 = arith.constant 0 : index
    %150 = vector.load %arg16[%c0_69, %c0_70, %c0_71] : memref<3x128x32xbf16, #tpu.memory_space<vmem>>, vector<1x128x32xbf16>
    %151 = vector.shape_cast %150 : vector<1x128x32xbf16> to vector<128x32xbf16>
    %cst_72 = arith.constant dense<0.000000e+00> : vector<17x32xf32>
    %152 = tpu.matmul %149, %151, %cst_72 {dimension_numbers = #tpu.dot_dimension_numbers<[1], [0], [0], [1], [0, 0, 1, 1], [], []>} : vector<17x128xbf16>, vector<128x32xbf16>, vector<17x32xf32> -> vector<17x32xf32>
    %c0_73 = arith.constant 0 : index
    %c0_74 = arith.constant 0 : index
    %c0_75 = arith.constant 0 : index
    %153 = vector.load %arg17[%c0_73, %c0_74, %c0_75] : memref<3x1x32xf32, #tpu.memory_space<vmem>>, vector<1x1x32xf32>
    %154 = vector.shape_cast %153 : vector<1x1x32xf32> to vector<1x32xf32>
    %155 = vector.broadcast %154 : vector<1x32xf32> to vector<17x32xf32>
    %156 = arith.addf %152, %155 : vector<17x32xf32>
    %157 = arith.addf %101, %156 : vector<17x32xf32>
    %158 = vector.extract_strided_slice %157 {offsets = [0, 0], sizes = [16, 32], strides = [1, 1]} : vector<17x32xf32> to vector<16x32xf32>
    %c0_76 = arith.constant 0 : index
    %c0_77 = arith.constant 0 : index
    %c0_78 = arith.constant 0 : index
    %159 = vector.load %arg33[%c0_76, %c0_77, %c0_78] : memref<2x16x256xf32, #tpu.memory_space<vmem>>, vector<1x16x32xf32>
    %160 = vector.shape_cast %159 : vector<1x16x32xf32> to vector<16x32xf32>
    %161 = vector.shape_cast %158 : vector<16x32xf32> to vector<1x16x32xf32>
    tpu.vector_store %arg33[%c0_76, %c0_77, %c0_78], %161 {strides = array<i32>} : memref<2x16x256xf32, #tpu.memory_space<vmem>>, vector<1x16x32xf32>,
    %c1 = arith.constant 1 : index
    %c0_79 = arith.constant 0 : index
    %c0_80 = arith.constant 0 : index
    %162 = vector.load %arg6[%c1, %c0_79, %c0_80] : memref<3x1x32xf32, #tpu.memory_space<vmem>>, vector<1x1x32xf32>
    %163 = vector.shape_cast %162 : vector<1x1x32xf32> to vector<1x32xf32>
    %c1_81 = arith.constant 1 : index
    %c0_82 = arith.constant 0 : index
    %c0_83 = arith.constant 0 : index
    %164 = vector.load %arg7[%c1_81, %c0_82, %c0_83] : memref<3x1x32xf32, #tpu.memory_space<vmem>>, vector<1x1x32xf32>
    %165 = vector.shape_cast %164 : vector<1x1x32xf32> to vector<1x32xf32>
    %cst_84 = arith.constant dense<0.000000e+00> : vector<17xf32>
    %166 = vector.multi_reduction <add>, %157, %cst_84 [1] : vector<17x32xf32> to vector<17xf32>
    %167 = vector.shape_cast %166 : vector<17xf32> to vector<17x1xf32>
    %cst_85 = arith.constant 3.200000e+01 : f32
    %168 = vector.broadcast %cst_85 : f32 to vector<17x1xf32>
    %169 = arith.divf %167, %168 : vector<17x1xf32>
    %170 = vector.broadcast %169 : vector<17x1xf32> to vector<17x32xf32>
    %171 = arith.subf %157, %170 : vector<17x32xf32>
    %172 = arith.mulf %171, %171 : vector<17x32xf32>
    %cst_86 = arith.constant dense<0.000000e+00> : vector<17xf32>
    %173 = vector.multi_reduction <add>, %172, %cst_86 [1] : vector<17x32xf32> to vector<17xf32>
    %174 = vector.shape_cast %173 : vector<17xf32> to vector<17x1xf32>
    %cst_87 = arith.constant 3.200000e+01 : f32
    %175 = vector.broadcast %cst_87 : f32 to vector<17x1xf32>
    %176 = arith.divf %174, %175 : vector<17x1xf32>
    %177 = vector.broadcast %169 : vector<17x1xf32> to vector<17x32xf32>
    %178 = arith.subf %157, %177 : vector<17x32xf32>
    %cst_88 = arith.constant 9.99999997E-7 : f32
    %179 = vector.broadcast %cst_88 : f32 to vector<17x1xf32>
    %180 = arith.addf %176, %179 : vector<17x1xf32>
    %181 = math.rsqrt %180 : vector<17x1xf32>
    %182 = vector.broadcast %181 : vector<17x1xf32> to vector<17x32xf32>
    %183 = arith.mulf %178, %182 : vector<17x32xf32>
    %184 = vector.broadcast %163 : vector<1x32xf32> to vector<17x32xf32>
    %185 = arith.mulf %183, %184 : vector<17x32xf32>
    %186 = vector.broadcast %165 : vector<1x32xf32> to vector<17x32xf32>
    %187 = arith.addf %185, %186 : vector<17x32xf32>
    %188 = arith.truncf %187 : vector<17x32xf32> to vector<17x32xbf16>
    %c1_89 = arith.constant 1 : index
    %c0_90 = arith.constant 0 : index
    %c0_91 = arith.constant 0 : index
    %189 = vector.load %arg8[%c1_89, %c0_90, %c0_91] : memref<3x32x96xbf16, #tpu.memory_space<vmem>>, vector<1x32x96xbf16>
    %190 = vector.shape_cast %189 : vector<1x32x96xbf16> to vector<32x96xbf16>
    %cst_92 = arith.constant dense<0.000000e+00> : vector<17x96xf32>
    %191 = tpu.matmul %188, %190, %cst_92 {dimension_numbers = #tpu.dot_dimension_numbers<[1], [0], [0], [1], [0, 0, 1, 1], [], []>} : vector<17x32xbf16>, vector<32x96xbf16>, vector<17x96xf32> -> vector<17x96xf32>
    %c1_93 = arith.constant 1 : index
    %c0_94 = arith.constant 0 : index
    %c0_95 = arith.constant 0 : index
    %192 = vector.load %arg9[%c1_93, %c0_94, %c0_95] : memref<3x1x96xf32, #tpu.memory_space<vmem>>, vector<1x1x96xf32>
    %193 = vector.shape_cast %192 : vector<1x1x96xf32> to vector<1x96xf32>
    %194 = vector.broadcast %193 : vector<1x96xf32> to vector<17x96xf32>
    %195 = arith.addf %191, %194 : vector<17x96xf32>
    %196 = vector.extract_strided_slice %195 {offsets = [0, 0], sizes = [17, 16], strides = [1, 1]} : vector<17x96xf32> to vector<17x16xf32>
    %197 = arith.truncf %196 : vector<17x16xf32> to vector<17x16xbf16>
    %198 = vector.extract_strided_slice %195 {offsets = [0, 32], sizes = [17, 16], strides = [1, 1]} : vector<17x96xf32> to vector<17x16xf32>
    %199 = arith.truncf %198 : vector<17x16xf32> to vector<17x16xbf16>
    %200 = vector.extract_strided_slice %195 {offsets = [0, 64], sizes = [17, 16], strides = [1, 1]} : vector<17x96xf32> to vector<17x16xf32>
    %201 = arith.truncf %200 : vector<17x16xf32> to vector<17x16xbf16>
    %cst_96 = arith.constant dense<0.000000e+00> : vector<17x17xf32>
    %202 = tpu.matmul %197, %199, %cst_96 {dimension_numbers = #tpu.dot_dimension_numbers<[1], [1], [0], [0], [0, 0, 1, 0], [], []>} : vector<17x16xbf16>, vector<17x16xbf16>, vector<17x17xf32> -> vector<17x17xf32>
    %cst_97 = arith.constant dense<0xFF800000> : vector<17xf32>
    %203 = vector.multi_reduction <maximumf>, %202, %cst_97 [1] : vector<17x17xf32> to vector<17xf32>
    %204 = vector.shape_cast %203 : vector<17xf32> to vector<17x1xf32>
    %205 = vector.broadcast %204 : vector<17x1xf32> to vector<17x17xf32>
    %206 = arith.subf %202, %205 : vector<17x17xf32>
    %207 = math.exp %206 : vector<17x17xf32>
    %cst_98 = arith.constant dense<0.000000e+00> : vector<17xf32>
    %208 = vector.multi_reduction <add>, %207, %cst_98 [1] : vector<17x17xf32> to vector<17xf32>
    %209 = vector.shape_cast %208 : vector<17xf32> to vector<17x1xf32>
    %210 = tpu.reciprocal %209 {approx = true} : vector<17x1xf32> -> vector<17x1xf32>
    %211 = vector.broadcast %210 : vector<17x1xf32> to vector<17x17xf32>
    %212 = arith.mulf %207, %211 : vector<17x17xf32>
    %213 = arith.truncf %212 : vector<17x17xf32> to vector<17x17xbf16>
    %cst_99 = arith.constant dense<0.000000e+00> : vector<17x16xf32>
    %214 = tpu.matmul %213, %201, %cst_99 {dimension_numbers = #tpu.dot_dimension_numbers<[1], [0], [0], [1], [0, 0, 1, 1], [], []>} : vector<17x17xbf16>, vector<17x16xbf16>, vector<17x16xf32> -> vector<17x16xf32>
    %215 = vector.extract_strided_slice %195 {offsets = [0, 16], sizes = [17, 16], strides = [1, 1]} : vector<17x96xf32> to vector<17x16xf32>
    %216 = arith.truncf %215 : vector<17x16xf32> to vector<17x16xbf16>
    %217 = vector.extract_strided_slice %195 {offsets = [0, 48], sizes = [17, 16], strides = [1, 1]} : vector<17x96xf32> to vector<17x16xf32>
    %218 = arith.truncf %217 : vector<17x16xf32> to vector<17x16xbf16>
    %219 = vector.extract_strided_slice %195 {offsets = [0, 80], sizes = [17, 16], strides = [1, 1]} : vector<17x96xf32> to vector<17x16xf32>
    %220 = arith.truncf %219 : vector<17x16xf32> to vector<17x16xbf16>
    %cst_100 = arith.constant dense<0.000000e+00> : vector<17x17xf32>
    %221 = tpu.matmul %216, %218, %cst_100 {dimension_numbers = #tpu.dot_dimension_numbers<[1], [1], [0], [0], [0, 0, 1, 0], [], []>} : vector<17x16xbf16>, vector<17x16xbf16>, vector<17x17xf32> -> vector<17x17xf32>
    %cst_101 = arith.constant dense<0xFF800000> : vector<17xf32>
    %222 = vector.multi_reduction <maximumf>, %221, %cst_101 [1] : vector<17x17xf32> to vector<17xf32>
    %223 = vector.shape_cast %222 : vector<17xf32> to vector<17x1xf32>
    %224 = vector.broadcast %223 : vector<17x1xf32> to vector<17x17xf32>
    %225 = arith.subf %221, %224 : vector<17x17xf32>
    %226 = math.exp %225 : vector<17x17xf32>
    %cst_102 = arith.constant dense<0.000000e+00> : vector<17xf32>
    %227 = vector.multi_reduction <add>, %226, %cst_102 [1] : vector<17x17xf32> to vector<17xf32>
    %228 = vector.shape_cast %227 : vector<17xf32> to vector<17x1xf32>
    %229 = tpu.reciprocal %228 {approx = true} : vector<17x1xf32> -> vector<17x1xf32>
    %230 = vector.broadcast %229 : vector<17x1xf32> to vector<17x17xf32>
    %231 = arith.mulf %226, %230 : vector<17x17xf32>
    %232 = arith.truncf %231 : vector<17x17xf32> to vector<17x17xbf16>
    %cst_103 = arith.constant dense<0.000000e+00> : vector<17x16xf32>
    %233 = tpu.matmul %232, %220, %cst_103 {dimension_numbers = #tpu.dot_dimension_numbers<[1], [0], [0], [1], [0, 0, 1, 1], [], []>} : vector<17x17xbf16>, vector<17x16xbf16>, vector<17x16xf32> -> vector<17x16xf32>
    %c1_104 = arith.constant 1 : index
    %c0_105 = arith.constant 0 : index
    %c0_106 = arith.constant 0 : index
    %234 = vector.load %arg10[%c1_104, %c0_105, %c0_106] : memref<3x32x32xbf16, #tpu.memory_space<vmem>>, vector<1x32x32xbf16>
    %235 = vector.shape_cast %234 : vector<1x32x32xbf16> to vector<32x32xbf16>
    %236 = arith.truncf %214 : vector<17x16xf32> to vector<17x16xbf16>
    %237 = vector.extract_strided_slice %235 {offsets = [0, 0], sizes = [16, 32], strides = [1, 1]} : vector<32x32xbf16> to vector<16x32xbf16>
    %cst_107 = arith.constant dense<0.000000e+00> : vector<17x32xf32>
    %238 = tpu.matmul %236, %237, %cst_107 {dimension_numbers = #tpu.dot_dimension_numbers<[1], [0], [0], [1], [0, 0, 1, 1], [], []>} : vector<17x16xbf16>, vector<16x32xbf16>, vector<17x32xf32> -> vector<17x32xf32>
    %239 = arith.truncf %233 : vector<17x16xf32> to vector<17x16xbf16>
    %240 = vector.extract_strided_slice %235 {offsets = [16, 0], sizes = [16, 32], strides = [1, 1]} : vector<32x32xbf16> to vector<16x32xbf16>
    %cst_108 = arith.constant dense<0.000000e+00> : vector<17x32xf32>
    %241 = tpu.matmul %239, %240, %cst_108 {dimension_numbers = #tpu.dot_dimension_numbers<[1], [0], [0], [1], [0, 0, 1, 1], [], []>} : vector<17x16xbf16>, vector<16x32xbf16>, vector<17x32xf32> -> vector<17x32xf32>
    %242 = arith.addf %238, %241 : vector<17x32xf32>
    %c1_109 = arith.constant 1 : index
    %c0_110 = arith.constant 0 : index
    %c0_111 = arith.constant 0 : index
    %243 = vector.load %arg11[%c1_109, %c0_110, %c0_111] : memref<3x1x32xf32, #tpu.memory_space<vmem>>, vector<1x1x32xf32>
    %244 = vector.shape_cast %243 : vector<1x1x32xf32> to vector<1x32xf32>
    %245 = vector.broadcast %244 : vector<1x32xf32> to vector<17x32xf32>
    %246 = arith.addf %242, %245 : vector<17x32xf32>
    %247 = arith.addf %157, %246 : vector<17x32xf32>
    %c1_112 = arith.constant 1 : index
    %c0_113 = arith.constant 0 : index
    %c0_114 = arith.constant 0 : index
    %248 = vector.load %arg12[%c1_112, %c0_113, %c0_114] : memref<3x1x32xf32, #tpu.memory_space<vmem>>, vector<1x1x32xf32>
    %249 = vector.shape_cast %248 : vector<1x1x32xf32> to vector<1x32xf32>
    %c1_115 = arith.constant 1 : index
    %c0_116 = arith.constant 0 : index
    %c0_117 = arith.constant 0 : index
    %250 = vector.load %arg13[%c1_115, %c0_116, %c0_117] : memref<3x1x32xf32, #tpu.memory_space<vmem>>, vector<1x1x32xf32>
    %251 = vector.shape_cast %250 : vector<1x1x32xf32> to vector<1x32xf32>
    %cst_118 = arith.constant dense<0.000000e+00> : vector<17xf32>
    %252 = vector.multi_reduction <add>, %247, %cst_118 [1] : vector<17x32xf32> to vector<17xf32>
    %253 = vector.shape_cast %252 : vector<17xf32> to vector<17x1xf32>
    %cst_119 = arith.constant 3.200000e+01 : f32
    %254 = vector.broadcast %cst_119 : f32 to vector<17x1xf32>
    %255 = arith.divf %253, %254 : vector<17x1xf32>
    %256 = vector.broadcast %255 : vector<17x1xf32> to vector<17x32xf32>
    %257 = arith.subf %247, %256 : vector<17x32xf32>
    %258 = arith.mulf %257, %257 : vector<17x32xf32>
    %cst_120 = arith.constant dense<0.000000e+00> : vector<17xf32>
    %259 = vector.multi_reduction <add>, %258, %cst_120 [1] : vector<17x32xf32> to vector<17xf32>
    %260 = vector.shape_cast %259 : vector<17xf32> to vector<17x1xf32>
    %cst_121 = arith.constant 3.200000e+01 : f32
    %261 = vector.broadcast %cst_121 : f32 to vector<17x1xf32>
    %262 = arith.divf %260, %261 : vector<17x1xf32>
    %263 = vector.broadcast %255 : vector<17x1xf32> to vector<17x32xf32>
    %264 = arith.subf %247, %263 : vector<17x32xf32>
    %cst_122 = arith.constant 9.99999997E-7 : f32
    %265 = vector.broadcast %cst_122 : f32 to vector<17x1xf32>
    %266 = arith.addf %262, %265 : vector<17x1xf32>
    %267 = math.rsqrt %266 : vector<17x1xf32>
    %268 = vector.broadcast %267 : vector<17x1xf32> to vector<17x32xf32>
    %269 = arith.mulf %264, %268 : vector<17x32xf32>
    %270 = vector.broadcast %249 : vector<1x32xf32> to vector<17x32xf32>
    %271 = arith.mulf %269, %270 : vector<17x32xf32>
    %272 = vector.broadcast %251 : vector<1x32xf32> to vector<17x32xf32>
    %273 = arith.addf %271, %272 : vector<17x32xf32>
    %274 = arith.truncf %273 : vector<17x32xf32> to vector<17x32xbf16>
    %c1_123 = arith.constant 1 : index
    %c0_124 = arith.constant 0 : index
    %c0_125 = arith.constant 0 : index
    %275 = vector.load %arg14[%c1_123, %c0_124, %c0_125] : memref<3x32x128xbf16, #tpu.memory_space<vmem>>, vector<1x32x128xbf16>
    %276 = vector.shape_cast %275 : vector<1x32x128xbf16> to vector<32x128xbf16>
    %cst_126 = arith.constant dense<0.000000e+00> : vector<17x128xf32>
    %277 = tpu.matmul %274, %276, %cst_126 {dimension_numbers = #tpu.dot_dimension_numbers<[1], [0], [0], [1], [0, 0, 1, 1], [], []>} : vector<17x32xbf16>, vector<32x128xbf16>, vector<17x128xf32> -> vector<17x128xf32>
    %c1_127 = arith.constant 1 : index
    %c0_128 = arith.constant 0 : index
    %c0_129 = arith.constant 0 : index
    %278 = vector.load %arg15[%c1_127, %c0_128, %c0_129] : memref<3x1x128xf32, #tpu.memory_space<vmem>>, vector<1x1x128xf32>
    %279 = vector.shape_cast %278 : vector<1x1x128xf32> to vector<1x128xf32>
    %280 = vector.broadcast %279 : vector<1x128xf32> to vector<17x128xf32>
    %281 = arith.addf %277, %280 : vector<17x128xf32>
    %282 = arith.mulf %281, %281 : vector<17x128xf32>
    %283 = arith.mulf %281, %282 : vector<17x128xf32>
    %cst_130 = arith.constant 4.471500e-02 : f32
    %284 = vector.broadcast %cst_130 : f32 to vector<17x128xf32>
    %285 = arith.mulf %284, %283 : vector<17x128xf32>
    %286 = arith.addf %281, %285 : vector<17x128xf32>
    %cst_131 = arith.constant 0.797884583 : f32
    %287 = vector.broadcast %cst_131 : f32 to vector<17x128xf32>
    %288 = arith.mulf %287, %286 : vector<17x128xf32>
    %289 = math.tanh %288 : vector<17x128xf32>
    %cst_132 = arith.constant 1.000000e+00 : f32
    %290 = vector.broadcast %cst_132 : f32 to vector<17x128xf32>
    %291 = arith.addf %290, %289 : vector<17x128xf32>
    %cst_133 = arith.constant 5.000000e-01 : f32
    %292 = vector.broadcast %cst_133 : f32 to vector<17x128xf32>
    %293 = arith.mulf %292, %291 : vector<17x128xf32>
    %294 = arith.mulf %281, %293 : vector<17x128xf32>
    %295 = arith.truncf %294 : vector<17x128xf32> to vector<17x128xbf16>
    %c1_134 = arith.constant 1 : index
    %c0_135 = arith.constant 0 : index
    %c0_136 = arith.constant 0 : index
    %296 = vector.load %arg16[%c1_134, %c0_135, %c0_136] : memref<3x128x32xbf16, #tpu.memory_space<vmem>>, vector<1x128x32xbf16>
    %297 = vector.shape_cast %296 : vector<1x128x32xbf16> to vector<128x32xbf16>
    %cst_137 = arith.constant dense<0.000000e+00> : vector<17x32xf32>
    %298 = tpu.matmul %295, %297, %cst_137 {dimension_numbers = #tpu.dot_dimension_numbers<[1], [0], [0], [1], [0, 0, 1, 1], [], []>} : vector<17x128xbf16>, vector<128x32xbf16>, vector<17x32xf32> -> vector<17x32xf32>
    %c1_138 = arith.constant 1 : index
    %c0_139 = arith.constant 0 : index
    %c0_140 = arith.constant 0 : index
    %299 = vector.load %arg17[%c1_138, %c0_139, %c0_140] : memref<3x1x32xf32, #tpu.memory_space<vmem>>, vector<1x1x32xf32>
    %300 = vector.shape_cast %299 : vector<1x1x32xf32> to vector<1x32xf32>
    %301 = vector.broadcast %300 : vector<1x32xf32> to vector<17x32xf32>
    %302 = arith.addf %298, %301 : vector<17x32xf32>
    %303 = arith.addf %247, %302 : vector<17x32xf32>
    %304 = vector.extract_strided_slice %303 {offsets = [0, 0], sizes = [16, 32], strides = [1, 1]} : vector<17x32xf32> to vector<16x32xf32>
    %c0_141 = arith.constant 0 : index
    %c0_142 = arith.constant 0 : index
    %c32 = arith.constant 32 : index
    %305 = vector.load %arg33[%c0_141, %c0_142, %c32] : memref<2x16x256xf32, #tpu.memory_space<vmem>>, vector<1x16x32xf32>
    %306 = vector.shape_cast %305 : vector<1x16x32xf32> to vector<16x32xf32>
    %307 = vector.shape_cast %304 : vector<16x32xf32> to vector<1x16x32xf32>
    tpu.vector_store %arg33[%c0_141, %c0_142, %c32], %307 {strides = array<i32>} : memref<2x16x256xf32, #tpu.memory_space<vmem>>, vector<1x16x32xf32>,
    %c2 = arith.constant 2 : index
    %c0_143 = arith.constant 0 : index
    %c0_144 = arith.constant 0 : index
    %308 = vector.load %arg6[%c2, %c0_143, %c0_144] : memref<3x1x32xf32, #tpu.memory_space<vmem>>, vector<1x1x32xf32>
    %309 = vector.shape_cast %308 : vector<1x1x32xf32> to vector<1x32xf32>
    %c2_145 = arith.constant 2 : index
    %c0_146 = arith.constant 0 : index
    %c0_147 = arith.constant 0 : index
    %310 = vector.load %arg7[%c2_145, %c0_146, %c0_147] : memref<3x1x32xf32, #tpu.memory_space<vmem>>, vector<1x1x32xf32>
    %311 = vector.shape_cast %310 : vector<1x1x32xf32> to vector<1x32xf32>
    %cst_148 = arith.constant dense<0.000000e+00> : vector<17xf32>
    %312 = vector.multi_reduction <add>, %303, %cst_148 [1] : vector<17x32xf32> to vector<17xf32>
    %313 = vector.shape_cast %312 : vector<17xf32> to vector<17x1xf32>
    %cst_149 = arith.constant 3.200000e+01 : f32
    %314 = vector.broadcast %cst_149 : f32 to vector<17x1xf32>
    %315 = arith.divf %313, %314 : vector<17x1xf32>
    %316 = vector.broadcast %315 : vector<17x1xf32> to vector<17x32xf32>
    %317 = arith.subf %303, %316 : vector<17x32xf32>
    %318 = arith.mulf %317, %317 : vector<17x32xf32>
    %cst_150 = arith.constant dense<0.000000e+00> : vector<17xf32>
    %319 = vector.multi_reduction <add>, %318, %cst_150 [1] : vector<17x32xf32> to vector<17xf32>
    %320 = vector.shape_cast %319 : vector<17xf32> to vector<17x1xf32>
    %cst_151 = arith.constant 3.200000e+01 : f32
    %321 = vector.broadcast %cst_151 : f32 to vector<17x1xf32>
    %322 = arith.divf %320, %321 : vector<17x1xf32>
    %323 = vector.broadcast %315 : vector<17x1xf32> to vector<17x32xf32>
    %324 = arith.subf %303, %323 : vector<17x32xf32>
    %cst_152 = arith.constant 9.99999997E-7 : f32
    %325 = vector.broadcast %cst_152 : f32 to vector<17x1xf32>
    %326 = arith.addf %322, %325 : vector<17x1xf32>
    %327 = math.rsqrt %326 : vector<17x1xf32>
    %328 = vector.broadcast %327 : vector<17x1xf32> to vector<17x32xf32>
    %329 = arith.mulf %324, %328 : vector<17x32xf32>
    %330 = vector.broadcast %309 : vector<1x32xf32> to vector<17x32xf32>
    %331 = arith.mulf %329, %330 : vector<17x32xf32>
    %332 = vector.broadcast %311 : vector<1x32xf32> to vector<17x32xf32>
    %333 = arith.addf %331, %332 : vector<17x32xf32>
    %334 = arith.truncf %333 : vector<17x32xf32> to vector<17x32xbf16>
    %c2_153 = arith.constant 2 : index
    %c0_154 = arith.constant 0 : index
    %c0_155 = arith.constant 0 : index
    %335 = vector.load %arg8[%c2_153, %c0_154, %c0_155] : memref<3x32x96xbf16, #tpu.memory_space<vmem>>, vector<1x32x96xbf16>
    %336 = vector.shape_cast %335 : vector<1x32x96xbf16> to vector<32x96xbf16>
    %cst_156 = arith.constant dense<0.000000e+00> : vector<17x96xf32>
    %337 = tpu.matmul %334, %336, %cst_156 {dimension_numbers = #tpu.dot_dimension_numbers<[1], [0], [0], [1], [0, 0, 1, 1], [], []>} : vector<17x32xbf16>, vector<32x96xbf16>, vector<17x96xf32> -> vector<17x96xf32>
    %c2_157 = arith.constant 2 : index
    %c0_158 = arith.constant 0 : index
    %c0_159 = arith.constant 0 : index
    %338 = vector.load %arg9[%c2_157, %c0_158, %c0_159] : memref<3x1x96xf32, #tpu.memory_space<vmem>>, vector<1x1x96xf32>
    %339 = vector.shape_cast %338 : vector<1x1x96xf32> to vector<1x96xf32>
    %340 = vector.broadcast %339 : vector<1x96xf32> to vector<17x96xf32>
    %341 = arith.addf %337, %340 : vector<17x96xf32>
    %342 = vector.extract_strided_slice %341 {offsets = [0, 0], sizes = [17, 16], strides = [1, 1]} : vector<17x96xf32> to vector<17x16xf32>
    %343 = arith.truncf %342 : vector<17x16xf32> to vector<17x16xbf16>
    %344 = vector.extract_strided_slice %341 {offsets = [0, 32], sizes = [17, 16], strides = [1, 1]} : vector<17x96xf32> to vector<17x16xf32>
    %345 = arith.truncf %344 : vector<17x16xf32> to vector<17x16xbf16>
    %346 = vector.extract_strided_slice %341 {offsets = [0, 64], sizes = [17, 16], strides = [1, 1]} : vector<17x96xf32> to vector<17x16xf32>
    %347 = arith.truncf %346 : vector<17x16xf32> to vector<17x16xbf16>
    %cst_160 = arith.constant dense<0.000000e+00> : vector<17x17xf32>
    %348 = tpu.matmul %343, %345, %cst_160 {dimension_numbers = #tpu.dot_dimension_numbers<[1], [1], [0], [0], [0, 0, 1, 0], [], []>} : vector<17x16xbf16>, vector<17x16xbf16>, vector<17x17xf32> -> vector<17x17xf32>
    %cst_161 = arith.constant dense<0xFF800000> : vector<17xf32>
    %349 = vector.multi_reduction <maximumf>, %348, %cst_161 [1] : vector<17x17xf32> to vector<17xf32>
    %350 = vector.shape_cast %349 : vector<17xf32> to vector<17x1xf32>
    %351 = vector.broadcast %350 : vector<17x1xf32> to vector<17x17xf32>
    %352 = arith.subf %348, %351 : vector<17x17xf32>
    %353 = math.exp %352 : vector<17x17xf32>
    %cst_162 = arith.constant dense<0.000000e+00> : vector<17xf32>
    %354 = vector.multi_reduction <add>, %353, %cst_162 [1] : vector<17x17xf32> to vector<17xf32>
    %355 = vector.shape_cast %354 : vector<17xf32> to vector<17x1xf32>
    %356 = tpu.reciprocal %355 {approx = true} : vector<17x1xf32> -> vector<17x1xf32>
    %357 = vector.broadcast %356 : vector<17x1xf32> to vector<17x17xf32>
    %358 = arith.mulf %353, %357 : vector<17x17xf32>
    %359 = arith.truncf %358 : vector<17x17xf32> to vector<17x17xbf16>
    %cst_163 = arith.constant dense<0.000000e+00> : vector<17x16xf32>
    %360 = tpu.matmul %359, %347, %cst_163 {dimension_numbers = #tpu.dot_dimension_numbers<[1], [0], [0], [1], [0, 0, 1, 1], [], []>} : vector<17x17xbf16>, vector<17x16xbf16>, vector<17x16xf32> -> vector<17x16xf32>
    %361 = vector.extract_strided_slice %341 {offsets = [0, 16], sizes = [17, 16], strides = [1, 1]} : vector<17x96xf32> to vector<17x16xf32>
    %362 = arith.truncf %361 : vector<17x16xf32> to vector<17x16xbf16>
    %363 = vector.extract_strided_slice %341 {offsets = [0, 48], sizes = [17, 16], strides = [1, 1]} : vector<17x96xf32> to vector<17x16xf32>
    %364 = arith.truncf %363 : vector<17x16xf32> to vector<17x16xbf16>
    %365 = vector.extract_strided_slice %341 {offsets = [0, 80], sizes = [17, 16], strides = [1, 1]} : vector<17x96xf32> to vector<17x16xf32>
    %366 = arith.truncf %365 : vector<17x16xf32> to vector<17x16xbf16>
    %cst_164 = arith.constant dense<0.000000e+00> : vector<17x17xf32>
    %367 = tpu.matmul %362, %364, %cst_164 {dimension_numbers = #tpu.dot_dimension_numbers<[1], [1], [0], [0], [0, 0, 1, 0], [], []>} : vector<17x16xbf16>, vector<17x16xbf16>, vector<17x17xf32> -> vector<17x17xf32>
    %cst_165 = arith.constant dense<0xFF800000> : vector<17xf32>
    %368 = vector.multi_reduction <maximumf>, %367, %cst_165 [1] : vector<17x17xf32> to vector<17xf32>
    %369 = vector.shape_cast %368 : vector<17xf32> to vector<17x1xf32>
    %370 = vector.broadcast %369 : vector<17x1xf32> to vector<17x17xf32>
    %371 = arith.subf %367, %370 : vector<17x17xf32>
    %372 = math.exp %371 : vector<17x17xf32>
    %cst_166 = arith.constant dense<0.000000e+00> : vector<17xf32>
    %373 = vector.multi_reduction <add>, %372, %cst_166 [1] : vector<17x17xf32> to vector<17xf32>
    %374 = vector.shape_cast %373 : vector<17xf32> to vector<17x1xf32>
    %375 = tpu.reciprocal %374 {approx = true} : vector<17x1xf32> -> vector<17x1xf32>
    %376 = vector.broadcast %375 : vector<17x1xf32> to vector<17x17xf32>
    %377 = arith.mulf %372, %376 : vector<17x17xf32>
    %378 = arith.truncf %377 : vector<17x17xf32> to vector<17x17xbf16>
    %cst_167 = arith.constant dense<0.000000e+00> : vector<17x16xf32>
    %379 = tpu.matmul %378, %366, %cst_167 {dimension_numbers = #tpu.dot_dimension_numbers<[1], [0], [0], [1], [0, 0, 1, 1], [], []>} : vector<17x17xbf16>, vector<17x16xbf16>, vector<17x16xf32> -> vector<17x16xf32>
    %c2_168 = arith.constant 2 : index
    %c0_169 = arith.constant 0 : index
    %c0_170 = arith.constant 0 : index
    %380 = vector.load %arg10[%c2_168, %c0_169, %c0_170] : memref<3x32x32xbf16, #tpu.memory_space<vmem>>, vector<1x32x32xbf16>
    %381 = vector.shape_cast %380 : vector<1x32x32xbf16> to vector<32x32xbf16>
    %382 = arith.truncf %360 : vector<17x16xf32> to vector<17x16xbf16>
    %383 = vector.extract_strided_slice %381 {offsets = [0, 0], sizes = [16, 32], strides = [1, 1]} : vector<32x32xbf16> to vector<16x32xbf16>
    %cst_171 = arith.constant dense<0.000000e+00> : vector<17x32xf32>
    %384 = tpu.matmul %382, %383, %cst_171 {dimension_numbers = #tpu.dot_dimension_numbers<[1], [0], [0], [1], [0, 0, 1, 1], [], []>} : vector<17x16xbf16>, vector<16x32xbf16>, vector<17x32xf32> -> vector<17x32xf32>
    %385 = arith.truncf %379 : vector<17x16xf32> to vector<17x16xbf16>
    %386 = vector.extract_strided_slice %381 {offsets = [16, 0], sizes = [16, 32], strides = [1, 1]} : vector<32x32xbf16> to vector<16x32xbf16>
    %cst_172 = arith.constant dense<0.000000e+00> : vector<17x32xf32>
    %387 = tpu.matmul %385, %386, %cst_172 {dimension_numbers = #tpu.dot_dimension_numbers<[1], [0], [0], [1], [0, 0, 1, 1], [], []>} : vector<17x16xbf16>, vector<16x32xbf16>, vector<17x32xf32> -> vector<17x32xf32>
    %388 = arith.addf %384, %387 : vector<17x32xf32>
    %c2_173 = arith.constant 2 : index
    %c0_174 = arith.constant 0 : index
    %c0_175 = arith.constant 0 : index
    %389 = vector.load %arg11[%c2_173, %c0_174, %c0_175] : memref<3x1x32xf32, #tpu.memory_space<vmem>>, vector<1x1x32xf32>
    %390 = vector.shape_cast %389 : vector<1x1x32xf32> to vector<1x32xf32>
    %391 = vector.broadcast %390 : vector<1x32xf32> to vector<17x32xf32>
    %392 = arith.addf %388, %391 : vector<17x32xf32>
    %393 = arith.addf %303, %392 : vector<17x32xf32>
    %c2_176 = arith.constant 2 : index
    %c0_177 = arith.constant 0 : index
    %c0_178 = arith.constant 0 : index
    %394 = vector.load %arg12[%c2_176, %c0_177, %c0_178] : memref<3x1x32xf32, #tpu.memory_space<vmem>>, vector<1x1x32xf32>
    %395 = vector.shape_cast %394 : vector<1x1x32xf32> to vector<1x32xf32>
    %c2_179 = arith.constant 2 : index
    %c0_180 = arith.constant 0 : index
    %c0_181 = arith.constant 0 : index
    %396 = vector.load %arg13[%c2_179, %c0_180, %c0_181] : memref<3x1x32xf32, #tpu.memory_space<vmem>>, vector<1x1x32xf32>
    %397 = vector.shape_cast %396 : vector<1x1x32xf32> to vector<1x32xf32>
    %cst_182 = arith.constant dense<0.000000e+00> : vector<17xf32>
    %398 = vector.multi_reduction <add>, %393, %cst_182 [1] : vector<17x32xf32> to vector<17xf32>
    %399 = vector.shape_cast %398 : vector<17xf32> to vector<17x1xf32>
    %cst_183 = arith.constant 3.200000e+01 : f32
    %400 = vector.broadcast %cst_183 : f32 to vector<17x1xf32>
    %401 = arith.divf %399, %400 : vector<17x1xf32>
    %402 = vector.broadcast %401 : vector<17x1xf32> to vector<17x32xf32>
    %403 = arith.subf %393, %402 : vector<17x32xf32>
    %404 = arith.mulf %403, %403 : vector<17x32xf32>
    %cst_184 = arith.constant dense<0.000000e+00> : vector<17xf32>
    %405 = vector.multi_reduction <add>, %404, %cst_184 [1] : vector<17x32xf32> to vector<17xf32>
    %406 = vector.shape_cast %405 : vector<17xf32> to vector<17x1xf32>
    %cst_185 = arith.constant 3.200000e+01 : f32
    %407 = vector.broadcast %cst_185 : f32 to vector<17x1xf32>
    %408 = arith.divf %406, %407 : vector<17x1xf32>
    %409 = vector.broadcast %401 : vector<17x1xf32> to vector<17x32xf32>
    %410 = arith.subf %393, %409 : vector<17x32xf32>
    %cst_186 = arith.constant 9.99999997E-7 : f32
    %411 = vector.broadcast %cst_186 : f32 to vector<17x1xf32>
    %412 = arith.addf %408, %411 : vector<17x1xf32>
    %413 = math.rsqrt %412 : vector<17x1xf32>
    %414 = vector.broadcast %413 : vector<17x1xf32> to vector<17x32xf32>
    %415 = arith.mulf %410, %414 : vector<17x32xf32>
    %416 = vector.broadcast %395 : vector<1x32xf32> to vector<17x32xf32>
    %417 = arith.mulf %415, %416 : vector<17x32xf32>
    %418 = vector.broadcast %397 : vector<1x32xf32> to vector<17x32xf32>
    %419 = arith.addf %417, %418 : vector<17x32xf32>
    %420 = arith.truncf %419 : vector<17x32xf32> to vector<17x32xbf16>
    %c2_187 = arith.constant 2 : index
    %c0_188 = arith.constant 0 : index
    %c0_189 = arith.constant 0 : index
    %421 = vector.load %arg14[%c2_187, %c0_188, %c0_189] : memref<3x32x128xbf16, #tpu.memory_space<vmem>>, vector<1x32x128xbf16>
    %422 = vector.shape_cast %421 : vector<1x32x128xbf16> to vector<32x128xbf16>
    %cst_190 = arith.constant dense<0.000000e+00> : vector<17x128xf32>
    %423 = tpu.matmul %420, %422, %cst_190 {dimension_numbers = #tpu.dot_dimension_numbers<[1], [0], [0], [1], [0, 0, 1, 1], [], []>} : vector<17x32xbf16>, vector<32x128xbf16>, vector<17x128xf32> -> vector<17x128xf32>
    %c2_191 = arith.constant 2 : index
    %c0_192 = arith.constant 0 : index
    %c0_193 = arith.constant 0 : index
    %424 = vector.load %arg15[%c2_191, %c0_192, %c0_193] : memref<3x1x128xf32, #tpu.memory_space<vmem>>, vector<1x1x128xf32>
    %425 = vector.shape_cast %424 : vector<1x1x128xf32> to vector<1x128xf32>
    %426 = vector.broadcast %425 : vector<1x128xf32> to vector<17x128xf32>
    %427 = arith.addf %423, %426 : vector<17x128xf32>
    %428 = arith.mulf %427, %427 : vector<17x128xf32>
    %429 = arith.mulf %427, %428 : vector<17x128xf32>
    %cst_194 = arith.constant 4.471500e-02 : f32
    %430 = vector.broadcast %cst_194 : f32 to vector<17x128xf32>
    %431 = arith.mulf %430, %429 : vector<17x128xf32>
    %432 = arith.addf %427, %431 : vector<17x128xf32>
    %cst_195 = arith.constant 0.797884583 : f32
    %433 = vector.broadcast %cst_195 : f32 to vector<17x128xf32>
    %434 = arith.mulf %433, %432 : vector<17x128xf32>
    %435 = math.tanh %434 : vector<17x128xf32>
    %cst_196 = arith.constant 1.000000e+00 : f32
    %436 = vector.broadcast %cst_196 : f32 to vector<17x128xf32>
    %437 = arith.addf %436, %435 : vector<17x128xf32>
    %cst_197 = arith.constant 5.000000e-01 : f32
    %438 = vector.broadcast %cst_197 : f32 to vector<17x128xf32>
    %439 = arith.mulf %438, %437 : vector<17x128xf32>
    %440 = arith.mulf %427, %439 : vector<17x128xf32>
    %441 = arith.truncf %440 : vector<17x128xf32> to vector<17x128xbf16>
    %c2_198 = arith.constant 2 : index
    %c0_199 = arith.constant 0 : index
    %c0_200 = arith.constant 0 : index
    %442 = vector.load %arg16[%c2_198, %c0_199, %c0_200] : memref<3x128x32xbf16, #tpu.memory_space<vmem>>, vector<1x128x32xbf16>
    %443 = vector.shape_cast %442 : vector<1x128x32xbf16> to vector<128x32xbf16>
    %cst_201 = arith.constant dense<0.000000e+00> : vector<17x32xf32>
    %444 = tpu.matmul %441, %443, %cst_201 {dimension_numbers = #tpu.dot_dimension_numbers<[1], [0], [0], [1], [0, 0, 1, 1], [], []>} : vector<17x128xbf16>, vector<128x32xbf16>, vector<17x32xf32> -> vector<17x32xf32>
    %c2_202 = arith.constant 2 : index
    %c0_203 = arith.constant 0 : index
    %c0_204 = arith.constant 0 : index
    %445 = vector.load %arg17[%c2_202, %c0_203, %c0_204] : memref<3x1x32xf32, #tpu.memory_space<vmem>>, vector<1x1x32xf32>
    %446 = vector.shape_cast %445 : vector<1x1x32xf32> to vector<1x32xf32>
    %447 = vector.broadcast %446 : vector<1x32xf32> to vector<17x32xf32>
    %448 = arith.addf %444, %447 : vector<17x32xf32>
    %449 = arith.addf %393, %448 : vector<17x32xf32>
    %450 = vector.extract_strided_slice %449 {offsets = [0, 0], sizes = [16, 32], strides = [1, 1]} : vector<17x32xf32> to vector<16x32xf32>
    %c0_205 = arith.constant 0 : index
    %c0_206 = arith.constant 0 : index
    %c64 = arith.constant 64 : index
    %451 = vector.load %arg33[%c0_205, %c0_206, %c64] : memref<2x16x256xf32, #tpu.memory_space<vmem>>, vector<1x16x32xf32>
    %452 = vector.shape_cast %451 : vector<1x16x32xf32> to vector<16x32xf32>
    %453 = vector.shape_cast %450 : vector<16x32xf32> to vector<1x16x32xf32>
    tpu.vector_store %arg33[%c0_205, %c0_206, %c64], %453 {strides = array<i32>} : memref<2x16x256xf32, #tpu.memory_space<vmem>>, vector<1x16x32xf32>,
    %454 = arith.truncf %304 : vector<16x32xf32> to vector<16x32xbf16>
    %c0_207 = arith.constant 0 : index
    %c0_208 = arith.constant 0 : index
    %455 = vector.load %arg18[%c0_207, %c0_208] : memref<64x32xbf16, #tpu.memory_space<vmem>>, vector<32x32xbf16>
    %cst_209 = arith.constant dense<0.000000e+00> : vector<16x32xf32>
    %456 = tpu.matmul %454, %455, %cst_209 {dimension_numbers = #tpu.dot_dimension_numbers<[1], [0], [0], [1], [0, 0, 1, 1], [], []>} : vector<16x32xbf16>, vector<32x32xbf16>, vector<16x32xf32> -> vector<16x32xf32>
    %457 = arith.truncf %450 : vector<16x32xf32> to vector<16x32xbf16>
    %c32_210 = arith.constant 32 : index
    %c0_211 = arith.constant 0 : index
    %458 = vector.load %arg18[%c32_210, %c0_211] : memref<64x32xbf16, #tpu.memory_space<vmem>>, vector<32x32xbf16>
    %cst_212 = arith.constant dense<0.000000e+00> : vector<16x32xf32>
    %459 = tpu.matmul %457, %458, %cst_212 {dimension_numbers = #tpu.dot_dimension_numbers<[1], [0], [0], [1], [0, 0, 1, 1], [], []>} : vector<16x32xbf16>, vector<32x32xbf16>, vector<16x32xf32> -> vector<16x32xf32>
    %460 = arith.addf %456, %459 : vector<16x32xf32>
    %c0_213 = arith.constant 0 : index
    %c0_214 = arith.constant 0 : index
    %461 = vector.load %arg19[%c0_213, %c0_214] : memref<1x32xf32, #tpu.memory_space<vmem>>, vector<1x32xf32>
    %462 = vector.broadcast %461 : vector<1x32xf32> to vector<16x32xf32>
    %463 = arith.addf %460, %462 : vector<16x32xf32>
    %c0_215 = arith.constant 0 : index
    %c0_216 = arith.constant 0 : index
    %464 = vector.load %arg20[%c0_215, %c0_216] : memref<16x32xf32, #tpu.memory_space<vmem>>, vector<16x32xf32>
    %465 = arith.addf %463, %464 : vector<16x32xf32>
    %c0_217 = arith.constant 0 : index
    %c0_218 = arith.constant 0 : index
    %c0_219 = arith.constant 0 : index
    %466 = vector.load %arg21[%c0_217, %c0_218, %c0_219] : memref<3x1x32xf32, #tpu.memory_space<vmem>>, vector<1x1x32xf32>
    %467 = vector.shape_cast %466 : vector<1x1x32xf32> to vector<1x32xf32>
    %c0_220 = arith.constant 0 : index
    %c0_221 = arith.constant 0 : index
    %c0_222 = arith.constant 0 : index
    %468 = vector.load %arg22[%c0_220, %c0_221, %c0_222] : memref<3x1x32xf32, #tpu.memory_space<vmem>>, vector<1x1x32xf32>
    %469 = vector.shape_cast %468 : vector<1x1x32xf32> to vector<1x32xf32>
    %cst_223 = arith.constant dense<0.000000e+00> : vector<16xf32>
    %470 = vector.multi_reduction <add>, %465, %cst_223 [1] : vector<16x32xf32> to vector<16xf32>
    %471 = vector.shape_cast %470 : vector<16xf32> to vector<16x1xf32>
    %cst_224 = arith.constant 3.200000e+01 : f32
    %472 = vector.broadcast %cst_224 : f32 to vector<16x1xf32>
    %473 = arith.divf %471, %472 : vector<16x1xf32>
    %474 = vector.broadcast %473 : vector<16x1xf32> to vector<16x32xf32>
    %475 = arith.subf %465, %474 : vector<16x32xf32>
    %476 = arith.mulf %475, %475 : vector<16x32xf32>
    %cst_225 = arith.constant dense<0.000000e+00> : vector<16xf32>
    %477 = vector.multi_reduction <add>, %476, %cst_225 [1] : vector<16x32xf32> to vector<16xf32>
    %478 = vector.shape_cast %477 : vector<16xf32> to vector<16x1xf32>
    %cst_226 = arith.constant 3.200000e+01 : f32
    %479 = vector.broadcast %cst_226 : f32 to vector<16x1xf32>
    %480 = arith.divf %478, %479 : vector<16x1xf32>
    %481 = vector.broadcast %473 : vector<16x1xf32> to vector<16x32xf32>
    %482 = arith.subf %465, %481 : vector<16x32xf32>
    %cst_227 = arith.constant 9.99999997E-7 : f32
    %483 = vector.broadcast %cst_227 : f32 to vector<16x1xf32>
    %484 = arith.addf %480, %483 : vector<16x1xf32>
    %485 = math.rsqrt %484 : vector<16x1xf32>
    %486 = vector.broadcast %485 : vector<16x1xf32> to vector<16x32xf32>
    %487 = arith.mulf %482, %486 : vector<16x32xf32>
    %488 = vector.broadcast %467 : vector<1x32xf32> to vector<16x32xf32>
    %489 = arith.mulf %487, %488 : vector<16x32xf32>
    %490 = vector.broadcast %469 : vector<1x32xf32> to vector<16x32xf32>
    %491 = arith.addf %489, %490 : vector<16x32xf32>
    %492 = arith.truncf %491 : vector<16x32xf32> to vector<16x32xbf16>
    %c0_228 = arith.constant 0 : index
    %c0_229 = arith.constant 0 : index
    %c0_230 = arith.constant 0 : index
    %493 = vector.load %arg23[%c0_228, %c0_229, %c0_230] : memref<3x32x96xbf16, #tpu.memory_space<vmem>>, vector<1x32x96xbf16>
    %494 = vector.shape_cast %493 : vector<1x32x96xbf16> to vector<32x96xbf16>
    %cst_231 = arith.constant dense<0.000000e+00> : vector<16x96xf32>
    %495 = tpu.matmul %492, %494, %cst_231 {dimension_numbers = #tpu.dot_dimension_numbers<[1], [0], [0], [1], [0, 0, 1, 1], [], []>} : vector<16x32xbf16>, vector<32x96xbf16>, vector<16x96xf32> -> vector<16x96xf32>
    %c0_232 = arith.constant 0 : index
    %c0_233 = arith.constant 0 : index
    %c0_234 = arith.constant 0 : index
    %496 = vector.load %arg24[%c0_232, %c0_233, %c0_234] : memref<3x1x96xf32, #tpu.memory_space<vmem>>, vector<1x1x96xf32>
    %497 = vector.shape_cast %496 : vector<1x1x96xf32> to vector<1x96xf32>
    %498 = vector.broadcast %497 : vector<1x96xf32> to vector<16x96xf32>
    %499 = arith.addf %495, %498 : vector<16x96xf32>
    %500 = vector.extract_strided_slice %499 {offsets = [0, 0], sizes = [16, 16], strides = [1, 1]} : vector<16x96xf32> to vector<16x16xf32>
    %501 = arith.truncf %500 : vector<16x16xf32> to vector<16x16xbf16>
    %502 = vector.extract_strided_slice %499 {offsets = [0, 32], sizes = [16, 16], strides = [1, 1]} : vector<16x96xf32> to vector<16x16xf32>
    %503 = arith.truncf %502 : vector<16x16xf32> to vector<16x16xbf16>
    %504 = vector.extract_strided_slice %499 {offsets = [0, 64], sizes = [16, 16], strides = [1, 1]} : vector<16x96xf32> to vector<16x16xf32>
    %505 = arith.truncf %504 : vector<16x16xf32> to vector<16x16xbf16>
    %cst_235 = arith.constant dense<0.000000e+00> : vector<16x16xf32>
    %506 = tpu.matmul %501, %503, %cst_235 {dimension_numbers = #tpu.dot_dimension_numbers<[1], [1], [0], [0], [0, 0, 1, 0], [], []>} : vector<16x16xbf16>, vector<16x16xbf16>, vector<16x16xf32> -> vector<16x16xf32>
    %cst_236 = arith.constant dense<0xFF800000> : vector<16xf32>
    %507 = vector.multi_reduction <maximumf>, %506, %cst_236 [1] : vector<16x16xf32> to vector<16xf32>
    %508 = vector.shape_cast %507 : vector<16xf32> to vector<16x1xf32>
    %509 = vector.broadcast %508 : vector<16x1xf32> to vector<16x16xf32>
    %510 = arith.subf %506, %509 : vector<16x16xf32>
    %511 = math.exp %510 : vector<16x16xf32>
    %cst_237 = arith.constant dense<0.000000e+00> : vector<16xf32>
    %512 = vector.multi_reduction <add>, %511, %cst_237 [1] : vector<16x16xf32> to vector<16xf32>
    %513 = vector.shape_cast %512 : vector<16xf32> to vector<16x1xf32>
    %514 = tpu.reciprocal %513 {approx = true} : vector<16x1xf32> -> vector<16x1xf32>
    %515 = vector.broadcast %514 : vector<16x1xf32> to vector<16x16xf32>
    %516 = arith.mulf %511, %515 : vector<16x16xf32>
    %517 = arith.truncf %516 : vector<16x16xf32> to vector<16x16xbf16>
    %cst_238 = arith.constant dense<0.000000e+00> : vector<16x16xf32>
    %518 = tpu.matmul %517, %505, %cst_238 {dimension_numbers = #tpu.dot_dimension_numbers<[1], [0], [0], [1], [0, 0, 1, 1], [], []>} : vector<16x16xbf16>, vector<16x16xbf16>, vector<16x16xf32> -> vector<16x16xf32>
    %519 = vector.extract_strided_slice %499 {offsets = [0, 16], sizes = [16, 16], strides = [1, 1]} : vector<16x96xf32> to vector<16x16xf32>
    %520 = arith.truncf %519 : vector<16x16xf32> to vector<16x16xbf16>
    %521 = vector.extract_strided_slice %499 {offsets = [0, 48], sizes = [16, 16], strides = [1, 1]} : vector<16x96xf32> to vector<16x16xf32>
    %522 = arith.truncf %521 : vector<16x16xf32> to vector<16x16xbf16>
    %523 = vector.extract_strided_slice %499 {offsets = [0, 80], sizes = [16, 16], strides = [1, 1]} : vector<16x96xf32> to vector<16x16xf32>
    %524 = arith.truncf %523 : vector<16x16xf32> to vector<16x16xbf16>
    %cst_239 = arith.constant dense<0.000000e+00> : vector<16x16xf32>
    %525 = tpu.matmul %520, %522, %cst_239 {dimension_numbers = #tpu.dot_dimension_numbers<[1], [1], [0], [0], [0, 0, 1, 0], [], []>} : vector<16x16xbf16>, vector<16x16xbf16>, vector<16x16xf32> -> vector<16x16xf32>
    %cst_240 = arith.constant dense<0xFF800000> : vector<16xf32>
    %526 = vector.multi_reduction <maximumf>, %525, %cst_240 [1] : vector<16x16xf32> to vector<16xf32>
    %527 = vector.shape_cast %526 : vector<16xf32> to vector<16x1xf32>
    %528 = vector.broadcast %527 : vector<16x1xf32> to vector<16x16xf32>
    %529 = arith.subf %525, %528 : vector<16x16xf32>
    %530 = math.exp %529 : vector<16x16xf32>
    %cst_241 = arith.constant dense<0.000000e+00> : vector<16xf32>
    %531 = vector.multi_reduction <add>, %530, %cst_241 [1] : vector<16x16xf32> to vector<16xf32>
    %532 = vector.shape_cast %531 : vector<16xf32> to vector<16x1xf32>
    %533 = tpu.reciprocal %532 {approx = true} : vector<16x1xf32> -> vector<16x1xf32>
    %534 = vector.broadcast %533 : vector<16x1xf32> to vector<16x16xf32>
    %535 = arith.mulf %530, %534 : vector<16x16xf32>
    %536 = arith.truncf %535 : vector<16x16xf32> to vector<16x16xbf16>
    %cst_242 = arith.constant dense<0.000000e+00> : vector<16x16xf32>
    %537 = tpu.matmul %536, %524, %cst_242 {dimension_numbers = #tpu.dot_dimension_numbers<[1], [0], [0], [1], [0, 0, 1, 1], [], []>} : vector<16x16xbf16>, vector<16x16xbf16>, vector<16x16xf32> -> vector<16x16xf32>
    %c0_243 = arith.constant 0 : index
    %c0_244 = arith.constant 0 : index
    %c0_245 = arith.constant 0 : index
    %538 = vector.load %arg25[%c0_243, %c0_244, %c0_245] : memref<3x32x32xbf16, #tpu.memory_space<vmem>>, vector<1x32x32xbf16>
    %539 = vector.shape_cast %538 : vector<1x32x32xbf16> to vector<32x32xbf16>
    %540 = arith.truncf %518 : vector<16x16xf32> to vector<16x16xbf16>
    %541 = vector.extract_strided_slice %539 {offsets = [0, 0], sizes = [16, 32], strides = [1, 1]} : vector<32x32xbf16> to vector<16x32xbf16>
    %cst_246 = arith.constant dense<0.000000e+00> : vector<16x32xf32>
    %542 = tpu.matmul %540, %541, %cst_246 {dimension_numbers = #tpu.dot_dimension_numbers<[1], [0], [0], [1], [0, 0, 1, 1], [], []>} : vector<16x16xbf16>, vector<16x32xbf16>, vector<16x32xf32> -> vector<16x32xf32>
    %543 = arith.truncf %537 : vector<16x16xf32> to vector<16x16xbf16>
    %544 = vector.extract_strided_slice %539 {offsets = [16, 0], sizes = [16, 32], strides = [1, 1]} : vector<32x32xbf16> to vector<16x32xbf16>
    %cst_247 = arith.constant dense<0.000000e+00> : vector<16x32xf32>
    %545 = tpu.matmul %543, %544, %cst_247 {dimension_numbers = #tpu.dot_dimension_numbers<[1], [0], [0], [1], [0, 0, 1, 1], [], []>} : vector<16x16xbf16>, vector<16x32xbf16>, vector<16x32xf32> -> vector<16x32xf32>
    %546 = arith.addf %542, %545 : vector<16x32xf32>
    %c0_248 = arith.constant 0 : index
    %c0_249 = arith.constant 0 : index
    %c0_250 = arith.constant 0 : index
    %547 = vector.load %arg26[%c0_248, %c0_249, %c0_250] : memref<3x1x32xf32, #tpu.memory_space<vmem>>, vector<1x1x32xf32>
    %548 = vector.shape_cast %547 : vector<1x1x32xf32> to vector<1x32xf32>
    %549 = vector.broadcast %548 : vector<1x32xf32> to vector<16x32xf32>
    %550 = arith.addf %546, %549 : vector<16x32xf32>
    %551 = arith.addf %465, %550 : vector<16x32xf32>
    %c0_251 = arith.constant 0 : index
    %c0_252 = arith.constant 0 : index
    %c0_253 = arith.constant 0 : index
    %552 = vector.load %arg27[%c0_251, %c0_252, %c0_253] : memref<3x1x32xf32, #tpu.memory_space<vmem>>, vector<1x1x32xf32>
    %553 = vector.shape_cast %552 : vector<1x1x32xf32> to vector<1x32xf32>
    %c0_254 = arith.constant 0 : index
    %c0_255 = arith.constant 0 : index
    %c0_256 = arith.constant 0 : index
    %554 = vector.load %arg28[%c0_254, %c0_255, %c0_256] : memref<3x1x32xf32, #tpu.memory_space<vmem>>, vector<1x1x32xf32>
    %555 = vector.shape_cast %554 : vector<1x1x32xf32> to vector<1x32xf32>
    %cst_257 = arith.constant dense<0.000000e+00> : vector<16xf32>
    %556 = vector.multi_reduction <add>, %551, %cst_257 [1] : vector<16x32xf32> to vector<16xf32>
    %557 = vector.shape_cast %556 : vector<16xf32> to vector<16x1xf32>
    %cst_258 = arith.constant 3.200000e+01 : f32
    %558 = vector.broadcast %cst_258 : f32 to vector<16x1xf32>
    %559 = arith.divf %557, %558 : vector<16x1xf32>
    %560 = vector.broadcast %559 : vector<16x1xf32> to vector<16x32xf32>
    %561 = arith.subf %551, %560 : vector<16x32xf32>
    %562 = arith.mulf %561, %561 : vector<16x32xf32>
    %cst_259 = arith.constant dense<0.000000e+00> : vector<16xf32>
    %563 = vector.multi_reduction <add>, %562, %cst_259 [1] : vector<16x32xf32> to vector<16xf32>
    %564 = vector.shape_cast %563 : vector<16xf32> to vector<16x1xf32>
    %cst_260 = arith.constant 3.200000e+01 : f32
    %565 = vector.broadcast %cst_260 : f32 to vector<16x1xf32>
    %566 = arith.divf %564, %565 : vector<16x1xf32>
    %567 = vector.broadcast %559 : vector<16x1xf32> to vector<16x32xf32>
    %568 = arith.subf %551, %567 : vector<16x32xf32>
    %cst_261 = arith.constant 9.99999997E-7 : f32
    %569 = vector.broadcast %cst_261 : f32 to vector<16x1xf32>
    %570 = arith.addf %566, %569 : vector<16x1xf32>
    %571 = math.rsqrt %570 : vector<16x1xf32>
    %572 = vector.broadcast %571 : vector<16x1xf32> to vector<16x32xf32>
    %573 = arith.mulf %568, %572 : vector<16x32xf32>
    %574 = vector.broadcast %553 : vector<1x32xf32> to vector<16x32xf32>
    %575 = arith.mulf %573, %574 : vector<16x32xf32>
    %576 = vector.broadcast %555 : vector<1x32xf32> to vector<16x32xf32>
    %577 = arith.addf %575, %576 : vector<16x32xf32>
    %578 = arith.truncf %577 : vector<16x32xf32> to vector<16x32xbf16>
    %c0_262 = arith.constant 0 : index
    %c0_263 = arith.constant 0 : index
    %c0_264 = arith.constant 0 : index
    %579 = vector.load %arg29[%c0_262, %c0_263, %c0_264] : memref<3x32x128xbf16, #tpu.memory_space<vmem>>, vector<1x32x128xbf16>
    %580 = vector.shape_cast %579 : vector<1x32x128xbf16> to vector<32x128xbf16>
    %cst_265 = arith.constant dense<0.000000e+00> : vector<16x128xf32>
    %581 = tpu.matmul %578, %580, %cst_265 {dimension_numbers = #tpu.dot_dimension_numbers<[1], [0], [0], [1], [0, 0, 1, 1], [], []>} : vector<16x32xbf16>, vector<32x128xbf16>, vector<16x128xf32> -> vector<16x128xf32>
    %c0_266 = arith.constant 0 : index
    %c0_267 = arith.constant 0 : index
    %c0_268 = arith.constant 0 : index
    %582 = vector.load %arg30[%c0_266, %c0_267, %c0_268] : memref<3x1x128xf32, #tpu.memory_space<vmem>>, vector<1x1x128xf32>
    %583 = vector.shape_cast %582 : vector<1x1x128xf32> to vector<1x128xf32>
    %584 = vector.broadcast %583 : vector<1x128xf32> to vector<16x128xf32>
    %585 = arith.addf %581, %584 : vector<16x128xf32>
    %586 = arith.mulf %585, %585 : vector<16x128xf32>
    %587 = arith.mulf %585, %586 : vector<16x128xf32>
    %cst_269 = arith.constant 4.471500e-02 : f32
    %588 = vector.broadcast %cst_269 : f32 to vector<16x128xf32>
    %589 = arith.mulf %588, %587 : vector<16x128xf32>
    %590 = arith.addf %585, %589 : vector<16x128xf32>
    %cst_270 = arith.constant 0.797884583 : f32
    %591 = vector.broadcast %cst_270 : f32 to vector<16x128xf32>
    %592 = arith.mulf %591, %590 : vector<16x128xf32>
    %593 = math.tanh %592 : vector<16x128xf32>
    %cst_271 = arith.constant 1.000000e+00 : f32
    %594 = vector.broadcast %cst_271 : f32 to vector<16x128xf32>
    %595 = arith.addf %594, %593 : vector<16x128xf32>
    %cst_272 = arith.constant 5.000000e-01 : f32
    %596 = vector.broadcast %cst_272 : f32 to vector<16x128xf32>
    %597 = arith.mulf %596, %595 : vector<16x128xf32>
    %598 = arith.mulf %585, %597 : vector<16x128xf32>
    %599 = arith.truncf %598 : vector<16x128xf32> to vector<16x128xbf16>
    %c0_273 = arith.constant 0 : index
    %c0_274 = arith.constant 0 : index
    %c0_275 = arith.constant 0 : index
    %600 = vector.load %arg31[%c0_273, %c0_274, %c0_275] : memref<3x128x32xbf16, #tpu.memory_space<vmem>>, vector<1x128x32xbf16>
    %601 = vector.shape_cast %600 : vector<1x128x32xbf16> to vector<128x32xbf16>
    %cst_276 = arith.constant dense<0.000000e+00> : vector<16x32xf32>
    %602 = tpu.matmul %599, %601, %cst_276 {dimension_numbers = #tpu.dot_dimension_numbers<[1], [0], [0], [1], [0, 0, 1, 1], [], []>} : vector<16x128xbf16>, vector<128x32xbf16>, vector<16x32xf32> -> vector<16x32xf32>
    %c0_277 = arith.constant 0 : index
    %c0_278 = arith.constant 0 : index
    %c0_279 = arith.constant 0 : index
    %603 = vector.load %arg32[%c0_277, %c0_278, %c0_279] : memref<3x1x32xf32, #tpu.memory_space<vmem>>, vector<1x1x32xf32>
    %604 = vector.shape_cast %603 : vector<1x1x32xf32> to vector<1x32xf32>
    %605 = vector.broadcast %604 : vector<1x32xf32> to vector<16x32xf32>
    %606 = arith.addf %602, %605 : vector<16x32xf32>
    %607 = arith.addf %551, %606 : vector<16x32xf32>
    %c0_280 = arith.constant 0 : index
    %c0_281 = arith.constant 0 : index
    %c96 = arith.constant 96 : index
    %608 = vector.load %arg33[%c0_280, %c0_281, %c96] : memref<2x16x256xf32, #tpu.memory_space<vmem>>, vector<1x16x32xf32>
    %609 = vector.shape_cast %608 : vector<1x16x32xf32> to vector<16x32xf32>
    %610 = vector.shape_cast %607 : vector<16x32xf32> to vector<1x16x32xf32>
    tpu.vector_store %arg33[%c0_280, %c0_281, %c96], %610 {strides = array<i32>} : memref<2x16x256xf32, #tpu.memory_space<vmem>>, vector<1x16x32xf32>,
    %c1_282 = arith.constant 1 : index
    %c0_283 = arith.constant 0 : index
    %c0_284 = arith.constant 0 : index
    %611 = vector.load %arg21[%c1_282, %c0_283, %c0_284] : memref<3x1x32xf32, #tpu.memory_space<vmem>>, vector<1x1x32xf32>
    %612 = vector.shape_cast %611 : vector<1x1x32xf32> to vector<1x32xf32>
    %c1_285 = arith.constant 1 : index
    %c0_286 = arith.constant 0 : index
    %c0_287 = arith.constant 0 : index
    %613 = vector.load %arg22[%c1_285, %c0_286, %c0_287] : memref<3x1x32xf32, #tpu.memory_space<vmem>>, vector<1x1x32xf32>
    %614 = vector.shape_cast %613 : vector<1x1x32xf32> to vector<1x32xf32>
    %cst_288 = arith.constant dense<0.000000e+00> : vector<16xf32>
    %615 = vector.multi_reduction <add>, %607, %cst_288 [1] : vector<16x32xf32> to vector<16xf32>
    %616 = vector.shape_cast %615 : vector<16xf32> to vector<16x1xf32>
    %cst_289 = arith.constant 3.200000e+01 : f32
    %617 = vector.broadcast %cst_289 : f32 to vector<16x1xf32>
    %618 = arith.divf %616, %617 : vector<16x1xf32>
    %619 = vector.broadcast %618 : vector<16x1xf32> to vector<16x32xf32>
    %620 = arith.subf %607, %619 : vector<16x32xf32>
    %621 = arith.mulf %620, %620 : vector<16x32xf32>
    %cst_290 = arith.constant dense<0.000000e+00> : vector<16xf32>
    %622 = vector.multi_reduction <add>, %621, %cst_290 [1] : vector<16x32xf32> to vector<16xf32>
    %623 = vector.shape_cast %622 : vector<16xf32> to vector<16x1xf32>
    %cst_291 = arith.constant 3.200000e+01 : f32
    %624 = vector.broadcast %cst_291 : f32 to vector<16x1xf32>
    %625 = arith.divf %623, %624 : vector<16x1xf32>
    %626 = vector.broadcast %618 : vector<16x1xf32> to vector<16x32xf32>
    %627 = arith.subf %607, %626 : vector<16x32xf32>
    %cst_292 = arith.constant 9.99999997E-7 : f32
    %628 = vector.broadcast %cst_292 : f32 to vector<16x1xf32>
    %629 = arith.addf %625, %628 : vector<16x1xf32>
    %630 = math.rsqrt %629 : vector<16x1xf32>
    %631 = vector.broadcast %630 : vector<16x1xf32> to vector<16x32xf32>
    %632 = arith.mulf %627, %631 : vector<16x32xf32>
    %633 = vector.broadcast %612 : vector<1x32xf32> to vector<16x32xf32>
    %634 = arith.mulf %632, %633 : vector<16x32xf32>
    %635 = vector.broadcast %614 : vector<1x32xf32> to vector<16x32xf32>
    %636 = arith.addf %634, %635 : vector<16x32xf32>
    %637 = arith.truncf %636 : vector<16x32xf32> to vector<16x32xbf16>
    %c1_293 = arith.constant 1 : index
    %c0_294 = arith.constant 0 : index
    %c0_295 = arith.constant 0 : index
    %638 = vector.load %arg23[%c1_293, %c0_294, %c0_295] : memref<3x32x96xbf16, #tpu.memory_space<vmem>>, vector<1x32x96xbf16>
    %639 = vector.shape_cast %638 : vector<1x32x96xbf16> to vector<32x96xbf16>
    %cst_296 = arith.constant dense<0.000000e+00> : vector<16x96xf32>
    %640 = tpu.matmul %637, %639, %cst_296 {dimension_numbers = #tpu.dot_dimension_numbers<[1], [0], [0], [1], [0, 0, 1, 1], [], []>} : vector<16x32xbf16>, vector<32x96xbf16>, vector<16x96xf32> -> vector<16x96xf32>
    %c1_297 = arith.constant 1 : index
    %c0_298 = arith.constant 0 : index
    %c0_299 = arith.constant 0 : index
    %641 = vector.load %arg24[%c1_297, %c0_298, %c0_299] : memref<3x1x96xf32, #tpu.memory_space<vmem>>, vector<1x1x96xf32>
    %642 = vector.shape_cast %641 : vector<1x1x96xf32> to vector<1x96xf32>
    %643 = vector.broadcast %642 : vector<1x96xf32> to vector<16x96xf32>
    %644 = arith.addf %640, %643 : vector<16x96xf32>
    %645 = vector.extract_strided_slice %644 {offsets = [0, 0], sizes = [16, 16], strides = [1, 1]} : vector<16x96xf32> to vector<16x16xf32>
    %646 = arith.truncf %645 : vector<16x16xf32> to vector<16x16xbf16>
    %647 = vector.extract_strided_slice %644 {offsets = [0, 32], sizes = [16, 16], strides = [1, 1]} : vector<16x96xf32> to vector<16x16xf32>
    %648 = arith.truncf %647 : vector<16x16xf32> to vector<16x16xbf16>
    %649 = vector.extract_strided_slice %644 {offsets = [0, 64], sizes = [16, 16], strides = [1, 1]} : vector<16x96xf32> to vector<16x16xf32>
    %650 = arith.truncf %649 : vector<16x16xf32> to vector<16x16xbf16>
    %cst_300 = arith.constant dense<0.000000e+00> : vector<16x16xf32>
    %651 = tpu.matmul %646, %648, %cst_300 {dimension_numbers = #tpu.dot_dimension_numbers<[1], [1], [0], [0], [0, 0, 1, 0], [], []>} : vector<16x16xbf16>, vector<16x16xbf16>, vector<16x16xf32> -> vector<16x16xf32>
    %cst_301 = arith.constant dense<0xFF800000> : vector<16xf32>
    %652 = vector.multi_reduction <maximumf>, %651, %cst_301 [1] : vector<16x16xf32> to vector<16xf32>
    %653 = vector.shape_cast %652 : vector<16xf32> to vector<16x1xf32>
    %654 = vector.broadcast %653 : vector<16x1xf32> to vector<16x16xf32>
    %655 = arith.subf %651, %654 : vector<16x16xf32>
    %656 = math.exp %655 : vector<16x16xf32>
    %cst_302 = arith.constant dense<0.000000e+00> : vector<16xf32>
    %657 = vector.multi_reduction <add>, %656, %cst_302 [1] : vector<16x16xf32> to vector<16xf32>
    %658 = vector.shape_cast %657 : vector<16xf32> to vector<16x1xf32>
    %659 = tpu.reciprocal %658 {approx = true} : vector<16x1xf32> -> vector<16x1xf32>
    %660 = vector.broadcast %659 : vector<16x1xf32> to vector<16x16xf32>
    %661 = arith.mulf %656, %660 : vector<16x16xf32>
    %662 = arith.truncf %661 : vector<16x16xf32> to vector<16x16xbf16>
    %cst_303 = arith.constant dense<0.000000e+00> : vector<16x16xf32>
    %663 = tpu.matmul %662, %650, %cst_303 {dimension_numbers = #tpu.dot_dimension_numbers<[1], [0], [0], [1], [0, 0, 1, 1], [], []>} : vector<16x16xbf16>, vector<16x16xbf16>, vector<16x16xf32> -> vector<16x16xf32>
    %664 = vector.extract_strided_slice %644 {offsets = [0, 16], sizes = [16, 16], strides = [1, 1]} : vector<16x96xf32> to vector<16x16xf32>
    %665 = arith.truncf %664 : vector<16x16xf32> to vector<16x16xbf16>
    %666 = vector.extract_strided_slice %644 {offsets = [0, 48], sizes = [16, 16], strides = [1, 1]} : vector<16x96xf32> to vector<16x16xf32>
    %667 = arith.truncf %666 : vector<16x16xf32> to vector<16x16xbf16>
    %668 = vector.extract_strided_slice %644 {offsets = [0, 80], sizes = [16, 16], strides = [1, 1]} : vector<16x96xf32> to vector<16x16xf32>
    %669 = arith.truncf %668 : vector<16x16xf32> to vector<16x16xbf16>
    %cst_304 = arith.constant dense<0.000000e+00> : vector<16x16xf32>
    %670 = tpu.matmul %665, %667, %cst_304 {dimension_numbers = #tpu.dot_dimension_numbers<[1], [1], [0], [0], [0, 0, 1, 0], [], []>} : vector<16x16xbf16>, vector<16x16xbf16>, vector<16x16xf32> -> vector<16x16xf32>
    %cst_305 = arith.constant dense<0xFF800000> : vector<16xf32>
    %671 = vector.multi_reduction <maximumf>, %670, %cst_305 [1] : vector<16x16xf32> to vector<16xf32>
    %672 = vector.shape_cast %671 : vector<16xf32> to vector<16x1xf32>
    %673 = vector.broadcast %672 : vector<16x1xf32> to vector<16x16xf32>
    %674 = arith.subf %670, %673 : vector<16x16xf32>
    %675 = math.exp %674 : vector<16x16xf32>
    %cst_306 = arith.constant dense<0.000000e+00> : vector<16xf32>
    %676 = vector.multi_reduction <add>, %675, %cst_306 [1] : vector<16x16xf32> to vector<16xf32>
    %677 = vector.shape_cast %676 : vector<16xf32> to vector<16x1xf32>
    %678 = tpu.reciprocal %677 {approx = true} : vector<16x1xf32> -> vector<16x1xf32>
    %679 = vector.broadcast %678 : vector<16x1xf32> to vector<16x16xf32>
    %680 = arith.mulf %675, %679 : vector<16x16xf32>
    %681 = arith.truncf %680 : vector<16x16xf32> to vector<16x16xbf16>
    %cst_307 = arith.constant dense<0.000000e+00> : vector<16x16xf32>
    %682 = tpu.matmul %681, %669, %cst_307 {dimension_numbers = #tpu.dot_dimension_numbers<[1], [0], [0], [1], [0, 0, 1, 1], [], []>} : vector<16x16xbf16>, vector<16x16xbf16>, vector<16x16xf32> -> vector<16x16xf32>
    %c1_308 = arith.constant 1 : index
    %c0_309 = arith.constant 0 : index
    %c0_310 = arith.constant 0 : index
    %683 = vector.load %arg25[%c1_308, %c0_309, %c0_310] : memref<3x32x32xbf16, #tpu.memory_space<vmem>>, vector<1x32x32xbf16>
    %684 = vector.shape_cast %683 : vector<1x32x32xbf16> to vector<32x32xbf16>
    %685 = arith.truncf %663 : vector<16x16xf32> to vector<16x16xbf16>
    %686 = vector.extract_strided_slice %684 {offsets = [0, 0], sizes = [16, 32], strides = [1, 1]} : vector<32x32xbf16> to vector<16x32xbf16>
    %cst_311 = arith.constant dense<0.000000e+00> : vector<16x32xf32>
    %687 = tpu.matmul %685, %686, %cst_311 {dimension_numbers = #tpu.dot_dimension_numbers<[1], [0], [0], [1], [0, 0, 1, 1], [], []>} : vector<16x16xbf16>, vector<16x32xbf16>, vector<16x32xf32> -> vector<16x32xf32>
    %688 = arith.truncf %682 : vector<16x16xf32> to vector<16x16xbf16>
    %689 = vector.extract_strided_slice %684 {offsets = [16, 0], sizes = [16, 32], strides = [1, 1]} : vector<32x32xbf16> to vector<16x32xbf16>
    %cst_312 = arith.constant dense<0.000000e+00> : vector<16x32xf32>
    %690 = tpu.matmul %688, %689, %cst_312 {dimension_numbers = #tpu.dot_dimension_numbers<[1], [0], [0], [1], [0, 0, 1, 1], [], []>} : vector<16x16xbf16>, vector<16x32xbf16>, vector<16x32xf32> -> vector<16x32xf32>
    %691 = arith.addf %687, %690 : vector<16x32xf32>
    %c1_313 = arith.constant 1 : index
    %c0_314 = arith.constant 0 : index
    %c0_315 = arith.constant 0 : index
    %692 = vector.load %arg26[%c1_313, %c0_314, %c0_315] : memref<3x1x32xf32, #tpu.memory_space<vmem>>, vector<1x1x32xf32>
    %693 = vector.shape_cast %692 : vector<1x1x32xf32> to vector<1x32xf32>
    %694 = vector.broadcast %693 : vector<1x32xf32> to vector<16x32xf32>
    %695 = arith.addf %691, %694 : vector<16x32xf32>
    %696 = arith.addf %607, %695 : vector<16x32xf32>
    %c1_316 = arith.constant 1 : index
    %c0_317 = arith.constant 0 : index
    %c0_318 = arith.constant 0 : index
    %697 = vector.load %arg27[%c1_316, %c0_317, %c0_318] : memref<3x1x32xf32, #tpu.memory_space<vmem>>, vector<1x1x32xf32>
    %698 = vector.shape_cast %697 : vector<1x1x32xf32> to vector<1x32xf32>
    %c1_319 = arith.constant 1 : index
    %c0_320 = arith.constant 0 : index
    %c0_321 = arith.constant 0 : index
    %699 = vector.load %arg28[%c1_319, %c0_320, %c0_321] : memref<3x1x32xf32, #tpu.memory_space<vmem>>, vector<1x1x32xf32>
    %700 = vector.shape_cast %699 : vector<1x1x32xf32> to vector<1x32xf32>
    %cst_322 = arith.constant dense<0.000000e+00> : vector<16xf32>
    %701 = vector.multi_reduction <add>, %696, %cst_322 [1] : vector<16x32xf32> to vector<16xf32>
    %702 = vector.shape_cast %701 : vector<16xf32> to vector<16x1xf32>
    %cst_323 = arith.constant 3.200000e+01 : f32
    %703 = vector.broadcast %cst_323 : f32 to vector<16x1xf32>
    %704 = arith.divf %702, %703 : vector<16x1xf32>
    %705 = vector.broadcast %704 : vector<16x1xf32> to vector<16x32xf32>
    %706 = arith.subf %696, %705 : vector<16x32xf32>
    %707 = arith.mulf %706, %706 : vector<16x32xf32>
    %cst_324 = arith.constant dense<0.000000e+00> : vector<16xf32>
    %708 = vector.multi_reduction <add>, %707, %cst_324 [1] : vector<16x32xf32> to vector<16xf32>
    %709 = vector.shape_cast %708 : vector<16xf32> to vector<16x1xf32>
    %cst_325 = arith.constant 3.200000e+01 : f32
    %710 = vector.broadcast %cst_325 : f32 to vector<16x1xf32>
    %711 = arith.divf %709, %710 : vector<16x1xf32>
    %712 = vector.broadcast %704 : vector<16x1xf32> to vector<16x32xf32>
    %713 = arith.subf %696, %712 : vector<16x32xf32>
    %cst_326 = arith.constant 9.99999997E-7 : f32
    %714 = vector.broadcast %cst_326 : f32 to vector<16x1xf32>
    %715 = arith.addf %711, %714 : vector<16x1xf32>
    %716 = math.rsqrt %715 : vector<16x1xf32>
    %717 = vector.broadcast %716 : vector<16x1xf32> to vector<16x32xf32>
    %718 = arith.mulf %713, %717 : vector<16x32xf32>
    %719 = vector.broadcast %698 : vector<1x32xf32> to vector<16x32xf32>
    %720 = arith.mulf %718, %719 : vector<16x32xf32>
    %721 = vector.broadcast %700 : vector<1x32xf32> to vector<16x32xf32>
    %722 = arith.addf %720, %721 : vector<16x32xf32>
    %723 = arith.truncf %722 : vector<16x32xf32> to vector<16x32xbf16>
    %c1_327 = arith.constant 1 : index
    %c0_328 = arith.constant 0 : index
    %c0_329 = arith.constant 0 : index
    %724 = vector.load %arg29[%c1_327, %c0_328, %c0_329] : memref<3x32x128xbf16, #tpu.memory_space<vmem>>, vector<1x32x128xbf16>
    %725 = vector.shape_cast %724 : vector<1x32x128xbf16> to vector<32x128xbf16>
    %cst_330 = arith.constant dense<0.000000e+00> : vector<16x128xf32>
    %726 = tpu.matmul %723, %725, %cst_330 {dimension_numbers = #tpu.dot_dimension_numbers<[1], [0], [0], [1], [0, 0, 1, 1], [], []>} : vector<16x32xbf16>, vector<32x128xbf16>, vector<16x128xf32> -> vector<16x128xf32>
    %c1_331 = arith.constant 1 : index
    %c0_332 = arith.constant 0 : index
    %c0_333 = arith.constant 0 : index
    %727 = vector.load %arg30[%c1_331, %c0_332, %c0_333] : memref<3x1x128xf32, #tpu.memory_space<vmem>>, vector<1x1x128xf32>
    %728 = vector.shape_cast %727 : vector<1x1x128xf32> to vector<1x128xf32>
    %729 = vector.broadcast %728 : vector<1x128xf32> to vector<16x128xf32>
    %730 = arith.addf %726, %729 : vector<16x128xf32>
    %731 = arith.mulf %730, %730 : vector<16x128xf32>
    %732 = arith.mulf %730, %731 : vector<16x128xf32>
    %cst_334 = arith.constant 4.471500e-02 : f32
    %733 = vector.broadcast %cst_334 : f32 to vector<16x128xf32>
    %734 = arith.mulf %733, %732 : vector<16x128xf32>
    %735 = arith.addf %730, %734 : vector<16x128xf32>
    %cst_335 = arith.constant 0.797884583 : f32
    %736 = vector.broadcast %cst_335 : f32 to vector<16x128xf32>
    %737 = arith.mulf %736, %735 : vector<16x128xf32>
    %738 = math.tanh %737 : vector<16x128xf32>
    %cst_336 = arith.constant 1.000000e+00 : f32
    %739 = vector.broadcast %cst_336 : f32 to vector<16x128xf32>
    %740 = arith.addf %739, %738 : vector<16x128xf32>
    %cst_337 = arith.constant 5.000000e-01 : f32
    %741 = vector.broadcast %cst_337 : f32 to vector<16x128xf32>
    %742 = arith.mulf %741, %740 : vector<16x128xf32>
    %743 = arith.mulf %730, %742 : vector<16x128xf32>
    %744 = arith.truncf %743 : vector<16x128xf32> to vector<16x128xbf16>
    %c1_338 = arith.constant 1 : index
    %c0_339 = arith.constant 0 : index
    %c0_340 = arith.constant 0 : index
    %745 = vector.load %arg31[%c1_338, %c0_339, %c0_340] : memref<3x128x32xbf16, #tpu.memory_space<vmem>>, vector<1x128x32xbf16>
    %746 = vector.shape_cast %745 : vector<1x128x32xbf16> to vector<128x32xbf16>
    %cst_341 = arith.constant dense<0.000000e+00> : vector<16x32xf32>
    %747 = tpu.matmul %744, %746, %cst_341 {dimension_numbers = #tpu.dot_dimension_numbers<[1], [0], [0], [1], [0, 0, 1, 1], [], []>} : vector<16x128xbf16>, vector<128x32xbf16>, vector<16x32xf32> -> vector<16x32xf32>
    %c1_342 = arith.constant 1 : index
    %c0_343 = arith.constant 0 : index
    %c0_344 = arith.constant 0 : index
    %748 = vector.load %arg32[%c1_342, %c0_343, %c0_344] : memref<3x1x32xf32, #tpu.memory_space<vmem>>, vector<1x1x32xf32>
    %749 = vector.shape_cast %748 : vector<1x1x32xf32> to vector<1x32xf32>
    %750 = vector.broadcast %749 : vector<1x32xf32> to vector<16x32xf32>
    %751 = arith.addf %747, %750 : vector<16x32xf32>
    %752 = arith.addf %696, %751 : vector<16x32xf32>
    %c0_345 = arith.constant 0 : index
    %c0_346 = arith.constant 0 : index
    %c128 = arith.constant 128 : index
    %753 = vector.load %arg33[%c0_345, %c0_346, %c128] : memref<2x16x256xf32, #tpu.memory_space<vmem>>, vector<1x16x32xf32>
    %754 = vector.shape_cast %753 : vector<1x16x32xf32> to vector<16x32xf32>
    %755 = vector.shape_cast %752 : vector<16x32xf32> to vector<1x16x32xf32>
    tpu.vector_store %arg33[%c0_345, %c0_346, %c128], %755 {strides = array<i32>} : memref<2x16x256xf32, #tpu.memory_space<vmem>>, vector<1x16x32xf32>,
    %c2_347 = arith.constant 2 : index
    %c0_348 = arith.constant 0 : index
    %c0_349 = arith.constant 0 : index
    %756 = vector.load %arg21[%c2_347, %c0_348, %c0_349] : memref<3x1x32xf32, #tpu.memory_space<vmem>>, vector<1x1x32xf32>
    %757 = vector.shape_cast %756 : vector<1x1x32xf32> to vector<1x32xf32>
    %c2_350 = arith.constant 2 : index
    %c0_351 = arith.constant 0 : index
    %c0_352 = arith.constant 0 : index
    %758 = vector.load %arg22[%c2_350, %c0_351, %c0_352] : memref<3x1x32xf32, #tpu.memory_space<vmem>>, vector<1x1x32xf32>
    %759 = vector.shape_cast %758 : vector<1x1x32xf32> to vector<1x32xf32>
    %cst_353 = arith.constant dense<0.000000e+00> : vector<16xf32>
    %760 = vector.multi_reduction <add>, %752, %cst_353 [1] : vector<16x32xf32> to vector<16xf32>
    %761 = vector.shape_cast %760 : vector<16xf32> to vector<16x1xf32>
    %cst_354 = arith.constant 3.200000e+01 : f32
    %762 = vector.broadcast %cst_354 : f32 to vector<16x1xf32>
    %763 = arith.divf %761, %762 : vector<16x1xf32>
    %764 = vector.broadcast %763 : vector<16x1xf32> to vector<16x32xf32>
    %765 = arith.subf %752, %764 : vector<16x32xf32>
    %766 = arith.mulf %765, %765 : vector<16x32xf32>
    %cst_355 = arith.constant dense<0.000000e+00> : vector<16xf32>
    %767 = vector.multi_reduction <add>, %766, %cst_355 [1] : vector<16x32xf32> to vector<16xf32>
    %768 = vector.shape_cast %767 : vector<16xf32> to vector<16x1xf32>
    %cst_356 = arith.constant 3.200000e+01 : f32
    %769 = vector.broadcast %cst_356 : f32 to vector<16x1xf32>
    %770 = arith.divf %768, %769 : vector<16x1xf32>
    %771 = vector.broadcast %763 : vector<16x1xf32> to vector<16x32xf32>
    %772 = arith.subf %752, %771 : vector<16x32xf32>
    %cst_357 = arith.constant 9.99999997E-7 : f32
    %773 = vector.broadcast %cst_357 : f32 to vector<16x1xf32>
    %774 = arith.addf %770, %773 : vector<16x1xf32>
    %775 = math.rsqrt %774 : vector<16x1xf32>
    %776 = vector.broadcast %775 : vector<16x1xf32> to vector<16x32xf32>
    %777 = arith.mulf %772, %776 : vector<16x32xf32>
    %778 = vector.broadcast %757 : vector<1x32xf32> to vector<16x32xf32>
    %779 = arith.mulf %777, %778 : vector<16x32xf32>
    %780 = vector.broadcast %759 : vector<1x32xf32> to vector<16x32xf32>
    %781 = arith.addf %779, %780 : vector<16x32xf32>
    %782 = arith.truncf %781 : vector<16x32xf32> to vector<16x32xbf16>
    %c2_358 = arith.constant 2 : index
    %c0_359 = arith.constant 0 : index
    %c0_360 = arith.constant 0 : index
    %783 = vector.load %arg23[%c2_358, %c0_359, %c0_360] : memref<3x32x96xbf16, #tpu.memory_space<vmem>>, vector<1x32x96xbf16>
    %784 = vector.shape_cast %783 : vector<1x32x96xbf16> to vector<32x96xbf16>
    %cst_361 = arith.constant dense<0.000000e+00> : vector<16x96xf32>
    %785 = tpu.matmul %782, %784, %cst_361 {dimension_numbers = #tpu.dot_dimension_numbers<[1], [0], [0], [1], [0, 0, 1, 1], [], []>} : vector<16x32xbf16>, vector<32x96xbf16>, vector<16x96xf32> -> vector<16x96xf32>
    %c2_362 = arith.constant 2 : index
    %c0_363 = arith.constant 0 : index
    %c0_364 = arith.constant 0 : index
    %786 = vector.load %arg24[%c2_362, %c0_363, %c0_364] : memref<3x1x96xf32, #tpu.memory_space<vmem>>, vector<1x1x96xf32>
    %787 = vector.shape_cast %786 : vector<1x1x96xf32> to vector<1x96xf32>
    %788 = vector.broadcast %787 : vector<1x96xf32> to vector<16x96xf32>
    %789 = arith.addf %785, %788 : vector<16x96xf32>
    %790 = vector.extract_strided_slice %789 {offsets = [0, 0], sizes = [16, 16], strides = [1, 1]} : vector<16x96xf32> to vector<16x16xf32>
    %791 = arith.truncf %790 : vector<16x16xf32> to vector<16x16xbf16>
    %792 = vector.extract_strided_slice %789 {offsets = [0, 32], sizes = [16, 16], strides = [1, 1]} : vector<16x96xf32> to vector<16x16xf32>
    %793 = arith.truncf %792 : vector<16x16xf32> to vector<16x16xbf16>
    %794 = vector.extract_strided_slice %789 {offsets = [0, 64], sizes = [16, 16], strides = [1, 1]} : vector<16x96xf32> to vector<16x16xf32>
    %795 = arith.truncf %794 : vector<16x16xf32> to vector<16x16xbf16>
    %cst_365 = arith.constant dense<0.000000e+00> : vector<16x16xf32>
    %796 = tpu.matmul %791, %793, %cst_365 {dimension_numbers = #tpu.dot_dimension_numbers<[1], [1], [0], [0], [0, 0, 1, 0], [], []>} : vector<16x16xbf16>, vector<16x16xbf16>, vector<16x16xf32> -> vector<16x16xf32>
    %cst_366 = arith.constant dense<0xFF800000> : vector<16xf32>
    %797 = vector.multi_reduction <maximumf>, %796, %cst_366 [1] : vector<16x16xf32> to vector<16xf32>
    %798 = vector.shape_cast %797 : vector<16xf32> to vector<16x1xf32>
    %799 = vector.broadcast %798 : vector<16x1xf32> to vector<16x16xf32>
    %800 = arith.subf %796, %799 : vector<16x16xf32>
    %801 = math.exp %800 : vector<16x16xf32>
    %cst_367 = arith.constant dense<0.000000e+00> : vector<16xf32>
    %802 = vector.multi_reduction <add>, %801, %cst_367 [1] : vector<16x16xf32> to vector<16xf32>
    %803 = vector.shape_cast %802 : vector<16xf32> to vector<16x1xf32>
    %804 = tpu.reciprocal %803 {approx = true} : vector<16x1xf32> -> vector<16x1xf32>
    %805 = vector.broadcast %804 : vector<16x1xf32> to vector<16x16xf32>
    %806 = arith.mulf %801, %805 : vector<16x16xf32>
    %807 = arith.truncf %806 : vector<16x16xf32> to vector<16x16xbf16>
    %cst_368 = arith.constant dense<0.000000e+00> : vector<16x16xf32>
    %808 = tpu.matmul %807, %795, %cst_368 {dimension_numbers = #tpu.dot_dimension_numbers<[1], [0], [0], [1], [0, 0, 1, 1], [], []>} : vector<16x16xbf16>, vector<16x16xbf16>, vector<16x16xf32> -> vector<16x16xf32>
    %809 = vector.extract_strided_slice %789 {offsets = [0, 16], sizes = [16, 16], strides = [1, 1]} : vector<16x96xf32> to vector<16x16xf32>
    %810 = arith.truncf %809 : vector<16x16xf32> to vector<16x16xbf16>
    %811 = vector.extract_strided_slice %789 {offsets = [0, 48], sizes = [16, 16], strides = [1, 1]} : vector<16x96xf32> to vector<16x16xf32>
    %812 = arith.truncf %811 : vector<16x16xf32> to vector<16x16xbf16>
    %813 = vector.extract_strided_slice %789 {offsets = [0, 80], sizes = [16, 16], strides = [1, 1]} : vector<16x96xf32> to vector<16x16xf32>
    %814 = arith.truncf %813 : vector<16x16xf32> to vector<16x16xbf16>
    %cst_369 = arith.constant dense<0.000000e+00> : vector<16x16xf32>
    %815 = tpu.matmul %810, %812, %cst_369 {dimension_numbers = #tpu.dot_dimension_numbers<[1], [1], [0], [0], [0, 0, 1, 0], [], []>} : vector<16x16xbf16>, vector<16x16xbf16>, vector<16x16xf32> -> vector<16x16xf32>
    %cst_370 = arith.constant dense<0xFF800000> : vector<16xf32>
    %816 = vector.multi_reduction <maximumf>, %815, %cst_370 [1] : vector<16x16xf32> to vector<16xf32>
    %817 = vector.shape_cast %816 : vector<16xf32> to vector<16x1xf32>
    %818 = vector.broadcast %817 : vector<16x1xf32> to vector<16x16xf32>
    %819 = arith.subf %815, %818 : vector<16x16xf32>
    %820 = math.exp %819 : vector<16x16xf32>
    %cst_371 = arith.constant dense<0.000000e+00> : vector<16xf32>
    %821 = vector.multi_reduction <add>, %820, %cst_371 [1] : vector<16x16xf32> to vector<16xf32>
    %822 = vector.shape_cast %821 : vector<16xf32> to vector<16x1xf32>
    %823 = tpu.reciprocal %822 {approx = true} : vector<16x1xf32> -> vector<16x1xf32>
    %824 = vector.broadcast %823 : vector<16x1xf32> to vector<16x16xf32>
    %825 = arith.mulf %820, %824 : vector<16x16xf32>
    %826 = arith.truncf %825 : vector<16x16xf32> to vector<16x16xbf16>
    %cst_372 = arith.constant dense<0.000000e+00> : vector<16x16xf32>
    %827 = tpu.matmul %826, %814, %cst_372 {dimension_numbers = #tpu.dot_dimension_numbers<[1], [0], [0], [1], [0, 0, 1, 1], [], []>} : vector<16x16xbf16>, vector<16x16xbf16>, vector<16x16xf32> -> vector<16x16xf32>
    %c2_373 = arith.constant 2 : index
    %c0_374 = arith.constant 0 : index
    %c0_375 = arith.constant 0 : index
    %828 = vector.load %arg25[%c2_373, %c0_374, %c0_375] : memref<3x32x32xbf16, #tpu.memory_space<vmem>>, vector<1x32x32xbf16>
    %829 = vector.shape_cast %828 : vector<1x32x32xbf16> to vector<32x32xbf16>
    %830 = arith.truncf %808 : vector<16x16xf32> to vector<16x16xbf16>
    %831 = vector.extract_strided_slice %829 {offsets = [0, 0], sizes = [16, 32], strides = [1, 1]} : vector<32x32xbf16> to vector<16x32xbf16>
    %cst_376 = arith.constant dense<0.000000e+00> : vector<16x32xf32>
    %832 = tpu.matmul %830, %831, %cst_376 {dimension_numbers = #tpu.dot_dimension_numbers<[1], [0], [0], [1], [0, 0, 1, 1], [], []>} : vector<16x16xbf16>, vector<16x32xbf16>, vector<16x32xf32> -> vector<16x32xf32>
    %833 = arith.truncf %827 : vector<16x16xf32> to vector<16x16xbf16>
    %834 = vector.extract_strided_slice %829 {offsets = [16, 0], sizes = [16, 32], strides = [1, 1]} : vector<32x32xbf16> to vector<16x32xbf16>
    %cst_377 = arith.constant dense<0.000000e+00> : vector<16x32xf32>
    %835 = tpu.matmul %833, %834, %cst_377 {dimension_numbers = #tpu.dot_dimension_numbers<[1], [0], [0], [1], [0, 0, 1, 1], [], []>} : vector<16x16xbf16>, vector<16x32xbf16>, vector<16x32xf32> -> vector<16x32xf32>
    %836 = arith.addf %832, %835 : vector<16x32xf32>
    %c2_378 = arith.constant 2 : index
    %c0_379 = arith.constant 0 : index
    %c0_380 = arith.constant 0 : index
    %837 = vector.load %arg26[%c2_378, %c0_379, %c0_380] : memref<3x1x32xf32, #tpu.memory_space<vmem>>, vector<1x1x32xf32>
    %838 = vector.shape_cast %837 : vector<1x1x32xf32> to vector<1x32xf32>
    %839 = vector.broadcast %838 : vector<1x32xf32> to vector<16x32xf32>
    %840 = arith.addf %836, %839 : vector<16x32xf32>
    %841 = arith.addf %752, %840 : vector<16x32xf32>
    %c2_381 = arith.constant 2 : index
    %c0_382 = arith.constant 0 : index
    %c0_383 = arith.constant 0 : index
    %842 = vector.load %arg27[%c2_381, %c0_382, %c0_383] : memref<3x1x32xf32, #tpu.memory_space<vmem>>, vector<1x1x32xf32>
    %843 = vector.shape_cast %842 : vector<1x1x32xf32> to vector<1x32xf32>
    %c2_384 = arith.constant 2 : index
    %c0_385 = arith.constant 0 : index
    %c0_386 = arith.constant 0 : index
    %844 = vector.load %arg28[%c2_384, %c0_385, %c0_386] : memref<3x1x32xf32, #tpu.memory_space<vmem>>, vector<1x1x32xf32>
    %845 = vector.shape_cast %844 : vector<1x1x32xf32> to vector<1x32xf32>
    %cst_387 = arith.constant dense<0.000000e+00> : vector<16xf32>
    %846 = vector.multi_reduction <add>, %841, %cst_387 [1] : vector<16x32xf32> to vector<16xf32>
    %847 = vector.shape_cast %846 : vector<16xf32> to vector<16x1xf32>
    %cst_388 = arith.constant 3.200000e+01 : f32
    %848 = vector.broadcast %cst_388 : f32 to vector<16x1xf32>
    %849 = arith.divf %847, %848 : vector<16x1xf32>
    %850 = vector.broadcast %849 : vector<16x1xf32> to vector<16x32xf32>
    %851 = arith.subf %841, %850 : vector<16x32xf32>
    %852 = arith.mulf %851, %851 : vector<16x32xf32>
    %cst_389 = arith.constant dense<0.000000e+00> : vector<16xf32>
    %853 = vector.multi_reduction <add>, %852, %cst_389 [1] : vector<16x32xf32> to vector<16xf32>
    %854 = vector.shape_cast %853 : vector<16xf32> to vector<16x1xf32>
    %cst_390 = arith.constant 3.200000e+01 : f32
    %855 = vector.broadcast %cst_390 : f32 to vector<16x1xf32>
    %856 = arith.divf %854, %855 : vector<16x1xf32>
    %857 = vector.broadcast %849 : vector<16x1xf32> to vector<16x32xf32>
    %858 = arith.subf %841, %857 : vector<16x32xf32>
    %cst_391 = arith.constant 9.99999997E-7 : f32
    %859 = vector.broadcast %cst_391 : f32 to vector<16x1xf32>
    %860 = arith.addf %856, %859 : vector<16x1xf32>
    %861 = math.rsqrt %860 : vector<16x1xf32>
    %862 = vector.broadcast %861 : vector<16x1xf32> to vector<16x32xf32>
    %863 = arith.mulf %858, %862 : vector<16x32xf32>
    %864 = vector.broadcast %843 : vector<1x32xf32> to vector<16x32xf32>
    %865 = arith.mulf %863, %864 : vector<16x32xf32>
    %866 = vector.broadcast %845 : vector<1x32xf32> to vector<16x32xf32>
    %867 = arith.addf %865, %866 : vector<16x32xf32>
    %868 = arith.truncf %867 : vector<16x32xf32> to vector<16x32xbf16>
    %c2_392 = arith.constant 2 : index
    %c0_393 = arith.constant 0 : index
    %c0_394 = arith.constant 0 : index
    %869 = vector.load %arg29[%c2_392, %c0_393, %c0_394] : memref<3x32x128xbf16, #tpu.memory_space<vmem>>, vector<1x32x128xbf16>
    %870 = vector.shape_cast %869 : vector<1x32x128xbf16> to vector<32x128xbf16>
    %cst_395 = arith.constant dense<0.000000e+00> : vector<16x128xf32>
    %871 = tpu.matmul %868, %870, %cst_395 {dimension_numbers = #tpu.dot_dimension_numbers<[1], [0], [0], [1], [0, 0, 1, 1], [], []>} : vector<16x32xbf16>, vector<32x128xbf16>, vector<16x128xf32> -> vector<16x128xf32>
    %c2_396 = arith.constant 2 : index
    %c0_397 = arith.constant 0 : index
    %c0_398 = arith.constant 0 : index
    %872 = vector.load %arg30[%c2_396, %c0_397, %c0_398] : memref<3x1x128xf32, #tpu.memory_space<vmem>>, vector<1x1x128xf32>
    %873 = vector.shape_cast %872 : vector<1x1x128xf32> to vector<1x128xf32>
    %874 = vector.broadcast %873 : vector<1x128xf32> to vector<16x128xf32>
    %875 = arith.addf %871, %874 : vector<16x128xf32>
    %876 = arith.mulf %875, %875 : vector<16x128xf32>
    %877 = arith.mulf %875, %876 : vector<16x128xf32>
    %cst_399 = arith.constant 4.471500e-02 : f32
    %878 = vector.broadcast %cst_399 : f32 to vector<16x128xf32>
    %879 = arith.mulf %878, %877 : vector<16x128xf32>
    %880 = arith.addf %875, %879 : vector<16x128xf32>
    %cst_400 = arith.constant 0.797884583 : f32
    %881 = vector.broadcast %cst_400 : f32 to vector<16x128xf32>
    %882 = arith.mulf %881, %880 : vector<16x128xf32>
    %883 = math.tanh %882 : vector<16x128xf32>
    %cst_401 = arith.constant 1.000000e+00 : f32
    %884 = vector.broadcast %cst_401 : f32 to vector<16x128xf32>
    %885 = arith.addf %884, %883 : vector<16x128xf32>
    %cst_402 = arith.constant 5.000000e-01 : f32
    %886 = vector.broadcast %cst_402 : f32 to vector<16x128xf32>
    %887 = arith.mulf %886, %885 : vector<16x128xf32>
    %888 = arith.mulf %875, %887 : vector<16x128xf32>
    %889 = arith.truncf %888 : vector<16x128xf32> to vector<16x128xbf16>
    %c2_403 = arith.constant 2 : index
    %c0_404 = arith.constant 0 : index
    %c0_405 = arith.constant 0 : index
    %890 = vector.load %arg31[%c2_403, %c0_404, %c0_405] : memref<3x128x32xbf16, #tpu.memory_space<vmem>>, vector<1x128x32xbf16>
    %891 = vector.shape_cast %890 : vector<1x128x32xbf16> to vector<128x32xbf16>
    %cst_406 = arith.constant dense<0.000000e+00> : vector<16x32xf32>
    %892 = tpu.matmul %889, %891, %cst_406 {dimension_numbers = #tpu.dot_dimension_numbers<[1], [0], [0], [1], [0, 0, 1, 1], [], []>} : vector<16x128xbf16>, vector<128x32xbf16>, vector<16x32xf32> -> vector<16x32xf32>
    %c2_407 = arith.constant 2 : index
    %c0_408 = arith.constant 0 : index
    %c0_409 = arith.constant 0 : index
    %893 = vector.load %arg32[%c2_407, %c0_408, %c0_409] : memref<3x1x32xf32, #tpu.memory_space<vmem>>, vector<1x1x32xf32>
    %894 = vector.shape_cast %893 : vector<1x1x32xf32> to vector<1x32xf32>
    %895 = vector.broadcast %894 : vector<1x32xf32> to vector<16x32xf32>
    %896 = arith.addf %892, %895 : vector<16x32xf32>
    %897 = arith.addf %841, %896 : vector<16x32xf32>
    %c0_410 = arith.constant 0 : index
    %c0_411 = arith.constant 0 : index
    %c160 = arith.constant 160 : index
    %898 = vector.load %arg33[%c0_410, %c0_411, %c160] : memref<2x16x256xf32, #tpu.memory_space<vmem>>, vector<1x16x32xf32>
    %899 = vector.shape_cast %898 : vector<1x16x32xf32> to vector<16x32xf32>
    %900 = vector.shape_cast %897 : vector<16x32xf32> to vector<1x16x32xf32>
    tpu.vector_store %arg33[%c0_410, %c0_411, %c160], %900 {strides = array<i32>} : memref<2x16x256xf32, #tpu.memory_space<vmem>>, vector<1x16x32xf32>,
    %cst_412 = arith.constant 0.000000e+00 : f32
    %901 = vector.broadcast %cst_412 : f32 to vector<16x64xf32>
    %c1_413 = arith.constant 1 : index
    %c0_414 = arith.constant 0 : index
    %c192_415 = arith.constant 192 : index
    %902 = vector.load %arg33[%c1_413, %c0_414, %c192_415] : memref<2x16x256xf32, #tpu.memory_space<vmem>>, vector<1x16x64xf32>
    %903 = vector.shape_cast %902 : vector<1x16x64xf32> to vector<16x64xf32>
    %904 = vector.shape_cast %901 : vector<16x64xf32> to vector<1x16x64xf32>
    tpu.vector_store %arg33[%c1_413, %c0_414, %c192_415], %904 {strides = array<i32>} : memref<2x16x256xf32, #tpu.memory_space<vmem>>, vector<1x16x64xf32>,
    %c1_416 = arith.constant 1 : index
    %c0_417 = arith.constant 0 : index
    %c0_418 = arith.constant 0 : index
    %905 = vector.load %arg1[%c1_416, %c0_417, %c0_418] : memref<2x16x48xf32, #tpu.memory_space<vmem>>, vector<1x16x48xf32>
    %906 = vector.shape_cast %905 : vector<1x16x48xf32> to vector<16x48xf32>
    %907 = arith.truncf %906 : vector<16x48xf32> to vector<16x48xbf16>
    %c0_419 = arith.constant 0 : index
    %c0_420 = arith.constant 0 : index
    %908 = vector.load %arg2[%c0_419, %c0_420] : memref<48x32xbf16, #tpu.memory_space<vmem>>, vector<48x32xbf16>
    %cst_421 = arith.constant dense<0.000000e+00> : vector<16x32xf32>
    %909 = tpu.matmul %907, %908, %cst_421 {dimension_numbers = #tpu.dot_dimension_numbers<[1], [0], [0], [1], [0, 0, 1, 1], [], []>} : vector<16x48xbf16>, vector<48x32xbf16>, vector<16x32xf32> -> vector<16x32xf32>
    %c0_422 = arith.constant 0 : index
    %c0_423 = arith.constant 0 : index
    %910 = vector.load %arg3[%c0_422, %c0_423] : memref<1x32xf32, #tpu.memory_space<vmem>>, vector<1x32xf32>
    %911 = vector.broadcast %910 : vector<1x32xf32> to vector<16x32xf32>
    %912 = arith.addf %909, %911 : vector<16x32xf32>
    %c0_424 = arith.constant 0 : index
    %c0_425 = arith.constant 0 : index
    %913 = vector.load %arg4[%c0_424, %c0_425] : memref<1x32xf32, #tpu.memory_space<vmem>>, vector<1x32xf32>
    %914 = tpu.concatenate %912, %913 in 0 : vector<16x32xf32>, vector<1x32xf32> -> vector<17x32xf32>
    %c0_426 = arith.constant 0 : index
    %c0_427 = arith.constant 0 : index
    %915 = vector.load %arg5[%c0_426, %c0_427] : memref<17x32xf32, #tpu.memory_space<vmem>>, vector<17x32xf32>
    %916 = arith.addf %914, %915 : vector<17x32xf32>
    %c0_428 = arith.constant 0 : index
    %c0_429 = arith.constant 0 : index
    %c0_430 = arith.constant 0 : index
    %917 = vector.load %arg6[%c0_428, %c0_429, %c0_430] : memref<3x1x32xf32, #tpu.memory_space<vmem>>, vector<1x1x32xf32>
    %918 = vector.shape_cast %917 : vector<1x1x32xf32> to vector<1x32xf32>
    %c0_431 = arith.constant 0 : index
    %c0_432 = arith.constant 0 : index
    %c0_433 = arith.constant 0 : index
    %919 = vector.load %arg7[%c0_431, %c0_432, %c0_433] : memref<3x1x32xf32, #tpu.memory_space<vmem>>, vector<1x1x32xf32>
    %920 = vector.shape_cast %919 : vector<1x1x32xf32> to vector<1x32xf32>
    %cst_434 = arith.constant dense<0.000000e+00> : vector<17xf32>
    %921 = vector.multi_reduction <add>, %916, %cst_434 [1] : vector<17x32xf32> to vector<17xf32>
    %922 = vector.shape_cast %921 : vector<17xf32> to vector<17x1xf32>
    %cst_435 = arith.constant 3.200000e+01 : f32
    %923 = vector.broadcast %cst_435 : f32 to vector<17x1xf32>
    %924 = arith.divf %922, %923 : vector<17x1xf32>
    %925 = vector.broadcast %924 : vector<17x1xf32> to vector<17x32xf32>
    %926 = arith.subf %916, %925 : vector<17x32xf32>
    %927 = arith.mulf %926, %926 : vector<17x32xf32>
    %cst_436 = arith.constant dense<0.000000e+00> : vector<17xf32>
    %928 = vector.multi_reduction <add>, %927, %cst_436 [1] : vector<17x32xf32> to vector<17xf32>
    %929 = vector.shape_cast %928 : vector<17xf32> to vector<17x1xf32>
    %cst_437 = arith.constant 3.200000e+01 : f32
    %930 = vector.broadcast %cst_437 : f32 to vector<17x1xf32>
    %931 = arith.divf %929, %930 : vector<17x1xf32>
    %932 = vector.broadcast %924 : vector<17x1xf32> to vector<17x32xf32>
    %933 = arith.subf %916, %932 : vector<17x32xf32>
    %cst_438 = arith.constant 9.99999997E-7 : f32
    %934 = vector.broadcast %cst_438 : f32 to vector<17x1xf32>
    %935 = arith.addf %931, %934 : vector<17x1xf32>
    %936 = math.rsqrt %935 : vector<17x1xf32>
    %937 = vector.broadcast %936 : vector<17x1xf32> to vector<17x32xf32>
    %938 = arith.mulf %933, %937 : vector<17x32xf32>
    %939 = vector.broadcast %918 : vector<1x32xf32> to vector<17x32xf32>
    %940 = arith.mulf %938, %939 : vector<17x32xf32>
    %941 = vector.broadcast %920 : vector<1x32xf32> to vector<17x32xf32>
    %942 = arith.addf %940, %941 : vector<17x32xf32>
    %943 = arith.truncf %942 : vector<17x32xf32> to vector<17x32xbf16>
    %c0_439 = arith.constant 0 : index
    %c0_440 = arith.constant 0 : index
    %c0_441 = arith.constant 0 : index
    %944 = vector.load %arg8[%c0_439, %c0_440, %c0_441] : memref<3x32x96xbf16, #tpu.memory_space<vmem>>, vector<1x32x96xbf16>
    %945 = vector.shape_cast %944 : vector<1x32x96xbf16> to vector<32x96xbf16>
    %cst_442 = arith.constant dense<0.000000e+00> : vector<17x96xf32>
    %946 = tpu.matmul %943, %945, %cst_442 {dimension_numbers = #tpu.dot_dimension_numbers<[1], [0], [0], [1], [0, 0, 1, 1], [], []>} : vector<17x32xbf16>, vector<32x96xbf16>, vector<17x96xf32> -> vector<17x96xf32>
    %c0_443 = arith.constant 0 : index
    %c0_444 = arith.constant 0 : index
    %c0_445 = arith.constant 0 : index
    %947 = vector.load %arg9[%c0_443, %c0_444, %c0_445] : memref<3x1x96xf32, #tpu.memory_space<vmem>>, vector<1x1x96xf32>
    %948 = vector.shape_cast %947 : vector<1x1x96xf32> to vector<1x96xf32>
    %949 = vector.broadcast %948 : vector<1x96xf32> to vector<17x96xf32>
    %950 = arith.addf %946, %949 : vector<17x96xf32>
    %951 = vector.extract_strided_slice %950 {offsets = [0, 0], sizes = [17, 16], strides = [1, 1]} : vector<17x96xf32> to vector<17x16xf32>
    %952 = arith.truncf %951 : vector<17x16xf32> to vector<17x16xbf16>
    %953 = vector.extract_strided_slice %950 {offsets = [0, 32], sizes = [17, 16], strides = [1, 1]} : vector<17x96xf32> to vector<17x16xf32>
    %954 = arith.truncf %953 : vector<17x16xf32> to vector<17x16xbf16>
    %955 = vector.extract_strided_slice %950 {offsets = [0, 64], sizes = [17, 16], strides = [1, 1]} : vector<17x96xf32> to vector<17x16xf32>
    %956 = arith.truncf %955 : vector<17x16xf32> to vector<17x16xbf16>
    %cst_446 = arith.constant dense<0.000000e+00> : vector<17x17xf32>
    %957 = tpu.matmul %952, %954, %cst_446 {dimension_numbers = #tpu.dot_dimension_numbers<[1], [1], [0], [0], [0, 0, 1, 0], [], []>} : vector<17x16xbf16>, vector<17x16xbf16>, vector<17x17xf32> -> vector<17x17xf32>
    %cst_447 = arith.constant dense<0xFF800000> : vector<17xf32>
    %958 = vector.multi_reduction <maximumf>, %957, %cst_447 [1] : vector<17x17xf32> to vector<17xf32>
    %959 = vector.shape_cast %958 : vector<17xf32> to vector<17x1xf32>
    %960 = vector.broadcast %959 : vector<17x1xf32> to vector<17x17xf32>
    %961 = arith.subf %957, %960 : vector<17x17xf32>
    %962 = math.exp %961 : vector<17x17xf32>
    %cst_448 = arith.constant dense<0.000000e+00> : vector<17xf32>
    %963 = vector.multi_reduction <add>, %962, %cst_448 [1] : vector<17x17xf32> to vector<17xf32>
    %964 = vector.shape_cast %963 : vector<17xf32> to vector<17x1xf32>
    %965 = tpu.reciprocal %964 {approx = true} : vector<17x1xf32> -> vector<17x1xf32>
    %966 = vector.broadcast %965 : vector<17x1xf32> to vector<17x17xf32>
    %967 = arith.mulf %962, %966 : vector<17x17xf32>
    %968 = arith.truncf %967 : vector<17x17xf32> to vector<17x17xbf16>
    %cst_449 = arith.constant dense<0.000000e+00> : vector<17x16xf32>
    %969 = tpu.matmul %968, %956, %cst_449 {dimension_numbers = #tpu.dot_dimension_numbers<[1], [0], [0], [1], [0, 0, 1, 1], [], []>} : vector<17x17xbf16>, vector<17x16xbf16>, vector<17x16xf32> -> vector<17x16xf32>
    %970 = vector.extract_strided_slice %950 {offsets = [0, 16], sizes = [17, 16], strides = [1, 1]} : vector<17x96xf32> to vector<17x16xf32>
    %971 = arith.truncf %970 : vector<17x16xf32> to vector<17x16xbf16>
    %972 = vector.extract_strided_slice %950 {offsets = [0, 48], sizes = [17, 16], strides = [1, 1]} : vector<17x96xf32> to vector<17x16xf32>
    %973 = arith.truncf %972 : vector<17x16xf32> to vector<17x16xbf16>
    %974 = vector.extract_strided_slice %950 {offsets = [0, 80], sizes = [17, 16], strides = [1, 1]} : vector<17x96xf32> to vector<17x16xf32>
    %975 = arith.truncf %974 : vector<17x16xf32> to vector<17x16xbf16>
    %cst_450 = arith.constant dense<0.000000e+00> : vector<17x17xf32>
    %976 = tpu.matmul %971, %973, %cst_450 {dimension_numbers = #tpu.dot_dimension_numbers<[1], [1], [0], [0], [0, 0, 1, 0], [], []>} : vector<17x16xbf16>, vector<17x16xbf16>, vector<17x17xf32> -> vector<17x17xf32>
    %cst_451 = arith.constant dense<0xFF800000> : vector<17xf32>
    %977 = vector.multi_reduction <maximumf>, %976, %cst_451 [1] : vector<17x17xf32> to vector<17xf32>
    %978 = vector.shape_cast %977 : vector<17xf32> to vector<17x1xf32>
    %979 = vector.broadcast %978 : vector<17x1xf32> to vector<17x17xf32>
    %980 = arith.subf %976, %979 : vector<17x17xf32>
    %981 = math.exp %980 : vector<17x17xf32>
    %cst_452 = arith.constant dense<0.000000e+00> : vector<17xf32>
    %982 = vector.multi_reduction <add>, %981, %cst_452 [1] : vector<17x17xf32> to vector<17xf32>
    %983 = vector.shape_cast %982 : vector<17xf32> to vector<17x1xf32>
    %984 = tpu.reciprocal %983 {approx = true} : vector<17x1xf32> -> vector<17x1xf32>
    %985 = vector.broadcast %984 : vector<17x1xf32> to vector<17x17xf32>
    %986 = arith.mulf %981, %985 : vector<17x17xf32>
    %987 = arith.truncf %986 : vector<17x17xf32> to vector<17x17xbf16>
    %cst_453 = arith.constant dense<0.000000e+00> : vector<17x16xf32>
    %988 = tpu.matmul %987, %975, %cst_453 {dimension_numbers = #tpu.dot_dimension_numbers<[1], [0], [0], [1], [0, 0, 1, 1], [], []>} : vector<17x17xbf16>, vector<17x16xbf16>, vector<17x16xf32> -> vector<17x16xf32>
    %c0_454 = arith.constant 0 : index
    %c0_455 = arith.constant 0 : index
    %c0_456 = arith.constant 0 : index
    %989 = vector.load %arg10[%c0_454, %c0_455, %c0_456] : memref<3x32x32xbf16, #tpu.memory_space<vmem>>, vector<1x32x32xbf16>
    %990 = vector.shape_cast %989 : vector<1x32x32xbf16> to vector<32x32xbf16>
    %991 = arith.truncf %969 : vector<17x16xf32> to vector<17x16xbf16>
    %992 = vector.extract_strided_slice %990 {offsets = [0, 0], sizes = [16, 32], strides = [1, 1]} : vector<32x32xbf16> to vector<16x32xbf16>
    %cst_457 = arith.constant dense<0.000000e+00> : vector<17x32xf32>
    %993 = tpu.matmul %991, %992, %cst_457 {dimension_numbers = #tpu.dot_dimension_numbers<[1], [0], [0], [1], [0, 0, 1, 1], [], []>} : vector<17x16xbf16>, vector<16x32xbf16>, vector<17x32xf32> -> vector<17x32xf32>
    %994 = arith.truncf %988 : vector<17x16xf32> to vector<17x16xbf16>
    %995 = vector.extract_strided_slice %990 {offsets = [16, 0], sizes = [16, 32], strides = [1, 1]} : vector<32x32xbf16> to vector<16x32xbf16>
    %cst_458 = arith.constant dense<0.000000e+00> : vector<17x32xf32>
    %996 = tpu.matmul %994, %995, %cst_458 {dimension_numbers = #tpu.dot_dimension_numbers<[1], [0], [0], [1], [0, 0, 1, 1], [], []>} : vector<17x16xbf16>, vector<16x32xbf16>, vector<17x32xf32> -> vector<17x32xf32>
    %997 = arith.addf %993, %996 : vector<17x32xf32>
    %c0_459 = arith.constant 0 : index
    %c0_460 = arith.constant 0 : index
    %c0_461 = arith.constant 0 : index
    %998 = vector.load %arg11[%c0_459, %c0_460, %c0_461] : memref<3x1x32xf32, #tpu.memory_space<vmem>>, vector<1x1x32xf32>
    %999 = vector.shape_cast %998 : vector<1x1x32xf32> to vector<1x32xf32>
    %1000 = vector.broadcast %999 : vector<1x32xf32> to vector<17x32xf32>
    %1001 = arith.addf %997, %1000 : vector<17x32xf32>
    %1002 = arith.addf %916, %1001 : vector<17x32xf32>
    %c0_462 = arith.constant 0 : index
    %c0_463 = arith.constant 0 : index
    %c0_464 = arith.constant 0 : index
    %1003 = vector.load %arg12[%c0_462, %c0_463, %c0_464] : memref<3x1x32xf32, #tpu.memory_space<vmem>>, vector<1x1x32xf32>
    %1004 = vector.shape_cast %1003 : vector<1x1x32xf32> to vector<1x32xf32>
    %c0_465 = arith.constant 0 : index
    %c0_466 = arith.constant 0 : index
    %c0_467 = arith.constant 0 : index
    %1005 = vector.load %arg13[%c0_465, %c0_466, %c0_467] : memref<3x1x32xf32, #tpu.memory_space<vmem>>, vector<1x1x32xf32>
    %1006 = vector.shape_cast %1005 : vector<1x1x32xf32> to vector<1x32xf32>
    %cst_468 = arith.constant dense<0.000000e+00> : vector<17xf32>
    %1007 = vector.multi_reduction <add>, %1002, %cst_468 [1] : vector<17x32xf32> to vector<17xf32>
    %1008 = vector.shape_cast %1007 : vector<17xf32> to vector<17x1xf32>
    %cst_469 = arith.constant 3.200000e+01 : f32
    %1009 = vector.broadcast %cst_469 : f32 to vector<17x1xf32>
    %1010 = arith.divf %1008, %1009 : vector<17x1xf32>
    %1011 = vector.broadcast %1010 : vector<17x1xf32> to vector<17x32xf32>
    %1012 = arith.subf %1002, %1011 : vector<17x32xf32>
    %1013 = arith.mulf %1012, %1012 : vector<17x32xf32>
    %cst_470 = arith.constant dense<0.000000e+00> : vector<17xf32>
    %1014 = vector.multi_reduction <add>, %1013, %cst_470 [1] : vector<17x32xf32> to vector<17xf32>
    %1015 = vector.shape_cast %1014 : vector<17xf32> to vector<17x1xf32>
    %cst_471 = arith.constant 3.200000e+01 : f32
    %1016 = vector.broadcast %cst_471 : f32 to vector<17x1xf32>
    %1017 = arith.divf %1015, %1016 : vector<17x1xf32>
    %1018 = vector.broadcast %1010 : vector<17x1xf32> to vector<17x32xf32>
    %1019 = arith.subf %1002, %1018 : vector<17x32xf32>
    %cst_472 = arith.constant 9.99999997E-7 : f32
    %1020 = vector.broadcast %cst_472 : f32 to vector<17x1xf32>
    %1021 = arith.addf %1017, %1020 : vector<17x1xf32>
    %1022 = math.rsqrt %1021 : vector<17x1xf32>
    %1023 = vector.broadcast %1022 : vector<17x1xf32> to vector<17x32xf32>
    %1024 = arith.mulf %1019, %1023 : vector<17x32xf32>
    %1025 = vector.broadcast %1004 : vector<1x32xf32> to vector<17x32xf32>
    %1026 = arith.mulf %1024, %1025 : vector<17x32xf32>
    %1027 = vector.broadcast %1006 : vector<1x32xf32> to vector<17x32xf32>
    %1028 = arith.addf %1026, %1027 : vector<17x32xf32>
    %1029 = arith.truncf %1028 : vector<17x32xf32> to vector<17x32xbf16>
    %c0_473 = arith.constant 0 : index
    %c0_474 = arith.constant 0 : index
    %c0_475 = arith.constant 0 : index
    %1030 = vector.load %arg14[%c0_473, %c0_474, %c0_475] : memref<3x32x128xbf16, #tpu.memory_space<vmem>>, vector<1x32x128xbf16>
    %1031 = vector.shape_cast %1030 : vector<1x32x128xbf16> to vector<32x128xbf16>
    %cst_476 = arith.constant dense<0.000000e+00> : vector<17x128xf32>
    %1032 = tpu.matmul %1029, %1031, %cst_476 {dimension_numbers = #tpu.dot_dimension_numbers<[1], [0], [0], [1], [0, 0, 1, 1], [], []>} : vector<17x32xbf16>, vector<32x128xbf16>, vector<17x128xf32> -> vector<17x128xf32>
    %c0_477 = arith.constant 0 : index
    %c0_478 = arith.constant 0 : index
    %c0_479 = arith.constant 0 : index
    %1033 = vector.load %arg15[%c0_477, %c0_478, %c0_479] : memref<3x1x128xf32, #tpu.memory_space<vmem>>, vector<1x1x128xf32>
    %1034 = vector.shape_cast %1033 : vector<1x1x128xf32> to vector<1x128xf32>
    %1035 = vector.broadcast %1034 : vector<1x128xf32> to vector<17x128xf32>
    %1036 = arith.addf %1032, %1035 : vector<17x128xf32>
    %1037 = arith.mulf %1036, %1036 : vector<17x128xf32>
    %1038 = arith.mulf %1036, %1037 : vector<17x128xf32>
    %cst_480 = arith.constant 4.471500e-02 : f32
    %1039 = vector.broadcast %cst_480 : f32 to vector<17x128xf32>
    %1040 = arith.mulf %1039, %1038 : vector<17x128xf32>
    %1041 = arith.addf %1036, %1040 : vector<17x128xf32>
    %cst_481 = arith.constant 0.797884583 : f32
    %1042 = vector.broadcast %cst_481 : f32 to vector<17x128xf32>
    %1043 = arith.mulf %1042, %1041 : vector<17x128xf32>
    %1044 = math.tanh %1043 : vector<17x128xf32>
    %cst_482 = arith.constant 1.000000e+00 : f32
    %1045 = vector.broadcast %cst_482 : f32 to vector<17x128xf32>
    %1046 = arith.addf %1045, %1044 : vector<17x128xf32>
    %cst_483 = arith.constant 5.000000e-01 : f32
    %1047 = vector.broadcast %cst_483 : f32 to vector<17x128xf32>
    %1048 = arith.mulf %1047, %1046 : vector<17x128xf32>
    %1049 = arith.mulf %1036, %1048 : vector<17x128xf32>
    %1050 = arith.truncf %1049 : vector<17x128xf32> to vector<17x128xbf16>
    %c0_484 = arith.constant 0 : index
    %c0_485 = arith.constant 0 : index
    %c0_486 = arith.constant 0 : index
    %1051 = vector.load %arg16[%c0_484, %c0_485, %c0_486] : memref<3x128x32xbf16, #tpu.memory_space<vmem>>, vector<1x128x32xbf16>
    %1052 = vector.shape_cast %1051 : vector<1x128x32xbf16> to vector<128x32xbf16>
    %cst_487 = arith.constant dense<0.000000e+00> : vector<17x32xf32>
    %1053 = tpu.matmul %1050, %1052, %cst_487 {dimension_numbers = #tpu.dot_dimension_numbers<[1], [0], [0], [1], [0, 0, 1, 1], [], []>} : vector<17x128xbf16>, vector<128x32xbf16>, vector<17x32xf32> -> vector<17x32xf32>
    %c0_488 = arith.constant 0 : index
    %c0_489 = arith.constant 0 : index
    %c0_490 = arith.constant 0 : index
    %1054 = vector.load %arg17[%c0_488, %c0_489, %c0_490] : memref<3x1x32xf32, #tpu.memory_space<vmem>>, vector<1x1x32xf32>
    %1055 = vector.shape_cast %1054 : vector<1x1x32xf32> to vector<1x32xf32>
    %1056 = vector.broadcast %1055 : vector<1x32xf32> to vector<17x32xf32>
    %1057 = arith.addf %1053, %1056 : vector<17x32xf32>
    %1058 = arith.addf %1002, %1057 : vector<17x32xf32>
    %1059 = vector.extract_strided_slice %1058 {offsets = [0, 0], sizes = [16, 32], strides = [1, 1]} : vector<17x32xf32> to vector<16x32xf32>
    %c1_491 = arith.constant 1 : index
    %c0_492 = arith.constant 0 : index
    %c0_493 = arith.constant 0 : index
    %1060 = vector.load %arg33[%c1_491, %c0_492, %c0_493] : memref<2x16x256xf32, #tpu.memory_space<vmem>>, vector<1x16x32xf32>
    %1061 = vector.shape_cast %1060 : vector<1x16x32xf32> to vector<16x32xf32>
    %1062 = vector.shape_cast %1059 : vector<16x32xf32> to vector<1x16x32xf32>
    tpu.vector_store %arg33[%c1_491, %c0_492, %c0_493], %1062 {strides = array<i32>} : memref<2x16x256xf32, #tpu.memory_space<vmem>>, vector<1x16x32xf32>,
    %c1_494 = arith.constant 1 : index
    %c0_495 = arith.constant 0 : index
    %c0_496 = arith.constant 0 : index
    %1063 = vector.load %arg6[%c1_494, %c0_495, %c0_496] : memref<3x1x32xf32, #tpu.memory_space<vmem>>, vector<1x1x32xf32>
    %1064 = vector.shape_cast %1063 : vector<1x1x32xf32> to vector<1x32xf32>
    %c1_497 = arith.constant 1 : index
    %c0_498 = arith.constant 0 : index
    %c0_499 = arith.constant 0 : index
    %1065 = vector.load %arg7[%c1_497, %c0_498, %c0_499] : memref<3x1x32xf32, #tpu.memory_space<vmem>>, vector<1x1x32xf32>
    %1066 = vector.shape_cast %1065 : vector<1x1x32xf32> to vector<1x32xf32>
    %cst_500 = arith.constant dense<0.000000e+00> : vector<17xf32>
    %1067 = vector.multi_reduction <add>, %1058, %cst_500 [1] : vector<17x32xf32> to vector<17xf32>
    %1068 = vector.shape_cast %1067 : vector<17xf32> to vector<17x1xf32>
    %cst_501 = arith.constant 3.200000e+01 : f32
    %1069 = vector.broadcast %cst_501 : f32 to vector<17x1xf32>
    %1070 = arith.divf %1068, %1069 : vector<17x1xf32>
    %1071 = vector.broadcast %1070 : vector<17x1xf32> to vector<17x32xf32>
    %1072 = arith.subf %1058, %1071 : vector<17x32xf32>
    %1073 = arith.mulf %1072, %1072 : vector<17x32xf32>
    %cst_502 = arith.constant dense<0.000000e+00> : vector<17xf32>
    %1074 = vector.multi_reduction <add>, %1073, %cst_502 [1] : vector<17x32xf32> to vector<17xf32>
    %1075 = vector.shape_cast %1074 : vector<17xf32> to vector<17x1xf32>
    %cst_503 = arith.constant 3.200000e+01 : f32
    %1076 = vector.broadcast %cst_503 : f32 to vector<17x1xf32>
    %1077 = arith.divf %1075, %1076 : vector<17x1xf32>
    %1078 = vector.broadcast %1070 : vector<17x1xf32> to vector<17x32xf32>
    %1079 = arith.subf %1058, %1078 : vector<17x32xf32>
    %cst_504 = arith.constant 9.99999997E-7 : f32
    %1080 = vector.broadcast %cst_504 : f32 to vector<17x1xf32>
    %1081 = arith.addf %1077, %1080 : vector<17x1xf32>
    %1082 = math.rsqrt %1081 : vector<17x1xf32>
    %1083 = vector.broadcast %1082 : vector<17x1xf32> to vector<17x32xf32>
    %1084 = arith.mulf %1079, %1083 : vector<17x32xf32>
    %1085 = vector.broadcast %1064 : vector<1x32xf32> to vector<17x32xf32>
    %1086 = arith.mulf %1084, %1085 : vector<17x32xf32>
    %1087 = vector.broadcast %1066 : vector<1x32xf32> to vector<17x32xf32>
    %1088 = arith.addf %1086, %1087 : vector<17x32xf32>
    %1089 = arith.truncf %1088 : vector<17x32xf32> to vector<17x32xbf16>
    %c1_505 = arith.constant 1 : index
    %c0_506 = arith.constant 0 : index
    %c0_507 = arith.constant 0 : index
    %1090 = vector.load %arg8[%c1_505, %c0_506, %c0_507] : memref<3x32x96xbf16, #tpu.memory_space<vmem>>, vector<1x32x96xbf16>
    %1091 = vector.shape_cast %1090 : vector<1x32x96xbf16> to vector<32x96xbf16>
    %cst_508 = arith.constant dense<0.000000e+00> : vector<17x96xf32>
    %1092 = tpu.matmul %1089, %1091, %cst_508 {dimension_numbers = #tpu.dot_dimension_numbers<[1], [0], [0], [1], [0, 0, 1, 1], [], []>} : vector<17x32xbf16>, vector<32x96xbf16>, vector<17x96xf32> -> vector<17x96xf32>
    %c1_509 = arith.constant 1 : index
    %c0_510 = arith.constant 0 : index
    %c0_511 = arith.constant 0 : index
    %1093 = vector.load %arg9[%c1_509, %c0_510, %c0_511] : memref<3x1x96xf32, #tpu.memory_space<vmem>>, vector<1x1x96xf32>
    %1094 = vector.shape_cast %1093 : vector<1x1x96xf32> to vector<1x96xf32>
    %1095 = vector.broadcast %1094 : vector<1x96xf32> to vector<17x96xf32>
    %1096 = arith.addf %1092, %1095 : vector<17x96xf32>
    %1097 = vector.extract_strided_slice %1096 {offsets = [0, 0], sizes = [17, 16], strides = [1, 1]} : vector<17x96xf32> to vector<17x16xf32>
    %1098 = arith.truncf %1097 : vector<17x16xf32> to vector<17x16xbf16>
    %1099 = vector.extract_strided_slice %1096 {offsets = [0, 32], sizes = [17, 16], strides = [1, 1]} : vector<17x96xf32> to vector<17x16xf32>
    %1100 = arith.truncf %1099 : vector<17x16xf32> to vector<17x16xbf16>
    %1101 = vector.extract_strided_slice %1096 {offsets = [0, 64], sizes = [17, 16], strides = [1, 1]} : vector<17x96xf32> to vector<17x16xf32>
    %1102 = arith.truncf %1101 : vector<17x16xf32> to vector<17x16xbf16>
    %cst_512 = arith.constant dense<0.000000e+00> : vector<17x17xf32>
    %1103 = tpu.matmul %1098, %1100, %cst_512 {dimension_numbers = #tpu.dot_dimension_numbers<[1], [1], [0], [0], [0, 0, 1, 0], [], []>} : vector<17x16xbf16>, vector<17x16xbf16>, vector<17x17xf32> -> vector<17x17xf32>
    %cst_513 = arith.constant dense<0xFF800000> : vector<17xf32>
    %1104 = vector.multi_reduction <maximumf>, %1103, %cst_513 [1] : vector<17x17xf32> to vector<17xf32>
    %1105 = vector.shape_cast %1104 : vector<17xf32> to vector<17x1xf32>
    %1106 = vector.broadcast %1105 : vector<17x1xf32> to vector<17x17xf32>
    %1107 = arith.subf %1103, %1106 : vector<17x17xf32>
    %1108 = math.exp %1107 : vector<17x17xf32>
    %cst_514 = arith.constant dense<0.000000e+00> : vector<17xf32>
    %1109 = vector.multi_reduction <add>, %1108, %cst_514 [1] : vector<17x17xf32> to vector<17xf32>
    %1110 = vector.shape_cast %1109 : vector<17xf32> to vector<17x1xf32>
    %1111 = tpu.reciprocal %1110 {approx = true} : vector<17x1xf32> -> vector<17x1xf32>
    %1112 = vector.broadcast %1111 : vector<17x1xf32> to vector<17x17xf32>
    %1113 = arith.mulf %1108, %1112 : vector<17x17xf32>
    %1114 = arith.truncf %1113 : vector<17x17xf32> to vector<17x17xbf16>
    %cst_515 = arith.constant dense<0.000000e+00> : vector<17x16xf32>
    %1115 = tpu.matmul %1114, %1102, %cst_515 {dimension_numbers = #tpu.dot_dimension_numbers<[1], [0], [0], [1], [0, 0, 1, 1], [], []>} : vector<17x17xbf16>, vector<17x16xbf16>, vector<17x16xf32> -> vector<17x16xf32>
    %1116 = vector.extract_strided_slice %1096 {offsets = [0, 16], sizes = [17, 16], strides = [1, 1]} : vector<17x96xf32> to vector<17x16xf32>
    %1117 = arith.truncf %1116 : vector<17x16xf32> to vector<17x16xbf16>
    %1118 = vector.extract_strided_slice %1096 {offsets = [0, 48], sizes = [17, 16], strides = [1, 1]} : vector<17x96xf32> to vector<17x16xf32>
    %1119 = arith.truncf %1118 : vector<17x16xf32> to vector<17x16xbf16>
    %1120 = vector.extract_strided_slice %1096 {offsets = [0, 80], sizes = [17, 16], strides = [1, 1]} : vector<17x96xf32> to vector<17x16xf32>
    %1121 = arith.truncf %1120 : vector<17x16xf32> to vector<17x16xbf16>
    %cst_516 = arith.constant dense<0.000000e+00> : vector<17x17xf32>
    %1122 = tpu.matmul %1117, %1119, %cst_516 {dimension_numbers = #tpu.dot_dimension_numbers<[1], [1], [0], [0], [0, 0, 1, 0], [], []>} : vector<17x16xbf16>, vector<17x16xbf16>, vector<17x17xf32> -> vector<17x17xf32>
    %cst_517 = arith.constant dense<0xFF800000> : vector<17xf32>
    %1123 = vector.multi_reduction <maximumf>, %1122, %cst_517 [1] : vector<17x17xf32> to vector<17xf32>
    %1124 = vector.shape_cast %1123 : vector<17xf32> to vector<17x1xf32>
    %1125 = vector.broadcast %1124 : vector<17x1xf32> to vector<17x17xf32>
    %1126 = arith.subf %1122, %1125 : vector<17x17xf32>
    %1127 = math.exp %1126 : vector<17x17xf32>
    %cst_518 = arith.constant dense<0.000000e+00> : vector<17xf32>
    %1128 = vector.multi_reduction <add>, %1127, %cst_518 [1] : vector<17x17xf32> to vector<17xf32>
    %1129 = vector.shape_cast %1128 : vector<17xf32> to vector<17x1xf32>
    %1130 = tpu.reciprocal %1129 {approx = true} : vector<17x1xf32> -> vector<17x1xf32>
    %1131 = vector.broadcast %1130 : vector<17x1xf32> to vector<17x17xf32>
    %1132 = arith.mulf %1127, %1131 : vector<17x17xf32>
    %1133 = arith.truncf %1132 : vector<17x17xf32> to vector<17x17xbf16>
    %cst_519 = arith.constant dense<0.000000e+00> : vector<17x16xf32>
    %1134 = tpu.matmul %1133, %1121, %cst_519 {dimension_numbers = #tpu.dot_dimension_numbers<[1], [0], [0], [1], [0, 0, 1, 1], [], []>} : vector<17x17xbf16>, vector<17x16xbf16>, vector<17x16xf32> -> vector<17x16xf32>
    %c1_520 = arith.constant 1 : index
    %c0_521 = arith.constant 0 : index
    %c0_522 = arith.constant 0 : index
    %1135 = vector.load %arg10[%c1_520, %c0_521, %c0_522] : memref<3x32x32xbf16, #tpu.memory_space<vmem>>, vector<1x32x32xbf16>
    %1136 = vector.shape_cast %1135 : vector<1x32x32xbf16> to vector<32x32xbf16>
    %1137 = arith.truncf %1115 : vector<17x16xf32> to vector<17x16xbf16>
    %1138 = vector.extract_strided_slice %1136 {offsets = [0, 0], sizes = [16, 32], strides = [1, 1]} : vector<32x32xbf16> to vector<16x32xbf16>
    %cst_523 = arith.constant dense<0.000000e+00> : vector<17x32xf32>
    %1139 = tpu.matmul %1137, %1138, %cst_523 {dimension_numbers = #tpu.dot_dimension_numbers<[1], [0], [0], [1], [0, 0, 1, 1], [], []>} : vector<17x16xbf16>, vector<16x32xbf16>, vector<17x32xf32> -> vector<17x32xf32>
    %1140 = arith.truncf %1134 : vector<17x16xf32> to vector<17x16xbf16>
    %1141 = vector.extract_strided_slice %1136 {offsets = [16, 0], sizes = [16, 32], strides = [1, 1]} : vector<32x32xbf16> to vector<16x32xbf16>
    %cst_524 = arith.constant dense<0.000000e+00> : vector<17x32xf32>
    %1142 = tpu.matmul %1140, %1141, %cst_524 {dimension_numbers = #tpu.dot_dimension_numbers<[1], [0], [0], [1], [0, 0, 1, 1], [], []>} : vector<17x16xbf16>, vector<16x32xbf16>, vector<17x32xf32> -> vector<17x32xf32>
    %1143 = arith.addf %1139, %1142 : vector<17x32xf32>
    %c1_525 = arith.constant 1 : index
    %c0_526 = arith.constant 0 : index
    %c0_527 = arith.constant 0 : index
    %1144 = vector.load %arg11[%c1_525, %c0_526, %c0_527] : memref<3x1x32xf32, #tpu.memory_space<vmem>>, vector<1x1x32xf32>
    %1145 = vector.shape_cast %1144 : vector<1x1x32xf32> to vector<1x32xf32>
    %1146 = vector.broadcast %1145 : vector<1x32xf32> to vector<17x32xf32>
    %1147 = arith.addf %1143, %1146 : vector<17x32xf32>
    %1148 = arith.addf %1058, %1147 : vector<17x32xf32>
    %c1_528 = arith.constant 1 : index
    %c0_529 = arith.constant 0 : index
    %c0_530 = arith.constant 0 : index
    %1149 = vector.load %arg12[%c1_528, %c0_529, %c0_530] : memref<3x1x32xf32, #tpu.memory_space<vmem>>, vector<1x1x32xf32>
    %1150 = vector.shape_cast %1149 : vector<1x1x32xf32> to vector<1x32xf32>
    %c1_531 = arith.constant 1 : index
    %c0_532 = arith.constant 0 : index
    %c0_533 = arith.constant 0 : index
    %1151 = vector.load %arg13[%c1_531, %c0_532, %c0_533] : memref<3x1x32xf32, #tpu.memory_space<vmem>>, vector<1x1x32xf32>
    %1152 = vector.shape_cast %1151 : vector<1x1x32xf32> to vector<1x32xf32>
    %cst_534 = arith.constant dense<0.000000e+00> : vector<17xf32>
    %1153 = vector.multi_reduction <add>, %1148, %cst_534 [1] : vector<17x32xf32> to vector<17xf32>
    %1154 = vector.shape_cast %1153 : vector<17xf32> to vector<17x1xf32>
    %cst_535 = arith.constant 3.200000e+01 : f32
    %1155 = vector.broadcast %cst_535 : f32 to vector<17x1xf32>
    %1156 = arith.divf %1154, %1155 : vector<17x1xf32>
    %1157 = vector.broadcast %1156 : vector<17x1xf32> to vector<17x32xf32>
    %1158 = arith.subf %1148, %1157 : vector<17x32xf32>
    %1159 = arith.mulf %1158, %1158 : vector<17x32xf32>
    %cst_536 = arith.constant dense<0.000000e+00> : vector<17xf32>
    %1160 = vector.multi_reduction <add>, %1159, %cst_536 [1] : vector<17x32xf32> to vector<17xf32>
    %1161 = vector.shape_cast %1160 : vector<17xf32> to vector<17x1xf32>
    %cst_537 = arith.constant 3.200000e+01 : f32
    %1162 = vector.broadcast %cst_537 : f32 to vector<17x1xf32>
    %1163 = arith.divf %1161, %1162 : vector<17x1xf32>
    %1164 = vector.broadcast %1156 : vector<17x1xf32> to vector<17x32xf32>
    %1165 = arith.subf %1148, %1164 : vector<17x32xf32>
    %cst_538 = arith.constant 9.99999997E-7 : f32
    %1166 = vector.broadcast %cst_538 : f32 to vector<17x1xf32>
    %1167 = arith.addf %1163, %1166 : vector<17x1xf32>
    %1168 = math.rsqrt %1167 : vector<17x1xf32>
    %1169 = vector.broadcast %1168 : vector<17x1xf32> to vector<17x32xf32>
    %1170 = arith.mulf %1165, %1169 : vector<17x32xf32>
    %1171 = vector.broadcast %1150 : vector<1x32xf32> to vector<17x32xf32>
    %1172 = arith.mulf %1170, %1171 : vector<17x32xf32>
    %1173 = vector.broadcast %1152 : vector<1x32xf32> to vector<17x32xf32>
    %1174 = arith.addf %1172, %1173 : vector<17x32xf32>
    %1175 = arith.truncf %1174 : vector<17x32xf32> to vector<17x32xbf16>
    %c1_539 = arith.constant 1 : index
    %c0_540 = arith.constant 0 : index
    %c0_541 = arith.constant 0 : index
    %1176 = vector.load %arg14[%c1_539, %c0_540, %c0_541] : memref<3x32x128xbf16, #tpu.memory_space<vmem>>, vector<1x32x128xbf16>
    %1177 = vector.shape_cast %1176 : vector<1x32x128xbf16> to vector<32x128xbf16>
    %cst_542 = arith.constant dense<0.000000e+00> : vector<17x128xf32>
    %1178 = tpu.matmul %1175, %1177, %cst_542 {dimension_numbers = #tpu.dot_dimension_numbers<[1], [0], [0], [1], [0, 0, 1, 1], [], []>} : vector<17x32xbf16>, vector<32x128xbf16>, vector<17x128xf32> -> vector<17x128xf32>
    %c1_543 = arith.constant 1 : index
    %c0_544 = arith.constant 0 : index
    %c0_545 = arith.constant 0 : index
    %1179 = vector.load %arg15[%c1_543, %c0_544, %c0_545] : memref<3x1x128xf32, #tpu.memory_space<vmem>>, vector<1x1x128xf32>
    %1180 = vector.shape_cast %1179 : vector<1x1x128xf32> to vector<1x128xf32>
    %1181 = vector.broadcast %1180 : vector<1x128xf32> to vector<17x128xf32>
    %1182 = arith.addf %1178, %1181 : vector<17x128xf32>
    %1183 = arith.mulf %1182, %1182 : vector<17x128xf32>
    %1184 = arith.mulf %1182, %1183 : vector<17x128xf32>
    %cst_546 = arith.constant 4.471500e-02 : f32
    %1185 = vector.broadcast %cst_546 : f32 to vector<17x128xf32>
    %1186 = arith.mulf %1185, %1184 : vector<17x128xf32>
    %1187 = arith.addf %1182, %1186 : vector<17x128xf32>
    %cst_547 = arith.constant 0.797884583 : f32
    %1188 = vector.broadcast %cst_547 : f32 to vector<17x128xf32>
    %1189 = arith.mulf %1188, %1187 : vector<17x128xf32>
    %1190 = math.tanh %1189 : vector<17x128xf32>
    %cst_548 = arith.constant 1.000000e+00 : f32
    %1191 = vector.broadcast %cst_548 : f32 to vector<17x128xf32>
    %1192 = arith.addf %1191, %1190 : vector<17x128xf32>
    %cst_549 = arith.constant 5.000000e-01 : f32
    %1193 = vector.broadcast %cst_549 : f32 to vector<17x128xf32>
    %1194 = arith.mulf %1193, %1192 : vector<17x128xf32>
    %1195 = arith.mulf %1182, %1194 : vector<17x128xf32>
    %1196 = arith.truncf %1195 : vector<17x128xf32> to vector<17x128xbf16>
    %c1_550 = arith.constant 1 : index
    %c0_551 = arith.constant 0 : index
    %c0_552 = arith.constant 0 : index
    %1197 = vector.load %arg16[%c1_550, %c0_551, %c0_552] : memref<3x128x32xbf16, #tpu.memory_space<vmem>>, vector<1x128x32xbf16>
    %1198 = vector.shape_cast %1197 : vector<1x128x32xbf16> to vector<128x32xbf16>
    %cst_553 = arith.constant dense<0.000000e+00> : vector<17x32xf32>
    %1199 = tpu.matmul %1196, %1198, %cst_553 {dimension_numbers = #tpu.dot_dimension_numbers<[1], [0], [0], [1], [0, 0, 1, 1], [], []>} : vector<17x128xbf16>, vector<128x32xbf16>, vector<17x32xf32> -> vector<17x32xf32>
    %c1_554 = arith.constant 1 : index
    %c0_555 = arith.constant 0 : index
    %c0_556 = arith.constant 0 : index
    %1200 = vector.load %arg17[%c1_554, %c0_555, %c0_556] : memref<3x1x32xf32, #tpu.memory_space<vmem>>, vector<1x1x32xf32>
    %1201 = vector.shape_cast %1200 : vector<1x1x32xf32> to vector<1x32xf32>
    %1202 = vector.broadcast %1201 : vector<1x32xf32> to vector<17x32xf32>
    %1203 = arith.addf %1199, %1202 : vector<17x32xf32>
    %1204 = arith.addf %1148, %1203 : vector<17x32xf32>
    %1205 = vector.extract_strided_slice %1204 {offsets = [0, 0], sizes = [16, 32], strides = [1, 1]} : vector<17x32xf32> to vector<16x32xf32>
    %c1_557 = arith.constant 1 : index
    %c0_558 = arith.constant 0 : index
    %c32_559 = arith.constant 32 : index
    %1206 = vector.load %arg33[%c1_557, %c0_558, %c32_559] : memref<2x16x256xf32, #tpu.memory_space<vmem>>, vector<1x16x32xf32>
    %1207 = vector.shape_cast %1206 : vector<1x16x32xf32> to vector<16x32xf32>
    %1208 = vector.shape_cast %1205 : vector<16x32xf32> to vector<1x16x32xf32>
    tpu.vector_store %arg33[%c1_557, %c0_558, %c32_559], %1208 {strides = array<i32>} : memref<2x16x256xf32, #tpu.memory_space<vmem>>, vector<1x16x32xf32>,
    %c2_560 = arith.constant 2 : index
    %c0_561 = arith.constant 0 : index
    %c0_562 = arith.constant 0 : index
    %1209 = vector.load %arg6[%c2_560, %c0_561, %c0_562] : memref<3x1x32xf32, #tpu.memory_space<vmem>>, vector<1x1x32xf32>
    %1210 = vector.shape_cast %1209 : vector<1x1x32xf32> to vector<1x32xf32>
    %c2_563 = arith.constant 2 : index
    %c0_564 = arith.constant 0 : index
    %c0_565 = arith.constant 0 : index
    %1211 = vector.load %arg7[%c2_563, %c0_564, %c0_565] : memref<3x1x32xf32, #tpu.memory_space<vmem>>, vector<1x1x32xf32>
    %1212 = vector.shape_cast %1211 : vector<1x1x32xf32> to vector<1x32xf32>
    %cst_566 = arith.constant dense<0.000000e+00> : vector<17xf32>
    %1213 = vector.multi_reduction <add>, %1204, %cst_566 [1] : vector<17x32xf32> to vector<17xf32>
    %1214 = vector.shape_cast %1213 : vector<17xf32> to vector<17x1xf32>
    %cst_567 = arith.constant 3.200000e+01 : f32
    %1215 = vector.broadcast %cst_567 : f32 to vector<17x1xf32>
    %1216 = arith.divf %1214, %1215 : vector<17x1xf32>
    %1217 = vector.broadcast %1216 : vector<17x1xf32> to vector<17x32xf32>
    %1218 = arith.subf %1204, %1217 : vector<17x32xf32>
    %1219 = arith.mulf %1218, %1218 : vector<17x32xf32>
    %cst_568 = arith.constant dense<0.000000e+00> : vector<17xf32>
    %1220 = vector.multi_reduction <add>, %1219, %cst_568 [1] : vector<17x32xf32> to vector<17xf32>
    %1221 = vector.shape_cast %1220 : vector<17xf32> to vector<17x1xf32>
    %cst_569 = arith.constant 3.200000e+01 : f32
    %1222 = vector.broadcast %cst_569 : f32 to vector<17x1xf32>
    %1223 = arith.divf %1221, %1222 : vector<17x1xf32>
    %1224 = vector.broadcast %1216 : vector<17x1xf32> to vector<17x32xf32>
    %1225 = arith.subf %1204, %1224 : vector<17x32xf32>
    %cst_570 = arith.constant 9.99999997E-7 : f32
    %1226 = vector.broadcast %cst_570 : f32 to vector<17x1xf32>
    %1227 = arith.addf %1223, %1226 : vector<17x1xf32>
    %1228 = math.rsqrt %1227 : vector<17x1xf32>
    %1229 = vector.broadcast %1228 : vector<17x1xf32> to vector<17x32xf32>
    %1230 = arith.mulf %1225, %1229 : vector<17x32xf32>
    %1231 = vector.broadcast %1210 : vector<1x32xf32> to vector<17x32xf32>
    %1232 = arith.mulf %1230, %1231 : vector<17x32xf32>
    %1233 = vector.broadcast %1212 : vector<1x32xf32> to vector<17x32xf32>
    %1234 = arith.addf %1232, %1233 : vector<17x32xf32>
    %1235 = arith.truncf %1234 : vector<17x32xf32> to vector<17x32xbf16>
    %c2_571 = arith.constant 2 : index
    %c0_572 = arith.constant 0 : index
    %c0_573 = arith.constant 0 : index
    %1236 = vector.load %arg8[%c2_571, %c0_572, %c0_573] : memref<3x32x96xbf16, #tpu.memory_space<vmem>>, vector<1x32x96xbf16>
    %1237 = vector.shape_cast %1236 : vector<1x32x96xbf16> to vector<32x96xbf16>
    %cst_574 = arith.constant dense<0.000000e+00> : vector<17x96xf32>
    %1238 = tpu.matmul %1235, %1237, %cst_574 {dimension_numbers = #tpu.dot_dimension_numbers<[1], [0], [0], [1], [0, 0, 1, 1], [], []>} : vector<17x32xbf16>, vector<32x96xbf16>, vector<17x96xf32> -> vector<17x96xf32>
    %c2_575 = arith.constant 2 : index
    %c0_576 = arith.constant 0 : index
    %c0_577 = arith.constant 0 : index
    %1239 = vector.load %arg9[%c2_575, %c0_576, %c0_577] : memref<3x1x96xf32, #tpu.memory_space<vmem>>, vector<1x1x96xf32>
    %1240 = vector.shape_cast %1239 : vector<1x1x96xf32> to vector<1x96xf32>
    %1241 = vector.broadcast %1240 : vector<1x96xf32> to vector<17x96xf32>
    %1242 = arith.addf %1238, %1241 : vector<17x96xf32>
    %1243 = vector.extract_strided_slice %1242 {offsets = [0, 0], sizes = [17, 16], strides = [1, 1]} : vector<17x96xf32> to vector<17x16xf32>
    %1244 = arith.truncf %1243 : vector<17x16xf32> to vector<17x16xbf16>
    %1245 = vector.extract_strided_slice %1242 {offsets = [0, 32], sizes = [17, 16], strides = [1, 1]} : vector<17x96xf32> to vector<17x16xf32>
    %1246 = arith.truncf %1245 : vector<17x16xf32> to vector<17x16xbf16>
    %1247 = vector.extract_strided_slice %1242 {offsets = [0, 64], sizes = [17, 16], strides = [1, 1]} : vector<17x96xf32> to vector<17x16xf32>
    %1248 = arith.truncf %1247 : vector<17x16xf32> to vector<17x16xbf16>
    %cst_578 = arith.constant dense<0.000000e+00> : vector<17x17xf32>
    %1249 = tpu.matmul %1244, %1246, %cst_578 {dimension_numbers = #tpu.dot_dimension_numbers<[1], [1], [0], [0], [0, 0, 1, 0], [], []>} : vector<17x16xbf16>, vector<17x16xbf16>, vector<17x17xf32> -> vector<17x17xf32>
    %cst_579 = arith.constant dense<0xFF800000> : vector<17xf32>
    %1250 = vector.multi_reduction <maximumf>, %1249, %cst_579 [1] : vector<17x17xf32> to vector<17xf32>
    %1251 = vector.shape_cast %1250 : vector<17xf32> to vector<17x1xf32>
    %1252 = vector.broadcast %1251 : vector<17x1xf32> to vector<17x17xf32>
    %1253 = arith.subf %1249, %1252 : vector<17x17xf32>
    %1254 = math.exp %1253 : vector<17x17xf32>
    %cst_580 = arith.constant dense<0.000000e+00> : vector<17xf32>
    %1255 = vector.multi_reduction <add>, %1254, %cst_580 [1] : vector<17x17xf32> to vector<17xf32>
    %1256 = vector.shape_cast %1255 : vector<17xf32> to vector<17x1xf32>
    %1257 = tpu.reciprocal %1256 {approx = true} : vector<17x1xf32> -> vector<17x1xf32>
    %1258 = vector.broadcast %1257 : vector<17x1xf32> to vector<17x17xf32>
    %1259 = arith.mulf %1254, %1258 : vector<17x17xf32>
    %1260 = arith.truncf %1259 : vector<17x17xf32> to vector<17x17xbf16>
    %cst_581 = arith.constant dense<0.000000e+00> : vector<17x16xf32>
    %1261 = tpu.matmul %1260, %1248, %cst_581 {dimension_numbers = #tpu.dot_dimension_numbers<[1], [0], [0], [1], [0, 0, 1, 1], [], []>} : vector<17x17xbf16>, vector<17x16xbf16>, vector<17x16xf32> -> vector<17x16xf32>
    %1262 = vector.extract_strided_slice %1242 {offsets = [0, 16], sizes = [17, 16], strides = [1, 1]} : vector<17x96xf32> to vector<17x16xf32>
    %1263 = arith.truncf %1262 : vector<17x16xf32> to vector<17x16xbf16>
    %1264 = vector.extract_strided_slice %1242 {offsets = [0, 48], sizes = [17, 16], strides = [1, 1]} : vector<17x96xf32> to vector<17x16xf32>
    %1265 = arith.truncf %1264 : vector<17x16xf32> to vector<17x16xbf16>
    %1266 = vector.extract_strided_slice %1242 {offsets = [0, 80], sizes = [17, 16], strides = [1, 1]} : vector<17x96xf32> to vector<17x16xf32>
    %1267 = arith.truncf %1266 : vector<17x16xf32> to vector<17x16xbf16>
    %cst_582 = arith.constant dense<0.000000e+00> : vector<17x17xf32>
    %1268 = tpu.matmul %1263, %1265, %cst_582 {dimension_numbers = #tpu.dot_dimension_numbers<[1], [1], [0], [0], [0, 0, 1, 0], [], []>} : vector<17x16xbf16>, vector<17x16xbf16>, vector<17x17xf32> -> vector<17x17xf32>
    %cst_583 = arith.constant dense<0xFF800000> : vector<17xf32>
    %1269 = vector.multi_reduction <maximumf>, %1268, %cst_583 [1] : vector<17x17xf32> to vector<17xf32>
    %1270 = vector.shape_cast %1269 : vector<17xf32> to vector<17x1xf32>
    %1271 = vector.broadcast %1270 : vector<17x1xf32> to vector<17x17xf32>
    %1272 = arith.subf %1268, %1271 : vector<17x17xf32>
    %1273 = math.exp %1272 : vector<17x17xf32>
    %cst_584 = arith.constant dense<0.000000e+00> : vector<17xf32>
    %1274 = vector.multi_reduction <add>, %1273, %cst_584 [1] : vector<17x17xf32> to vector<17xf32>
    %1275 = vector.shape_cast %1274 : vector<17xf32> to vector<17x1xf32>
    %1276 = tpu.reciprocal %1275 {approx = true} : vector<17x1xf32> -> vector<17x1xf32>
    %1277 = vector.broadcast %1276 : vector<17x1xf32> to vector<17x17xf32>
    %1278 = arith.mulf %1273, %1277 : vector<17x17xf32>
    %1279 = arith.truncf %1278 : vector<17x17xf32> to vector<17x17xbf16>
    %cst_585 = arith.constant dense<0.000000e+00> : vector<17x16xf32>
    %1280 = tpu.matmul %1279, %1267, %cst_585 {dimension_numbers = #tpu.dot_dimension_numbers<[1], [0], [0], [1], [0, 0, 1, 1], [], []>} : vector<17x17xbf16>, vector<17x16xbf16>, vector<17x16xf32> -> vector<17x16xf32>
    %c2_586 = arith.constant 2 : index
    %c0_587 = arith.constant 0 : index
    %c0_588 = arith.constant 0 : index
    %1281 = vector.load %arg10[%c2_586, %c0_587, %c0_588] : memref<3x32x32xbf16, #tpu.memory_space<vmem>>, vector<1x32x32xbf16>
    %1282 = vector.shape_cast %1281 : vector<1x32x32xbf16> to vector<32x32xbf16>
    %1283 = arith.truncf %1261 : vector<17x16xf32> to vector<17x16xbf16>
    %1284 = vector.extract_strided_slice %1282 {offsets = [0, 0], sizes = [16, 32], strides = [1, 1]} : vector<32x32xbf16> to vector<16x32xbf16>
    %cst_589 = arith.constant dense<0.000000e+00> : vector<17x32xf32>
    %1285 = tpu.matmul %1283, %1284, %cst_589 {dimension_numbers = #tpu.dot_dimension_numbers<[1], [0], [0], [1], [0, 0, 1, 1], [], []>} : vector<17x16xbf16>, vector<16x32xbf16>, vector<17x32xf32> -> vector<17x32xf32>
    %1286 = arith.truncf %1280 : vector<17x16xf32> to vector<17x16xbf16>
    %1287 = vector.extract_strided_slice %1282 {offsets = [16, 0], sizes = [16, 32], strides = [1, 1]} : vector<32x32xbf16> to vector<16x32xbf16>
    %cst_590 = arith.constant dense<0.000000e+00> : vector<17x32xf32>
    %1288 = tpu.matmul %1286, %1287, %cst_590 {dimension_numbers = #tpu.dot_dimension_numbers<[1], [0], [0], [1], [0, 0, 1, 1], [], []>} : vector<17x16xbf16>, vector<16x32xbf16>, vector<17x32xf32> -> vector<17x32xf32>
    %1289 = arith.addf %1285, %1288 : vector<17x32xf32>
    %c2_591 = arith.constant 2 : index
    %c0_592 = arith.constant 0 : index
    %c0_593 = arith.constant 0 : index
    %1290 = vector.load %arg11[%c2_591, %c0_592, %c0_593] : memref<3x1x32xf32, #tpu.memory_space<vmem>>, vector<1x1x32xf32>
    %1291 = vector.shape_cast %1290 : vector<1x1x32xf32> to vector<1x32xf32>
    %1292 = vector.broadcast %1291 : vector<1x32xf32> to vector<17x32xf32>
    %1293 = arith.addf %1289, %1292 : vector<17x32xf32>
    %1294 = arith.addf %1204, %1293 : vector<17x32xf32>
    %c2_594 = arith.constant 2 : index
    %c0_595 = arith.constant 0 : index
    %c0_596 = arith.constant 0 : index
    %1295 = vector.load %arg12[%c2_594, %c0_595, %c0_596] : memref<3x1x32xf32, #tpu.memory_space<vmem>>, vector<1x1x32xf32>
    %1296 = vector.shape_cast %1295 : vector<1x1x32xf32> to vector<1x32xf32>
    %c2_597 = arith.constant 2 : index
    %c0_598 = arith.constant 0 : index
    %c0_599 = arith.constant 0 : index
    %1297 = vector.load %arg13[%c2_597, %c0_598, %c0_599] : memref<3x1x32xf32, #tpu.memory_space<vmem>>, vector<1x1x32xf32>
    %1298 = vector.shape_cast %1297 : vector<1x1x32xf32> to vector<1x32xf32>
    %cst_600 = arith.constant dense<0.000000e+00> : vector<17xf32>
    %1299 = vector.multi_reduction <add>, %1294, %cst_600 [1] : vector<17x32xf32> to vector<17xf32>
    %1300 = vector.shape_cast %1299 : vector<17xf32> to vector<17x1xf32>
    %cst_601 = arith.constant 3.200000e+01 : f32
    %1301 = vector.broadcast %cst_601 : f32 to vector<17x1xf32>
    %1302 = arith.divf %1300, %1301 : vector<17x1xf32>
    %1303 = vector.broadcast %1302 : vector<17x1xf32> to vector<17x32xf32>
    %1304 = arith.subf %1294, %1303 : vector<17x32xf32>
    %1305 = arith.mulf %1304, %1304 : vector<17x32xf32>
    %cst_602 = arith.constant dense<0.000000e+00> : vector<17xf32>
    %1306 = vector.multi_reduction <add>, %1305, %cst_602 [1] : vector<17x32xf32> to vector<17xf32>
    %1307 = vector.shape_cast %1306 : vector<17xf32> to vector<17x1xf32>
    %cst_603 = arith.constant 3.200000e+01 : f32
    %1308 = vector.broadcast %cst_603 : f32 to vector<17x1xf32>
    %1309 = arith.divf %1307, %1308 : vector<17x1xf32>
    %1310 = vector.broadcast %1302 : vector<17x1xf32> to vector<17x32xf32>
    %1311 = arith.subf %1294, %1310 : vector<17x32xf32>
    %cst_604 = arith.constant 9.99999997E-7 : f32
    %1312 = vector.broadcast %cst_604 : f32 to vector<17x1xf32>
    %1313 = arith.addf %1309, %1312 : vector<17x1xf32>
    %1314 = math.rsqrt %1313 : vector<17x1xf32>
    %1315 = vector.broadcast %1314 : vector<17x1xf32> to vector<17x32xf32>
    %1316 = arith.mulf %1311, %1315 : vector<17x32xf32>
    %1317 = vector.broadcast %1296 : vector<1x32xf32> to vector<17x32xf32>
    %1318 = arith.mulf %1316, %1317 : vector<17x32xf32>
    %1319 = vector.broadcast %1298 : vector<1x32xf32> to vector<17x32xf32>
    %1320 = arith.addf %1318, %1319 : vector<17x32xf32>
    %1321 = arith.truncf %1320 : vector<17x32xf32> to vector<17x32xbf16>
    %c2_605 = arith.constant 2 : index
    %c0_606 = arith.constant 0 : index
    %c0_607 = arith.constant 0 : index
    %1322 = vector.load %arg14[%c2_605, %c0_606, %c0_607] : memref<3x32x128xbf16, #tpu.memory_space<vmem>>, vector<1x32x128xbf16>
    %1323 = vector.shape_cast %1322 : vector<1x32x128xbf16> to vector<32x128xbf16>
    %cst_608 = arith.constant dense<0.000000e+00> : vector<17x128xf32>
    %1324 = tpu.matmul %1321, %1323, %cst_608 {dimension_numbers = #tpu.dot_dimension_numbers<[1], [0], [0], [1], [0, 0, 1, 1], [], []>} : vector<17x32xbf16>, vector<32x128xbf16>, vector<17x128xf32> -> vector<17x128xf32>
    %c2_609 = arith.constant 2 : index
    %c0_610 = arith.constant 0 : index
    %c0_611 = arith.constant 0 : index
    %1325 = vector.load %arg15[%c2_609, %c0_610, %c0_611] : memref<3x1x128xf32, #tpu.memory_space<vmem>>, vector<1x1x128xf32>
    %1326 = vector.shape_cast %1325 : vector<1x1x128xf32> to vector<1x128xf32>
    %1327 = vector.broadcast %1326 : vector<1x128xf32> to vector<17x128xf32>
    %1328 = arith.addf %1324, %1327 : vector<17x128xf32>
    %1329 = arith.mulf %1328, %1328 : vector<17x128xf32>
    %1330 = arith.mulf %1328, %1329 : vector<17x128xf32>
    %cst_612 = arith.constant 4.471500e-02 : f32
    %1331 = vector.broadcast %cst_612 : f32 to vector<17x128xf32>
    %1332 = arith.mulf %1331, %1330 : vector<17x128xf32>
    %1333 = arith.addf %1328, %1332 : vector<17x128xf32>
    %cst_613 = arith.constant 0.797884583 : f32
    %1334 = vector.broadcast %cst_613 : f32 to vector<17x128xf32>
    %1335 = arith.mulf %1334, %1333 : vector<17x128xf32>
    %1336 = math.tanh %1335 : vector<17x128xf32>
    %cst_614 = arith.constant 1.000000e+00 : f32
    %1337 = vector.broadcast %cst_614 : f32 to vector<17x128xf32>
    %1338 = arith.addf %1337, %1336 : vector<17x128xf32>
    %cst_615 = arith.constant 5.000000e-01 : f32
    %1339 = vector.broadcast %cst_615 : f32 to vector<17x128xf32>
    %1340 = arith.mulf %1339, %1338 : vector<17x128xf32>
    %1341 = arith.mulf %1328, %1340 : vector<17x128xf32>
    %1342 = arith.truncf %1341 : vector<17x128xf32> to vector<17x128xbf16>
    %c2_616 = arith.constant 2 : index
    %c0_617 = arith.constant 0 : index
    %c0_618 = arith.constant 0 : index
    %1343 = vector.load %arg16[%c2_616, %c0_617, %c0_618] : memref<3x128x32xbf16, #tpu.memory_space<vmem>>, vector<1x128x32xbf16>
    %1344 = vector.shape_cast %1343 : vector<1x128x32xbf16> to vector<128x32xbf16>
    %cst_619 = arith.constant dense<0.000000e+00> : vector<17x32xf32>
    %1345 = tpu.matmul %1342, %1344, %cst_619 {dimension_numbers = #tpu.dot_dimension_numbers<[1], [0], [0], [1], [0, 0, 1, 1], [], []>} : vector<17x128xbf16>, vector<128x32xbf16>, vector<17x32xf32> -> vector<17x32xf32>
    %c2_620 = arith.constant 2 : index
    %c0_621 = arith.constant 0 : index
    %c0_622 = arith.constant 0 : index
    %1346 = vector.load %arg17[%c2_620, %c0_621, %c0_622] : memref<3x1x32xf32, #tpu.memory_space<vmem>>, vector<1x1x32xf32>
    %1347 = vector.shape_cast %1346 : vector<1x1x32xf32> to vector<1x32xf32>
    %1348 = vector.broadcast %1347 : vector<1x32xf32> to vector<17x32xf32>
    %1349 = arith.addf %1345, %1348 : vector<17x32xf32>
    %1350 = arith.addf %1294, %1349 : vector<17x32xf32>
    %1351 = vector.extract_strided_slice %1350 {offsets = [0, 0], sizes = [16, 32], strides = [1, 1]} : vector<17x32xf32> to vector<16x32xf32>
    %c1_623 = arith.constant 1 : index
    %c0_624 = arith.constant 0 : index
    %c64_625 = arith.constant 64 : index
    %1352 = vector.load %arg33[%c1_623, %c0_624, %c64_625] : memref<2x16x256xf32, #tpu.memory_space<vmem>>, vector<1x16x32xf32>
    %1353 = vector.shape_cast %1352 : vector<1x16x32xf32> to vector<16x32xf32>
    %1354 = vector.shape_cast %1351 : vector<16x32xf32> to vector<1x16x32xf32>
    tpu.vector_store %arg33[%c1_623, %c0_624, %c64_625], %1354 {strides = array<i32>} : memref<2x16x256xf32, #tpu.memory_space<vmem>>, vector<1x16x32xf32>,
    %1355 = arith.truncf %1205 : vector<16x32xf32> to vector<16x32xbf16>
    %c0_626 = arith.constant 0 : index
    %c0_627 = arith.constant 0 : index
    %1356 = vector.load %arg18[%c0_626, %c0_627] : memref<64x32xbf16, #tpu.memory_space<vmem>>, vector<32x32xbf16>
    %cst_628 = arith.constant dense<0.000000e+00> : vector<16x32xf32>
    %1357 = tpu.matmul %1355, %1356, %cst_628 {dimension_numbers = #tpu.dot_dimension_numbers<[1], [0], [0], [1], [0, 0, 1, 1], [], []>} : vector<16x32xbf16>, vector<32x32xbf16>, vector<16x32xf32> -> vector<16x32xf32>
    %1358 = arith.truncf %1351 : vector<16x32xf32> to vector<16x32xbf16>
    %c32_629 = arith.constant 32 : index
    %c0_630 = arith.constant 0 : index
    %1359 = vector.load %arg18[%c32_629, %c0_630] : memref<64x32xbf16, #tpu.memory_space<vmem>>, vector<32x32xbf16>
    %cst_631 = arith.constant dense<0.000000e+00> : vector<16x32xf32>
    %1360 = tpu.matmul %1358, %1359, %cst_631 {dimension_numbers = #tpu.dot_dimension_numbers<[1], [0], [0], [1], [0, 0, 1, 1], [], []>} : vector<16x32xbf16>, vector<32x32xbf16>, vector<16x32xf32> -> vector<16x32xf32>
    %1361 = arith.addf %1357, %1360 : vector<16x32xf32>
    %c0_632 = arith.constant 0 : index
    %c0_633 = arith.constant 0 : index
    %1362 = vector.load %arg19[%c0_632, %c0_633] : memref<1x32xf32, #tpu.memory_space<vmem>>, vector<1x32xf32>
    %1363 = vector.broadcast %1362 : vector<1x32xf32> to vector<16x32xf32>
    %1364 = arith.addf %1361, %1363 : vector<16x32xf32>
    %c0_634 = arith.constant 0 : index
    %c0_635 = arith.constant 0 : index
    %1365 = vector.load %arg20[%c0_634, %c0_635] : memref<16x32xf32, #tpu.memory_space<vmem>>, vector<16x32xf32>
    %1366 = arith.addf %1364, %1365 : vector<16x32xf32>
    %c0_636 = arith.constant 0 : index
    %c0_637 = arith.constant 0 : index
    %c0_638 = arith.constant 0 : index
    %1367 = vector.load %arg21[%c0_636, %c0_637, %c0_638] : memref<3x1x32xf32, #tpu.memory_space<vmem>>, vector<1x1x32xf32>
    %1368 = vector.shape_cast %1367 : vector<1x1x32xf32> to vector<1x32xf32>
    %c0_639 = arith.constant 0 : index
    %c0_640 = arith.constant 0 : index
    %c0_641 = arith.constant 0 : index
    %1369 = vector.load %arg22[%c0_639, %c0_640, %c0_641] : memref<3x1x32xf32, #tpu.memory_space<vmem>>, vector<1x1x32xf32>
    %1370 = vector.shape_cast %1369 : vector<1x1x32xf32> to vector<1x32xf32>
    %cst_642 = arith.constant dense<0.000000e+00> : vector<16xf32>
    %1371 = vector.multi_reduction <add>, %1366, %cst_642 [1] : vector<16x32xf32> to vector<16xf32>
    %1372 = vector.shape_cast %1371 : vector<16xf32> to vector<16x1xf32>
    %cst_643 = arith.constant 3.200000e+01 : f32
    %1373 = vector.broadcast %cst_643 : f32 to vector<16x1xf32>
    %1374 = arith.divf %1372, %1373 : vector<16x1xf32>
    %1375 = vector.broadcast %1374 : vector<16x1xf32> to vector<16x32xf32>
    %1376 = arith.subf %1366, %1375 : vector<16x32xf32>
    %1377 = arith.mulf %1376, %1376 : vector<16x32xf32>
    %cst_644 = arith.constant dense<0.000000e+00> : vector<16xf32>
    %1378 = vector.multi_reduction <add>, %1377, %cst_644 [1] : vector<16x32xf32> to vector<16xf32>
    %1379 = vector.shape_cast %1378 : vector<16xf32> to vector<16x1xf32>
    %cst_645 = arith.constant 3.200000e+01 : f32
    %1380 = vector.broadcast %cst_645 : f32 to vector<16x1xf32>
    %1381 = arith.divf %1379, %1380 : vector<16x1xf32>
    %1382 = vector.broadcast %1374 : vector<16x1xf32> to vector<16x32xf32>
    %1383 = arith.subf %1366, %1382 : vector<16x32xf32>
    %cst_646 = arith.constant 9.99999997E-7 : f32
    %1384 = vector.broadcast %cst_646 : f32 to vector<16x1xf32>
    %1385 = arith.addf %1381, %1384 : vector<16x1xf32>
    %1386 = math.rsqrt %1385 : vector<16x1xf32>
    %1387 = vector.broadcast %1386 : vector<16x1xf32> to vector<16x32xf32>
    %1388 = arith.mulf %1383, %1387 : vector<16x32xf32>
    %1389 = vector.broadcast %1368 : vector<1x32xf32> to vector<16x32xf32>
    %1390 = arith.mulf %1388, %1389 : vector<16x32xf32>
    %1391 = vector.broadcast %1370 : vector<1x32xf32> to vector<16x32xf32>
    %1392 = arith.addf %1390, %1391 : vector<16x32xf32>
    %1393 = arith.truncf %1392 : vector<16x32xf32> to vector<16x32xbf16>
    %c0_647 = arith.constant 0 : index
    %c0_648 = arith.constant 0 : index
    %c0_649 = arith.constant 0 : index
    %1394 = vector.load %arg23[%c0_647, %c0_648, %c0_649] : memref<3x32x96xbf16, #tpu.memory_space<vmem>>, vector<1x32x96xbf16>
    %1395 = vector.shape_cast %1394 : vector<1x32x96xbf16> to vector<32x96xbf16>
    %cst_650 = arith.constant dense<0.000000e+00> : vector<16x96xf32>
    %1396 = tpu.matmul %1393, %1395, %cst_650 {dimension_numbers = #tpu.dot_dimension_numbers<[1], [0], [0], [1], [0, 0, 1, 1], [], []>} : vector<16x32xbf16>, vector<32x96xbf16>, vector<16x96xf32> -> vector<16x96xf32>
    %c0_651 = arith.constant 0 : index
    %c0_652 = arith.constant 0 : index
    %c0_653 = arith.constant 0 : index
    %1397 = vector.load %arg24[%c0_651, %c0_652, %c0_653] : memref<3x1x96xf32, #tpu.memory_space<vmem>>, vector<1x1x96xf32>
    %1398 = vector.shape_cast %1397 : vector<1x1x96xf32> to vector<1x96xf32>
    %1399 = vector.broadcast %1398 : vector<1x96xf32> to vector<16x96xf32>
    %1400 = arith.addf %1396, %1399 : vector<16x96xf32>
    %1401 = vector.extract_strided_slice %1400 {offsets = [0, 0], sizes = [16, 16], strides = [1, 1]} : vector<16x96xf32> to vector<16x16xf32>
    %1402 = arith.truncf %1401 : vector<16x16xf32> to vector<16x16xbf16>
    %1403 = vector.extract_strided_slice %1400 {offsets = [0, 32], sizes = [16, 16], strides = [1, 1]} : vector<16x96xf32> to vector<16x16xf32>
    %1404 = arith.truncf %1403 : vector<16x16xf32> to vector<16x16xbf16>
    %1405 = vector.extract_strided_slice %1400 {offsets = [0, 64], sizes = [16, 16], strides = [1, 1]} : vector<16x96xf32> to vector<16x16xf32>
    %1406 = arith.truncf %1405 : vector<16x16xf32> to vector<16x16xbf16>
    %cst_654 = arith.constant dense<0.000000e+00> : vector<16x16xf32>
    %1407 = tpu.matmul %1402, %1404, %cst_654 {dimension_numbers = #tpu.dot_dimension_numbers<[1], [1], [0], [0], [0, 0, 1, 0], [], []>} : vector<16x16xbf16>, vector<16x16xbf16>, vector<16x16xf32> -> vector<16x16xf32>
    %cst_655 = arith.constant dense<0xFF800000> : vector<16xf32>
    %1408 = vector.multi_reduction <maximumf>, %1407, %cst_655 [1] : vector<16x16xf32> to vector<16xf32>
    %1409 = vector.shape_cast %1408 : vector<16xf32> to vector<16x1xf32>
    %1410 = vector.broadcast %1409 : vector<16x1xf32> to vector<16x16xf32>
    %1411 = arith.subf %1407, %1410 : vector<16x16xf32>
    %1412 = math.exp %1411 : vector<16x16xf32>
    %cst_656 = arith.constant dense<0.000000e+00> : vector<16xf32>
    %1413 = vector.multi_reduction <add>, %1412, %cst_656 [1] : vector<16x16xf32> to vector<16xf32>
    %1414 = vector.shape_cast %1413 : vector<16xf32> to vector<16x1xf32>
    %1415 = tpu.reciprocal %1414 {approx = true} : vector<16x1xf32> -> vector<16x1xf32>
    %1416 = vector.broadcast %1415 : vector<16x1xf32> to vector<16x16xf32>
    %1417 = arith.mulf %1412, %1416 : vector<16x16xf32>
    %1418 = arith.truncf %1417 : vector<16x16xf32> to vector<16x16xbf16>
    %cst_657 = arith.constant dense<0.000000e+00> : vector<16x16xf32>
    %1419 = tpu.matmul %1418, %1406, %cst_657 {dimension_numbers = #tpu.dot_dimension_numbers<[1], [0], [0], [1], [0, 0, 1, 1], [], []>} : vector<16x16xbf16>, vector<16x16xbf16>, vector<16x16xf32> -> vector<16x16xf32>
    %1420 = vector.extract_strided_slice %1400 {offsets = [0, 16], sizes = [16, 16], strides = [1, 1]} : vector<16x96xf32> to vector<16x16xf32>
    %1421 = arith.truncf %1420 : vector<16x16xf32> to vector<16x16xbf16>
    %1422 = vector.extract_strided_slice %1400 {offsets = [0, 48], sizes = [16, 16], strides = [1, 1]} : vector<16x96xf32> to vector<16x16xf32>
    %1423 = arith.truncf %1422 : vector<16x16xf32> to vector<16x16xbf16>
    %1424 = vector.extract_strided_slice %1400 {offsets = [0, 80], sizes = [16, 16], strides = [1, 1]} : vector<16x96xf32> to vector<16x16xf32>
    %1425 = arith.truncf %1424 : vector<16x16xf32> to vector<16x16xbf16>
    %cst_658 = arith.constant dense<0.000000e+00> : vector<16x16xf32>
    %1426 = tpu.matmul %1421, %1423, %cst_658 {dimension_numbers = #tpu.dot_dimension_numbers<[1], [1], [0], [0], [0, 0, 1, 0], [], []>} : vector<16x16xbf16>, vector<16x16xbf16>, vector<16x16xf32> -> vector<16x16xf32>
    %cst_659 = arith.constant dense<0xFF800000> : vector<16xf32>
    %1427 = vector.multi_reduction <maximumf>, %1426, %cst_659 [1] : vector<16x16xf32> to vector<16xf32>
    %1428 = vector.shape_cast %1427 : vector<16xf32> to vector<16x1xf32>
    %1429 = vector.broadcast %1428 : vector<16x1xf32> to vector<16x16xf32>
    %1430 = arith.subf %1426, %1429 : vector<16x16xf32>
    %1431 = math.exp %1430 : vector<16x16xf32>
    %cst_660 = arith.constant dense<0.000000e+00> : vector<16xf32>
    %1432 = vector.multi_reduction <add>, %1431, %cst_660 [1] : vector<16x16xf32> to vector<16xf32>
    %1433 = vector.shape_cast %1432 : vector<16xf32> to vector<16x1xf32>
    %1434 = tpu.reciprocal %1433 {approx = true} : vector<16x1xf32> -> vector<16x1xf32>
    %1435 = vector.broadcast %1434 : vector<16x1xf32> to vector<16x16xf32>
    %1436 = arith.mulf %1431, %1435 : vector<16x16xf32>
    %1437 = arith.truncf %1436 : vector<16x16xf32> to vector<16x16xbf16>
    %cst_661 = arith.constant dense<0.000000e+00> : vector<16x16xf32>
    %1438 = tpu.matmul %1437, %1425, %cst_661 {dimension_numbers = #tpu.dot_dimension_numbers<[1], [0], [0], [1], [0, 0, 1, 1], [], []>} : vector<16x16xbf16>, vector<16x16xbf16>, vector<16x16xf32> -> vector<16x16xf32>
    %c0_662 = arith.constant 0 : index
    %c0_663 = arith.constant 0 : index
    %c0_664 = arith.constant 0 : index
    %1439 = vector.load %arg25[%c0_662, %c0_663, %c0_664] : memref<3x32x32xbf16, #tpu.memory_space<vmem>>, vector<1x32x32xbf16>
    %1440 = vector.shape_cast %1439 : vector<1x32x32xbf16> to vector<32x32xbf16>
    %1441 = arith.truncf %1419 : vector<16x16xf32> to vector<16x16xbf16>
    %1442 = vector.extract_strided_slice %1440 {offsets = [0, 0], sizes = [16, 32], strides = [1, 1]} : vector<32x32xbf16> to vector<16x32xbf16>
    %cst_665 = arith.constant dense<0.000000e+00> : vector<16x32xf32>
    %1443 = tpu.matmul %1441, %1442, %cst_665 {dimension_numbers = #tpu.dot_dimension_numbers<[1], [0], [0], [1], [0, 0, 1, 1], [], []>} : vector<16x16xbf16>, vector<16x32xbf16>, vector<16x32xf32> -> vector<16x32xf32>
    %1444 = arith.truncf %1438 : vector<16x16xf32> to vector<16x16xbf16>
    %1445 = vector.extract_strided_slice %1440 {offsets = [16, 0], sizes = [16, 32], strides = [1, 1]} : vector<32x32xbf16> to vector<16x32xbf16>
    %cst_666 = arith.constant dense<0.000000e+00> : vector<16x32xf32>
    %1446 = tpu.matmul %1444, %1445, %cst_666 {dimension_numbers = #tpu.dot_dimension_numbers<[1], [0], [0], [1], [0, 0, 1, 1], [], []>} : vector<16x16xbf16>, vector<16x32xbf16>, vector<16x32xf32> -> vector<16x32xf32>
    %1447 = arith.addf %1443, %1446 : vector<16x32xf32>
    %c0_667 = arith.constant 0 : index
    %c0_668 = arith.constant 0 : index
    %c0_669 = arith.constant 0 : index
    %1448 = vector.load %arg26[%c0_667, %c0_668, %c0_669] : memref<3x1x32xf32, #tpu.memory_space<vmem>>, vector<1x1x32xf32>
    %1449 = vector.shape_cast %1448 : vector<1x1x32xf32> to vector<1x32xf32>
    %1450 = vector.broadcast %1449 : vector<1x32xf32> to vector<16x32xf32>
    %1451 = arith.addf %1447, %1450 : vector<16x32xf32>
    %1452 = arith.addf %1366, %1451 : vector<16x32xf32>
    %c0_670 = arith.constant 0 : index
    %c0_671 = arith.constant 0 : index
    %c0_672 = arith.constant 0 : index
    %1453 = vector.load %arg27[%c0_670, %c0_671, %c0_672] : memref<3x1x32xf32, #tpu.memory_space<vmem>>, vector<1x1x32xf32>
    %1454 = vector.shape_cast %1453 : vector<1x1x32xf32> to vector<1x32xf32>
    %c0_673 = arith.constant 0 : index
    %c0_674 = arith.constant 0 : index
    %c0_675 = arith.constant 0 : index
    %1455 = vector.load %arg28[%c0_673, %c0_674, %c0_675] : memref<3x1x32xf32, #tpu.memory_space<vmem>>, vector<1x1x32xf32>
    %1456 = vector.shape_cast %1455 : vector<1x1x32xf32> to vector<1x32xf32>
    %cst_676 = arith.constant dense<0.000000e+00> : vector<16xf32>
    %1457 = vector.multi_reduction <add>, %1452, %cst_676 [1] : vector<16x32xf32> to vector<16xf32>
    %1458 = vector.shape_cast %1457 : vector<16xf32> to vector<16x1xf32>
    %cst_677 = arith.constant 3.200000e+01 : f32
    %1459 = vector.broadcast %cst_677 : f32 to vector<16x1xf32>
    %1460 = arith.divf %1458, %1459 : vector<16x1xf32>
    %1461 = vector.broadcast %1460 : vector<16x1xf32> to vector<16x32xf32>
    %1462 = arith.subf %1452, %1461 : vector<16x32xf32>
    %1463 = arith.mulf %1462, %1462 : vector<16x32xf32>
    %cst_678 = arith.constant dense<0.000000e+00> : vector<16xf32>
    %1464 = vector.multi_reduction <add>, %1463, %cst_678 [1] : vector<16x32xf32> to vector<16xf32>
    %1465 = vector.shape_cast %1464 : vector<16xf32> to vector<16x1xf32>
    %cst_679 = arith.constant 3.200000e+01 : f32
    %1466 = vector.broadcast %cst_679 : f32 to vector<16x1xf32>
    %1467 = arith.divf %1465, %1466 : vector<16x1xf32>
    %1468 = vector.broadcast %1460 : vector<16x1xf32> to vector<16x32xf32>
    %1469 = arith.subf %1452, %1468 : vector<16x32xf32>
    %cst_680 = arith.constant 9.99999997E-7 : f32
    %1470 = vector.broadcast %cst_680 : f32 to vector<16x1xf32>
    %1471 = arith.addf %1467, %1470 : vector<16x1xf32>
    %1472 = math.rsqrt %1471 : vector<16x1xf32>
    %1473 = vector.broadcast %1472 : vector<16x1xf32> to vector<16x32xf32>
    %1474 = arith.mulf %1469, %1473 : vector<16x32xf32>
    %1475 = vector.broadcast %1454 : vector<1x32xf32> to vector<16x32xf32>
    %1476 = arith.mulf %1474, %1475 : vector<16x32xf32>
    %1477 = vector.broadcast %1456 : vector<1x32xf32> to vector<16x32xf32>
    %1478 = arith.addf %1476, %1477 : vector<16x32xf32>
    %1479 = arith.truncf %1478 : vector<16x32xf32> to vector<16x32xbf16>
    %c0_681 = arith.constant 0 : index
    %c0_682 = arith.constant 0 : index
    %c0_683 = arith.constant 0 : index
    %1480 = vector.load %arg29[%c0_681, %c0_682, %c0_683] : memref<3x32x128xbf16, #tpu.memory_space<vmem>>, vector<1x32x128xbf16>
    %1481 = vector.shape_cast %1480 : vector<1x32x128xbf16> to vector<32x128xbf16>
    %cst_684 = arith.constant dense<0.000000e+00> : vector<16x128xf32>
    %1482 = tpu.matmul %1479, %1481, %cst_684 {dimension_numbers = #tpu.dot_dimension_numbers<[1], [0], [0], [1], [0, 0, 1, 1], [], []>} : vector<16x32xbf16>, vector<32x128xbf16>, vector<16x128xf32> -> vector<16x128xf32>
    %c0_685 = arith.constant 0 : index
    %c0_686 = arith.constant 0 : index
    %c0_687 = arith.constant 0 : index
    %1483 = vector.load %arg30[%c0_685, %c0_686, %c0_687] : memref<3x1x128xf32, #tpu.memory_space<vmem>>, vector<1x1x128xf32>
    %1484 = vector.shape_cast %1483 : vector<1x1x128xf32> to vector<1x128xf32>
    %1485 = vector.broadcast %1484 : vector<1x128xf32> to vector<16x128xf32>
    %1486 = arith.addf %1482, %1485 : vector<16x128xf32>
    %1487 = arith.mulf %1486, %1486 : vector<16x128xf32>
    %1488 = arith.mulf %1486, %1487 : vector<16x128xf32>
    %cst_688 = arith.constant 4.471500e-02 : f32
    %1489 = vector.broadcast %cst_688 : f32 to vector<16x128xf32>
    %1490 = arith.mulf %1489, %1488 : vector<16x128xf32>
    %1491 = arith.addf %1486, %1490 : vector<16x128xf32>
    %cst_689 = arith.constant 0.797884583 : f32
    %1492 = vector.broadcast %cst_689 : f32 to vector<16x128xf32>
    %1493 = arith.mulf %1492, %1491 : vector<16x128xf32>
    %1494 = math.tanh %1493 : vector<16x128xf32>
    %cst_690 = arith.constant 1.000000e+00 : f32
    %1495 = vector.broadcast %cst_690 : f32 to vector<16x128xf32>
    %1496 = arith.addf %1495, %1494 : vector<16x128xf32>
    %cst_691 = arith.constant 5.000000e-01 : f32
    %1497 = vector.broadcast %cst_691 : f32 to vector<16x128xf32>
    %1498 = arith.mulf %1497, %1496 : vector<16x128xf32>
    %1499 = arith.mulf %1486, %1498 : vector<16x128xf32>
    %1500 = arith.truncf %1499 : vector<16x128xf32> to vector<16x128xbf16>
    %c0_692 = arith.constant 0 : index
    %c0_693 = arith.constant 0 : index
    %c0_694 = arith.constant 0 : index
    %1501 = vector.load %arg31[%c0_692, %c0_693, %c0_694] : memref<3x128x32xbf16, #tpu.memory_space<vmem>>, vector<1x128x32xbf16>
    %1502 = vector.shape_cast %1501 : vector<1x128x32xbf16> to vector<128x32xbf16>
    %cst_695 = arith.constant dense<0.000000e+00> : vector<16x32xf32>
    %1503 = tpu.matmul %1500, %1502, %cst_695 {dimension_numbers = #tpu.dot_dimension_numbers<[1], [0], [0], [1], [0, 0, 1, 1], [], []>} : vector<16x128xbf16>, vector<128x32xbf16>, vector<16x32xf32> -> vector<16x32xf32>
    %c0_696 = arith.constant 0 : index
    %c0_697 = arith.constant 0 : index
    %c0_698 = arith.constant 0 : index
    %1504 = vector.load %arg32[%c0_696, %c0_697, %c0_698] : memref<3x1x32xf32, #tpu.memory_space<vmem>>, vector<1x1x32xf32>
    %1505 = vector.shape_cast %1504 : vector<1x1x32xf32> to vector<1x32xf32>
    %1506 = vector.broadcast %1505 : vector<1x32xf32> to vector<16x32xf32>
    %1507 = arith.addf %1503, %1506 : vector<16x32xf32>
    %1508 = arith.addf %1452, %1507 : vector<16x32xf32>
    %c1_699 = arith.constant 1 : index
    %c0_700 = arith.constant 0 : index
    %c96_701 = arith.constant 96 : index
    %1509 = vector.load %arg33[%c1_699, %c0_700, %c96_701] : memref<2x16x256xf32, #tpu.memory_space<vmem>>, vector<1x16x32xf32>
    %1510 = vector.shape_cast %1509 : vector<1x16x32xf32> to vector<16x32xf32>
    %1511 = vector.shape_cast %1508 : vector<16x32xf32> to vector<1x16x32xf32>
    tpu.vector_store %arg33[%c1_699, %c0_700, %c96_701], %1511 {strides = array<i32>} : memref<2x16x256xf32, #tpu.memory_space<vmem>>, vector<1x16x32xf32>,
    %c1_702 = arith.constant 1 : index
    %c0_703 = arith.constant 0 : index
    %c0_704 = arith.constant 0 : index
    %1512 = vector.load %arg21[%c1_702, %c0_703, %c0_704] : memref<3x1x32xf32, #tpu.memory_space<vmem>>, vector<1x1x32xf32>
    %1513 = vector.shape_cast %1512 : vector<1x1x32xf32> to vector<1x32xf32>
    %c1_705 = arith.constant 1 : index
    %c0_706 = arith.constant 0 : index
    %c0_707 = arith.constant 0 : index
    %1514 = vector.load %arg22[%c1_705, %c0_706, %c0_707] : memref<3x1x32xf32, #tpu.memory_space<vmem>>, vector<1x1x32xf32>
    %1515 = vector.shape_cast %1514 : vector<1x1x32xf32> to vector<1x32xf32>
    %cst_708 = arith.constant dense<0.000000e+00> : vector<16xf32>
    %1516 = vector.multi_reduction <add>, %1508, %cst_708 [1] : vector<16x32xf32> to vector<16xf32>
    %1517 = vector.shape_cast %1516 : vector<16xf32> to vector<16x1xf32>
    %cst_709 = arith.constant 3.200000e+01 : f32
    %1518 = vector.broadcast %cst_709 : f32 to vector<16x1xf32>
    %1519 = arith.divf %1517, %1518 : vector<16x1xf32>
    %1520 = vector.broadcast %1519 : vector<16x1xf32> to vector<16x32xf32>
    %1521 = arith.subf %1508, %1520 : vector<16x32xf32>
    %1522 = arith.mulf %1521, %1521 : vector<16x32xf32>
    %cst_710 = arith.constant dense<0.000000e+00> : vector<16xf32>
    %1523 = vector.multi_reduction <add>, %1522, %cst_710 [1] : vector<16x32xf32> to vector<16xf32>
    %1524 = vector.shape_cast %1523 : vector<16xf32> to vector<16x1xf32>
    %cst_711 = arith.constant 3.200000e+01 : f32
    %1525 = vector.broadcast %cst_711 : f32 to vector<16x1xf32>
    %1526 = arith.divf %1524, %1525 : vector<16x1xf32>
    %1527 = vector.broadcast %1519 : vector<16x1xf32> to vector<16x32xf32>
    %1528 = arith.subf %1508, %1527 : vector<16x32xf32>
    %cst_712 = arith.constant 9.99999997E-7 : f32
    %1529 = vector.broadcast %cst_712 : f32 to vector<16x1xf32>
    %1530 = arith.addf %1526, %1529 : vector<16x1xf32>
    %1531 = math.rsqrt %1530 : vector<16x1xf32>
    %1532 = vector.broadcast %1531 : vector<16x1xf32> to vector<16x32xf32>
    %1533 = arith.mulf %1528, %1532 : vector<16x32xf32>
    %1534 = vector.broadcast %1513 : vector<1x32xf32> to vector<16x32xf32>
    %1535 = arith.mulf %1533, %1534 : vector<16x32xf32>
    %1536 = vector.broadcast %1515 : vector<1x32xf32> to vector<16x32xf32>
    %1537 = arith.addf %1535, %1536 : vector<16x32xf32>
    %1538 = arith.truncf %1537 : vector<16x32xf32> to vector<16x32xbf16>
    %c1_713 = arith.constant 1 : index
    %c0_714 = arith.constant 0 : index
    %c0_715 = arith.constant 0 : index
    %1539 = vector.load %arg23[%c1_713, %c0_714, %c0_715] : memref<3x32x96xbf16, #tpu.memory_space<vmem>>, vector<1x32x96xbf16>
    %1540 = vector.shape_cast %1539 : vector<1x32x96xbf16> to vector<32x96xbf16>
    %cst_716 = arith.constant dense<0.000000e+00> : vector<16x96xf32>
    %1541 = tpu.matmul %1538, %1540, %cst_716 {dimension_numbers = #tpu.dot_dimension_numbers<[1], [0], [0], [1], [0, 0, 1, 1], [], []>} : vector<16x32xbf16>, vector<32x96xbf16>, vector<16x96xf32> -> vector<16x96xf32>
    %c1_717 = arith.constant 1 : index
    %c0_718 = arith.constant 0 : index
    %c0_719 = arith.constant 0 : index
    %1542 = vector.load %arg24[%c1_717, %c0_718, %c0_719] : memref<3x1x96xf32, #tpu.memory_space<vmem>>, vector<1x1x96xf32>
    %1543 = vector.shape_cast %1542 : vector<1x1x96xf32> to vector<1x96xf32>
    %1544 = vector.broadcast %1543 : vector<1x96xf32> to vector<16x96xf32>
    %1545 = arith.addf %1541, %1544 : vector<16x96xf32>
    %1546 = vector.extract_strided_slice %1545 {offsets = [0, 0], sizes = [16, 16], strides = [1, 1]} : vector<16x96xf32> to vector<16x16xf32>
    %1547 = arith.truncf %1546 : vector<16x16xf32> to vector<16x16xbf16>
    %1548 = vector.extract_strided_slice %1545 {offsets = [0, 32], sizes = [16, 16], strides = [1, 1]} : vector<16x96xf32> to vector<16x16xf32>
    %1549 = arith.truncf %1548 : vector<16x16xf32> to vector<16x16xbf16>
    %1550 = vector.extract_strided_slice %1545 {offsets = [0, 64], sizes = [16, 16], strides = [1, 1]} : vector<16x96xf32> to vector<16x16xf32>
    %1551 = arith.truncf %1550 : vector<16x16xf32> to vector<16x16xbf16>
    %cst_720 = arith.constant dense<0.000000e+00> : vector<16x16xf32>
    %1552 = tpu.matmul %1547, %1549, %cst_720 {dimension_numbers = #tpu.dot_dimension_numbers<[1], [1], [0], [0], [0, 0, 1, 0], [], []>} : vector<16x16xbf16>, vector<16x16xbf16>, vector<16x16xf32> -> vector<16x16xf32>
    %cst_721 = arith.constant dense<0xFF800000> : vector<16xf32>
    %1553 = vector.multi_reduction <maximumf>, %1552, %cst_721 [1] : vector<16x16xf32> to vector<16xf32>
    %1554 = vector.shape_cast %1553 : vector<16xf32> to vector<16x1xf32>
    %1555 = vector.broadcast %1554 : vector<16x1xf32> to vector<16x16xf32>
    %1556 = arith.subf %1552, %1555 : vector<16x16xf32>
    %1557 = math.exp %1556 : vector<16x16xf32>
    %cst_722 = arith.constant dense<0.000000e+00> : vector<16xf32>
    %1558 = vector.multi_reduction <add>, %1557, %cst_722 [1] : vector<16x16xf32> to vector<16xf32>
    %1559 = vector.shape_cast %1558 : vector<16xf32> to vector<16x1xf32>
    %1560 = tpu.reciprocal %1559 {approx = true} : vector<16x1xf32> -> vector<16x1xf32>
    %1561 = vector.broadcast %1560 : vector<16x1xf32> to vector<16x16xf32>
    %1562 = arith.mulf %1557, %1561 : vector<16x16xf32>
    %1563 = arith.truncf %1562 : vector<16x16xf32> to vector<16x16xbf16>
    %cst_723 = arith.constant dense<0.000000e+00> : vector<16x16xf32>
    %1564 = tpu.matmul %1563, %1551, %cst_723 {dimension_numbers = #tpu.dot_dimension_numbers<[1], [0], [0], [1], [0, 0, 1, 1], [], []>} : vector<16x16xbf16>, vector<16x16xbf16>, vector<16x16xf32> -> vector<16x16xf32>
    %1565 = vector.extract_strided_slice %1545 {offsets = [0, 16], sizes = [16, 16], strides = [1, 1]} : vector<16x96xf32> to vector<16x16xf32>
    %1566 = arith.truncf %1565 : vector<16x16xf32> to vector<16x16xbf16>
    %1567 = vector.extract_strided_slice %1545 {offsets = [0, 48], sizes = [16, 16], strides = [1, 1]} : vector<16x96xf32> to vector<16x16xf32>
    %1568 = arith.truncf %1567 : vector<16x16xf32> to vector<16x16xbf16>
    %1569 = vector.extract_strided_slice %1545 {offsets = [0, 80], sizes = [16, 16], strides = [1, 1]} : vector<16x96xf32> to vector<16x16xf32>
    %1570 = arith.truncf %1569 : vector<16x16xf32> to vector<16x16xbf16>
    %cst_724 = arith.constant dense<0.000000e+00> : vector<16x16xf32>
    %1571 = tpu.matmul %1566, %1568, %cst_724 {dimension_numbers = #tpu.dot_dimension_numbers<[1], [1], [0], [0], [0, 0, 1, 0], [], []>} : vector<16x16xbf16>, vector<16x16xbf16>, vector<16x16xf32> -> vector<16x16xf32>
    %cst_725 = arith.constant dense<0xFF800000> : vector<16xf32>
    %1572 = vector.multi_reduction <maximumf>, %1571, %cst_725 [1] : vector<16x16xf32> to vector<16xf32>
    %1573 = vector.shape_cast %1572 : vector<16xf32> to vector<16x1xf32>
    %1574 = vector.broadcast %1573 : vector<16x1xf32> to vector<16x16xf32>
    %1575 = arith.subf %1571, %1574 : vector<16x16xf32>
    %1576 = math.exp %1575 : vector<16x16xf32>
    %cst_726 = arith.constant dense<0.000000e+00> : vector<16xf32>
    %1577 = vector.multi_reduction <add>, %1576, %cst_726 [1] : vector<16x16xf32> to vector<16xf32>
    %1578 = vector.shape_cast %1577 : vector<16xf32> to vector<16x1xf32>
    %1579 = tpu.reciprocal %1578 {approx = true} : vector<16x1xf32> -> vector<16x1xf32>
    %1580 = vector.broadcast %1579 : vector<16x1xf32> to vector<16x16xf32>
    %1581 = arith.mulf %1576, %1580 : vector<16x16xf32>
    %1582 = arith.truncf %1581 : vector<16x16xf32> to vector<16x16xbf16>
    %cst_727 = arith.constant dense<0.000000e+00> : vector<16x16xf32>
    %1583 = tpu.matmul %1582, %1570, %cst_727 {dimension_numbers = #tpu.dot_dimension_numbers<[1], [0], [0], [1], [0, 0, 1, 1], [], []>} : vector<16x16xbf16>, vector<16x16xbf16>, vector<16x16xf32> -> vector<16x16xf32>
    %c1_728 = arith.constant 1 : index
    %c0_729 = arith.constant 0 : index
    %c0_730 = arith.constant 0 : index
    %1584 = vector.load %arg25[%c1_728, %c0_729, %c0_730] : memref<3x32x32xbf16, #tpu.memory_space<vmem>>, vector<1x32x32xbf16>
    %1585 = vector.shape_cast %1584 : vector<1x32x32xbf16> to vector<32x32xbf16>
    %1586 = arith.truncf %1564 : vector<16x16xf32> to vector<16x16xbf16>
    %1587 = vector.extract_strided_slice %1585 {offsets = [0, 0], sizes = [16, 32], strides = [1, 1]} : vector<32x32xbf16> to vector<16x32xbf16>
    %cst_731 = arith.constant dense<0.000000e+00> : vector<16x32xf32>
    %1588 = tpu.matmul %1586, %1587, %cst_731 {dimension_numbers = #tpu.dot_dimension_numbers<[1], [0], [0], [1], [0, 0, 1, 1], [], []>} : vector<16x16xbf16>, vector<16x32xbf16>, vector<16x32xf32> -> vector<16x32xf32>
    %1589 = arith.truncf %1583 : vector<16x16xf32> to vector<16x16xbf16>
    %1590 = vector.extract_strided_slice %1585 {offsets = [16, 0], sizes = [16, 32], strides = [1, 1]} : vector<32x32xbf16> to vector<16x32xbf16>
    %cst_732 = arith.constant dense<0.000000e+00> : vector<16x32xf32>
    %1591 = tpu.matmul %1589, %1590, %cst_732 {dimension_numbers = #tpu.dot_dimension_numbers<[1], [0], [0], [1], [0, 0, 1, 1], [], []>} : vector<16x16xbf16>, vector<16x32xbf16>, vector<16x32xf32> -> vector<16x32xf32>
    %1592 = arith.addf %1588, %1591 : vector<16x32xf32>
    %c1_733 = arith.constant 1 : index
    %c0_734 = arith.constant 0 : index
    %c0_735 = arith.constant 0 : index
    %1593 = vector.load %arg26[%c1_733, %c0_734, %c0_735] : memref<3x1x32xf32, #tpu.memory_space<vmem>>, vector<1x1x32xf32>
    %1594 = vector.shape_cast %1593 : vector<1x1x32xf32> to vector<1x32xf32>
    %1595 = vector.broadcast %1594 : vector<1x32xf32> to vector<16x32xf32>
    %1596 = arith.addf %1592, %1595 : vector<16x32xf32>
    %1597 = arith.addf %1508, %1596 : vector<16x32xf32>
    %c1_736 = arith.constant 1 : index
    %c0_737 = arith.constant 0 : index
    %c0_738 = arith.constant 0 : index
    %1598 = vector.load %arg27[%c1_736, %c0_737, %c0_738] : memref<3x1x32xf32, #tpu.memory_space<vmem>>, vector<1x1x32xf32>
    %1599 = vector.shape_cast %1598 : vector<1x1x32xf32> to vector<1x32xf32>
    %c1_739 = arith.constant 1 : index
    %c0_740 = arith.constant 0 : index
    %c0_741 = arith.constant 0 : index
    %1600 = vector.load %arg28[%c1_739, %c0_740, %c0_741] : memref<3x1x32xf32, #tpu.memory_space<vmem>>, vector<1x1x32xf32>
    %1601 = vector.shape_cast %1600 : vector<1x1x32xf32> to vector<1x32xf32>
    %cst_742 = arith.constant dense<0.000000e+00> : vector<16xf32>
    %1602 = vector.multi_reduction <add>, %1597, %cst_742 [1] : vector<16x32xf32> to vector<16xf32>
    %1603 = vector.shape_cast %1602 : vector<16xf32> to vector<16x1xf32>
    %cst_743 = arith.constant 3.200000e+01 : f32
    %1604 = vector.broadcast %cst_743 : f32 to vector<16x1xf32>
    %1605 = arith.divf %1603, %1604 : vector<16x1xf32>
    %1606 = vector.broadcast %1605 : vector<16x1xf32> to vector<16x32xf32>
    %1607 = arith.subf %1597, %1606 : vector<16x32xf32>
    %1608 = arith.mulf %1607, %1607 : vector<16x32xf32>
    %cst_744 = arith.constant dense<0.000000e+00> : vector<16xf32>
    %1609 = vector.multi_reduction <add>, %1608, %cst_744 [1] : vector<16x32xf32> to vector<16xf32>
    %1610 = vector.shape_cast %1609 : vector<16xf32> to vector<16x1xf32>
    %cst_745 = arith.constant 3.200000e+01 : f32
    %1611 = vector.broadcast %cst_745 : f32 to vector<16x1xf32>
    %1612 = arith.divf %1610, %1611 : vector<16x1xf32>
    %1613 = vector.broadcast %1605 : vector<16x1xf32> to vector<16x32xf32>
    %1614 = arith.subf %1597, %1613 : vector<16x32xf32>
    %cst_746 = arith.constant 9.99999997E-7 : f32
    %1615 = vector.broadcast %cst_746 : f32 to vector<16x1xf32>
    %1616 = arith.addf %1612, %1615 : vector<16x1xf32>
    %1617 = math.rsqrt %1616 : vector<16x1xf32>
    %1618 = vector.broadcast %1617 : vector<16x1xf32> to vector<16x32xf32>
    %1619 = arith.mulf %1614, %1618 : vector<16x32xf32>
    %1620 = vector.broadcast %1599 : vector<1x32xf32> to vector<16x32xf32>
    %1621 = arith.mulf %1619, %1620 : vector<16x32xf32>
    %1622 = vector.broadcast %1601 : vector<1x32xf32> to vector<16x32xf32>
    %1623 = arith.addf %1621, %1622 : vector<16x32xf32>
    %1624 = arith.truncf %1623 : vector<16x32xf32> to vector<16x32xbf16>
    %c1_747 = arith.constant 1 : index
    %c0_748 = arith.constant 0 : index
    %c0_749 = arith.constant 0 : index
    %1625 = vector.load %arg29[%c1_747, %c0_748, %c0_749] : memref<3x32x128xbf16, #tpu.memory_space<vmem>>, vector<1x32x128xbf16>
    %1626 = vector.shape_cast %1625 : vector<1x32x128xbf16> to vector<32x128xbf16>
    %cst_750 = arith.constant dense<0.000000e+00> : vector<16x128xf32>
    %1627 = tpu.matmul %1624, %1626, %cst_750 {dimension_numbers = #tpu.dot_dimension_numbers<[1], [0], [0], [1], [0, 0, 1, 1], [], []>} : vector<16x32xbf16>, vector<32x128xbf16>, vector<16x128xf32> -> vector<16x128xf32>
    %c1_751 = arith.constant 1 : index
    %c0_752 = arith.constant 0 : index
    %c0_753 = arith.constant 0 : index
    %1628 = vector.load %arg30[%c1_751, %c0_752, %c0_753] : memref<3x1x128xf32, #tpu.memory_space<vmem>>, vector<1x1x128xf32>
    %1629 = vector.shape_cast %1628 : vector<1x1x128xf32> to vector<1x128xf32>
    %1630 = vector.broadcast %1629 : vector<1x128xf32> to vector<16x128xf32>
    %1631 = arith.addf %1627, %1630 : vector<16x128xf32>
    %1632 = arith.mulf %1631, %1631 : vector<16x128xf32>
    %1633 = arith.mulf %1631, %1632 : vector<16x128xf32>
    %cst_754 = arith.constant 4.471500e-02 : f32
    %1634 = vector.broadcast %cst_754 : f32 to vector<16x128xf32>
    %1635 = arith.mulf %1634, %1633 : vector<16x128xf32>
    %1636 = arith.addf %1631, %1635 : vector<16x128xf32>
    %cst_755 = arith.constant 0.797884583 : f32
    %1637 = vector.broadcast %cst_755 : f32 to vector<16x128xf32>
    %1638 = arith.mulf %1637, %1636 : vector<16x128xf32>
    %1639 = math.tanh %1638 : vector<16x128xf32>
    %cst_756 = arith.constant 1.000000e+00 : f32
    %1640 = vector.broadcast %cst_756 : f32 to vector<16x128xf32>
    %1641 = arith.addf %1640, %1639 : vector<16x128xf32>
    %cst_757 = arith.constant 5.000000e-01 : f32
    %1642 = vector.broadcast %cst_757 : f32 to vector<16x128xf32>
    %1643 = arith.mulf %1642, %1641 : vector<16x128xf32>
    %1644 = arith.mulf %1631, %1643 : vector<16x128xf32>
    %1645 = arith.truncf %1644 : vector<16x128xf32> to vector<16x128xbf16>
    %c1_758 = arith.constant 1 : index
    %c0_759 = arith.constant 0 : index
    %c0_760 = arith.constant 0 : index
    %1646 = vector.load %arg31[%c1_758, %c0_759, %c0_760] : memref<3x128x32xbf16, #tpu.memory_space<vmem>>, vector<1x128x32xbf16>
    %1647 = vector.shape_cast %1646 : vector<1x128x32xbf16> to vector<128x32xbf16>
    %cst_761 = arith.constant dense<0.000000e+00> : vector<16x32xf32>
    %1648 = tpu.matmul %1645, %1647, %cst_761 {dimension_numbers = #tpu.dot_dimension_numbers<[1], [0], [0], [1], [0, 0, 1, 1], [], []>} : vector<16x128xbf16>, vector<128x32xbf16>, vector<16x32xf32> -> vector<16x32xf32>
    %c1_762 = arith.constant 1 : index
    %c0_763 = arith.constant 0 : index
    %c0_764 = arith.constant 0 : index
    %1649 = vector.load %arg32[%c1_762, %c0_763, %c0_764] : memref<3x1x32xf32, #tpu.memory_space<vmem>>, vector<1x1x32xf32>
    %1650 = vector.shape_cast %1649 : vector<1x1x32xf32> to vector<1x32xf32>
    %1651 = vector.broadcast %1650 : vector<1x32xf32> to vector<16x32xf32>
    %1652 = arith.addf %1648, %1651 : vector<16x32xf32>
    %1653 = arith.addf %1597, %1652 : vector<16x32xf32>
    %c1_765 = arith.constant 1 : index
    %c0_766 = arith.constant 0 : index
    %c128_767 = arith.constant 128 : index
    %1654 = vector.load %arg33[%c1_765, %c0_766, %c128_767] : memref<2x16x256xf32, #tpu.memory_space<vmem>>, vector<1x16x32xf32>
    %1655 = vector.shape_cast %1654 : vector<1x16x32xf32> to vector<16x32xf32>
    %1656 = vector.shape_cast %1653 : vector<16x32xf32> to vector<1x16x32xf32>
    tpu.vector_store %arg33[%c1_765, %c0_766, %c128_767], %1656 {strides = array<i32>} : memref<2x16x256xf32, #tpu.memory_space<vmem>>, vector<1x16x32xf32>,
    %c2_768 = arith.constant 2 : index
    %c0_769 = arith.constant 0 : index
    %c0_770 = arith.constant 0 : index
    %1657 = vector.load %arg21[%c2_768, %c0_769, %c0_770] : memref<3x1x32xf32, #tpu.memory_space<vmem>>, vector<1x1x32xf32>
    %1658 = vector.shape_cast %1657 : vector<1x1x32xf32> to vector<1x32xf32>
    %c2_771 = arith.constant 2 : index
    %c0_772 = arith.constant 0 : index
    %c0_773 = arith.constant 0 : index
    %1659 = vector.load %arg22[%c2_771, %c0_772, %c0_773] : memref<3x1x32xf32, #tpu.memory_space<vmem>>, vector<1x1x32xf32>
    %1660 = vector.shape_cast %1659 : vector<1x1x32xf32> to vector<1x32xf32>
    %cst_774 = arith.constant dense<0.000000e+00> : vector<16xf32>
    %1661 = vector.multi_reduction <add>, %1653, %cst_774 [1] : vector<16x32xf32> to vector<16xf32>
    %1662 = vector.shape_cast %1661 : vector<16xf32> to vector<16x1xf32>
    %cst_775 = arith.constant 3.200000e+01 : f32
    %1663 = vector.broadcast %cst_775 : f32 to vector<16x1xf32>
    %1664 = arith.divf %1662, %1663 : vector<16x1xf32>
    %1665 = vector.broadcast %1664 : vector<16x1xf32> to vector<16x32xf32>
    %1666 = arith.subf %1653, %1665 : vector<16x32xf32>
    %1667 = arith.mulf %1666, %1666 : vector<16x32xf32>
    %cst_776 = arith.constant dense<0.000000e+00> : vector<16xf32>
    %1668 = vector.multi_reduction <add>, %1667, %cst_776 [1] : vector<16x32xf32> to vector<16xf32>
    %1669 = vector.shape_cast %1668 : vector<16xf32> to vector<16x1xf32>
    %cst_777 = arith.constant 3.200000e+01 : f32
    %1670 = vector.broadcast %cst_777 : f32 to vector<16x1xf32>
    %1671 = arith.divf %1669, %1670 : vector<16x1xf32>
    %1672 = vector.broadcast %1664 : vector<16x1xf32> to vector<16x32xf32>
    %1673 = arith.subf %1653, %1672 : vector<16x32xf32>
    %cst_778 = arith.constant 9.99999997E-7 : f32
    %1674 = vector.broadcast %cst_778 : f32 to vector<16x1xf32>
    %1675 = arith.addf %1671, %1674 : vector<16x1xf32>
    %1676 = math.rsqrt %1675 : vector<16x1xf32>
    %1677 = vector.broadcast %1676 : vector<16x1xf32> to vector<16x32xf32>
    %1678 = arith.mulf %1673, %1677 : vector<16x32xf32>
    %1679 = vector.broadcast %1658 : vector<1x32xf32> to vector<16x32xf32>
    %1680 = arith.mulf %1678, %1679 : vector<16x32xf32>
    %1681 = vector.broadcast %1660 : vector<1x32xf32> to vector<16x32xf32>
    %1682 = arith.addf %1680, %1681 : vector<16x32xf32>
    %1683 = arith.truncf %1682 : vector<16x32xf32> to vector<16x32xbf16>
    %c2_779 = arith.constant 2 : index
    %c0_780 = arith.constant 0 : index
    %c0_781 = arith.constant 0 : index
    %1684 = vector.load %arg23[%c2_779, %c0_780, %c0_781] : memref<3x32x96xbf16, #tpu.memory_space<vmem>>, vector<1x32x96xbf16>
    %1685 = vector.shape_cast %1684 : vector<1x32x96xbf16> to vector<32x96xbf16>
    %cst_782 = arith.constant dense<0.000000e+00> : vector<16x96xf32>
    %1686 = tpu.matmul %1683, %1685, %cst_782 {dimension_numbers = #tpu.dot_dimension_numbers<[1], [0], [0], [1], [0, 0, 1, 1], [], []>} : vector<16x32xbf16>, vector<32x96xbf16>, vector<16x96xf32> -> vector<16x96xf32>
    %c2_783 = arith.constant 2 : index
    %c0_784 = arith.constant 0 : index
    %c0_785 = arith.constant 0 : index
    %1687 = vector.load %arg24[%c2_783, %c0_784, %c0_785] : memref<3x1x96xf32, #tpu.memory_space<vmem>>, vector<1x1x96xf32>
    %1688 = vector.shape_cast %1687 : vector<1x1x96xf32> to vector<1x96xf32>
    %1689 = vector.broadcast %1688 : vector<1x96xf32> to vector<16x96xf32>
    %1690 = arith.addf %1686, %1689 : vector<16x96xf32>
    %1691 = vector.extract_strided_slice %1690 {offsets = [0, 0], sizes = [16, 16], strides = [1, 1]} : vector<16x96xf32> to vector<16x16xf32>
    %1692 = arith.truncf %1691 : vector<16x16xf32> to vector<16x16xbf16>
    %1693 = vector.extract_strided_slice %1690 {offsets = [0, 32], sizes = [16, 16], strides = [1, 1]} : vector<16x96xf32> to vector<16x16xf32>
    %1694 = arith.truncf %1693 : vector<16x16xf32> to vector<16x16xbf16>
    %1695 = vector.extract_strided_slice %1690 {offsets = [0, 64], sizes = [16, 16], strides = [1, 1]} : vector<16x96xf32> to vector<16x16xf32>
    %1696 = arith.truncf %1695 : vector<16x16xf32> to vector<16x16xbf16>
    %cst_786 = arith.constant dense<0.000000e+00> : vector<16x16xf32>
    %1697 = tpu.matmul %1692, %1694, %cst_786 {dimension_numbers = #tpu.dot_dimension_numbers<[1], [1], [0], [0], [0, 0, 1, 0], [], []>} : vector<16x16xbf16>, vector<16x16xbf16>, vector<16x16xf32> -> vector<16x16xf32>
    %cst_787 = arith.constant dense<0xFF800000> : vector<16xf32>
    %1698 = vector.multi_reduction <maximumf>, %1697, %cst_787 [1] : vector<16x16xf32> to vector<16xf32>
    %1699 = vector.shape_cast %1698 : vector<16xf32> to vector<16x1xf32>
    %1700 = vector.broadcast %1699 : vector<16x1xf32> to vector<16x16xf32>
    %1701 = arith.subf %1697, %1700 : vector<16x16xf32>
    %1702 = math.exp %1701 : vector<16x16xf32>
    %cst_788 = arith.constant dense<0.000000e+00> : vector<16xf32>
    %1703 = vector.multi_reduction <add>, %1702, %cst_788 [1] : vector<16x16xf32> to vector<16xf32>
    %1704 = vector.shape_cast %1703 : vector<16xf32> to vector<16x1xf32>
    %1705 = tpu.reciprocal %1704 {approx = true} : vector<16x1xf32> -> vector<16x1xf32>
    %1706 = vector.broadcast %1705 : vector<16x1xf32> to vector<16x16xf32>
    %1707 = arith.mulf %1702, %1706 : vector<16x16xf32>
    %1708 = arith.truncf %1707 : vector<16x16xf32> to vector<16x16xbf16>
    %cst_789 = arith.constant dense<0.000000e+00> : vector<16x16xf32>
    %1709 = tpu.matmul %1708, %1696, %cst_789 {dimension_numbers = #tpu.dot_dimension_numbers<[1], [0], [0], [1], [0, 0, 1, 1], [], []>} : vector<16x16xbf16>, vector<16x16xbf16>, vector<16x16xf32> -> vector<16x16xf32>
    %1710 = vector.extract_strided_slice %1690 {offsets = [0, 16], sizes = [16, 16], strides = [1, 1]} : vector<16x96xf32> to vector<16x16xf32>
    %1711 = arith.truncf %1710 : vector<16x16xf32> to vector<16x16xbf16>
    %1712 = vector.extract_strided_slice %1690 {offsets = [0, 48], sizes = [16, 16], strides = [1, 1]} : vector<16x96xf32> to vector<16x16xf32>
    %1713 = arith.truncf %1712 : vector<16x16xf32> to vector<16x16xbf16>
    %1714 = vector.extract_strided_slice %1690 {offsets = [0, 80], sizes = [16, 16], strides = [1, 1]} : vector<16x96xf32> to vector<16x16xf32>
    %1715 = arith.truncf %1714 : vector<16x16xf32> to vector<16x16xbf16>
    %cst_790 = arith.constant dense<0.000000e+00> : vector<16x16xf32>
    %1716 = tpu.matmul %1711, %1713, %cst_790 {dimension_numbers = #tpu.dot_dimension_numbers<[1], [1], [0], [0], [0, 0, 1, 0], [], []>} : vector<16x16xbf16>, vector<16x16xbf16>, vector<16x16xf32> -> vector<16x16xf32>
    %cst_791 = arith.constant dense<0xFF800000> : vector<16xf32>
    %1717 = vector.multi_reduction <maximumf>, %1716, %cst_791 [1] : vector<16x16xf32> to vector<16xf32>
    %1718 = vector.shape_cast %1717 : vector<16xf32> to vector<16x1xf32>
    %1719 = vector.broadcast %1718 : vector<16x1xf32> to vector<16x16xf32>
    %1720 = arith.subf %1716, %1719 : vector<16x16xf32>
    %1721 = math.exp %1720 : vector<16x16xf32>
    %cst_792 = arith.constant dense<0.000000e+00> : vector<16xf32>
    %1722 = vector.multi_reduction <add>, %1721, %cst_792 [1] : vector<16x16xf32> to vector<16xf32>
    %1723 = vector.shape_cast %1722 : vector<16xf32> to vector<16x1xf32>
    %1724 = tpu.reciprocal %1723 {approx = true} : vector<16x1xf32> -> vector<16x1xf32>
    %1725 = vector.broadcast %1724 : vector<16x1xf32> to vector<16x16xf32>
    %1726 = arith.mulf %1721, %1725 : vector<16x16xf32>
    %1727 = arith.truncf %1726 : vector<16x16xf32> to vector<16x16xbf16>
    %cst_793 = arith.constant dense<0.000000e+00> : vector<16x16xf32>
    %1728 = tpu.matmul %1727, %1715, %cst_793 {dimension_numbers = #tpu.dot_dimension_numbers<[1], [0], [0], [1], [0, 0, 1, 1], [], []>} : vector<16x16xbf16>, vector<16x16xbf16>, vector<16x16xf32> -> vector<16x16xf32>
    %c2_794 = arith.constant 2 : index
    %c0_795 = arith.constant 0 : index
    %c0_796 = arith.constant 0 : index
    %1729 = vector.load %arg25[%c2_794, %c0_795, %c0_796] : memref<3x32x32xbf16, #tpu.memory_space<vmem>>, vector<1x32x32xbf16>
    %1730 = vector.shape_cast %1729 : vector<1x32x32xbf16> to vector<32x32xbf16>
    %1731 = arith.truncf %1709 : vector<16x16xf32> to vector<16x16xbf16>
    %1732 = vector.extract_strided_slice %1730 {offsets = [0, 0], sizes = [16, 32], strides = [1, 1]} : vector<32x32xbf16> to vector<16x32xbf16>
    %cst_797 = arith.constant dense<0.000000e+00> : vector<16x32xf32>
    %1733 = tpu.matmul %1731, %1732, %cst_797 {dimension_numbers = #tpu.dot_dimension_numbers<[1], [0], [0], [1], [0, 0, 1, 1], [], []>} : vector<16x16xbf16>, vector<16x32xbf16>, vector<16x32xf32> -> vector<16x32xf32>
    %1734 = arith.truncf %1728 : vector<16x16xf32> to vector<16x16xbf16>
    %1735 = vector.extract_strided_slice %1730 {offsets = [16, 0], sizes = [16, 32], strides = [1, 1]} : vector<32x32xbf16> to vector<16x32xbf16>
    %cst_798 = arith.constant dense<0.000000e+00> : vector<16x32xf32>
    %1736 = tpu.matmul %1734, %1735, %cst_798 {dimension_numbers = #tpu.dot_dimension_numbers<[1], [0], [0], [1], [0, 0, 1, 1], [], []>} : vector<16x16xbf16>, vector<16x32xbf16>, vector<16x32xf32> -> vector<16x32xf32>
    %1737 = arith.addf %1733, %1736 : vector<16x32xf32>
    %c2_799 = arith.constant 2 : index
    %c0_800 = arith.constant 0 : index
    %c0_801 = arith.constant 0 : index
    %1738 = vector.load %arg26[%c2_799, %c0_800, %c0_801] : memref<3x1x32xf32, #tpu.memory_space<vmem>>, vector<1x1x32xf32>
    %1739 = vector.shape_cast %1738 : vector<1x1x32xf32> to vector<1x32xf32>
    %1740 = vector.broadcast %1739 : vector<1x32xf32> to vector<16x32xf32>
    %1741 = arith.addf %1737, %1740 : vector<16x32xf32>
    %1742 = arith.addf %1653, %1741 : vector<16x32xf32>
    %c2_802 = arith.constant 2 : index
    %c0_803 = arith.constant 0 : index
    %c0_804 = arith.constant 0 : index
    %1743 = vector.load %arg27[%c2_802, %c0_803, %c0_804] : memref<3x1x32xf32, #tpu.memory_space<vmem>>, vector<1x1x32xf32>
    %1744 = vector.shape_cast %1743 : vector<1x1x32xf32> to vector<1x32xf32>
    %c2_805 = arith.constant 2 : index
    %c0_806 = arith.constant 0 : index
    %c0_807 = arith.constant 0 : index
    %1745 = vector.load %arg28[%c2_805, %c0_806, %c0_807] : memref<3x1x32xf32, #tpu.memory_space<vmem>>, vector<1x1x32xf32>
    %1746 = vector.shape_cast %1745 : vector<1x1x32xf32> to vector<1x32xf32>
    %cst_808 = arith.constant dense<0.000000e+00> : vector<16xf32>
    %1747 = vector.multi_reduction <add>, %1742, %cst_808 [1] : vector<16x32xf32> to vector<16xf32>
    %1748 = vector.shape_cast %1747 : vector<16xf32> to vector<16x1xf32>
    %cst_809 = arith.constant 3.200000e+01 : f32
    %1749 = vector.broadcast %cst_809 : f32 to vector<16x1xf32>
    %1750 = arith.divf %1748, %1749 : vector<16x1xf32>
    %1751 = vector.broadcast %1750 : vector<16x1xf32> to vector<16x32xf32>
    %1752 = arith.subf %1742, %1751 : vector<16x32xf32>
    %1753 = arith.mulf %1752, %1752 : vector<16x32xf32>
    %cst_810 = arith.constant dense<0.000000e+00> : vector<16xf32>
    %1754 = vector.multi_reduction <add>, %1753, %cst_810 [1] : vector<16x32xf32> to vector<16xf32>
    %1755 = vector.shape_cast %1754 : vector<16xf32> to vector<16x1xf32>
    %cst_811 = arith.constant 3.200000e+01 : f32
    %1756 = vector.broadcast %cst_811 : f32 to vector<16x1xf32>
    %1757 = arith.divf %1755, %1756 : vector<16x1xf32>
    %1758 = vector.broadcast %1750 : vector<16x1xf32> to vector<16x32xf32>
    %1759 = arith.subf %1742, %1758 : vector<16x32xf32>
    %cst_812 = arith.constant 9.99999997E-7 : f32
    %1760 = vector.broadcast %cst_812 : f32 to vector<16x1xf32>
    %1761 = arith.addf %1757, %1760 : vector<16x1xf32>
    %1762 = math.rsqrt %1761 : vector<16x1xf32>
    %1763 = vector.broadcast %1762 : vector<16x1xf32> to vector<16x32xf32>
    %1764 = arith.mulf %1759, %1763 : vector<16x32xf32>
    %1765 = vector.broadcast %1744 : vector<1x32xf32> to vector<16x32xf32>
    %1766 = arith.mulf %1764, %1765 : vector<16x32xf32>
    %1767 = vector.broadcast %1746 : vector<1x32xf32> to vector<16x32xf32>
    %1768 = arith.addf %1766, %1767 : vector<16x32xf32>
    %1769 = arith.truncf %1768 : vector<16x32xf32> to vector<16x32xbf16>
    %c2_813 = arith.constant 2 : index
    %c0_814 = arith.constant 0 : index
    %c0_815 = arith.constant 0 : index
    %1770 = vector.load %arg29[%c2_813, %c0_814, %c0_815] : memref<3x32x128xbf16, #tpu.memory_space<vmem>>, vector<1x32x128xbf16>
    %1771 = vector.shape_cast %1770 : vector<1x32x128xbf16> to vector<32x128xbf16>
    %cst_816 = arith.constant dense<0.000000e+00> : vector<16x128xf32>
    %1772 = tpu.matmul %1769, %1771, %cst_816 {dimension_numbers = #tpu.dot_dimension_numbers<[1], [0], [0], [1], [0, 0, 1, 1], [], []>} : vector<16x32xbf16>, vector<32x128xbf16>, vector<16x128xf32> -> vector<16x128xf32>
    %c2_817 = arith.constant 2 : index
    %c0_818 = arith.constant 0 : index
    %c0_819 = arith.constant 0 : index
    %1773 = vector.load %arg30[%c2_817, %c0_818, %c0_819] : memref<3x1x128xf32, #tpu.memory_space<vmem>>, vector<1x1x128xf32>
    %1774 = vector.shape_cast %1773 : vector<1x1x128xf32> to vector<1x128xf32>
    %1775 = vector.broadcast %1774 : vector<1x128xf32> to vector<16x128xf32>
    %1776 = arith.addf %1772, %1775 : vector<16x128xf32>
    %1777 = arith.mulf %1776, %1776 : vector<16x128xf32>
    %1778 = arith.mulf %1776, %1777 : vector<16x128xf32>
    %cst_820 = arith.constant 4.471500e-02 : f32
    %1779 = vector.broadcast %cst_820 : f32 to vector<16x128xf32>
    %1780 = arith.mulf %1779, %1778 : vector<16x128xf32>
    %1781 = arith.addf %1776, %1780 : vector<16x128xf32>
    %cst_821 = arith.constant 0.797884583 : f32
    %1782 = vector.broadcast %cst_821 : f32 to vector<16x128xf32>
    %1783 = arith.mulf %1782, %1781 : vector<16x128xf32>
    %1784 = math.tanh %1783 : vector<16x128xf32>
    %cst_822 = arith.constant 1.000000e+00 : f32
    %1785 = vector.broadcast %cst_822 : f32 to vector<16x128xf32>
    %1786 = arith.addf %1785, %1784 : vector<16x128xf32>
    %cst_823 = arith.constant 5.000000e-01 : f32
    %1787 = vector.broadcast %cst_823 : f32 to vector<16x128xf32>
    %1788 = arith.mulf %1787, %1786 : vector<16x128xf32>
    %1789 = arith.mulf %1776, %1788 : vector<16x128xf32>
    %1790 = arith.truncf %1789 : vector<16x128xf32> to vector<16x128xbf16>
    %c2_824 = arith.constant 2 : index
    %c0_825 = arith.constant 0 : index
    %c0_826 = arith.constant 0 : index
    %1791 = vector.load %arg31[%c2_824, %c0_825, %c0_826] : memref<3x128x32xbf16, #tpu.memory_space<vmem>>, vector<1x128x32xbf16>
    %1792 = vector.shape_cast %1791 : vector<1x128x32xbf16> to vector<128x32xbf16>
    %cst_827 = arith.constant dense<0.000000e+00> : vector<16x32xf32>
    %1793 = tpu.matmul %1790, %1792, %cst_827 {dimension_numbers = #tpu.dot_dimension_numbers<[1], [0], [0], [1], [0, 0, 1, 1], [], []>} : vector<16x128xbf16>, vector<128x32xbf16>, vector<16x32xf32> -> vector<16x32xf32>
    %c2_828 = arith.constant 2 : index
    %c0_829 = arith.constant 0 : index
    %c0_830 = arith.constant 0 : index
    %1794 = vector.load %arg32[%c2_828, %c0_829, %c0_830] : memref<3x1x32xf32, #tpu.memory_space<vmem>>, vector<1x1x32xf32>
    %1795 = vector.shape_cast %1794 : vector<1x1x32xf32> to vector<1x32xf32>
    %1796 = vector.broadcast %1795 : vector<1x32xf32> to vector<16x32xf32>
    %1797 = arith.addf %1793, %1796 : vector<16x32xf32>
    %1798 = arith.addf %1742, %1797 : vector<16x32xf32>
    %c1_831 = arith.constant 1 : index
    %c0_832 = arith.constant 0 : index
    %c160_833 = arith.constant 160 : index
    %1799 = vector.load %arg33[%c1_831, %c0_832, %c160_833] : memref<2x16x256xf32, #tpu.memory_space<vmem>>, vector<1x16x32xf32>
    %1800 = vector.shape_cast %1799 : vector<1x16x32xf32> to vector<16x32xf32>
    %1801 = vector.shape_cast %1798 : vector<16x32xf32> to vector<1x16x32xf32>
    tpu.vector_store %arg33[%c1_831, %c0_832, %c160_833], %1801 {strides = array<i32>} : memref<2x16x256xf32, #tpu.memory_space<vmem>>, vector<1x16x32xf32>,
    return
  }
  func.func @transform_0(%arg0: i32) -> (i32, i32, i32) {
    %c0_i32 = arith.constant 0 : i32
    %c0_i32_0 = arith.constant 0 : i32
    %c0_i32_1 = arith.constant 0 : i32
    return %arg0, %c0_i32, %c0_i32_0 : i32, i32, i32
  }
  func.func @transform_1(%arg0: i32) -> (i32, i32) {
    %c0_i32 = arith.constant 0 : i32
    %c0_i32_0 = arith.constant 0 : i32
    %c0_i32_1 = arith.constant 0 : i32
    return %c0_i32, %c0_i32_0 : i32, i32
  }
  func.func @transform_2(%arg0: i32) -> (i32, i32) {
    %c0_i32 = arith.constant 0 : i32
    %c0_i32_0 = arith.constant 0 : i32
    %c0_i32_1 = arith.constant 0 : i32
    return %c0_i32, %c0_i32_0 : i32, i32
  }
  func.func @transform_3(%arg0: i32) -> (i32, i32) {
    %c0_i32 = arith.constant 0 : i32
    %c0_i32_0 = arith.constant 0 : i32
    %c0_i32_1 = arith.constant 0 : i32
    return %c0_i32, %c0_i32_0 : i32, i32
  }
  func.func @transform_4(%arg0: i32) -> (i32, i32) {
    %c0_i32 = arith.constant 0 : i32
    %c0_i32_0 = arith.constant 0 : i32
    %c0_i32_1 = arith.constant 0 : i32
    return %c0_i32, %c0_i32_0 : i32, i32
  }
  func.func @transform_5(%arg0: i32) -> (i32, i32, i32) {
    %c0_i32 = arith.constant 0 : i32
    %c0_i32_0 = arith.constant 0 : i32
    %c0_i32_1 = arith.constant 0 : i32
    %c0_i32_2 = arith.constant 0 : i32
    return %c0_i32, %c0_i32_0, %c0_i32_1 : i32, i32, i32
  }
  func.func @transform_6(%arg0: i32) -> (i32, i32, i32) {
    %c0_i32 = arith.constant 0 : i32
    %c0_i32_0 = arith.constant 0 : i32
    %c0_i32_1 = arith.constant 0 : i32
    %c0_i32_2 = arith.constant 0 : i32
    return %c0_i32, %c0_i32_0, %c0_i32_1 : i32, i32, i32
  }
  func.func @transform_7(%arg0: i32) -> (i32, i32, i32) {
    %c0_i32 = arith.constant 0 : i32
    %c0_i32_0 = arith.constant 0 : i32
    %c0_i32_1 = arith.constant 0 : i32
    %c0_i32_2 = arith.constant 0 : i32
    return %c0_i32, %c0_i32_0, %c0_i32_1 : i32, i32, i32
  }
  func.func @transform_8(%arg0: i32) -> (i32, i32, i32) {
    %c0_i32 = arith.constant 0 : i32
    %c0_i32_0 = arith.constant 0 : i32
    %c0_i32_1 = arith.constant 0 : i32
    %c0_i32_2 = arith.constant 0 : i32
    return %c0_i32, %c0_i32_0, %c0_i32_1 : i32, i32, i32
  }
  func.func @transform_9(%arg0: i32) -> (i32, i32, i32) {
    %c0_i32 = arith.constant 0 : i32
    %c0_i32_0 = arith.constant 0 : i32
    %c0_i32_1 = arith.constant 0 : i32
    %c0_i32_2 = arith.constant 0 : i32
    return %c0_i32, %c0_i32_0, %c0_i32_1 : i32, i32, i32
  }
  func.func @transform_10(%arg0: i32) -> (i32, i32, i32) {
    %c0_i32 = arith.constant 0 : i32
    %c0_i32_0 = arith.constant 0 : i32
    %c0_i32_1 = arith.constant 0 : i32
    %c0_i32_2 = arith.constant 0 : i32
    return %c0_i32, %c0_i32_0, %c0_i32_1 : i32, i32, i32
  }
  func.func @transform_11(%arg0: i32) -> (i32, i32, i32) {
    %c0_i32 = arith.constant 0 : i32
    %c0_i32_0 = arith.constant 0 : i32
    %c0_i32_1 = arith.constant 0 : i32
    %c0_i32_2 = arith.constant 0 : i32
    return %c0_i32, %c0_i32_0, %c0_i32_1 : i32, i32, i32
  }
  func.func @transform_12(%arg0: i32) -> (i32, i32, i32) {
    %c0_i32 = arith.constant 0 : i32
    %c0_i32_0 = arith.constant 0 : i32
    %c0_i32_1 = arith.constant 0 : i32
    %c0_i32_2 = arith.constant 0 : i32
    return %c0_i32, %c0_i32_0, %c0_i32_1 : i32, i32, i32
  }
  func.func @transform_13(%arg0: i32) -> (i32, i32, i32) {
    %c0_i32 = arith.constant 0 : i32
    %c0_i32_0 = arith.constant 0 : i32
    %c0_i32_1 = arith.constant 0 : i32
    %c0_i32_2 = arith.constant 0 : i32
    return %c0_i32, %c0_i32_0, %c0_i32_1 : i32, i32, i32
  }
  func.func @transform_14(%arg0: i32) -> (i32, i32, i32) {
    %c0_i32 = arith.constant 0 : i32
    %c0_i32_0 = arith.constant 0 : i32
    %c0_i32_1 = arith.constant 0 : i32
    %c0_i32_2 = arith.constant 0 : i32
    return %c0_i32, %c0_i32_0, %c0_i32_1 : i32, i32, i32
  }
  func.func @transform_15(%arg0: i32) -> (i32, i32, i32) {
    %c0_i32 = arith.constant 0 : i32
    %c0_i32_0 = arith.constant 0 : i32
    %c0_i32_1 = arith.constant 0 : i32
    %c0_i32_2 = arith.constant 0 : i32
    return %c0_i32, %c0_i32_0, %c0_i32_1 : i32, i32, i32
  }
  func.func @transform_16(%arg0: i32) -> (i32, i32, i32) {
    %c0_i32 = arith.constant 0 : i32
    %c0_i32_0 = arith.constant 0 : i32
    %c0_i32_1 = arith.constant 0 : i32
    %c0_i32_2 = arith.constant 0 : i32
    return %c0_i32, %c0_i32_0, %c0_i32_1 : i32, i32, i32
  }
  func.func @transform_17(%arg0: i32) -> (i32, i32) {
    %c0_i32 = arith.constant 0 : i32
    %c0_i32_0 = arith.constant 0 : i32
    %c0_i32_1 = arith.constant 0 : i32
    return %c0_i32, %c0_i32_0 : i32, i32
  }
  func.func @transform_18(%arg0: i32) -> (i32, i32) {
    %c0_i32 = arith.constant 0 : i32
    %c0_i32_0 = arith.constant 0 : i32
    %c0_i32_1 = arith.constant 0 : i32
    return %c0_i32, %c0_i32_0 : i32, i32
  }
  func.func @transform_19(%arg0: i32) -> (i32, i32) {
    %c0_i32 = arith.constant 0 : i32
    %c0_i32_0 = arith.constant 0 : i32
    %c0_i32_1 = arith.constant 0 : i32
    return %c0_i32, %c0_i32_0 : i32, i32
  }
  func.func @transform_20(%arg0: i32) -> (i32, i32, i32) {
    %c0_i32 = arith.constant 0 : i32
    %c0_i32_0 = arith.constant 0 : i32
    %c0_i32_1 = arith.constant 0 : i32
    %c0_i32_2 = arith.constant 0 : i32
    return %c0_i32, %c0_i32_0, %c0_i32_1 : i32, i32, i32
  }
  func.func @transform_21(%arg0: i32) -> (i32, i32, i32) {
    %c0_i32 = arith.constant 0 : i32
    %c0_i32_0 = arith.constant 0 : i32
    %c0_i32_1 = arith.constant 0 : i32
    %c0_i32_2 = arith.constant 0 : i32
    return %c0_i32, %c0_i32_0, %c0_i32_1 : i32, i32, i32
  }
  func.func @transform_22(%arg0: i32) -> (i32, i32, i32) {
    %c0_i32 = arith.constant 0 : i32
    %c0_i32_0 = arith.constant 0 : i32
    %c0_i32_1 = arith.constant 0 : i32
    %c0_i32_2 = arith.constant 0 : i32
    return %c0_i32, %c0_i32_0, %c0_i32_1 : i32, i32, i32
  }
  func.func @transform_23(%arg0: i32) -> (i32, i32, i32) {
    %c0_i32 = arith.constant 0 : i32
    %c0_i32_0 = arith.constant 0 : i32
    %c0_i32_1 = arith.constant 0 : i32
    %c0_i32_2 = arith.constant 0 : i32
    return %c0_i32, %c0_i32_0, %c0_i32_1 : i32, i32, i32
  }
  func.func @transform_24(%arg0: i32) -> (i32, i32, i32) {
    %c0_i32 = arith.constant 0 : i32
    %c0_i32_0 = arith.constant 0 : i32
    %c0_i32_1 = arith.constant 0 : i32
    %c0_i32_2 = arith.constant 0 : i32
    return %c0_i32, %c0_i32_0, %c0_i32_1 : i32, i32, i32
  }
  func.func @transform_25(%arg0: i32) -> (i32, i32, i32) {
    %c0_i32 = arith.constant 0 : i32
    %c0_i32_0 = arith.constant 0 : i32
    %c0_i32_1 = arith.constant 0 : i32
    %c0_i32_2 = arith.constant 0 : i32
    return %c0_i32, %c0_i32_0, %c0_i32_1 : i32, i32, i32
  }
  func.func @transform_26(%arg0: i32) -> (i32, i32, i32) {
    %c0_i32 = arith.constant 0 : i32
    %c0_i32_0 = arith.constant 0 : i32
    %c0_i32_1 = arith.constant 0 : i32
    %c0_i32_2 = arith.constant 0 : i32
    return %c0_i32, %c0_i32_0, %c0_i32_1 : i32, i32, i32
  }
  func.func @transform_27(%arg0: i32) -> (i32, i32, i32) {
    %c0_i32 = arith.constant 0 : i32
    %c0_i32_0 = arith.constant 0 : i32
    %c0_i32_1 = arith.constant 0 : i32
    %c0_i32_2 = arith.constant 0 : i32
    return %c0_i32, %c0_i32_0, %c0_i32_1 : i32, i32, i32
  }
  func.func @transform_28(%arg0: i32) -> (i32, i32, i32) {
    %c0_i32 = arith.constant 0 : i32
    %c0_i32_0 = arith.constant 0 : i32
    %c0_i32_1 = arith.constant 0 : i32
    %c0_i32_2 = arith.constant 0 : i32
    return %c0_i32, %c0_i32_0, %c0_i32_1 : i32, i32, i32
  }
  func.func @transform_29(%arg0: i32) -> (i32, i32, i32) {
    %c0_i32 = arith.constant 0 : i32
    %c0_i32_0 = arith.constant 0 : i32
    %c0_i32_1 = arith.constant 0 : i32
    %c0_i32_2 = arith.constant 0 : i32
    return %c0_i32, %c0_i32_0, %c0_i32_1 : i32, i32, i32
  }
  func.func @transform_30(%arg0: i32) -> (i32, i32, i32) {
    %c0_i32 = arith.constant 0 : i32
    %c0_i32_0 = arith.constant 0 : i32
    %c0_i32_1 = arith.constant 0 : i32
    %c0_i32_2 = arith.constant 0 : i32
    return %c0_i32, %c0_i32_0, %c0_i32_1 : i32, i32, i32
  }
  func.func @transform_31(%arg0: i32) -> (i32, i32, i32) {
    %c0_i32 = arith.constant 0 : i32
    %c0_i32_0 = arith.constant 0 : i32
    %c0_i32_1 = arith.constant 0 : i32
    %c0_i32_2 = arith.constant 0 : i32
    return %c0_i32, %c0_i32_0, %c0_i32_1 : i32, i32, i32
  }
  func.func @transform_32(%arg0: i32) -> (i32, i32, i32) {
    %c0_i32 = arith.constant 0 : i32
    %c0_i32_0 = arith.constant 0 : i32
    %c0_i32_1 = arith.constant 0 : i32
    return %arg0, %c0_i32, %c0_i32_0 : i32, i32, i32
  }
}

</mosaic_0001>

<llo_original>
// kernel: vitad_forward.1
$region0: #{vitad_forward.1}
  #allocation0 [shape = 'u32[]', space=smem, size = 0x4, offset = 0x4, fixed_abs, tag = 'smem constant byte address 0x4 - core index']
  #allocation1 [shape = 'u32[72,128]{1,0:T(1,128)}', space=vmem, size = 0x9000, scoped, tag = 'internal scratch']
  %s0 = inlined_call_operand.smem [shape: u32[33], index: -1, kind: input, shape index: {}]
  %s1 = sld [smem:[%s0]]
  %s2 = scalar_lea.smem %s0, 1
  %s3 = sld [smem:[%s2]]
  %s4 = scalar_lea.smem %s0, 2
  %s5 = sld [smem:[%s4]]
  %s6 = scalar_lea.smem %s0, 3
  %s7 = sld [smem:[%s6]]
  %s8 = scalar_lea.smem %s0, 4
  %s9 = sld [smem:[%s8]]
  %s10 = scalar_lea.smem %s0, 5
  %s11 = sld [smem:[%s10]]
  %s12 = scalar_lea.smem %s0, 6
  %s13 = sld [smem:[%s12]]
  %s14 = scalar_lea.smem %s0, 7
  %s15 = sld [smem:[%s14]]
  %s16 = scalar_lea.smem %s0, 8
  %s17 = sld [smem:[%s16]]
  %s18 = scalar_lea.smem %s0, 9
  %s19 = sld [smem:[%s18]]
  %s20 = scalar_lea.smem %s0, 10
  %s21 = sld [smem:[%s20]]
  %s22 = scalar_lea.smem %s0, 11
  %s23 = sld [smem:[%s22]]
  %s24 = scalar_lea.smem %s0, 12
  %s25 = sld [smem:[%s24]]
  %s26 = scalar_lea.smem %s0, 13
  %s27 = sld [smem:[%s26]]
  %s28 = scalar_lea.smem %s0, 14
  %s29 = sld [smem:[%s28]]
  %s30 = scalar_lea.smem %s0, 15
  %s31 = sld [smem:[%s30]]
  %s32 = scalar_lea.smem %s0, 16
  %s33 = sld [smem:[%s32]]
  %s34 = scalar_lea.smem %s0, 17
  %s35 = sld [smem:[%s34]]
  %s36 = scalar_lea.smem %s0, 18
  %s37 = sld [smem:[%s36]]
  %s38 = scalar_lea.smem %s0, 19
  %s39 = sld [smem:[%s38]]
  %s40 = scalar_lea.smem %s0, 20
  %s41 = sld [smem:[%s40]]
  %s42 = scalar_lea.smem %s0, 21
  %s43 = sld [smem:[%s42]]
  %s44 = scalar_lea.smem %s0, 22
  %s45 = sld [smem:[%s44]]
  %s46 = scalar_lea.smem %s0, 23
  %s47 = sld [smem:[%s46]]
  %s48 = scalar_lea.smem %s0, 24
  %s49 = sld [smem:[%s48]]
  %s50 = scalar_lea.smem %s0, 25
  %s51 = sld [smem:[%s50]]
  %s52 = scalar_lea.smem %s0, 26
  %s53 = sld [smem:[%s52]]
  %s54 = scalar_lea.smem %s0, 27
  %s55 = sld [smem:[%s54]]
  %s56 = scalar_lea.smem %s0, 28
  %s57 = sld [smem:[%s56]]
  %s58 = scalar_lea.smem %s0, 29
  %s59 = sld [smem:[%s58]]
  %s60 = scalar_lea.smem %s0, 30
  %s61 = sld [smem:[%s60]]
  %s62 = scalar_lea.smem %s0, 31
  %s63 = sld [smem:[%s62]]
  %s64 = scalar_lea.smem %s0, 32
  %s65 = sld [smem:[%s64]]
  %s66 = sld [smem:[#allocation0]]
  $region138: #{vitad_forward.1} parent=0
    _
  %s68 = ssub.s32 1, %s66
  %s69 = scalar_select 0, %s68, %s66
  // Predicated region
  $region2: #{vitad_forward.1} parent=0 // pred_check
    _
  $region3: #{vitad_forward.1} parent=0 // pred_check_branch
    %71 = sbr.rel (0) target = $region5
  $region4: #{vitad_forward.1} parent=0 // pred_region
    _
  $region5: #{vitad_forward.1} parent=0 // pred_fallthru
    _
  // Predicated region
  $region6: #{vitad_forward.1} parent=0 // pred_check
    _
  $region7: #{vitad_forward.1} parent=0 // pred_check_branch
    %73 = sbr.rel (0) target = $region9
  $region8: #{vitad_forward.1} parent=0 // pred_region
    _
  $region9: #{vitad_forward.1} parent=0 // pred_fallthru
    _
  // Predicated region
  $region10: #{vitad_forward.1} parent=0 // pred_check
    _
  $region11: #{vitad_forward.1} parent=0 // pred_check_branch
    %75 = sbr.rel (0) target = $region13
  $region12: #{vitad_forward.1} parent=0 // pred_region
    _
  $region13: #{vitad_forward.1} parent=0 // pred_fallthru
    _
  // Predicated region
  $region14: #{vitad_forward.1} parent=0 // pred_check
    _
  $region15: #{vitad_forward.1} parent=0 // pred_check_branch
    %77 = sbr.rel (0) target = $region17
  $region16: #{vitad_forward.1} parent=0 // pred_region
    _
  $region17: #{vitad_forward.1} parent=0 // pred_fallthru
    _
  // Predicated region
  $region18: #{vitad_forward.1} parent=0 // pred_check
    _
  $region19: #{vitad_forward.1} parent=0 // pred_check_branch
    %79 = sbr.rel (0) target = $region21
  $region20: #{vitad_forward.1} parent=0 // pred_region
    _
  $region21: #{vitad_forward.1} parent=0 // pred_fallthru
    _
  // Predicated region
  $region22: #{vitad_forward.1} parent=0 // pred_check
    _
  $region23: #{vitad_forward.1} parent=0 // pred_check_branch
    %81 = sbr.rel (0) target = $region25
  $region24: #{vitad_forward.1} parent=0 // pred_region
    _
  $region25: #{vitad_forward.1} parent=0 // pred_fallthru
    _
  // Predicated region
  $region26: #{vitad_forward.1} parent=0 // pred_check
    _
  $region27: #{vitad_forward.1} parent=0 // pred_check_branch
    %83 = sbr.rel (0) target = $region29
  $region28: #{vitad_forward.1} parent=0 // pred_region
    _
  $region29: #{vitad_forward.1} parent=0 // pred_fallthru
    _
  // Predicated region
  $region30: #{vitad_forward.1} parent=0 // pred_check
    _
  $region31: #{vitad_forward.1} parent=0 // pred_check_branch
    %85 = sbr.rel (0) target = $region33
  $region32: #{vitad_forward.1} parent=0 // pred_region
    _
  $region33: #{vitad_forward.1} parent=0 // pred_fallthru
    _
  // Predicated region
  $region34: #{vitad_forward.1} parent=0 // pred_check
    _
  $region35: #{vitad_forward.1} parent=0 // pred_check_branch
    %87 = sbr.rel (0) target = $region37
  $region36: #{vitad_forward.1} parent=0 // pred_region
    _
  $region37: #{vitad_forward.1} parent=0 // pred_fallthru
    _
  // Predicated region
  $region38: #{vitad_forward.1} parent=0 // pred_check
    _
  $region39: #{vitad_forward.1} parent=0 // pred_check_branch
    %89 = sbr.rel (0) target = $region41
  $region40: #{vitad_forward.1} parent=0 // pred_region
    _
  $region41: #{vitad_forward.1} parent=0 // pred_fallthru
    _
  // Predicated region
  $region42: #{vitad_forward.1} parent=0 // pred_check
    _
  $region43: #{vitad_forward.1} parent=0 // pred_check_branch
    %91 = sbr.rel (0) target = $region45
  $region44: #{vitad_forward.1} parent=0 // pred_region
    _
  $region45: #{vitad_forward.1} parent=0 // pred_fallthru
    _
  // Predicated region
  $region46: #{vitad_forward.1} parent=0 // pred_check
    _
  $region47: #{vitad_forward.1} parent=0 // pred_check_branch
    %93 = sbr.rel (0) target = $region49
  $region48: #{vitad_forward.1} parent=0 // pred_region
    _
  $region49: #{vitad_forward.1} parent=0 // pred_fallthru
    _
  // Predicated region
  $region50: #{vitad_forward.1} parent=0 // pred_check
    _
  $region51: #{vitad_forward.1} parent=0 // pred_check_branch
    %95 = sbr.rel (0) target = $region53
  $region52: #{vitad_forward.1} parent=0 // pred_region
    _
  $region53: #{vitad_forward.1} parent=0 // pred_fallthru
    _
  // Predicated region
  $region54: #{vitad_forward.1} parent=0 // pred_check
    _
  $region55: #{vitad_forward.1} parent=0 // pred_check_branch
    %97 = sbr.rel (0) target = $region57
  $region56: #{vitad_forward.1} parent=0 // pred_region
    _
  $region57: #{vitad_forward.1} parent=0 // pred_fallthru
    _
  // Predicated region
  $region58: #{vitad_forward.1} parent=0 // pred_check
    _
  $region59: #{vitad_forward.1} parent=0 // pred_check_branch
    %99 = sbr.rel (0) target = $region61
  $region60: #{vitad_forward.1} parent=0 // pred_region
    _
  $region61: #{vitad_forward.1} parent=0 // pred_fallthru
    _
  // Predicated region
  $region62: #{vitad_forward.1} parent=0 // pred_check
    _
  $region63: #{vitad_forward.1} parent=0 // pred_check_branch
    %101 = sbr.rel (0) target = $region65
  $region64: #{vitad_forward.1} parent=0 // pred_region
    _
  $region65: #{vitad_forward.1} parent=0 // pred_fallthru
    _
  // Predicated region
  $region66: #{vitad_forward.1} parent=0 // pred_check
    _
  $region67: #{vitad_forward.1} parent=0 // pred_check_branch
    %103 = sbr.rel (0) target = $region69
  $region68: #{vitad_forward.1} parent=0 // pred_region
    _
  $region69: #{vitad_forward.1} parent=0 // pred_fallthru
    _
  // Predicated region
  $region70: #{vitad_forward.1} parent=0 // pred_check
    _
  $region71: #{vitad_forward.1} parent=0 // pred_check_branch
    %105 = sbr.rel (0) target = $region73
  $region72: #{vitad_forward.1} parent=0 // pred_region
    _
  $region73: #{vitad_forward.1} parent=0 // pred_fallthru
    _
  // Predicated region
  $region74: #{vitad_forward.1} parent=0 // pred_check
    _
  $region75: #{vitad_forward.1} parent=0 // pred_check_branch
    %107 = sbr.rel (0) target = $region77
  $region76: #{vitad_forward.1} parent=0 // pred_region
    _
  $region77: #{vitad_forward.1} parent=0 // pred_fallthru
    _
  // Predicated region
  $region78: #{vitad_forward.1} parent=0 // pred_check
    _
  $region79: #{vitad_forward.1} parent=0 // pred_check_branch
    %109 = sbr.rel (0) target = $region81
  $region80: #{vitad_forward.1} parent=0 // pred_region
    _
  $region81: #{vitad_forward.1} parent=0 // pred_fallthru
    _
  // Predicated region
  $region82: #{vitad_forward.1} parent=0 // pred_check
    _
  $region83: #{vitad_forward.1} parent=0 // pred_check_branch
    %111 = sbr.rel (0) target = $region85
  $region84: #{vitad_forward.1} parent=0 // pred_region
    _
  $region85: #{vitad_forward.1} parent=0 // pred_fallthru
    _
  // Predicated region
  $region86: #{vitad_forward.1} parent=0 // pred_check
    _
  $region87: #{vitad_forward.1} parent=0 // pred_check_branch
    %113 = sbr.rel (0) target = $region89
  $region88: #{vitad_forward.1} parent=0 // pred_region
    _
  $region89: #{vitad_forward.1} parent=0 // pred_fallthru
    _
  // Predicated region
  $region90: #{vitad_forward.1} parent=0 // pred_check
    _
  $region91: #{vitad_forward.1} parent=0 // pred_check_branch
    %115 = sbr.rel (0) target = $region93
  $region92: #{vitad_forward.1} parent=0 // pred_region
    _
  $region93: #{vitad_forward.1} parent=0 // pred_fallthru
    _
  // Predicated region
  $region94: #{vitad_forward.1} parent=0 // pred_check
    _
  $region95: #{vitad_forward.1} parent=0 // pred_check_branch
    %117 = sbr.rel (0) target = $region97
  $region96: #{vitad_forward.1} parent=0 // pred_region
    _
  $region97: #{vitad_forward.1} parent=0 // pred_fallthru
    _
  // Predicated region
  $region98: #{vitad_forward.1} parent=0 // pred_check
    _
  $region99: #{vitad_forward.1} parent=0 // pred_check_branch
    %119 = sbr.rel (0) target = $region101
  $region100: #{vitad_forward.1} parent=0 // pred_region
    _
  $region101: #{vitad_forward.1} parent=0 // pred_fallthru
    _
  // Predicated region
  $region102: #{vitad_forward.1} parent=0 // pred_check
    _
  $region103: #{vitad_forward.1} parent=0 // pred_check_branch
    %121 = sbr.rel (0) target = $region105
  $region104: #{vitad_forward.1} parent=0 // pred_region
    _
  $region105: #{vitad_forward.1} parent=0 // pred_fallthru
    _
  // Predicated region
  $region106: #{vitad_forward.1} parent=0 // pred_check
    _
  $region107: #{vitad_forward.1} parent=0 // pred_check_branch
    %123 = sbr.rel (0) target = $region109
  $region108: #{vitad_forward.1} parent=0 // pred_region
    _
  $region109: #{vitad_forward.1} parent=0 // pred_fallthru
    _
  // Predicated region
  $region110: #{vitad_forward.1} parent=0 // pred_check
    _
  $region111: #{vitad_forward.1} parent=0 // pred_check_branch
    %125 = sbr.rel (0) target = $region113
  $region112: #{vitad_forward.1} parent=0 // pred_region
    _
  $region113: #{vitad_forward.1} parent=0 // pred_fallthru
    _
  // Predicated region
  $region114: #{vitad_forward.1} parent=0 // pred_check
    _
  $region115: #{vitad_forward.1} parent=0 // pred_check_branch
    %127 = sbr.rel (0) target = $region117
  $region116: #{vitad_forward.1} parent=0 // pred_region
    _
  $region117: #{vitad_forward.1} parent=0 // pred_fallthru
    _
  // Predicated region
  $region118: #{vitad_forward.1} parent=0 // pred_check
    _
  $region119: #{vitad_forward.1} parent=0 // pred_check_branch
    %129 = sbr.rel (0) target = $region121
  $region120: #{vitad_forward.1} parent=0 // pred_region
    _
  $region121: #{vitad_forward.1} parent=0 // pred_fallthru
    _
  // Predicated region
  $region122: #{vitad_forward.1} parent=0 // pred_check
    _
  $region123: #{vitad_forward.1} parent=0 // pred_check_branch
    %131 = sbr.rel (0) target = $region125
  $region124: #{vitad_forward.1} parent=0 // pred_region
    _
  $region125: #{vitad_forward.1} parent=0 // pred_fallthru
    _
  // Predicated region
  $region126: #{vitad_forward.1} parent=0 // pred_check
    _
  $region127: #{vitad_forward.1} parent=0 // pred_check_branch
    %133 = sbr.rel (0) target = $region129
  $region128: #{vitad_forward.1} parent=0 // pred_region
    _
  $region129: #{vitad_forward.1} parent=0 // pred_fallthru
    _
  %vm135 = vcmask 1048064
  %136 = vst.msk [vmem:[%s65 + $0x8] sm:$0xff] %vm135, 0.0
  %137 = vst.msk [vmem:[%s65 + $0x18] sm:$0xff] %vm135, 0.0
  %v138 = vld [vmem:[%s1] sm:$0xff]
  %v139 = vld [vmem:[%s1 + $0x8] sm:$0xff]
  %v140 = vpack.c.bf16 %v139, %v138
  %v141 = vld [vmem:[%s3] sm:$0xf]
  %v142 = vld [vmem:[%s3 + $0x4] sm:$0xf]
  %v143 = vld [vmem:[%s3 + $0x8] sm:$0xf]
  %v144 = vld [vmem:[%s3 + $0xc] sm:$0xf]
  %v145 = vld [vmem:[%s3 + $0x10] sm:$0xf]
  %v146 = vld [vmem:[%s3 + $0x14] sm:$0xf]
  %v147 = vld [vmem:[%s5] sm:$0x1]
  %v149 = vperm.slane %v147, 0
  %v157 = vunpack.c.l.b16 %v141
  %v158 = vunpack.c.l.b16 %v142
  %v159 = vunpack.c.l.b16 %v143
  %v160 = vunpack.c.l.b16 %v144
  %v161 = vunpack.c.l.b16 %v145
  %v162 = vunpack.c.l.b16 %v146
  %v163 = vpack.c.b16 %v158, %v157
  %v164 = vpack.c.b16 %v160, %v159
  %v165 = vpack.c.b16 %v162, %v161
  %vm169 = vcmask 392192
  %v171 = vsel %vm169, %v140, 0
  %173 = vmatpush.bf16.msra.mxu0 0
  %174 = vmatpush.bf16.msra.mxu0 0
  %175 = vmatpush.bf16.msra.mxu0 0
  %176 = vmatpush.bf16.msra.mxu0 0
  %177 = vmatpush.bf16.msra.mxu0 0
  %178 = vmatpush.bf16.msra.mxu0 %v165
  %179 = vmatpush.bf16.msra.mxu0 %v164
  %180 = vmatpush.bf16.msra.mxu0 %v163
  %181 = vmatmul.bf16.gmra.mxu0 %v171
  %v182 = vpop.f32.mrf.mxu0
  %v183 = vadd.f32 %v149, %v182
  %v184 = vpop.f32.mrf.mxu0
  %v185 = vadd.f32 %v149, %v184
  %186 = vdwg.mxu0
  %v187 = vld [vmem:[%s7] sm:$0x1]
  %v188 = vld [vmem:[%s9] sm:$0xff]
  %v189 = vld [vmem:[%s9 + $0x8] sm:$0xff]
  %v190 = vld [vmem:[%s9 + $0x10] sm:$0x1]
  %v191 = vadd.f32 %v183, %v188
  %v192 = vadd.f32 %v185, %v189
  %v193 = vadd.f32 %v187, %v190
  %v194 = vld [vmem:[%s11] sm:$0x1]
  %v195 = vld [vmem:[%s13] sm:$0x1]
  %vm196 = vcmask 261120
  %v197 = vsel %vm196, %v191, 0.0
  %198 = vadd.xlane.f32.xlu0 %v197
  %v199 = vpop.xlane.xlu0 %198
  %v200 = vsel %vm196, %v192, 0.0
  %201 = vadd.xlane.f32.xlu0 %v200
  %v202 = vpop.xlane.xlu0 %201
  %vm203 = vcmask 253952
  %v204 = vsel %vm203, %v193, 0.0
  %205 = vadd.xlane.f32.xlu0 %v204
  %v206 = vpop.xlane.xlu0 %205
  %v207 = vrcp.pop 32.0
  %v208 = vmul.f32 32.0, %v207
  %v209 = vsub.f32 1.0, %v208
  %v210 = vmul.f32 %v207, %v209
  %v211 = vadd.f32 %v207, %v210
  %vm212 = vweird.f32 %v207
  %v213 = vsel %vm212, %v207, %v211
  %v214 = vmul.f32 %v199, %v213
  %v215 = vmul.f32 %v202, %v213
  %v216 = vmul.f32 %v206, %v213
  %v217 = vsub.f32 %v191, %v214
  %v218 = vsub.f32 %v192, %v215
  %v219 = vsub.f32 %v193, %v216
  %v220 = vmul.f32 %v217, %v217
  %v221 = vmul.f32 %v218, %v218
  %v222 = vmul.f32 %v219, %v219
  %v223 = vsel %vm196, %v220, 0.0
  %224 = vadd.xlane.f32.xlu0 %v223
  %v225 = vpop.xlane.xlu0 %224
  %v226 = vsel %vm196, %v221, 0.0
  %227 = vadd.xlane.f32.xlu0 %v226
  %v228 = vpop.xlane.xlu0 %227
  %v229 = vsel %vm203, %v222, 0.0
  %230 = vadd.xlane.f32.xlu0 %v229
  %v231 = vpop.xlane.xlu0 %230
  %v232 = vmul.f32 %v225, %v213
  %v233 = vmul.f32 %v228, %v213
  %v234 = vmul.f32 %v231, %v213
  %v235 = vadd.f32 %v232, 1e-06
  %v236 = vadd.f32 %v233, 1e-06
  %v237 = vadd.f32 %v234, 1e-06
  %v238 = vrsqrt.pop %v235
  %v239 = vmul.f32 %v238, %v235
  %v240 = vmul.f32 %v239, %v238
  %v241 = vmul.f32 0.5, %v240
  %v242 = vsub.f32 1.5, %v241
  %v243 = vmul.f32 %v238, %v242
  %vm244 = vweird.f32 %v235
  %vm245 = vweird.f32 %v238
  %vm246 = vmor %vm244, %vm245
  %v247 = vsel %vm246, %v238, %v243
  %v248 = vrsqrt.pop %v236
  %v249 = vmul.f32 %v248, %v236
  %v250 = vmul.f32 %v249, %v248
  %v251 = vmul.f32 0.5, %v250
  %v252 = vsub.f32 1.5, %v251
  %v253 = vmul.f32 %v248, %v252
  %vm254 = vweird.f32 %v236
  %vm255 = vweird.f32 %v248
  %vm256 = vmor %vm254, %vm255
  %v257 = vsel %vm256, %v248, %v253
  %v258 = vrsqrt.pop %v237
  %v259 = vmul.f32 %v258, %v237
  %v260 = vmul.f32 %v259, %v258
  %v261 = vmul.f32 0.5, %v260
  %v262 = vsub.f32 1.5, %v261
  %v263 = vmul.f32 %v258, %v262
  %vm264 = vweird.f32 %v237
  %vm265 = vweird.f32 %v258
  %vm266 = vmor %vm264, %vm265
  %v267 = vsel %vm266, %v258, %v263
  %v268 = vmul.f32 %v217, %v247
  %v269 = vmul.f32 %v218, %v257
  %v270 = vmul.f32 %v219, %v267
  %v272 = vperm.slane %v194, 0
  %v274 = vmul.f32 %v268, %v272
  %v275 = vmul.f32 %v269, %v272
  %v276 = vmul.f32 %v270, %v272
  %v278 = vperm.slane %v195, 0
  %v280 = vadd.f32 %v274, %v278
  %v281 = vadd.f32 %v275, %v278
  %v282 = vadd.f32 %v276, %v278
  %v283 = vpack.c.bf16 %v281, %v280
  %v284 = vpack.c.bf16 %v282, %v282
  %v285 = vld [vmem:[%s15] sm:$0xf]
  %v286 = vld [vmem:[%s15 + $0x4] sm:$0xf]
  %v287 = vld [vmem:[%s15 + $0x8] sm:$0xf]
  %v288 = vld [vmem:[%s15 + $0xc] sm:$0xf]
  %v289 = vld [vmem:[%s17] sm:$0x1]
  %v291 = vperm.slane %v289, 0
  %v297 = vunpack.c.l.b16 %v285
  %v298 = vunpack.c.l.b16 %v286
  %v299 = vunpack.c.l.b16 %v287
  %v300 = vunpack.c.l.b16 %v288
  %v301 = vpack.c.b16 %v298, %v297
  %v302 = vpack.c.b16 %v300, %v299
  %v306 = vsel %vm196, %v283, 0
  %v309 = vsel %vm196, %v284, 0
  %311 = vmatpush.bf16.msra.mxu0 0
  %312 = vmatpush.bf16.msra.mxu0 0
  %313 = vmatpush.bf16.msra.mxu0 0
  %314 = vmatpush.bf16.msra.mxu0 0
  %315 = vmatpush.bf16.msra.mxu0 0
  %316 = vmatpush.bf16.msra.mxu0 0
  %317 = vmatpush.bf16.msra.mxu0 %v302
  %318 = vmatpush.bf16.msra.mxu0 %v301
  %319 = vmatmul.bf16.gmra.mxu0 %v306
  %v320 = vpop.f32.mrf.mxu0
  %v321 = vadd.f32 %v291, %v320
  %v322 = vpop.f32.mrf.mxu0
  %v323 = vadd.f32 %v291, %v322
  %324 = vmatmul.bf16.gmra.mxu0 %v309
  %v325 = vpop.f32.mrf.mxu0
  %v326 = vadd.f32 %v291, %v325
  %v327 = vpop.f32.mrf.mxu0
  %328 = vdwg.mxu0
  %v329 = vpack.c.bf16 %v323, %v321
  %v330 = vpack.c.bf16 %v326, %v326
  %333 = vrot.lane.b32.xlu0 %v329, 96
  %v334 = vpop.permute.xlu0 %333
  %335 = vrot.lane.b32.xlu0 %v330, 96
  %v336 = vpop.permute.xlu0 %335
  %vm337 = vcmask 130048
  %v339 = vsel %vm337, %v329, 0
  %v342 = vsel %vm337, %v330, 0
  %v345 = vsel %vm337, %v334, 0
  %v348 = vsel %vm337, %v336, 0
  %350 = vmatpush.bf16.xpose.msra.mxu0 0
  %351 = vmatpush.bf16.xpose.msra.mxu0 0
  %352 = vmatpush.bf16.xpose.msra.mxu0 0
  %353 = vmatpush.bf16.xpose.msra.mxu0 0
  %354 = vmatpush.bf16.xpose.msra.mxu0 0
  %355 = vmatpush.bf16.xpose.msra.mxu0 0
  %356 = vmatpush.bf16.xpose.msra.mxu0 %v348
  %357 = vmatpush.bf16.xpose.msra.mxu0 %v345
  %358 = vmatmul.bf16.gmra.mxu0 %v339
  %v359 = vpop.f32.mrf.mxu0
  %v360 = vadd.f32 0.0, %v359
  %v361 = vpop.f32.mrf.mxu0
  %v362 = vadd.f32 0.0, %v361
  %363 = vmatmul.bf16.gmra.mxu0 %v342
  %v364 = vpop.f32.mrf.mxu0
  %v365 = vadd.f32 0.0, %v364
  %v366 = vpop.f32.mrf.mxu0
  %367 = vdwg.mxu0
  %vm368 = vcmask 138240
  %v369 = vsel %vm368, %v360, -inf
  %370 = vmax.xlane.f32.xlu0 %v369
  %v371 = vpop.xlane.xlu0 %370
  %v372 = vsel %vm368, %v362, -inf
  %373 = vmax.xlane.f32.xlu0 %v372
  %v374 = vpop.xlane.xlu0 %373
  %vm375 = vcmask 131072
  %v376 = vsel %vm375, %v365, -inf
  %377 = vmax.xlane.f32.xlu0 %v376
  %v378 = vpop.xlane.xlu0 %377
  %v379 = vsub.f32 %v360, %v371
  %v380 = vsub.f32 %v362, %v374
  %v381 = vsub.f32 %v365, %v378
  %v382 = vmul.f32 %v379, 1.442695
  %v383 = vpow.pop %v382
  %v384 = vmul.f32 %v380, 1.442695
  %v385 = vpow.pop %v384
  %v386 = vmul.f32 %v381, 1.442695
  %v387 = vpow.pop %v386
  %v388 = vsel %vm368, %v383, 0.0
  %389 = vadd.xlane.f32.xlu0 %v388
  %v390 = vpop.xlane.xlu0 %389
  %v391 = vsel %vm368, %v385, 0.0
  %392 = vadd.xlane.f32.xlu0 %v391
  %v393 = vpop.xlane.xlu0 %392
  %v394 = vsel %vm375, %v387, 0.0
  %395 = vadd.xlane.f32.xlu0 %v394
  %v396 = vpop.xlane.xlu0 %395
  %v397 = vrcp.pop %v390
  %v398 = vrcp.pop %v393
  %v399 = vrcp.pop %v396
  %v400 = vmul.f32 %v383, %v397
  %v401 = vmul.f32 %v385, %v398
  %v402 = vmul.f32 %v387, %v399
  %v403 = vpack.c.bf16 %v401, %v400
  %v404 = vpack.c.bf16 %v402, %v402
  %405 = vrot.lane.b32.xlu0 %v329, 64
  %v406 = vpop.permute.xlu0 %405
  %407 = vrot.lane.b32.xlu0 %v330, 64
  %v408 = vpop.permute.xlu0 %407
  %v411 = vsel %vm368, %v403, 0
  %v414 = vsel %vm368, %v404, 0
  %vm416 = vcmask 1040384
  %v417 = vsel 0, 4294967295, 65535
  %v418 = vsel %vm416, %v417, 0
  %v420 = vand.u32 %v408, %v418
  %422 = vmatpush.bf16.msra.mxu0 0
  %423 = vmatpush.bf16.msra.mxu0 0
  %424 = vmatpush.bf16.msra.mxu0 0
  %425 = vmatpush.bf16.msra.mxu0 0
  %426 = vmatpush.bf16.msra.mxu0 0
  %427 = vmatpush.bf16.msra.mxu0 0
  %428 = vmatpush.bf16.msra.mxu0 %v420
  %429 = vmatpush.bf16.msra.mxu0 %v406
  %430 = vmatmul.bf16.gmra.mxu0 %v411
  %v431 = vpop.f32.mrf.mxu0
  %v432 = vadd.f32 0.0, %v431
  %v433 = vpop.f32.mrf.mxu0
  %v434 = vadd.f32 0.0, %v433
  %435 = vmatmul.bf16.gmra.mxu0 %v414
  %v436 = vpop.f32.mrf.mxu0
  %v437 = vadd.f32 0.0, %v436
  %v438 = vpop.f32.mrf.mxu0
  %439 = vdwg.mxu0
  %440 = vrot.lane.b32.xlu0 %v329, 112
  %v441 = vpop.permute.xlu0 %440
  %442 = vrot.lane.b32.xlu0 %v330, 112
  %v443 = vpop.permute.xlu0 %442
  %444 = vrot.lane.b32.xlu0 %v329, 80
  %v445 = vpop.permute.xlu0 %444
  %446 = vrot.lane.b32.xlu0 %v330, 80
  %v447 = vpop.permute.xlu0 %446
  %v449 = vsel %vm337, %v441, 0
  %v452 = vsel %vm337, %v443, 0
  %v455 = vsel %vm337, %v445, 0
  %v458 = vsel %vm337, %v447, 0
  %460 = vmatpush.bf16.xpose.msra.mxu0 0
  %461 = vmatpush.bf16.xpose.msra.mxu0 0
  %462 = vmatpush.bf16.xpose.msra.mxu0 0
  %463 = vmatpush.bf16.xpose.msra.mxu0 0
  %464 = vmatpush.bf16.xpose.msra.mxu0 0
  %465 = vmatpush.bf16.xpose.msra.mxu0 0
  %466 = vmatpush.bf16.xpose.msra.mxu0 %v458
  %467 = vmatpush.bf16.xpose.msra.mxu0 %v455
  %468 = vmatmul.bf16.gmra.mxu0 %v449
  %v469 = vpop.f32.mrf.mxu0
  %v470 = vadd.f32 0.0, %v469
  %v471 = vpop.f32.mrf.mxu0
  %v472 = vadd.f32 0.0, %v471
  %473 = vmatmul.bf16.gmra.mxu0 %v452
  %v474 = vpop.f32.mrf.mxu0
  %v475 = vadd.f32 0.0, %v474
  %v476 = vpop.f32.mrf.mxu0
  %477 = vdwg.mxu0
  %v478 = vsel %vm368, %v470, -inf
  %479 = vmax.xlane.f32.xlu0 %v478
  %v480 = vpop.xlane.xlu0 %479
  %v481 = vsel %vm368, %v472, -inf
  %482 = vmax.xlane.f32.xlu0 %v481
  %v483 = vpop.xlane.xlu0 %482
  %v484 = vsel %vm375, %v475, -inf
  %485 = vmax.xlane.f32.xlu0 %v484
  %v486 = vpop.xlane.xlu0 %485
  %v487 = vsub.f32 %v470, %v480
  %v488 = vsub.f32 %v472, %v483
  %v489 = vsub.f32 %v475, %v486
  %v490 = vmul.f32 %v487, 1.442695
  %v491 = vpow.pop %v490
  %v492 = vmul.f32 %v488, 1.442695
  %v493 = vpow.pop %v492
  %v494 = vmul.f32 %v489, 1.442695
  %v495 = vpow.pop %v494
  %v496 = vsel %vm368, %v491, 0.0
  %497 = vadd.xlane.f32.xlu0 %v496
  %v498 = vpop.xlane.xlu0 %497
  %v499 = vsel %vm368, %v493, 0.0
  %500 = vadd.xlane.f32.xlu0 %v499
  %v501 = vpop.xlane.xlu0 %500
  %v502 = vsel %vm375, %v495, 0.0
  %503 = vadd.xlane.f32.xlu0 %v502
  %v504 = vpop.xlane.xlu0 %503
  %v505 = vrcp.pop %v498
  %v506 = vrcp.pop %v501
  %v507 = vrcp.pop %v504
  %v508 = vmul.f32 %v491, %v505
  %v509 = vmul.f32 %v493, %v506
  %v510 = vmul.f32 %v495, %v507
  %v511 = vpack.c.bf16 %v509, %v508
  %v512 = vpack.c.bf16 %v510, %v510
  %513 = vrot.lane.b32.xlu0 %v329, 48
  %v514 = vpop.permute.xlu0 %513
  %515 = vrot.lane.b32.xlu0 %v330, 48
  %v516 = vpop.permute.xlu0 %515
  %v519 = vsel %vm368, %v511, 0
  %v522 = vsel %vm368, %v512, 0
  %v525 = vand.u32 %v516, %v418
  %527 = vmatpush.bf16.msra.mxu0 0
  %528 = vmatpush.bf16.msra.mxu0 0
  %529 = vmatpush.bf16.msra.mxu0 0
  %530 = vmatpush.bf16.msra.mxu0 0
  %531 = vmatpush.bf16.msra.mxu0 0
  %532 = vmatpush.bf16.msra.mxu0 0
  %533 = vmatpush.bf16.msra.mxu0 %v525
  %534 = vmatpush.bf16.msra.mxu0 %v514
  %535 = vmatmul.bf16.gmra.mxu0 %v519
  %v536 = vpop.f32.mrf.mxu0
  %v537 = vadd.f32 0.0, %v536
  %v538 = vpop.f32.mrf.mxu0
  %v539 = vadd.f32 0.0, %v538
  %540 = vmatmul.bf16.gmra.mxu0 %v522
  %v541 = vpop.f32.mrf.mxu0
  %v542 = vadd.f32 0.0, %v541
  %v543 = vpop.f32.mrf.mxu0
  %544 = vdwg.mxu0
  %v545 = vld [vmem:[%s19] sm:$0xf]
  %v546 = vld [vmem:[%s19 + $0x4] sm:$0xf]
  %v547 = vld [vmem:[%s19 + $0x8] sm:$0xf]
  %v548 = vld [vmem:[%s19 + $0xc] sm:$0xf]
  %v549 = vpack.c.bf16 %v434, %v432
  %v550 = vpack.c.bf16 %v437, %v437
  %v551 = vpack.c.bf16 %v539, %v537
  %v552 = vpack.c.bf16 %v542, %v542
  %v555 = vunpack.c.l.b16 %v547
  %v556 = vunpack.c.l.b16 %v548
  %v557 = vpack.c.b16 %v556, %v555
  %v560 = vsel %vm337, %v551, 0
  %v563 = vsel %vm337, %v552, 0
  %565 = vmatpush.bf16.msra.mxu0 0
  %566 = vmatpush.bf16.msra.mxu0 0
  %567 = vmatpush.bf16.msra.mxu0 0
  %568 = vmatpush.bf16.msra.mxu0 0
  %569 = vmatpush.bf16.msra.mxu0 0
  %570 = vmatpush.bf16.msra.mxu0 0
  %571 = vmatpush.bf16.msra.mxu0 0
  %572 = vmatpush.bf16.msra.mxu0 %v557
  %573 = vmatmul.bf16.gmra.mxu0 %v560
  %v574 = vpop.f32.mrf.mxu0
  %v575 = vadd.f32 0.0, %v574
  %v576 = vpop.f32.mrf.mxu0
  %v577 = vadd.f32 0.0, %v576
  %578 = vmatmul.bf16.gmra.mxu0 %v563
  %v579 = vpop.f32.mrf.mxu0
  %v580 = vadd.f32 0.0, %v579
  %v581 = vpop.f32.mrf.mxu0
  %582 = vdwg.mxu0
  %v585 = vunpack.c.l.b16 %v545
  %v586 = vunpack.c.l.b16 %v546
  %v587 = vpack.c.b16 %v586, %v585
  %v590 = vsel %vm337, %v549, 0
  %v593 = vsel %vm337, %v550, 0
  %595 = vmatpush.bf16.msra.mxu0 0
  %596 = vmatpush.bf16.msra.mxu0 0
  %597 = vmatpush.bf16.msra.mxu0 0
  %598 = vmatpush.bf16.msra.mxu0 0
  %599 = vmatpush.bf16.msra.mxu0 0
  %600 = vmatpush.bf16.msra.mxu0 0
  %601 = vmatpush.bf16.msra.mxu0 0
  %602 = vmatpush.bf16.msra.mxu0 %v587
  %603 = vmatmul.bf16.gmra.mxu0 %v590
  %v604 = vpop.f32.mrf.mxu0
  %v605 = vadd.f32 %v575, %v604
  %v606 = vpop.f32.mrf.mxu0
  %v607 = vadd.f32 %v577, %v606
  %608 = vmatmul.bf16.gmra.mxu0 %v593
  %v609 = vpop.f32.mrf.mxu0
  %v610 = vadd.f32 %v580, %v609
  %v611 = vpop.f32.mrf.mxu0
  %612 = vdwg.mxu0
  %v613 = vld [vmem:[%s21] sm:$0x1]
  %v615 = vperm.slane %v613, 0
  %v617 = vadd.f32 %v605, %v615
  %v618 = vadd.f32 %v607, %v615
  %v619 = vadd.f32 %v610, %v615
  %v620 = vadd.f32 %v191, %v617
  %v621 = vadd.f32 %v192, %v618
  %v622 = vadd.f32 %v193, %v619
  %v623 = vld [vmem:[%s23] sm:$0x1]
  %v624 = vld [vmem:[%s25] sm:$0x1]
  %v625 = vsel %vm196, %v620, 0.0
  %626 = vadd.xlane.f32.xlu0 %v625
  %v627 = vpop.xlane.xlu0 %626
  %v628 = vsel %vm196, %v621, 0.0
  %629 = vadd.xlane.f32.xlu0 %v628
  %v630 = vpop.xlane.xlu0 %629
  %v631 = vsel %vm203, %v622, 0.0
  %632 = vadd.xlane.f32.xlu0 %v631
  %v633 = vpop.xlane.xlu0 %632
  %v634 = vmul.f32 %v627, %v213
  %v635 = vmul.f32 %v630, %v213
  %v636 = vmul.f32 %v633, %v213
  %v637 = vsub.f32 %v620, %v634
  %v638 = vsub.f32 %v621, %v635
  %v639 = vsub.f32 %v622, %v636
  %v640 = vmul.f32 %v637, %v637
  %v641 = vmul.f32 %v638, %v638
  %v642 = vmul.f32 %v639, %v639
  %v643 = vsel %vm196, %v640, 0.0
  %644 = vadd.xlane.f32.xlu0 %v643
  %v645 = vpop.xlane.xlu0 %644
  %v646 = vsel %vm196, %v641, 0.0
  %647 = vadd.xlane.f32.xlu0 %v646
  %v648 = vpop.xlane.xlu0 %647
  %v649 = vsel %vm203, %v642, 0.0
  %650 = vadd.xlane.f32.xlu0 %v649
  %v651 = vpop.xlane.xlu0 %650
  %v652 = vmul.f32 %v645, %v213
  %v653 = vmul.f32 %v648, %v213
  %v654 = vmul.f32 %v651, %v213
  %v655 = vadd.f32 %v652, 1e-06
  %v656 = vadd.f32 %v653, 1e-06
  %v657 = vadd.f32 %v654, 1e-06
  %v658 = vrsqrt.pop %v655
  %v659 = vmul.f32 %v658, %v655
  %v660 = vmul.f32 %v659, %v658
  %v661 = vmul.f32 0.5, %v660
  %v662 = vsub.f32 1.5, %v661
  %v663 = vmul.f32 %v658, %v662
  %vm664 = vweird.f32 %v655
  %vm665 = vweird.f32 %v658
  %vm666 = vmor %vm664, %vm665
  %v667 = vsel %vm666, %v658, %v663
  %v668 = vrsqrt.pop %v656
  %v669 = vmul.f32 %v668, %v656
  %v670 = vmul.f32 %v669, %v668
  %v671 = vmul.f32 0.5, %v670
  %v672 = vsub.f32 1.5, %v671
  %v673 = vmul.f32 %v668, %v672
  %vm674 = vweird.f32 %v656
  %vm675 = vweird.f32 %v668
  %vm676 = vmor %vm674, %vm675
  %v677 = vsel %vm676, %v668, %v673
  %v678 = vrsqrt.pop %v657
  %v679 = vmul.f32 %v678, %v657
  %v680 = vmul.f32 %v679, %v678
  %v681 = vmul.f32 0.5, %v680
  %v682 = vsub.f32 1.5, %v681
  %v683 = vmul.f32 %v678, %v682
  %vm684 = vweird.f32 %v657
  %vm685 = vweird.f32 %v678
  %vm686 = vmor %vm684, %vm685
  %v687 = vsel %vm686, %v678, %v683
  %v688 = vmul.f32 %v637, %v667
  %v689 = vmul.f32 %v638, %v677
  %v690 = vmul.f32 %v639, %v687
  %v692 = vperm.slane %v623, 0
  %v694 = vmul.f32 %v688, %v692
  %v695 = vmul.f32 %v689, %v692
  %v696 = vmul.f32 %v690, %v692
  %v698 = vperm.slane %v624, 0
  %v700 = vadd.f32 %v694, %v698
  %v701 = vadd.f32 %v695, %v698
  %v702 = vadd.f32 %v696, %v698
  %v703 = vpack.c.bf16 %v701, %v700
  %v704 = vpack.c.bf16 %v702, %v702
  %v705 = vld [vmem:[%s27] sm:$0xf]
  %v706 = vld [vmem:[%s27 + $0x4] sm:$0xf]
  %v707 = vld [vmem:[%s27 + $0x8] sm:$0xf]
  %v708 = vld [vmem:[%s27 + $0xc] sm:$0xf]
  %v709 = vld [vmem:[%s29] sm:$0x1]
  %v711 = vperm.slane %v709, 0
  %v717 = vunpack.c.l.b16 %v705
  %v718 = vunpack.c.l.b16 %v706
  %v719 = vunpack.c.l.b16 %v707
  %v720 = vunpack.c.l.b16 %v708
  %v721 = vpack.c.b16 %v718, %v717
  %v722 = vpack.c.b16 %v720, %v719
  %v726 = vsel %vm196, %v703, 0
  %v729 = vsel %vm196, %v704, 0
  %731 = vmatpush.bf16.msra.mxu0 0
  %732 = vmatpush.bf16.msra.mxu0 0
  %733 = vmatpush.bf16.msra.mxu0 0
  %734 = vmatpush.bf16.msra.mxu0 0
  %735 = vmatpush.bf16.msra.mxu0 0
  %736 = vmatpush.bf16.msra.mxu0 0
  %737 = vmatpush.bf16.msra.mxu0 %v722
  %738 = vmatpush.bf16.msra.mxu0 %v721
  %739 = vmatmul.bf16.gmra.mxu0 %v726
  %v740 = vpop.f32.mrf.mxu0
  %v741 = vadd.f32 %v711, %v740
  %v742 = vpop.f32.mrf.mxu0
  %v743 = vadd.f32 %v711, %v742
  %744 = vmatmul.bf16.gmra.mxu0 %v729
  %v745 = vpop.f32.mrf.mxu0
  %v746 = vadd.f32 %v711, %v745
  %v747 = vpop.f32.mrf.mxu0
  %748 = vdwg.mxu0
  %v749 = vmul.f32 %v741, %v741
  %v750 = vmul.f32 %v743, %v743
  %v751 = vmul.f32 %v746, %v746
  %v752 = vmul.f32 %v741, %v749
  %v753 = vmul.f32 %v743, %v750
  %v754 = vmul.f32 %v746, %v751
  %v755 = vmul.f32 %v752, 0.044715
  %v756 = vmul.f32 %v753, 0.044715
  %v757 = vmul.f32 %v754, 0.044715
  %v758 = vadd.f32 %v741, %v755
  %v759 = vadd.f32 %v743, %v756
  %v760 = vadd.f32 %v746, %v757
  %v761 = vmul.f32 %v758, 0.7978846
  %v762 = vmul.f32 %v759, 0.7978846
  %v763 = vmul.f32 %v760, 0.7978846
  %v764 = vtanh.pop %v761
  %v765 = vtanh.pop %v762
  %v766 = vtanh.pop %v763
  %v767 = vadd.f32 %v764, 1.0
  %v768 = vadd.f32 %v765, 1.0
  %v769 = vadd.f32 %v766, 1.0
  %v770 = vmul.f32 %v767, 0.5
  %v771 = vmul.f32 %v768, 0.5
  %v772 = vmul.f32 %v769, 0.5
  %v773 = vmul.f32 %v741, %v770
  %v774 = vmul.f32 %v743, %v771
  %v775 = vmul.f32 %v746, %v772
  %v776 = vpack.c.bf16 %v774, %v773
  %v777 = vpack.c.bf16 %v775, %v775
  %v778 = vld [vmem:[%s31] sm:$0xf]
  %v779 = vld [vmem:[%s31 + $0x4] sm:$0xf]
  %v780 = vld [vmem:[%s31 + $0x8] sm:$0xf]
  %v781 = vld [vmem:[%s31 + $0xc] sm:$0xf]
  %v782 = vld [vmem:[%s31 + $0x10] sm:$0xf]
  %v783 = vld [vmem:[%s31 + $0x14] sm:$0xf]
  %v784 = vld [vmem:[%s31 + $0x18] sm:$0xf]
  %v785 = vld [vmem:[%s31 + $0x1c] sm:$0xf]
  %v786 = vld [vmem:[%s31 + $0x20] sm:$0xf]
  %v787 = vld [vmem:[%s31 + $0x24] sm:$0xf]
  %v788 = vld [vmem:[%s31 + $0x28] sm:$0xf]
  %v789 = vld [vmem:[%s31 + $0x2c] sm:$0xf]
  %v790 = vld [vmem:[%s31 + $0x30] sm:$0xf]
  %v791 = vld [vmem:[%s31 + $0x34] sm:$0xf]
  %v792 = vld [vmem:[%s31 + $0x38] sm:$0xf]
  %v793 = vld [vmem:[%s31 + $0x3c] sm:$0xf]
  %v794 = vld [vmem:[%s33] sm:$0x1]
  %v796 = vperm.slane %v794, 0
  %v814 = vunpack.c.l.b16 %v778
  %v815 = vunpack.c.l.b16 %v779
  %v816 = vunpack.c.l.b16 %v780
  %v817 = vunpack.c.l.b16 %v781
  %v818 = vunpack.c.l.b16 %v782
  %v819 = vunpack.c.l.b16 %v783
  %v820 = vunpack.c.l.b16 %v784
  %v821 = vunpack.c.l.b16 %v785
  %v822 = vunpack.c.l.b16 %v786
  %v823 = vunpack.c.l.b16 %v787
  %v824 = vunpack.c.l.b16 %v788
  %v825 = vunpack.c.l.b16 %v789
  %v826 = vunpack.c.l.b16 %v790
  %v827 = vunpack.c.l.b16 %v791
  %v828 = vunpack.c.l.b16 %v792
  %v829 = vunpack.c.l.b16 %v793
  %v830 = vpack.c.b16 %v815, %v814
  %v831 = vpack.c.b16 %v817, %v816
  %v832 = vpack.c.b16 %v819, %v818
  %v833 = vpack.c.b16 %v821, %v820
  %v834 = vpack.c.b16 %v823, %v822
  %v835 = vpack.c.b16 %v825, %v824
  %v836 = vpack.c.b16 %v827, %v826
  %v837 = vpack.c.b16 %v829, %v828
  %846 = vmatpush.bf16.msra.mxu0 %v837
  %847 = vmatpush.bf16.msra.mxu0 %v836
  %848 = vmatpush.bf16.msra.mxu0 %v835
  %849 = vmatpush.bf16.msra.mxu0 %v834
  %850 = vmatpush.bf16.msra.mxu0 %v833
  %851 = vmatpush.bf16.msra.mxu0 %v832
  %852 = vmatpush.bf16.msra.mxu0 %v831
  %853 = vmatpush.bf16.msra.mxu0 %v830
  %854 = vmatmul.bf16.gmra.mxu0 %v776
  %v855 = vpop.f32.mrf.mxu0
  %v856 = vadd.f32 %v796, %v855
  %v857 = vpop.f32.mrf.mxu0
  %v858 = vadd.f32 %v796, %v857
  %859 = vmatmul.bf16.gmra.mxu0 %v777
  %v860 = vpop.f32.mrf.mxu0
  %v861 = vadd.f32 %v796, %v860
  %v862 = vpop.f32.mrf.mxu0
  %863 = vdwg.mxu0
  %v864 = vadd.f32 %v620, %v856
  %v865 = vadd.f32 %v621, %v858
  %v866 = vadd.f32 %v622, %v861
  %867 = vst.msk [vmem:[%s65] sm:$0xff] %vm196, %v864
  %868 = vst.msk [vmem:[%s65 + $0x10] sm:$0xff] %vm196, %v865
  %s869 = scalar_lea.vmem %s11, 1
  %v870 = vld [vmem:[%s869] sm:$0x1]
  %s871 = scalar_lea.vmem %s13, 1
  %v872 = vld [vmem:[%s871] sm:$0x1]
  %v873 = vsel %vm196, %v864, 0.0
  %874 = vadd.xlane.f32.xlu0 %v873
  %v875 = vpop.xlane.xlu0 %874
  %v876 = vsel %vm196, %v865, 0.0
  %877 = vadd.xlane.f32.xlu0 %v876
  %v878 = vpop.xlane.xlu0 %877
  %v879 = vsel %vm203, %v866, 0.0
  %880 = vadd.xlane.f32.xlu0 %v879
  %v881 = vpop.xlane.xlu0 %880
  %v882 = vmul.f32 %v875, %v213
  %v883 = vmul.f32 %v878, %v213
  %v884 = vmul.f32 %v881, %v213
  %v885 = vsub.f32 %v864, %v882
  %v886 = vsub.f32 %v865, %v883
  %v887 = vsub.f32 %v866, %v884
  %v888 = vmul.f32 %v885, %v885
  %v889 = vmul.f32 %v886, %v886
  %v890 = vmul.f32 %v887, %v887
  %v891 = vsel %vm196, %v888, 0.0
  %892 = vadd.xlane.f32.xlu0 %v891
  %v893 = vpop.xlane.xlu0 %892
  %v894 = vsel %vm196, %v889, 0.0
  %895 = vadd.xlane.f32.xlu0 %v894
  %v896 = vpop.xlane.xlu0 %895
  %v897 = vsel %vm203, %v890, 0.0
  %898 = vadd.xlane.f32.xlu0 %v897
  %v899 = vpop.xlane.xlu0 %898
  %v900 = vmul.f32 %v893, %v213
  %v901 = vmul.f32 %v896, %v213
  %v902 = vmul.f32 %v899, %v213
  %v903 = vadd.f32 %v900, 1e-06
  %v904 = vadd.f32 %v901, 1e-06
  %v905 = vadd.f32 %v902, 1e-06
  %v906 = vrsqrt.pop %v903
  %v907 = vmul.f32 %v906, %v903
  %v908 = vmul.f32 %v907, %v906
  %v909 = vmul.f32 0.5, %v908
  %v910 = vsub.f32 1.5, %v909
  %v911 = vmul.f32 %v906, %v910
  %vm912 = vweird.f32 %v903
  %vm913 = vweird.f32 %v906
  %vm914 = vmor %vm912, %vm913
  %v915 = vsel %vm914, %v906, %v911
  %v916 = vrsqrt.pop %v904
  %v917 = vmul.f32 %v916, %v904
  %v918 = vmul.f32 %v917, %v916
  %v919 = vmul.f32 0.5, %v918
  %v920 = vsub.f32 1.5, %v919
  %v921 = vmul.f32 %v916, %v920
  %vm922 = vweird.f32 %v904
  %vm923 = vweird.f32 %v916
  %vm924 = vmor %vm922, %vm923
  %v925 = vsel %vm924, %v916, %v921
  %v926 = vrsqrt.pop %v905
  %v927 = vmul.f32 %v926, %v905
  %v928 = vmul.f32 %v927, %v926
  %v929 = vmul.f32 0.5, %v928
  %v930 = vsub.f32 1.5, %v929
  %v931 = vmul.f32 %v926, %v930
  %vm932 = vweird.f32 %v905
  %vm933 = vweird.f32 %v926
  %vm934 = vmor %vm932, %vm933
  %v935 = vsel %vm934, %v926, %v931
  %v936 = vmul.f32 %v885, %v915
  %v937 = vmul.f32 %v886, %v925
  %v938 = vmul.f32 %v887, %v935
  %v940 = vperm.slane %v870, 0
  %v942 = vmul.f32 %v936, %v940
  %v943 = vmul.f32 %v937, %v940
  %v944 = vmul.f32 %v938, %v940
  %v946 = vperm.slane %v872, 0
  %v948 = vadd.f32 %v942, %v946
  %v949 = vadd.f32 %v943, %v946
  %v950 = vadd.f32 %v944, %v946
  %v951 = vpack.c.bf16 %v949, %v948
  %v952 = vpack.c.bf16 %v950, %v950
  %s953 = scalar_lea.vmem %s15, 16
  %v954 = vld [vmem:[%s953] sm:$0xf]
  %v955 = vld [vmem:[%s953 + $0x4] sm:$0xf]
  %v956 = vld [vmem:[%s953 + $0x8] sm:$0xf]
  %v957 = vld [vmem:[%s953 + $0xc] sm:$0xf]
  %s958 = scalar_lea.vmem %s17, 1
  %v959 = vld [vmem:[%s958] sm:$0x1]
  %v961 = vperm.slane %v959, 0
  %v967 = vunpack.c.l.b16 %v954
  %v968 = vunpack.c.l.b16 %v955
  %v969 = vunpack.c.l.b16 %v956
  %v970 = vunpack.c.l.b16 %v957
  %v971 = vpack.c.b16 %v968, %v967
  %v972 = vpack.c.b16 %v970, %v969
  %v976 = vsel %vm196, %v951, 0
  %v979 = vsel %vm196, %v952, 0
  %981 = vmatpush.bf16.msra.mxu0 0
  %982 = vmatpush.bf16.msra.mxu0 0
  %983 = vmatpush.bf16.msra.mxu0 0
  %984 = vmatpush.bf16.msra.mxu0 0
  %985 = vmatpush.bf16.msra.mxu0 0
  %986 = vmatpush.bf16.msra.mxu0 0
  %987 = vmatpush.bf16.msra.mxu0 %v972
  %988 = vmatpush.bf16.msra.mxu0 %v971
  %989 = vmatmul.bf16.gmra.mxu0 %v976
  %v990 = vpop.f32.mrf.mxu0
  %v991 = vadd.f32 %v961, %v990
  %v992 = vpop.f32.mrf.mxu0
  %v993 = vadd.f32 %v961, %v992
  %994 = vmatmul.bf16.gmra.mxu0 %v979
  %v995 = vpop.f32.mrf.mxu0
  %v996 = vadd.f32 %v961, %v995
  %v997 = vpop.f32.mrf.mxu0
  %998 = vdwg.mxu0
  %v999 = vpack.c.bf16 %v993, %v991
  %v1000 = vpack.c.bf16 %v996, %v996
  %1003 = vrot.lane.b32.xlu0 %v999, 96
  %v1004 = vpop.permute.xlu0 %1003
  %1005 = vrot.lane.b32.xlu0 %v1000, 96
  %v1006 = vpop.permute.xlu0 %1005
  %v1008 = vsel %vm337, %v999, 0
  %v1011 = vsel %vm337, %v1000, 0
  %v1014 = vsel %vm337, %v1004, 0
  %v1017 = vsel %vm337, %v1006, 0
  %1019 = vmatpush.bf16.xpose.msra.mxu0 0
  %1020 = vmatpush.bf16.xpose.msra.mxu0 0
  %1021 = vmatpush.bf16.xpose.msra.mxu0 0
  %1022 = vmatpush.bf16.xpose.msra.mxu0 0
  %1023 = vmatpush.bf16.xpose.msra.mxu0 0
  %1024 = vmatpush.bf16.xpose.msra.mxu0 0
  %1025 = vmatpush.bf16.xpose.msra.mxu0 %v1017
  %1026 = vmatpush.bf16.xpose.msra.mxu0 %v1014
  %1027 = vmatmul.bf16.gmra.mxu0 %v1008
  %v1028 = vpop.f32.mrf.mxu0
  %v1029 = vadd.f32 0.0, %v1028
  %v1030 = vpop.f32.mrf.mxu0
  %v1031 = vadd.f32 0.0, %v1030
  %1032 = vmatmul.bf16.gmra.mxu0 %v1011
  %v1033 = vpop.f32.mrf.mxu0
  %v1034 = vadd.f32 0.0, %v1033
  %v1035 = vpop.f32.mrf.mxu0
  %1036 = vdwg.mxu0
  %v1037 = vsel %vm368, %v1029, -inf
  %1038 = vmax.xlane.f32.xlu0 %v1037
  %v1039 = vpop.xlane.xlu0 %1038
  %v1040 = vsel %vm368, %v1031, -inf
  %1041 = vmax.xlane.f32.xlu0 %v1040
  %v1042 = vpop.xlane.xlu0 %1041
  %v1043 = vsel %vm375, %v1034, -inf
  %1044 = vmax.xlane.f32.xlu0 %v1043
  %v1045 = vpop.xlane.xlu0 %1044
  %v1046 = vsub.f32 %v1029, %v1039
  %v1047 = vsub.f32 %v1031, %v1042
  %v1048 = vsub.f32 %v1034, %v1045
  %v1049 = vmul.f32 %v1046, 1.442695
  %v1050 = vpow.pop %v1049
  %v1051 = vmul.f32 %v1047, 1.442695
  %v1052 = vpow.pop %v1051
  %v1053 = vmul.f32 %v1048, 1.442695
  %v1054 = vpow.pop %v1053
  %v1055 = vsel %vm368, %v1050, 0.0
  %1056 = vadd.xlane.f32.xlu0 %v1055
  %v1057 = vpop.xlane.xlu0 %1056
  %v1058 = vsel %vm368, %v1052, 0.0
  %1059 = vadd.xlane.f32.xlu0 %v1058
  %v1060 = vpop.xlane.xlu0 %1059
  %v1061 = vsel %vm375, %v1054, 0.0
  %1062 = vadd.xlane.f32.xlu0 %v1061
  %v1063 = vpop.xlane.xlu0 %1062
  %v1064 = vrcp.pop %v1057
  %v1065 = vrcp.pop %v1060
  %v1066 = vrcp.pop %v1063
  %v1067 = vmul.f32 %v1050, %v1064
  %v1068 = vmul.f32 %v1052, %v1065
  %v1069 = vmul.f32 %v1054, %v1066
  %v1070 = vpack.c.bf16 %v1068, %v1067
  %v1071 = vpack.c.bf16 %v1069, %v1069
  %1072 = vrot.lane.b32.xlu0 %v999, 64
  %v1073 = vpop.permute.xlu0 %1072
  %1074 = vrot.lane.b32.xlu0 %v1000, 64
  %v1075 = vpop.permute.xlu0 %1074
  %v1078 = vsel %vm368, %v1070, 0
  %v1081 = vsel %vm368, %v1071, 0
  %v1084 = vand.u32 %v1075, %v418
  %1086 = vmatpush.bf16.msra.mxu0 0
  %1087 = vmatpush.bf16.msra.mxu0 0
  %1088 = vmatpush.bf16.msra.mxu0 0
  %1089 = vmatpush.bf16.msra.mxu0 0
  %1090 = vmatpush.bf16.msra.mxu0 0
  %1091 = vmatpush.bf16.msra.mxu0 0
  %1092 = vmatpush.bf16.msra.mxu0 %v1084
  %1093 = vmatpush.bf16.msra.mxu0 %v1073
  %1094 = vmatmul.bf16.gmra.mxu0 %v1078
  %v1095 = vpop.f32.mrf.mxu0
  %v1096 = vadd.f32 0.0, %v1095
  %v1097 = vpop.f32.mrf.mxu0
  %v1098 = vadd.f32 0.0, %v1097
  %1099 = vmatmul.bf16.gmra.mxu0 %v1081
  %v1100 = vpop.f32.mrf.mxu0
  %v1101 = vadd.f32 0.0, %v1100
  %v1102 = vpop.f32.mrf.mxu0
  %1103 = vdwg.mxu0
  %1104 = vrot.lane.b32.xlu0 %v999, 112
  %v1105 = vpop.permute.xlu0 %1104
  %1106 = vrot.lane.b32.xlu0 %v1000, 112
  %v1107 = vpop.permute.xlu0 %1106
  %1108 = vrot.lane.b32.xlu0 %v999, 80
  %v1109 = vpop.permute.xlu0 %1108
  %1110 = vrot.lane.b32.xlu0 %v1000, 80
  %v1111 = vpop.permute.xlu0 %1110
  %v1113 = vsel %vm337, %v1105, 0
  %v1116 = vsel %vm337, %v1107, 0
  %v1119 = vsel %vm337, %v1109, 0
  %v1122 = vsel %vm337, %v1111, 0
  %1124 = vmatpush.bf16.xpose.msra.mxu0 0
  %1125 = vmatpush.bf16.xpose.msra.mxu0 0
  %1126 = vmatpush.bf16.xpose.msra.mxu0 0
  %1127 = vmatpush.bf16.xpose.msra.mxu0 0
  %1128 = vmatpush.bf16.xpose.msra.mxu0 0
  %1129 = vmatpush.bf16.xpose.msra.mxu0 0
  %1130 = vmatpush.bf16.xpose.msra.mxu0 %v1122
  %1131 = vmatpush.bf16.xpose.msra.mxu0 %v1119
  %1132 = vmatmul.bf16.gmra.mxu0 %v1113
  %v1133 = vpop.f32.mrf.mxu0
  %v1134 = vadd.f32 0.0, %v1133
  %v1135 = vpop.f32.mrf.mxu0
  %v1136 = vadd.f32 0.0, %v1135
  %1137 = vmatmul.bf16.gmra.mxu0 %v1116
  %v1138 = vpop.f32.mrf.mxu0
  %v1139 = vadd.f32 0.0, %v1138
  %v1140 = vpop.f32.mrf.mxu0
  %1141 = vdwg.mxu0
  %v1142 = vsel %vm368, %v1134, -inf
  %1143 = vmax.xlane.f32.xlu0 %v1142
  %v1144 = vpop.xlane.xlu0 %1143
  %v1145 = vsel %vm368, %v1136, -inf
  %1146 = vmax.xlane.f32.xlu0 %v1145
  %v1147 = vpop.xlane.xlu0 %1146
  %v1148 = vsel %vm375, %v1139, -inf
  %1149 = vmax.xlane.f32.xlu0 %v1148
  %v1150 = vpop.xlane.xlu0 %1149
  %v1151 = vsub.f32 %v1134, %v1144
  %v1152 = vsub.f32 %v1136, %v1147
  %v1153 = vsub.f32 %v1139, %v1150
  %v1154 = vmul.f32 %v1151, 1.442695
  %v1155 = vpow.pop %v1154
  %v1156 = vmul.f32 %v1152, 1.442695
  %v1157 = vpow.pop %v1156
  %v1158 = vmul.f32 %v1153, 1.442695
  %v1159 = vpow.pop %v1158
  %v1160 = vsel %vm368, %v1155, 0.0
  %1161 = vadd.xlane.f32.xlu0 %v1160
  %v1162 = vpop.xlane.xlu0 %1161
  %v1163 = vsel %vm368, %v1157, 0.0
  %1164 = vadd.xlane.f32.xlu0 %v1163
  %v1165 = vpop.xlane.xlu0 %1164
  %v1166 = vsel %vm375, %v1159, 0.0
  %1167 = vadd.xlane.f32.xlu0 %v1166
  %v1168 = vpop.xlane.xlu0 %1167
  %v1169 = vrcp.pop %v1162
  %v1170 = vrcp.pop %v1165
  %v1171 = vrcp.pop %v1168
  %v1172 = vmul.f32 %v1155, %v1169
  %v1173 = vmul.f32 %v1157, %v1170
  %v1174 = vmul.f32 %v1159, %v1171
  %v1175 = vpack.c.bf16 %v1173, %v1172
  %v1176 = vpack.c.bf16 %v1174, %v1174
  %1177 = vrot.lane.b32.xlu0 %v999, 48
  %v1178 = vpop.permute.xlu0 %1177
  %1179 = vrot.lane.b32.xlu0 %v1000, 48
  %v1180 = vpop.permute.xlu0 %1179
  %v1183 = vsel %vm368, %v1175, 0
  %v1186 = vsel %vm368, %v1176, 0
  %v1189 = vand.u32 %v1180, %v418
  %1191 = vmatpush.bf16.msra.mxu0 0
  %1192 = vmatpush.bf16.msra.mxu0 0
  %1193 = vmatpush.bf16.msra.mxu0 0
  %1194 = vmatpush.bf16.msra.mxu0 0
  %1195 = vmatpush.bf16.msra.mxu0 0
  %1196 = vmatpush.bf16.msra.mxu0 0
  %1197 = vmatpush.bf16.msra.mxu0 %v1189
  %1198 = vmatpush.bf16.msra.mxu0 %v1178
  %1199 = vmatmul.bf16.gmra.mxu0 %v1183
  %v1200 = vpop.f32.mrf.mxu0
  %v1201 = vadd.f32 0.0, %v1200
  %v1202 = vpop.f32.mrf.mxu0
  %v1203 = vadd.f32 0.0, %v1202
  %1204 = vmatmul.bf16.gmra.mxu0 %v1186
  %v1205 = vpop.f32.mrf.mxu0
  %v1206 = vadd.f32 0.0, %v1205
  %v1207 = vpop.f32.mrf.mxu0
  %1208 = vdwg.mxu0
  %s1209 = scalar_lea.vmem %s19, 16
  %v1210 = vld [vmem:[%s1209] sm:$0xf]
  %v1211 = vld [vmem:[%s1209 + $0x4] sm:$0xf]
  %v1212 = vld [vmem:[%s1209 + $0x8] sm:$0xf]
  %v1213 = vld [vmem:[%s1209 + $0xc] sm:$0xf]
  %v1214 = vpack.c.bf16 %v1098, %v1096
  %v1215 = vpack.c.bf16 %v1101, %v1101
  %v1216 = vpack.c.bf16 %v1203, %v1201
  %v1217 = vpack.c.bf16 %v1206, %v1206
  %v1220 = vunpack.c.l.b16 %v1212
  %v1221 = vunpack.c.l.b16 %v1213
  %v1222 = vpack.c.b16 %v1221, %v1220
  %v1225 = vsel %vm337, %v1216, 0
  %v1228 = vsel %vm337, %v1217, 0
  %1230 = vmatpush.bf16.msra.mxu0 0
  %1231 = vmatpush.bf16.msra.mxu0 0
  %1232 = vmatpush.bf16.msra.mxu0 0
  %1233 = vmatpush.bf16.msra.mxu0 0
  %1234 = vmatpush.bf16.msra.mxu0 0
  %1235 = vmatpush.bf16.msra.mxu0 0
  %1236 = vmatpush.bf16.msra.mxu0 0
  %1237 = vmatpush.bf16.msra.mxu0 %v1222
  %1238 = vmatmul.bf16.gmra.mxu0 %v1225
  %v1239 = vpop.f32.mrf.mxu0
  %v1240 = vadd.f32 0.0, %v1239
  %v1241 = vpop.f32.mrf.mxu0
  %v1242 = vadd.f32 0.0, %v1241
  %1243 = vmatmul.bf16.gmra.mxu0 %v1228
  %v1244 = vpop.f32.mrf.mxu0
  %v1245 = vadd.f32 0.0, %v1244
  %v1246 = vpop.f32.mrf.mxu0
  %1247 = vdwg.mxu0
  %v1250 = vunpack.c.l.b16 %v1210
  %v1251 = vunpack.c.l.b16 %v1211
  %v1252 = vpack.c.b16 %v1251, %v1250
  %v1255 = vsel %vm337, %v1214, 0
  %v1258 = vsel %vm337, %v1215, 0
  %1260 = vmatpush.bf16.msra.mxu0 0
  %1261 = vmatpush.bf16.msra.mxu0 0
  %1262 = vmatpush.bf16.msra.mxu0 0
  %1263 = vmatpush.bf16.msra.mxu0 0
  %1264 = vmatpush.bf16.msra.mxu0 0
  %1265 = vmatpush.bf16.msra.mxu0 0
  %1266 = vmatpush.bf16.msra.mxu0 0
  %1267 = vmatpush.bf16.msra.mxu0 %v1252
  %1268 = vmatmul.bf16.gmra.mxu0 %v1255
  %v1269 = vpop.f32.mrf.mxu0
  %v1270 = vadd.f32 %v1240, %v1269
  %v1271 = vpop.f32.mrf.mxu0
  %v1272 = vadd.f32 %v1242, %v1271
  %1273 = vmatmul.bf16.gmra.mxu0 %v1258
  %v1274 = vpop.f32.mrf.mxu0
  %v1275 = vadd.f32 %v1245, %v1274
  %v1276 = vpop.f32.mrf.mxu0
  %1277 = vdwg.mxu0
  %s1278 = scalar_lea.vmem %s21, 1
  %v1279 = vld [vmem:[%s1278] sm:$0x1]
  %v1281 = vperm.slane %v1279, 0
  %v1283 = vadd.f32 %v1270, %v1281
  %v1284 = vadd.f32 %v1272, %v1281
  %v1285 = vadd.f32 %v1275, %v1281
  %v1286 = vadd.f32 %v864, %v1283
  %v1287 = vadd.f32 %v865, %v1284
  %v1288 = vadd.f32 %v866, %v1285
  %s1289 = scalar_lea.vmem %s23, 1
  %v1290 = vld [vmem:[%s1289] sm:$0x1]
  %s1291 = scalar_lea.vmem %s25, 1
  %v1292 = vld [vmem:[%s1291] sm:$0x1]
  %v1293 = vsel %vm196, %v1286, 0.0
  %1294 = vadd.xlane.f32.xlu0 %v1293
  %v1295 = vpop.xlane.xlu0 %1294
  %v1296 = vsel %vm196, %v1287, 0.0
  %1297 = vadd.xlane.f32.xlu0 %v1296
  %v1298 = vpop.xlane.xlu0 %1297
  %v1299 = vsel %vm203, %v1288, 0.0
  %1300 = vadd.xlane.f32.xlu0 %v1299
  %v1301 = vpop.xlane.xlu0 %1300
  %v1302 = vmul.f32 %v1295, %v213
  %v1303 = vmul.f32 %v1298, %v213
  %v1304 = vmul.f32 %v1301, %v213
  %v1305 = vsub.f32 %v1286, %v1302
  %v1306 = vsub.f32 %v1287, %v1303
  %v1307 = vsub.f32 %v1288, %v1304
  %v1308 = vmul.f32 %v1305, %v1305
  %v1309 = vmul.f32 %v1306, %v1306
  %v1310 = vmul.f32 %v1307, %v1307
  %v1311 = vsel %vm196, %v1308, 0.0
  %1312 = vadd.xlane.f32.xlu0 %v1311
  %v1313 = vpop.xlane.xlu0 %1312
  %v1314 = vsel %vm196, %v1309, 0.0
  %1315 = vadd.xlane.f32.xlu0 %v1314
  %v1316 = vpop.xlane.xlu0 %1315
  %v1317 = vsel %vm203, %v1310, 0.0
  %1318 = vadd.xlane.f32.xlu0 %v1317
  %v1319 = vpop.xlane.xlu0 %1318
  %v1320 = vmul.f32 %v1313, %v213
  %v1321 = vmul.f32 %v1316, %v213
  %v1322 = vmul.f32 %v1319, %v213
  %v1323 = vadd.f32 %v1320, 1e-06
  %v1324 = vadd.f32 %v1321, 1e-06
  %v1325 = vadd.f32 %v1322, 1e-06
  %v1326 = vrsqrt.pop %v1323
  %v1327 = vmul.f32 %v1326, %v1323
  %v1328 = vmul.f32 %v1327, %v1326
  %v1329 = vmul.f32 0.5, %v1328
  %v1330 = vsub.f32 1.5, %v1329
  %v1331 = vmul.f32 %v1326, %v1330
  %vm1332 = vweird.f32 %v1323
  %vm1333 = vweird.f32 %v1326
  %vm1334 = vmor %vm1332, %vm1333
  %v1335 = vsel %vm1334, %v1326, %v1331
  %v1336 = vrsqrt.pop %v1324
  %v1337 = vmul.f32 %v1336, %v1324
  %v1338 = vmul.f32 %v1337, %v1336
  %v1339 = vmul.f32 0.5, %v1338
  %v1340 = vsub.f32 1.5, %v1339
  %v1341 = vmul.f32 %v1336, %v1340
  %vm1342 = vweird.f32 %v1324
  %vm1343 = vweird.f32 %v1336
  %vm1344 = vmor %vm1342, %vm1343
  %v1345 = vsel %vm1344, %v1336, %v1341
  %v1346 = vrsqrt.pop %v1325
  %v1347 = vmul.f32 %v1346, %v1325
  %v1348 = vmul.f32 %v1347, %v1346
  %v1349 = vmul.f32 0.5, %v1348
  %v1350 = vsub.f32 1.5, %v1349
  %v1351 = vmul.f32 %v1346, %v1350
  %vm1352 = vweird.f32 %v1325
  %vm1353 = vweird.f32 %v1346
  %vm1354 = vmor %vm1352, %vm1353
  %v1355 = vsel %vm1354, %v1346, %v1351
  %v1356 = vmul.f32 %v1305, %v1335
  %v1357 = vmul.f32 %v1306, %v1345
  %v1358 = vmul.f32 %v1307, %v1355
  %v1360 = vperm.slane %v1290, 0
  %v1362 = vmul.f32 %v1356, %v1360
  %v1363 = vmul.f32 %v1357, %v1360
  %v1364 = vmul.f32 %v1358, %v1360
  %v1366 = vperm.slane %v1292, 0
  %v1368 = vadd.f32 %v1362, %v1366
  %v1369 = vadd.f32 %v1363, %v1366
  %v1370 = vadd.f32 %v1364, %v1366
  %v1371 = vpack.c.bf16 %v1369, %v1368
  %v1372 = vpack.c.bf16 %v1370, %v1370
  %s1373 = scalar_lea.vmem %s27, 16
  %v1374 = vld [vmem:[%s1373] sm:$0xf]
  %v1375 = vld [vmem:[%s1373 + $0x4] sm:$0xf]
  %v1376 = vld [vmem:[%s1373 + $0x8] sm:$0xf]
  %v1377 = vld [vmem:[%s1373 + $0xc] sm:$0xf]
  %s1378 = scalar_lea.vmem %s29, 1
  %v1379 = vld [vmem:[%s1378] sm:$0x1]
  %v1381 = vperm.slane %v1379, 0
  %v1387 = vunpack.c.l.b16 %v1374
  %v1388 = vunpack.c.l.b16 %v1375
  %v1389 = vunpack.c.l.b16 %v1376
  %v1390 = vunpack.c.l.b16 %v1377
  %v1391 = vpack.c.b16 %v1388, %v1387
  %v1392 = vpack.c.b16 %v1390, %v1389
  %v1396 = vsel %vm196, %v1371, 0
  %v1399 = vsel %vm196, %v1372, 0
  %1401 = vmatpush.bf16.msra.mxu0 0
  %1402 = vmatpush.bf16.msra.mxu0 0
  %1403 = vmatpush.bf16.msra.mxu0 0
  %1404 = vmatpush.bf16.msra.mxu0 0
  %1405 = vmatpush.bf16.msra.mxu0 0
  %1406 = vmatpush.bf16.msra.mxu0 0
  %1407 = vmatpush.bf16.msra.mxu0 %v1392
  %1408 = vmatpush.bf16.msra.mxu0 %v1391
  %1409 = vmatmul.bf16.gmra.mxu0 %v1396
  %v1410 = vpop.f32.mrf.mxu0
  %v1411 = vadd.f32 %v1381, %v1410
  %v1412 = vpop.f32.mrf.mxu0
  %v1413 = vadd.f32 %v1381, %v1412
  %1414 = vmatmul.bf16.gmra.mxu0 %v1399
  %v1415 = vpop.f32.mrf.mxu0
  %v1416 = vadd.f32 %v1381, %v1415
  %v1417 = vpop.f32.mrf.mxu0
  %1418 = vdwg.mxu0
  %v1419 = vmul.f32 %v1411, %v1411
  %v1420 = vmul.f32 %v1413, %v1413
  %v1421 = vmul.f32 %v1416, %v1416
  %v1422 = vmul.f32 %v1411, %v1419
  %v1423 = vmul.f32 %v1413, %v1420
  %v1424 = vmul.f32 %v1416, %v1421
  %v1425 = vmul.f32 %v1422, 0.044715
  %v1426 = vmul.f32 %v1423, 0.044715
  %v1427 = vmul.f32 %v1424, 0.044715
  %v1428 = vadd.f32 %v1411, %v1425
  %v1429 = vadd.f32 %v1413, %v1426
  %v1430 = vadd.f32 %v1416, %v1427
  %v1431 = vmul.f32 %v1428, 0.7978846
  %v1432 = vmul.f32 %v1429, 0.7978846
  %v1433 = vmul.f32 %v1430, 0.7978846
  %v1434 = vtanh.pop %v1431
  %v1435 = vtanh.pop %v1432
  %v1436 = vtanh.pop %v1433
  %v1437 = vadd.f32 %v1434, 1.0
  %v1438 = vadd.f32 %v1435, 1.0
  %v1439 = vadd.f32 %v1436, 1.0
  %v1440 = vmul.f32 %v1437, 0.5
  %v1441 = vmul.f32 %v1438, 0.5
  %v1442 = vmul.f32 %v1439, 0.5
  %v1443 = vmul.f32 %v1411, %v1440
  %v1444 = vmul.f32 %v1413, %v1441
  %v1445 = vmul.f32 %v1416, %v1442
  %v1446 = vpack.c.bf16 %v1444, %v1443
  %v1447 = vpack.c.bf16 %v1445, %v1445
  %s1448 = scalar_lea.vmem %s31, 64
  %v1449 = vld [vmem:[%s1448] sm:$0xf]
  %v1450 = vld [vmem:[%s1448 + $0x4] sm:$0xf]
  %v1451 = vld [vmem:[%s1448 + $0x8] sm:$0xf]
  %v1452 = vld [vmem:[%s1448 + $0xc] sm:$0xf]
  %v1453 = vld [vmem:[%s1448 + $0x10] sm:$0xf]
  %v1454 = vld [vmem:[%s1448 + $0x14] sm:$0xf]
  %v1455 = vld [vmem:[%s1448 + $0x18] sm:$0xf]
  %v1456 = vld [vmem:[%s1448 + $0x1c] sm:$0xf]
  %v1457 = vld [vmem:[%s1448 + $0x20] sm:$0xf]
  %v1458 = vld [vmem:[%s1448 + $0x24] sm:$0xf]
  %v1459 = vld [vmem:[%s1448 + $0x28] sm:$0xf]
  %v1460 = vld [vmem:[%s1448 + $0x2c] sm:$0xf]
  %v1461 = vld [vmem:[%s1448 + $0x30] sm:$0xf]
  %v1462 = vld [vmem:[%s1448 + $0x34] sm:$0xf]
  %v1463 = vld [vmem:[%s1448 + $0x38] sm:$0xf]
  %v1464 = vld [vmem:[%s1448 + $0x3c] sm:$0xf]
  %s1465 = scalar_lea.vmem %s33, 1
  %v1466 = vld [vmem:[%s1465] sm:$0x1]
  %v1468 = vperm.slane %v1466, 0
  %v1486 = vunpack.c.l.b16 %v1449
  %v1487 = vunpack.c.l.b16 %v1450
  %v1488 = vunpack.c.l.b16 %v1451
  %v1489 = vunpack.c.l.b16 %v1452
  %v1490 = vunpack.c.l.b16 %v1453
  %v1491 = vunpack.c.l.b16 %v1454
  %v1492 = vunpack.c.l.b16 %v1455
  %v1493 = vunpack.c.l.b16 %v1456
  %v1494 = vunpack.c.l.b16 %v1457
  %v1495 = vunpack.c.l.b16 %v1458
  %v1496 = vunpack.c.l.b16 %v1459
  %v1497 = vunpack.c.l.b16 %v1460
  %v1498 = vunpack.c.l.b16 %v1461
  %v1499 = vunpack.c.l.b16 %v1462
  %v1500 = vunpack.c.l.b16 %v1463
  %v1501 = vunpack.c.l.b16 %v1464
  %v1502 = vpack.c.b16 %v1487, %v1486
  %v1503 = vpack.c.b16 %v1489, %v1488
  %v1504 = vpack.c.b16 %v1491, %v1490
  %v1505 = vpack.c.b16 %v1493, %v1492
  %v1506 = vpack.c.b16 %v1495, %v1494
  %v1507 = vpack.c.b16 %v1497, %v1496
  %v1508 = vpack.c.b16 %v1499, %v1498
  %v1509 = vpack.c.b16 %v1501, %v1500
  %1518 = vmatpush.bf16.msra.mxu0 %v1509
  %1519 = vmatpush.bf16.msra.mxu0 %v1508
  %1520 = vmatpush.bf16.msra.mxu0 %v1507
  %1521 = vmatpush.bf16.msra.mxu0 %v1506
  %1522 = vmatpush.bf16.msra.mxu0 %v1505
  %1523 = vmatpush.bf16.msra.mxu0 %v1504
  %1524 = vmatpush.bf16.msra.mxu0 %v1503
  %1525 = vmatpush.bf16.msra.mxu0 %v1502
  %1526 = vmatmul.bf16.gmra.mxu0 %v1446
  %v1527 = vpop.f32.mrf.mxu0
  %v1528 = vadd.f32 %v1468, %v1527
  %v1529 = vpop.f32.mrf.mxu0
  %v1530 = vadd.f32 %v1468, %v1529
  %1531 = vmatmul.bf16.gmra.mxu0 %v1447
  %v1532 = vpop.f32.mrf.mxu0
  %v1533 = vadd.f32 %v1468, %v1532
  %v1534 = vpop.f32.mrf.mxu0
  %1535 = vdwg.mxu0
  %v1536 = vadd.f32 %v1286, %v1528
  %v1537 = vadd.f32 %v1287, %v1530
  %v1538 = vadd.f32 %v1288, %v1533
  %1541 = vrot.lane.b32.xlu0 %v1536, 32
  %v1542 = vpop.permute.xlu0 %1541
  %1543 = vrot.lane.b32.xlu0 %v1537, 32
  %v1544 = vpop.permute.xlu0 %1543
  %vm1547 = vcmask 523520
  %1548 = vst.msk [vmem:[%s65] sm:$0xff] %vm1547, %v1542
  %1549 = vst.msk [vmem:[%s65 + $0x10] sm:$0xff] %vm1547, %v1544
  %s1550 = scalar_lea.vmem %s11, 2
  %v1551 = vld [vmem:[%s1550] sm:$0x1]
  %s1552 = scalar_lea.vmem %s13, 2
  %v1553 = vld [vmem:[%s1552] sm:$0x1]
  %v1554 = vsel %vm196, %v1536, 0.0
  %1555 = vadd.xlane.f32.xlu0 %v1554
  %v1556 = vpop.xlane.xlu0 %1555
  %v1557 = vsel %vm196, %v1537, 0.0
  %1558 = vadd.xlane.f32.xlu0 %v1557
  %v1559 = vpop.xlane.xlu0 %1558
  %v1560 = vsel %vm203, %v1538, 0.0
  %1561 = vadd.xlane.f32.xlu0 %v1560
  %v1562 = vpop.xlane.xlu0 %1561
  %v1563 = vmul.f32 %v1556, %v213
  %v1564 = vmul.f32 %v1559, %v213
  %v1565 = vmul.f32 %v1562, %v213
  %v1566 = vsub.f32 %v1536, %v1563
  %v1567 = vsub.f32 %v1537, %v1564
  %v1568 = vsub.f32 %v1538, %v1565
  %v1569 = vmul.f32 %v1566, %v1566
  %v1570 = vmul.f32 %v1567, %v1567
  %v1571 = vmul.f32 %v1568, %v1568
  %v1572 = vsel %vm196, %v1569, 0.0
  %1573 = vadd.xlane.f32.xlu0 %v1572
  %v1574 = vpop.xlane.xlu0 %1573
  %v1575 = vsel %vm196, %v1570, 0.0
  %1576 = vadd.xlane.f32.xlu0 %v1575
  %v1577 = vpop.xlane.xlu0 %1576
  %v1578 = vsel %vm203, %v1571, 0.0
  %1579 = vadd.xlane.f32.xlu0 %v1578
  %v1580 = vpop.xlane.xlu0 %1579
  %v1581 = vmul.f32 %v1574, %v213
  %v1582 = vmul.f32 %v1577, %v213
  %v1583 = vmul.f32 %v1580, %v213
  %v1584 = vadd.f32 %v1581, 1e-06
  %v1585 = vadd.f32 %v1582, 1e-06
  %v1586 = vadd.f32 %v1583, 1e-06
  %v1587 = vrsqrt.pop %v1584
  %v1588 = vmul.f32 %v1587, %v1584
  %v1589 = vmul.f32 %v1588, %v1587
  %v1590 = vmul.f32 0.5, %v1589
  %v1591 = vsub.f32 1.5, %v1590
  %v1592 = vmul.f32 %v1587, %v1591
  %vm1593 = vweird.f32 %v1584
  %vm1594 = vweird.f32 %v1587
  %vm1595 = vmor %vm1593, %vm1594
  %v1596 = vsel %vm1595, %v1587, %v1592
  %v1597 = vrsqrt.pop %v1585
  %v1598 = vmul.f32 %v1597, %v1585
  %v1599 = vmul.f32 %v1598, %v1597
  %v1600 = vmul.f32 0.5, %v1599
  %v1601 = vsub.f32 1.5, %v1600
  %v1602 = vmul.f32 %v1597, %v1601
  %vm1603 = vweird.f32 %v1585
  %vm1604 = vweird.f32 %v1597
  %vm1605 = vmor %vm1603, %vm1604
  %v1606 = vsel %vm1605, %v1597, %v1602
  %v1607 = vrsqrt.pop %v1586
  %v1608 = vmul.f32 %v1607, %v1586
  %v1609 = vmul.f32 %v1608, %v1607
  %v1610 = vmul.f32 0.5, %v1609
  %v1611 = vsub.f32 1.5, %v1610
  %v1612 = vmul.f32 %v1607, %v1611
  %vm1613 = vweird.f32 %v1586
  %vm1614 = vweird.f32 %v1607
  %vm1615 = vmor %vm1613, %vm1614
  %v1616 = vsel %vm1615, %v1607, %v1612
  %v1617 = vmul.f32 %v1566, %v1596
  %v1618 = vmul.f32 %v1567, %v1606
  %v1619 = vmul.f32 %v1568, %v1616
  %v1621 = vperm.slane %v1551, 0
  %v1623 = vmul.f32 %v1617, %v1621
  %v1624 = vmul.f32 %v1618, %v1621
  %v1625 = vmul.f32 %v1619, %v1621
  %v1627 = vperm.slane %v1553, 0
  %v1629 = vadd.f32 %v1623, %v1627
  %v1630 = vadd.f32 %v1624, %v1627
  %v1631 = vadd.f32 %v1625, %v1627
  %v1632 = vpack.c.bf16 %v1630, %v1629
  %v1633 = vpack.c.bf16 %v1631, %v1631
  %s1634 = scalar_lea.vmem %s15, 32
  %v1635 = vld [vmem:[%s1634] sm:$0xf]
  %v1636 = vld [vmem:[%s1634 + $0x4] sm:$0xf]
  %v1637 = vld [vmem:[%s1634 + $0x8] sm:$0xf]
  %v1638 = vld [vmem:[%s1634 + $0xc] sm:$0xf]
  %s1639 = scalar_lea.vmem %s17, 2
  %v1640 = vld [vmem:[%s1639] sm:$0x1]
  %v1642 = vperm.slane %v1640, 0
  %v1648 = vunpack.c.l.b16 %v1635
  %v1649 = vunpack.c.l.b16 %v1636
  %v1650 = vunpack.c.l.b16 %v1637
  %v1651 = vunpack.c.l.b16 %v1638
  %v1652 = vpack.c.b16 %v1649, %v1648
  %v1653 = vpack.c.b16 %v1651, %v1650
  %v1657 = vsel %vm196, %v1632, 0
  %v1660 = vsel %vm196, %v1633, 0
  %1662 = vmatpush.bf16.msra.mxu0 0
  %1663 = vmatpush.bf16.msra.mxu0 0
  %1664 = vmatpush.bf16.msra.mxu0 0
  %1665 = vmatpush.bf16.msra.mxu0 0
  %1666 = vmatpush.bf16.msra.mxu0 0
  %1667 = vmatpush.bf16.msra.mxu0 0
  %1668 = vmatpush.bf16.msra.mxu0 %v1653
  %1669 = vmatpush.bf16.msra.mxu0 %v1652
  %1670 = vmatmul.bf16.gmra.mxu0 %v1657
  %v1671 = vpop.f32.mrf.mxu0
  %v1672 = vadd.f32 %v1642, %v1671
  %v1673 = vpop.f32.mrf.mxu0
  %v1674 = vadd.f32 %v1642, %v1673
  %1675 = vmatmul.bf16.gmra.mxu0 %v1660
  %v1676 = vpop.f32.mrf.mxu0
  %v1677 = vadd.f32 %v1642, %v1676
  %v1678 = vpop.f32.mrf.mxu0
  %1679 = vdwg.mxu0
  %v1680 = vpack.c.bf16 %v1674, %v1672
  %v1681 = vpack.c.bf16 %v1677, %v1677
  %1684 = vrot.lane.b32.xlu0 %v1680, 96
  %v1685 = vpop.permute.xlu0 %1684
  %1686 = vrot.lane.b32.xlu0 %v1681, 96
  %v1687 = vpop.permute.xlu0 %1686
  %v1689 = vsel %vm337, %v1680, 0
  %v1692 = vsel %vm337, %v1681, 0
  %v1695 = vsel %vm337, %v1685, 0
  %v1698 = vsel %vm337, %v1687, 0
  %1700 = vmatpush.bf16.xpose.msra.mxu0 0
  %1701 = vmatpush.bf16.xpose.msra.mxu0 0
  %1702 = vmatpush.bf16.xpose.msra.mxu0 0
  %1703 = vmatpush.bf16.xpose.msra.mxu0 0
  %1704 = vmatpush.bf16.xpose.msra.mxu0 0
  %1705 = vmatpush.bf16.xpose.msra.mxu0 0
  %1706 = vmatpush.bf16.xpose.msra.mxu0 %v1698
  %1707 = vmatpush.bf16.xpose.msra.mxu0 %v1695
  %1708 = vmatmul.bf16.gmra.mxu0 %v1689
  %v1709 = vpop.f32.mrf.mxu0
  %v1710 = vadd.f32 0.0, %v1709
  %v1711 = vpop.f32.mrf.mxu0
  %v1712 = vadd.f32 0.0, %v1711
  %1713 = vmatmul.bf16.gmra.mxu0 %v1692
  %v1714 = vpop.f32.mrf.mxu0
  %v1715 = vadd.f32 0.0, %v1714
  %v1716 = vpop.f32.mrf.mxu0
  %1717 = vdwg.mxu0
  %v1718 = vsel %vm368, %v1710, -inf
  %1719 = vmax.xlane.f32.xlu0 %v1718
  %v1720 = vpop.xlane.xlu0 %1719
  %v1721 = vsel %vm368, %v1712, -inf
  %1722 = vmax.xlane.f32.xlu0 %v1721
  %v1723 = vpop.xlane.xlu0 %1722
  %v1724 = vsel %vm375, %v1715, -inf
  %1725 = vmax.xlane.f32.xlu0 %v1724
  %v1726 = vpop.xlane.xlu0 %1725
  %v1727 = vsub.f32 %v1710, %v1720
  %v1728 = vsub.f32 %v1712, %v1723
  %v1729 = vsub.f32 %v1715, %v1726
  %v1730 = vmul.f32 %v1727, 1.442695
  %v1731 = vpow.pop %v1730
  %v1732 = vmul.f32 %v1728, 1.442695
  %v1733 = vpow.pop %v1732
  %v1734 = vmul.f32 %v1729, 1.442695
  %v1735 = vpow.pop %v1734
  %v1736 = vsel %vm368, %v1731, 0.0
  %1737 = vadd.xlane.f32.xlu0 %v1736
  %v1738 = vpop.xlane.xlu0 %1737
  %v1739 = vsel %vm368, %v1733, 0.0
  %1740 = vadd.xlane.f32.xlu0 %v1739
  %v1741 = vpop.xlane.xlu0 %1740
  %v1742 = vsel %vm375, %v1735, 0.0
  %1743 = vadd.xlane.f32.xlu0 %v1742
  %v1744 = vpop.xlane.xlu0 %1743
  %v1745 = vrcp.pop %v1738
  %v1746 = vrcp.pop %v1741
  %v1747 = vrcp.pop %v1744
  %v1748 = vmul.f32 %v1731, %v1745
  %v1749 = vmul.f32 %v1733, %v1746
  %v1750 = vmul.f32 %v1735, %v1747
  %v1751 = vpack.c.bf16 %v1749, %v1748
  %v1752 = vpack.c.bf16 %v1750, %v1750
  %1753 = vrot.lane.b32.xlu0 %v1680, 64
  %v1754 = vpop.permute.xlu0 %1753
  %1755 = vrot.lane.b32.xlu0 %v1681, 64
  %v1756 = vpop.permute.xlu0 %1755
  %v1759 = vsel %vm368, %v1751, 0
  %v1762 = vsel %vm368, %v1752, 0
  %v1765 = vand.u32 %v1756, %v418
  %1767 = vmatpush.bf16.msra.mxu0 0
  %1768 = vmatpush.bf16.msra.mxu0 0
  %1769 = vmatpush.bf16.msra.mxu0 0
  %1770 = vmatpush.bf16.msra.mxu0 0
  %1771 = vmatpush.bf16.msra.mxu0 0
  %1772 = vmatpush.bf16.msra.mxu0 0
  %1773 = vmatpush.bf16.msra.mxu0 %v1765
  %1774 = vmatpush.bf16.msra.mxu0 %v1754
  %1775 = vmatmul.bf16.gmra.mxu0 %v1759
  %v1776 = vpop.f32.mrf.mxu0
  %v1777 = vadd.f32 0.0, %v1776
  %v1778 = vpop.f32.mrf.mxu0
  %v1779 = vadd.f32 0.0, %v1778
  %1780 = vmatmul.bf16.gmra.mxu0 %v1762
  %v1781 = vpop.f32.mrf.mxu0
  %v1782 = vadd.f32 0.0, %v1781
  %v1783 = vpop.f32.mrf.mxu0
  %1784 = vdwg.mxu0
  %1785 = vrot.lane.b32.xlu0 %v1680, 112
  %v1786 = vpop.permute.xlu0 %1785
  %1787 = vrot.lane.b32.xlu0 %v1681, 112
  %v1788 = vpop.permute.xlu0 %1787
  %1789 = vrot.lane.b32.xlu0 %v1680, 80
  %v1790 = vpop.permute.xlu0 %1789
  %1791 = vrot.lane.b32.xlu0 %v1681, 80
  %v1792 = vpop.permute.xlu0 %1791
  %v1794 = vsel %vm337, %v1786, 0
  %v1797 = vsel %vm337, %v1788, 0
  %v1800 = vsel %vm337, %v1790, 0
  %v1803 = vsel %vm337, %v1792, 0
  %1805 = vmatpush.bf16.xpose.msra.mxu0 0
  %1806 = vmatpush.bf16.xpose.msra.mxu0 0
  %1807 = vmatpush.bf16.xpose.msra.mxu0 0
  %1808 = vmatpush.bf16.xpose.msra.mxu0 0
  %1809 = vmatpush.bf16.xpose.msra.mxu0 0
  %1810 = vmatpush.bf16.xpose.msra.mxu0 0
  %1811 = vmatpush.bf16.xpose.msra.mxu0 %v1803
  %1812 = vmatpush.bf16.xpose.msra.mxu0 %v1800
  %1813 = vmatmul.bf16.gmra.mxu0 %v1794
  %v1814 = vpop.f32.mrf.mxu0
  %v1815 = vadd.f32 0.0, %v1814
  %v1816 = vpop.f32.mrf.mxu0
  %v1817 = vadd.f32 0.0, %v1816
  %1818 = vmatmul.bf16.gmra.mxu0 %v1797
  %v1819 = vpop.f32.mrf.mxu0
  %v1820 = vadd.f32 0.0, %v1819
  %v1821 = vpop.f32.mrf.mxu0
  %1822 = vdwg.mxu0
  %v1823 = vsel %vm368, %v1815, -inf
  %1824 = vmax.xlane.f32.xlu0 %v1823
  %v1825 = vpop.xlane.xlu0 %1824
  %v1826 = vsel %vm368, %v1817, -inf
  %1827 = vmax.xlane.f32.xlu0 %v1826
  %v1828 = vpop.xlane.xlu0 %1827
  %v1829 = vsel %vm375, %v1820, -inf
  %1830 = vmax.xlane.f32.xlu0 %v1829
  %v1831 = vpop.xlane.xlu0 %1830
  %v1832 = vsub.f32 %v1815, %v1825
  %v1833 = vsub.f32 %v1817, %v1828
  %v1834 = vsub.f32 %v1820, %v1831
  %v1835 = vmul.f32 %v1832, 1.442695
  %v1836 = vpow.pop %v1835
  %v1837 = vmul.f32 %v1833, 1.442695
  %v1838 = vpow.pop %v1837
  %v1839 = vmul.f32 %v1834, 1.442695
  %v1840 = vpow.pop %v1839
  %v1841 = vsel %vm368, %v1836, 0.0
  %1842 = vadd.xlane.f32.xlu0 %v1841
  %v1843 = vpop.xlane.xlu0 %1842
  %v1844 = vsel %vm368, %v1838, 0.0
  %1845 = vadd.xlane.f32.xlu0 %v1844
  %v1846 = vpop.xlane.xlu0 %1845
  %v1847 = vsel %vm375, %v1840, 0.0
  %1848 = vadd.xlane.f32.xlu0 %v1847
  %v1849 = vpop.xlane.xlu0 %1848
  %v1850 = vrcp.pop %v1843
  %v1851 = vrcp.pop %v1846
  %v1852 = vrcp.pop %v1849
  %v1853 = vmul.f32 %v1836, %v1850
  %v1854 = vmul.f32 %v1838, %v1851
  %v1855 = vmul.f32 %v1840, %v1852
  %v1856 = vpack.c.bf16 %v1854, %v1853
  %v1857 = vpack.c.bf16 %v1855, %v1855
  %1858 = vrot.lane.b32.xlu0 %v1680, 48
  %v1859 = vpop.permute.xlu0 %1858
  %1860 = vrot.lane.b32.xlu0 %v1681, 48
  %v1861 = vpop.permute.xlu0 %1860
  %v1864 = vsel %vm368, %v1856, 0
  %v1867 = vsel %vm368, %v1857, 0
  %v1870 = vand.u32 %v1861, %v418
  %1872 = vmatpush.bf16.msra.mxu0 0
  %1873 = vmatpush.bf16.msra.mxu0 0
  %1874 = vmatpush.bf16.msra.mxu0 0
  %1875 = vmatpush.bf16.msra.mxu0 0
  %1876 = vmatpush.bf16.msra.mxu0 0
  %1877 = vmatpush.bf16.msra.mxu0 0
  %1878 = vmatpush.bf16.msra.mxu0 %v1870
  %1879 = vmatpush.bf16.msra.mxu0 %v1859
  %1880 = vmatmul.bf16.gmra.mxu0 %v1864
  %v1881 = vpop.f32.mrf.mxu0
  %v1882 = vadd.f32 0.0, %v1881
  %v1883 = vpop.f32.mrf.mxu0
  %v1884 = vadd.f32 0.0, %v1883
  %1885 = vmatmul.bf16.gmra.mxu0 %v1867
  %v1886 = vpop.f32.mrf.mxu0
  %v1887 = vadd.f32 0.0, %v1886
  %v1888 = vpop.f32.mrf.mxu0
  %1889 = vdwg.mxu0
  %s1890 = scalar_lea.vmem %s19, 32
  %v1891 = vld [vmem:[%s1890] sm:$0xf]
  %v1892 = vld [vmem:[%s1890 + $0x4] sm:$0xf]
  %v1893 = vld [vmem:[%s1890 + $0x8] sm:$0xf]
  %v1894 = vld [vmem:[%s1890 + $0xc] sm:$0xf]
  %v1895 = vpack.c.bf16 %v1779, %v1777
  %v1896 = vpack.c.bf16 %v1782, %v1782
  %v1897 = vpack.c.bf16 %v1884, %v1882
  %v1898 = vpack.c.bf16 %v1887, %v1887
  %v1901 = vunpack.c.l.b16 %v1893
  %v1902 = vunpack.c.l.b16 %v1894
  %v1903 = vpack.c.b16 %v1902, %v1901
  %v1906 = vsel %vm337, %v1897, 0
  %v1909 = vsel %vm337, %v1898, 0
  %1911 = vmatpush.bf16.msra.mxu0 0
  %1912 = vmatpush.bf16.msra.mxu0 0
  %1913 = vmatpush.bf16.msra.mxu0 0
  %1914 = vmatpush.bf16.msra.mxu0 0
  %1915 = vmatpush.bf16.msra.mxu0 0
  %1916 = vmatpush.bf16.msra.mxu0 0
  %1917 = vmatpush.bf16.msra.mxu0 0
  %1918 = vmatpush.bf16.msra.mxu0 %v1903
  %1919 = vmatmul.bf16.gmra.mxu0 %v1906
  %v1920 = vpop.f32.mrf.mxu0
  %v1921 = vadd.f32 0.0, %v1920
  %v1922 = vpop.f32.mrf.mxu0
  %v1923 = vadd.f32 0.0, %v1922
  %1924 = vmatmul.bf16.gmra.mxu0 %v1909
  %v1925 = vpop.f32.mrf.mxu0
  %v1926 = vadd.f32 0.0, %v1925
  %v1927 = vpop.f32.mrf.mxu0
  %1928 = vdwg.mxu0
  %v1931 = vunpack.c.l.b16 %v1891
  %v1932 = vunpack.c.l.b16 %v1892
  %v1933 = vpack.c.b16 %v1932, %v1931
  %v1936 = vsel %vm337, %v1895, 0
  %v1939 = vsel %vm337, %v1896, 0
  %1941 = vmatpush.bf16.msra.mxu0 0
  %1942 = vmatpush.bf16.msra.mxu0 0
  %1943 = vmatpush.bf16.msra.mxu0 0
  %1944 = vmatpush.bf16.msra.mxu0 0
  %1945 = vmatpush.bf16.msra.mxu0 0
  %1946 = vmatpush.bf16.msra.mxu0 0
  %1947 = vmatpush.bf16.msra.mxu0 0
  %1948 = vmatpush.bf16.msra.mxu0 %v1933
  %1949 = vmatmul.bf16.gmra.mxu0 %v1936
  %v1950 = vpop.f32.mrf.mxu0
  %v1951 = vadd.f32 %v1921, %v1950
  %v1952 = vpop.f32.mrf.mxu0
  %v1953 = vadd.f32 %v1923, %v1952
  %1954 = vmatmul.bf16.gmra.mxu0 %v1939
  %v1955 = vpop.f32.mrf.mxu0
  %v1956 = vadd.f32 %v1926, %v1955
  %v1957 = vpop.f32.mrf.mxu0
  %1958 = vdwg.mxu0
  %s1959 = scalar_lea.vmem %s21, 2
  %v1960 = vld [vmem:[%s1959] sm:$0x1]
  %v1962 = vperm.slane %v1960, 0
  %v1964 = vadd.f32 %v1951, %v1962
  %v1965 = vadd.f32 %v1953, %v1962
  %v1966 = vadd.f32 %v1956, %v1962
  %v1967 = vadd.f32 %v1536, %v1964
  %v1968 = vadd.f32 %v1537, %v1965
  %v1969 = vadd.f32 %v1538, %v1966
  %s1970 = scalar_lea.vmem %s23, 2
  %v1971 = vld [vmem:[%s1970] sm:$0x1]
  %s1972 = scalar_lea.vmem %s25, 2
  %v1973 = vld [vmem:[%s1972] sm:$0x1]
  %v1974 = vsel %vm196, %v1967, 0.0
  %1975 = vadd.xlane.f32.xlu0 %v1974
  %v1976 = vpop.xlane.xlu0 %1975
  %v1977 = vsel %vm196, %v1968, 0.0
  %1978 = vadd.xlane.f32.xlu0 %v1977
  %v1979 = vpop.xlane.xlu0 %1978
  %v1980 = vsel %vm203, %v1969, 0.0
  %1981 = vadd.xlane.f32.xlu0 %v1980
  %v1982 = vpop.xlane.xlu0 %1981
  %v1983 = vmul.f32 %v1976, %v213
  %v1984 = vmul.f32 %v1979, %v213
  %v1985 = vmul.f32 %v1982, %v213
  %v1986 = vsub.f32 %v1967, %v1983
  %v1987 = vsub.f32 %v1968, %v1984
  %v1988 = vsub.f32 %v1969, %v1985
  %v1989 = vmul.f32 %v1986, %v1986
  %v1990 = vmul.f32 %v1987, %v1987
  %v1991 = vmul.f32 %v1988, %v1988
  %v1992 = vsel %vm196, %v1989, 0.0
  %1993 = vadd.xlane.f32.xlu0 %v1992
  %v1994 = vpop.xlane.xlu0 %1993
  %v1995 = vsel %vm196, %v1990, 0.0
  %1996 = vadd.xlane.f32.xlu0 %v1995
  %v1997 = vpop.xlane.xlu0 %1996
  %v1998 = vsel %vm203, %v1991, 0.0
  %1999 = vadd.xlane.f32.xlu0 %v1998
  %v2000 = vpop.xlane.xlu0 %1999
  %v2001 = vmul.f32 %v1994, %v213
  %v2002 = vmul.f32 %v1997, %v213
  %v2003 = vmul.f32 %v2000, %v213
  %v2004 = vadd.f32 %v2001, 1e-06
  %v2005 = vadd.f32 %v2002, 1e-06
  %v2006 = vadd.f32 %v2003, 1e-06
  %v2007 = vrsqrt.pop %v2004
  %v2008 = vmul.f32 %v2007, %v2004
  %v2009 = vmul.f32 %v2008, %v2007
  %v2010 = vmul.f32 0.5, %v2009
  %v2011 = vsub.f32 1.5, %v2010
  %v2012 = vmul.f32 %v2007, %v2011
  %vm2013 = vweird.f32 %v2004
  %vm2014 = vweird.f32 %v2007
  %vm2015 = vmor %vm2013, %vm2014
  %v2016 = vsel %vm2015, %v2007, %v2012
  %v2017 = vrsqrt.pop %v2005
  %v2018 = vmul.f32 %v2017, %v2005
  %v2019 = vmul.f32 %v2018, %v2017
  %v2020 = vmul.f32 0.5, %v2019
  %v2021 = vsub.f32 1.5, %v2020
  %v2022 = vmul.f32 %v2017, %v2021
  %vm2023 = vweird.f32 %v2005
  %vm2024 = vweird.f32 %v2017
  %vm2025 = vmor %vm2023, %vm2024
  %v2026 = vsel %vm2025, %v2017, %v2022
  %v2027 = vrsqrt.pop %v2006
  %v2028 = vmul.f32 %v2027, %v2006
  %v2029 = vmul.f32 %v2028, %v2027
  %v2030 = vmul.f32 0.5, %v2029
  %v2031 = vsub.f32 1.5, %v2030
  %v2032 = vmul.f32 %v2027, %v2031
  %vm2033 = vweird.f32 %v2006
  %vm2034 = vweird.f32 %v2027
  %vm2035 = vmor %vm2033, %vm2034
  %v2036 = vsel %vm2035, %v2027, %v2032
  %v2037 = vmul.f32 %v1986, %v2016
  %v2038 = vmul.f32 %v1987, %v2026
  %v2039 = vmul.f32 %v1988, %v2036
  %v2041 = vperm.slane %v1971, 0
  %v2043 = vmul.f32 %v2037, %v2041
  %v2044 = vmul.f32 %v2038, %v2041
  %v2045 = vmul.f32 %v2039, %v2041
  %v2047 = vperm.slane %v1973, 0
  %v2049 = vadd.f32 %v2043, %v2047
  %v2050 = vadd.f32 %v2044, %v2047
  %v2051 = vadd.f32 %v2045, %v2047
  %v2052 = vpack.c.bf16 %v2050, %v2049
  %v2053 = vpack.c.bf16 %v2051, %v2051
  %s2054 = scalar_lea.vmem %s27, 32
  %v2055 = vld [vmem:[%s2054] sm:$0xf]
  %v2056 = vld [vmem:[%s2054 + $0x4] sm:$0xf]
  %v2057 = vld [vmem:[%s2054 + $0x8] sm:$0xf]
  %v2058 = vld [vmem:[%s2054 + $0xc] sm:$0xf]
  %s2059 = scalar_lea.vmem %s29, 2
  %v2060 = vld [vmem:[%s2059] sm:$0x1]
  %v2062 = vperm.slane %v2060, 0
  %v2068 = vunpack.c.l.b16 %v2055
  %v2069 = vunpack.c.l.b16 %v2056
  %v2070 = vunpack.c.l.b16 %v2057
  %v2071 = vunpack.c.l.b16 %v2058
  %v2072 = vpack.c.b16 %v2069, %v2068
  %v2073 = vpack.c.b16 %v2071, %v2070
  %v2077 = vsel %vm196, %v2052, 0
  %v2080 = vsel %vm196, %v2053, 0
  %2082 = vmatpush.bf16.msra.mxu0 0
  %2083 = vmatpush.bf16.msra.mxu0 0
  %2084 = vmatpush.bf16.msra.mxu0 0
  %2085 = vmatpush.bf16.msra.mxu0 0
  %2086 = vmatpush.bf16.msra.mxu0 0
  %2087 = vmatpush.bf16.msra.mxu0 0
  %2088 = vmatpush.bf16.msra.mxu0 %v2073
  %2089 = vmatpush.bf16.msra.mxu0 %v2072
  %2090 = vmatmul.bf16.gmra.mxu0 %v2077
  %v2091 = vpop.f32.mrf.mxu0
  %v2092 = vadd.f32 %v2062, %v2091
  %v2093 = vpop.f32.mrf.mxu0
  %v2094 = vadd.f32 %v2062, %v2093
  %2095 = vmatmul.bf16.gmra.mxu0 %v2080
  %v2096 = vpop.f32.mrf.mxu0
  %v2097 = vadd.f32 %v2062, %v2096
  %v2098 = vpop.f32.mrf.mxu0
  %2099 = vdwg.mxu0
  %v2100 = vmul.f32 %v2092, %v2092
  %v2101 = vmul.f32 %v2094, %v2094
  %v2102 = vmul.f32 %v2097, %v2097
  %v2103 = vmul.f32 %v2092, %v2100
  %v2104 = vmul.f32 %v2094, %v2101
  %v2105 = vmul.f32 %v2097, %v2102
  %v2106 = vmul.f32 %v2103, 0.044715
  %v2107 = vmul.f32 %v2104, 0.044715
  %v2108 = vmul.f32 %v2105, 0.044715
  %v2109 = vadd.f32 %v2092, %v2106
  %v2110 = vadd.f32 %v2094, %v2107
  %v2111 = vadd.f32 %v2097, %v2108
  %v2112 = vmul.f32 %v2109, 0.7978846
  %v2113 = vmul.f32 %v2110, 0.7978846
  %v2114 = vmul.f32 %v2111, 0.7978846
  %v2115 = vtanh.pop %v2112
  %v2116 = vtanh.pop %v2113
  %v2117 = vtanh.pop %v2114
  %v2118 = vadd.f32 %v2115, 1.0
  %v2119 = vadd.f32 %v2116, 1.0
  %v2120 = vadd.f32 %v2117, 1.0
  %v2121 = vmul.f32 %v2118, 0.5
  %v2122 = vmul.f32 %v2119, 0.5
  %v2123 = vmul.f32 %v2120, 0.5
  %v2124 = vmul.f32 %v2092, %v2121
  %v2125 = vmul.f32 %v2094, %v2122
  %v2126 = vmul.f32 %v2097, %v2123
  %v2127 = vpack.c.bf16 %v2125, %v2124
  %v2128 = vpack.c.bf16 %v2126, %v2126
  %s2129 = scalar_lea.vmem %s31, 128
  %v2130 = vld [vmem:[%s2129] sm:$0xf]
  %v2131 = vld [vmem:[%s2129 + $0x4] sm:$0xf]
  %v2132 = vld [vmem:[%s2129 + $0x8] sm:$0xf]
  %v2133 = vld [vmem:[%s2129 + $0xc] sm:$0xf]
  %v2134 = vld [vmem:[%s2129 + $0x10] sm:$0xf]
  %v2135 = vld [vmem:[%s2129 + $0x14] sm:$0xf]
  %v2136 = vld [vmem:[%s2129 + $0x18] sm:$0xf]
  %v2137 = vld [vmem:[%s2129 + $0x1c] sm:$0xf]
  %v2138 = vld [vmem:[%s2129 + $0x20] sm:$0xf]
  %v2139 = vld [vmem:[%s2129 + $0x24] sm:$0xf]
  %v2140 = vld [vmem:[%s2129 + $0x28] sm:$0xf]
  %v2141 = vld [vmem:[%s2129 + $0x2c] sm:$0xf]
  %v2142 = vld [vmem:[%s2129 + $0x30] sm:$0xf]
  %v2143 = vld [vmem:[%s2129 + $0x34] sm:$0xf]
  %v2144 = vld [vmem:[%s2129 + $0x38] sm:$0xf]
  %v2145 = vld [vmem:[%s2129 + $0x3c] sm:$0xf]
  %s2146 = scalar_lea.vmem %s33, 2
  %v2147 = vld [vmem:[%s2146] sm:$0x1]
  %v2149 = vperm.slane %v2147, 0
  %v2167 = vunpack.c.l.b16 %v2130
  %v2168 = vunpack.c.l.b16 %v2131
  %v2169 = vunpack.c.l.b16 %v2132
  %v2170 = vunpack.c.l.b16 %v2133
  %v2171 = vunpack.c.l.b16 %v2134
  %v2172 = vunpack.c.l.b16 %v2135
  %v2173 = vunpack.c.l.b16 %v2136
  %v2174 = vunpack.c.l.b16 %v2137
  %v2175 = vunpack.c.l.b16 %v2138
  %v2176 = vunpack.c.l.b16 %v2139
  %v2177 = vunpack.c.l.b16 %v2140
  %v2178 = vunpack.c.l.b16 %v2141
  %v2179 = vunpack.c.l.b16 %v2142
  %v2180 = vunpack.c.l.b16 %v2143
  %v2181 = vunpack.c.l.b16 %v2144
  %v2182 = vunpack.c.l.b16 %v2145
  %v2183 = vpack.c.b16 %v2168, %v2167
  %v2184 = vpack.c.b16 %v2170, %v2169
  %v2185 = vpack.c.b16 %v2172, %v2171
  %v2186 = vpack.c.b16 %v2174, %v2173
  %v2187 = vpack.c.b16 %v2176, %v2175
  %v2188 = vpack.c.b16 %v2178, %v2177
  %v2189 = vpack.c.b16 %v2180, %v2179
  %v2190 = vpack.c.b16 %v2182, %v2181
  %2199 = vmatpush.bf16.msra.mxu0 %v2190
  %2200 = vmatpush.bf16.msra.mxu0 %v2189
  %2201 = vmatpush.bf16.msra.mxu0 %v2188
  %2202 = vmatpush.bf16.msra.mxu0 %v2187
  %2203 = vmatpush.bf16.msra.mxu0 %v2186
  %2204 = vmatpush.bf16.msra.mxu0 %v2185
  %2205 = vmatpush.bf16.msra.mxu0 %v2184
  %2206 = vmatpush.bf16.msra.mxu0 %v2183
  %2207 = vmatmul.bf16.gmra.mxu0 %v2127
  %v2208 = vpop.f32.mrf.mxu0
  %v2209 = vadd.f32 %v2149, %v2208
  %v2210 = vpop.f32.mrf.mxu0
  %v2211 = vadd.f32 %v2149, %v2210
  %2212 = vmatmul.bf16.gmra.mxu0 %v2128
  %v2213 = vpop.f32.mrf.mxu0
  %v2214 = vpop.f32.mrf.mxu0
  %2215 = vdwg.mxu0
  %v2216 = vadd.f32 %v1967, %v2209
  %v2217 = vadd.f32 %v1968, %v2211
  %2220 = vrot.lane.b32.xlu0 %v2216, 64
  %v2221 = vpop.permute.xlu0 %2220
  %2222 = vrot.lane.b32.xlu0 %v2217, 64
  %v2223 = vpop.permute.xlu0 %2222
  %vm2226 = vcmask 785920
  %2227 = vst.msk [vmem:[%s65] sm:$0xff] %vm2226, %v2221
  %2228 = vst.msk [vmem:[%s65 + $0x10] sm:$0xff] %vm2226, %v2223
  %v2229 = vpack.c.bf16 %v1537, %v1536
  %v2230 = vld [vmem:[%s35] sm:$0xf]
  %v2231 = vld [vmem:[%s35 + $0x4] sm:$0xf]
  %v2232 = vld [vmem:[%s35 + $0x8] sm:$0xf]
  %v2233 = vld [vmem:[%s35 + $0xc] sm:$0xf]
  %v2234 = vpack.c.bf16 %v2217, %v2216
  %v2235 = vld [vmem:[%s35 + $0x10] sm:$0xf]
  %v2236 = vld [vmem:[%s35 + $0x14] sm:$0xf]
  %v2237 = vld [vmem:[%s35 + $0x18] sm:$0xf]
  %v2238 = vld [vmem:[%s35 + $0x1c] sm:$0xf]
  %v2243 = vunpack.c.l.b16 %v2235
  %v2244 = vunpack.c.l.b16 %v2236
  %v2245 = vunpack.c.l.b16 %v2237
  %v2246 = vunpack.c.l.b16 %v2238
  %v2247 = vpack.c.b16 %v2244, %v2243
  %v2248 = vpack.c.b16 %v2246, %v2245
  %v2252 = vsel %vm196, %v2234, 0
  %2254 = vmatpush.bf16.msra.mxu0 0
  %2255 = vmatpush.bf16.msra.mxu0 0
  %2256 = vmatpush.bf16.msra.mxu0 0
  %2257 = vmatpush.bf16.msra.mxu0 0
  %2258 = vmatpush.bf16.msra.mxu0 0
  %2259 = vmatpush.bf16.msra.mxu0 0
  %2260 = vmatpush.bf16.msra.mxu0 %v2248
  %2261 = vmatpush.bf16.msra.mxu0 %v2247
  %2262 = vmatmul.bf16.gmra.mxu0 %v2252
  %v2263 = vpop.f32.mrf.mxu0
  %v2264 = vadd.f32 0.0, %v2263
  %v2265 = vpop.f32.mrf.mxu0
  %v2266 = vadd.f32 0.0, %v2265
  %2267 = vdwg.mxu0
  %v2272 = vunpack.c.l.b16 %v2230
  %v2273 = vunpack.c.l.b16 %v2231
  %v2274 = vunpack.c.l.b16 %v2232
  %v2275 = vunpack.c.l.b16 %v2233
  %v2276 = vpack.c.b16 %v2273, %v2272
  %v2277 = vpack.c.b16 %v2275, %v2274
  %v2281 = vsel %vm196, %v2229, 0
  %2283 = vmatpush.bf16.msra.mxu0 0
  %2284 = vmatpush.bf16.msra.mxu0 0
  %2285 = vmatpush.bf16.msra.mxu0 0
  %2286 = vmatpush.bf16.msra.mxu0 0
  %2287 = vmatpush.bf16.msra.mxu0 0
  %2288 = vmatpush.bf16.msra.mxu0 0
  %2289 = vmatpush.bf16.msra.mxu0 %v2277
  %2290 = vmatpush.bf16.msra.mxu0 %v2276
  %2291 = vmatmul.bf16.gmra.mxu0 %v2281
  %v2292 = vpop.f32.mrf.mxu0
  %v2293 = vadd.f32 %v2264, %v2292
  %v2294 = vpop.f32.mrf.mxu0
  %v2295 = vadd.f32 %v2266, %v2294
  %2296 = vdwg.mxu0
  %v2297 = vld [vmem:[%s37] sm:$0x1]
  %v2299 = vperm.slane %v2297, 0
  %v2301 = vadd.f32 %v2293, %v2299
  %v2302 = vadd.f32 %v2295, %v2299
  %v2303 = vld [vmem:[%s39] sm:$0xff]
  %v2304 = vld [vmem:[%s39 + $0x8] sm:$0xff]
  %v2305 = vadd.f32 %v2301, %v2303
  %v2306 = vadd.f32 %v2302, %v2304
  %v2307 = vld [vmem:[%s41] sm:$0x1]
  %v2308 = vld [vmem:[%s43] sm:$0x1]
  %v2309 = vsel %vm196, %v2305, 0.0
  %2310 = vadd.xlane.f32.xlu0 %v2309
  %v2311 = vpop.xlane.xlu0 %2310
  %v2312 = vsel %vm196, %v2306, 0.0
  %2313 = vadd.xlane.f32.xlu0 %v2312
  %v2314 = vpop.xlane.xlu0 %2313
  %v2315 = vmul.f32 %v2311, %v213
  %v2316 = vmul.f32 %v2314, %v213
  %v2317 = vsub.f32 %v2305, %v2315
  %v2318 = vsub.f32 %v2306, %v2316
  %v2319 = vmul.f32 %v2317, %v2317
  %v2320 = vmul.f32 %v2318, %v2318
  %v2321 = vsel %vm196, %v2319, 0.0
  %2322 = vadd.xlane.f32.xlu0 %v2321
  %v2323 = vpop.xlane.xlu0 %2322
  %v2324 = vsel %vm196, %v2320, 0.0
  %2325 = vadd.xlane.f32.xlu0 %v2324
  %v2326 = vpop.xlane.xlu0 %2325
  %v2327 = vmul.f32 %v2323, %v213
  %v2328 = vmul.f32 %v2326, %v213
  %v2329 = vadd.f32 %v2327, 1e-06
  %v2330 = vadd.f32 %v2328, 1e-06
  %v2331 = vrsqrt.pop %v2329
  %v2332 = vmul.f32 %v2331, %v2329
  %v2333 = vmul.f32 %v2332, %v2331
  %v2334 = vmul.f32 0.5, %v2333
  %v2335 = vsub.f32 1.5, %v2334
  %v2336 = vmul.f32 %v2331, %v2335
  %vm2337 = vweird.f32 %v2329
  %vm2338 = vweird.f32 %v2331
  %vm2339 = vmor %vm2337, %vm2338
  %v2340 = vsel %vm2339, %v2331, %v2336
  %v2341 = vrsqrt.pop %v2330
  %v2342 = vmul.f32 %v2341, %v2330
  %v2343 = vmul.f32 %v2342, %v2341
  %v2344 = vmul.f32 0.5, %v2343
  %v2345 = vsub.f32 1.5, %v2344
  %v2346 = vmul.f32 %v2341, %v2345
  %vm2347 = vweird.f32 %v2330
  %vm2348 = vweird.f32 %v2341
  %vm2349 = vmor %vm2347, %vm2348
  %v2350 = vsel %vm2349, %v2341, %v2346
  %v2351 = vmul.f32 %v2317, %v2340
  %v2352 = vmul.f32 %v2318, %v2350
  %v2354 = vperm.slane %v2307, 0
  %v2356 = vmul.f32 %v2351, %v2354
  %v2357 = vmul.f32 %v2352, %v2354
  %v2359 = vperm.slane %v2308, 0
  %v2361 = vadd.f32 %v2356, %v2359
  %v2362 = vadd.f32 %v2357, %v2359
  %v2363 = vpack.c.bf16 %v2362, %v2361
  %v2364 = vld [vmem:[%s45] sm:$0xf]
  %v2365 = vld [vmem:[%s45 + $0x4] sm:$0xf]
  %v2366 = vld [vmem:[%s45 + $0x8] sm:$0xf]
  %v2367 = vld [vmem:[%s45 + $0xc] sm:$0xf]
  %v2368 = vld [vmem:[%s47] sm:$0x1]
  %v2370 = vperm.slane %v2368, 0
  %v2376 = vunpack.c.l.b16 %v2364
  %v2377 = vunpack.c.l.b16 %v2365
  %v2378 = vunpack.c.l.b16 %v2366
  %v2379 = vunpack.c.l.b16 %v2367
  %v2380 = vpack.c.b16 %v2377, %v2376
  %v2381 = vpack.c.b16 %v2379, %v2378
  %v2385 = vsel %vm196, %v2363, 0
  %2387 = vmatpush.bf16.msra.mxu0 0
  %2388 = vmatpush.bf16.msra.mxu0 0
  %2389 = vmatpush.bf16.msra.mxu0 0
  %2390 = vmatpush.bf16.msra.mxu0 0
  %2391 = vmatpush.bf16.msra.mxu0 0
  %2392 = vmatpush.bf16.msra.mxu0 0
  %2393 = vmatpush.bf16.msra.mxu0 %v2381
  %2394 = vmatpush.bf16.msra.mxu0 %v2380
  %2395 = vmatmul.bf16.gmra.mxu0 %v2385
  %v2396 = vpop.f32.mrf.mxu0
  %v2397 = vadd.f32 %v2370, %v2396
  %v2398 = vpop.f32.mrf.mxu0
  %v2399 = vadd.f32 %v2370, %v2398
  %2400 = vdwg.mxu0
  %v2401 = vpack.c.bf16 %v2399, %v2397
  %2403 = vrot.lane.b32.xlu0 %v2401, 96
  %v2404 = vpop.permute.xlu0 %2403
  %v2406 = vsel %vm337, %v2401, 0
  %v2409 = vsel %vm337, %v2404, 0
  %2411 = vmatpush.bf16.xpose.msra.mxu0 0
  %2412 = vmatpush.bf16.xpose.msra.mxu0 0
  %2413 = vmatpush.bf16.xpose.msra.mxu0 0
  %2414 = vmatpush.bf16.xpose.msra.mxu0 0
  %2415 = vmatpush.bf16.xpose.msra.mxu0 0
  %2416 = vmatpush.bf16.xpose.msra.mxu0 0
  %2417 = vmatpush.bf16.xpose.msra.mxu0 0
  %2418 = vmatpush.bf16.xpose.msra.mxu0 %v2409
  %2419 = vmatmul.bf16.gmra.mxu0 %v2406
  %v2420 = vpop.f32.mrf.mxu0
  %v2421 = vadd.f32 0.0, %v2420
  %v2422 = vpop.f32.mrf.mxu0
  %v2423 = vadd.f32 0.0, %v2422
  %2424 = vdwg.mxu0
  %v2425 = vsel %vm337, %v2421, -inf
  %2426 = vmax.xlane.f32.xlu0 %v2425
  %v2427 = vpop.xlane.xlu0 %2426
  %v2428 = vsel %vm337, %v2423, -inf
  %2429 = vmax.xlane.f32.xlu0 %v2428
  %v2430 = vpop.xlane.xlu0 %2429
  %v2431 = vsub.f32 %v2421, %v2427
  %v2432 = vsub.f32 %v2423, %v2430
  %v2433 = vmul.f32 %v2431, 1.442695
  %v2434 = vpow.pop %v2433
  %v2435 = vmul.f32 %v2432, 1.442695
  %v2436 = vpow.pop %v2435
  %v2437 = vsel %vm337, %v2434, 0.0
  %2438 = vadd.xlane.f32.xlu0 %v2437
  %v2439 = vpop.xlane.xlu0 %2438
  %v2440 = vsel %vm337, %v2436, 0.0
  %2441 = vadd.xlane.f32.xlu0 %v2440
  %v2442 = vpop.xlane.xlu0 %2441
  %v2443 = vrcp.pop %v2439
  %v2444 = vrcp.pop %v2442
  %v2445 = vmul.f32 %v2434, %v2443
  %v2446 = vmul.f32 %v2436, %v2444
  %v2447 = vpack.c.bf16 %v2446, %v2445
  %2448 = vrot.lane.b32.xlu0 %v2401, 64
  %v2449 = vpop.permute.xlu0 %2448
  %v2452 = vsel %vm337, %v2447, 0
  %2454 = vmatpush.bf16.msra.mxu0 0
  %2455 = vmatpush.bf16.msra.mxu0 0
  %2456 = vmatpush.bf16.msra.mxu0 0
  %2457 = vmatpush.bf16.msra.mxu0 0
  %2458 = vmatpush.bf16.msra.mxu0 0
  %2459 = vmatpush.bf16.msra.mxu0 0
  %2460 = vmatpush.bf16.msra.mxu0 0
  %2461 = vmatpush.bf16.msra.mxu0 %v2449
  %2462 = vmatmul.bf16.gmra.mxu0 %v2452
  %v2463 = vpop.f32.mrf.mxu0
  %v2464 = vadd.f32 0.0, %v2463
  %v2465 = vpop.f32.mrf.mxu0
  %v2466 = vadd.f32 0.0, %v2465
  %2467 = vdwg.mxu0
  %2468 = vrot.lane.b32.xlu0 %v2401, 112
  %v2469 = vpop.permute.xlu0 %2468
  %2470 = vrot.lane.b32.xlu0 %v2401, 80
  %v2471 = vpop.permute.xlu0 %2470
  %v2473 = vsel %vm337, %v2469, 0
  %v2476 = vsel %vm337, %v2471, 0
  %2478 = vmatpush.bf16.xpose.msra.mxu0 0
  %2479 = vmatpush.bf16.xpose.msra.mxu0 0
  %2480 = vmatpush.bf16.xpose.msra.mxu0 0
  %2481 = vmatpush.bf16.xpose.msra.mxu0 0
  %2482 = vmatpush.bf16.xpose.msra.mxu0 0
  %2483 = vmatpush.bf16.xpose.msra.mxu0 0
  %2484 = vmatpush.bf16.xpose.msra.mxu0 0
  %2485 = vmatpush.bf16.xpose.msra.mxu0 %v2476
  %2486 = vmatmul.bf16.gmra.mxu0 %v2473
  %v2487 = vpop.f32.mrf.mxu0
  %v2488 = vadd.f32 0.0, %v2487
  %v2489 = vpop.f32.mrf.mxu0
  %v2490 = vadd.f32 0.0, %v2489
  %2491 = vdwg.mxu0
  %v2492 = vsel %vm337, %v2488, -inf
  %2493 = vmax.xlane.f32.xlu0 %v2492
  %v2494 = vpop.xlane.xlu0 %2493
  %v2495 = vsel %vm337, %v2490, -inf
  %2496 = vmax.xlane.f32.xlu0 %v2495
  %v2497 = vpop.xlane.xlu0 %2496
  %v2498 = vsub.f32 %v2488, %v2494
  %v2499 = vsub.f32 %v2490, %v2497
  %v2500 = vmul.f32 %v2498, 1.442695
  %v2501 = vpow.pop %v2500
  %v2502 = vmul.f32 %v2499, 1.442695
  %v2503 = vpow.pop %v2502
  %v2504 = vsel %vm337, %v2501, 0.0
  %2505 = vadd.xlane.f32.xlu0 %v2504
  %v2506 = vpop.xlane.xlu0 %2505
  %v2507 = vsel %vm337, %v2503, 0.0
  %2508 = vadd.xlane.f32.xlu0 %v2507
  %v2509 = vpop.xlane.xlu0 %2508
  %v2510 = vrcp.pop %v2506
  %v2511 = vrcp.pop %v2509
  %v2512 = vmul.f32 %v2501, %v2510
  %v2513 = vmul.f32 %v2503, %v2511
  %v2514 = vpack.c.bf16 %v2513, %v2512
  %2515 = vrot.lane.b32.xlu0 %v2401, 48
  %v2516 = vpop.permute.xlu0 %2515
  %v2519 = vsel %vm337, %v2514, 0
  %2521 = vmatpush.bf16.msra.mxu0 0
  %2522 = vmatpush.bf16.msra.mxu0 0
  %2523 = vmatpush.bf16.msra.mxu0 0
  %2524 = vmatpush.bf16.msra.mxu0 0
  %2525 = vmatpush.bf16.msra.mxu0 0
  %2526 = vmatpush.bf16.msra.mxu0 0
  %2527 = vmatpush.bf16.msra.mxu0 0
  %2528 = vmatpush.bf16.msra.mxu0 %v2516
  %2529 = vmatmul.bf16.gmra.mxu0 %v2519
  %v2530 = vpop.f32.mrf.mxu0
  %v2531 = vadd.f32 0.0, %v2530
  %v2532 = vpop.f32.mrf.mxu0
  %v2533 = vadd.f32 0.0, %v2532
  %2534 = vdwg.mxu0
  %v2535 = vld [vmem:[%s49] sm:$0xf]
  %v2536 = vld [vmem:[%s49 + $0x4] sm:$0xf]
  %v2537 = vld [vmem:[%s49 + $0x8] sm:$0xf]
  %v2538 = vld [vmem:[%s49 + $0xc] sm:$0xf]
  %v2539 = vpack.c.bf16 %v2466, %v2464
  %v2540 = vpack.c.bf16 %v2533, %v2531
  %v2543 = vunpack.c.l.b16 %v2537
  %v2544 = vunpack.c.l.b16 %v2538
  %v2545 = vpack.c.b16 %v2544, %v2543
  %v2548 = vsel %vm337, %v2540, 0
  %2550 = vmatpush.bf16.msra.mxu0 0
  %2551 = vmatpush.bf16.msra.mxu0 0
  %2552 = vmatpush.bf16.msra.mxu0 0
  %2553 = vmatpush.bf16.msra.mxu0 0
  %2554 = vmatpush.bf16.msra.mxu0 0
  %2555 = vmatpush.bf16.msra.mxu0 0
  %2556 = vmatpush.bf16.msra.mxu0 0
  %2557 = vmatpush.bf16.msra.mxu0 %v2545
  %2558 = vmatmul.bf16.gmra.mxu0 %v2548
  %v2559 = vpop.f32.mrf.mxu0
  %v2560 = vadd.f32 0.0, %v2559
  %v2561 = vpop.f32.mrf.mxu0
  %v2562 = vadd.f32 0.0, %v2561
  %2563 = vdwg.mxu0
  %v2566 = vunpack.c.l.b16 %v2535
  %v2567 = vunpack.c.l.b16 %v2536
  %v2568 = vpack.c.b16 %v2567, %v2566
  %v2571 = vsel %vm337, %v2539, 0
  %2573 = vmatpush.bf16.msra.mxu0 0
  %2574 = vmatpush.bf16.msra.mxu0 0
  %2575 = vmatpush.bf16.msra.mxu0 0
  %2576 = vmatpush.bf16.msra.mxu0 0
  %2577 = vmatpush.bf16.msra.mxu0 0
  %2578 = vmatpush.bf16.msra.mxu0 0
  %2579 = vmatpush.bf16.msra.mxu0 0
  %2580 = vmatpush.bf16.msra.mxu0 %v2568
  %2581 = vmatmul.bf16.gmra.mxu0 %v2571
  %v2582 = vpop.f32.mrf.mxu0
  %v2583 = vadd.f32 %v2560, %v2582
  %v2584 = vpop.f32.mrf.mxu0
  %v2585 = vadd.f32 %v2562, %v2584
  %2586 = vdwg.mxu0
  %v2587 = vld [vmem:[%s51] sm:$0x1]
  %v2589 = vperm.slane %v2587, 0
  %v2591 = vadd.f32 %v2583, %v2589
  %v2592 = vadd.f32 %v2585, %v2589
  %v2593 = vadd.f32 %v2305, %v2591
  %v2594 = vadd.f32 %v2306, %v2592
  %v2595 = vld [vmem:[%s53] sm:$0x1]
  %v2596 = vld [vmem:[%s55] sm:$0x1]
  %v2597 = vsel %vm196, %v2593, 0.0
  %2598 = vadd.xlane.f32.xlu0 %v2597
  %v2599 = vpop.xlane.xlu0 %2598
  %v2600 = vsel %vm196, %v2594, 0.0
  %2601 = vadd.xlane.f32.xlu0 %v2600
  %v2602 = vpop.xlane.xlu0 %2601
  %v2603 = vmul.f32 %v2599, %v213
  %v2604 = vmul.f32 %v2602, %v213
  %v2605 = vsub.f32 %v2593, %v2603
  %v2606 = vsub.f32 %v2594, %v2604
  %v2607 = vmul.f32 %v2605, %v2605
  %v2608 = vmul.f32 %v2606, %v2606
  %v2609 = vsel %vm196, %v2607, 0.0
  %2610 = vadd.xlane.f32.xlu0 %v2609
  %v2611 = vpop.xlane.xlu0 %2610
  %v2612 = vsel %vm196, %v2608, 0.0
  %2613 = vadd.xlane.f32.xlu0 %v2612
  %v2614 = vpop.xlane.xlu0 %2613
  %v2615 = vmul.f32 %v2611, %v213
  %v2616 = vmul.f32 %v2614, %v213
  %v2617 = vadd.f32 %v2615, 1e-06
  %v2618 = vadd.f32 %v2616, 1e-06
  %v2619 = vrsqrt.pop %v2617
  %v2620 = vmul.f32 %v2619, %v2617
  %v2621 = vmul.f32 %v2620, %v2619
  %v2622 = vmul.f32 0.5, %v2621
  %v2623 = vsub.f32 1.5, %v2622
  %v2624 = vmul.f32 %v2619, %v2623
  %vm2625 = vweird.f32 %v2617
  %vm2626 = vweird.f32 %v2619
  %vm2627 = vmor %vm2625, %vm2626
  %v2628 = vsel %vm2627, %v2619, %v2624
  %v2629 = vrsqrt.pop %v2618
  %v2630 = vmul.f32 %v2629, %v2618
  %v2631 = vmul.f32 %v2630, %v2629
  %v2632 = vmul.f32 0.5, %v2631
  %v2633 = vsub.f32 1.5, %v2632
  %v2634 = vmul.f32 %v2629, %v2633
  %vm2635 = vweird.f32 %v2618
  %vm2636 = vweird.f32 %v2629
  %vm2637 = vmor %vm2635, %vm2636
  %v2638 = vsel %vm2637, %v2629, %v2634
  %v2639 = vmul.f32 %v2605, %v2628
  %v2640 = vmul.f32 %v2606, %v2638
  %v2642 = vperm.slane %v2595, 0
  %v2644 = vmul.f32 %v2639, %v2642
  %v2645 = vmul.f32 %v2640, %v2642
  %v2647 = vperm.slane %v2596, 0
  %v2649 = vadd.f32 %v2644, %v2647
  %v2650 = vadd.f32 %v2645, %v2647
  %v2651 = vpack.c.bf16 %v2650, %v2649
  %v2652 = vld [vmem:[%s57] sm:$0xf]
  %v2653 = vld [vmem:[%s57 + $0x4] sm:$0xf]
  %v2654 = vld [vmem:[%s57 + $0x8] sm:$0xf]
  %v2655 = vld [vmem:[%s57 + $0xc] sm:$0xf]
  %v2656 = vld [vmem:[%s59] sm:$0x1]
  %v2658 = vperm.slane %v2656, 0
  %v2664 = vunpack.c.l.b16 %v2652
  %v2665 = vunpack.c.l.b16 %v2653
  %v2666 = vunpack.c.l.b16 %v2654
  %v2667 = vunpack.c.l.b16 %v2655
  %v2668 = vpack.c.b16 %v2665, %v2664
  %v2669 = vpack.c.b16 %v2667, %v2666
  %v2673 = vsel %vm196, %v2651, 0
  %2675 = vmatpush.bf16.msra.mxu0 0
  %2676 = vmatpush.bf16.msra.mxu0 0
  %2677 = vmatpush.bf16.msra.mxu0 0
  %2678 = vmatpush.bf16.msra.mxu0 0
  %2679 = vmatpush.bf16.msra.mxu0 0
  %2680 = vmatpush.bf16.msra.mxu0 0
  %2681 = vmatpush.bf16.msra.mxu0 %v2669
  %2682 = vmatpush.bf16.msra.mxu0 %v2668
  %2683 = vmatmul.bf16.gmra.mxu0 %v2673
  %v2684 = vpop.f32.mrf.mxu0
  %v2685 = vadd.f32 %v2658, %v2684
  %v2686 = vpop.f32.mrf.mxu0
  %v2687 = vadd.f32 %v2658, %v2686
  %2688 = vdwg.mxu0
  %v2689 = vmul.f32 %v2685, %v2685
  %v2690 = vmul.f32 %v2687, %v2687
  %v2691 = vmul.f32 %v2685, %v2689
  %v2692 = vmul.f32 %v2687, %v2690
  %v2693 = vmul.f32 %v2691, 0.044715
  %v2694 = vmul.f32 %v2692, 0.044715
  %v2695 = vadd.f32 %v2685, %v2693
  %v2696 = vadd.f32 %v2687, %v2694
  %v2697 = vmul.f32 %v2695, 0.7978846
  %v2698 = vmul.f32 %v2696, 0.7978846
  %v2699 = vtanh.pop %v2697
  %v2700 = vtanh.pop %v2698
  %v2701 = vadd.f32 %v2699, 1.0
  %v2702 = vadd.f32 %v2700, 1.0
  %v2703 = vmul.f32 %v2701, 0.5
  %v2704 = vmul.f32 %v2702, 0.5
  %v2705 = vmul.f32 %v2685, %v2703
  %v2706 = vmul.f32 %v2687, %v2704
  %v2707 = vpack.c.bf16 %v2706, %v2705
  %v2708 = vld [vmem:[%s61] sm:$0xf]
  %v2709 = vld [vmem:[%s61 + $0x4] sm:$0xf]
  %v2710 = vld [vmem:[%s61 + $0x8] sm:$0xf]
  %v2711 = vld [vmem:[%s61 + $0xc] sm:$0xf]
  %v2712 = vld [vmem:[%s61 + $0x10] sm:$0xf]
  %v2713 = vld [vmem:[%s61 + $0x14] sm:$0xf]
  %v2714 = vld [vmem:[%s61 + $0x18] sm:$0xf]
  %v2715 = vld [vmem:[%s61 + $0x1c] sm:$0xf]
  %v2716 = vld [vmem:[%s61 + $0x20] sm:$0xf]
  %v2717 = vld [vmem:[%s61 + $0x24] sm:$0xf]
  %v2718 = vld [vmem:[%s61 + $0x28] sm:$0xf]
  %v2719 = vld [vmem:[%s61 + $0x2c] sm:$0xf]
  %v2720 = vld [vmem:[%s61 + $0x30] sm:$0xf]
  %v2721 = vld [vmem:[%s61 + $0x34] sm:$0xf]
  %v2722 = vld [vmem:[%s61 + $0x38] sm:$0xf]
  %v2723 = vld [vmem:[%s61 + $0x3c] sm:$0xf]
  %v2724 = vld [vmem:[%s63] sm:$0x1]
  %v2726 = vperm.slane %v2724, 0
  %v2744 = vunpack.c.l.b16 %v2708
  %v2745 = vunpack.c.l.b16 %v2709
  %v2746 = vunpack.c.l.b16 %v2710
  %v2747 = vunpack.c.l.b16 %v2711
  %v2748 = vunpack.c.l.b16 %v2712
  %v2749 = vunpack.c.l.b16 %v2713
  %v2750 = vunpack.c.l.b16 %v2714
  %v2751 = vunpack.c.l.b16 %v2715
  %v2752 = vunpack.c.l.b16 %v2716
  %v2753 = vunpack.c.l.b16 %v2717
  %v2754 = vunpack.c.l.b16 %v2718
  %v2755 = vunpack.c.l.b16 %v2719
  %v2756 = vunpack.c.l.b16 %v2720
  %v2757 = vunpack.c.l.b16 %v2721
  %v2758 = vunpack.c.l.b16 %v2722
  %v2759 = vunpack.c.l.b16 %v2723
  %v2760 = vpack.c.b16 %v2745, %v2744
  %v2761 = vpack.c.b16 %v2747, %v2746
  %v2762 = vpack.c.b16 %v2749, %v2748
  %v2763 = vpack.c.b16 %v2751, %v2750
  %v2764 = vpack.c.b16 %v2753, %v2752
  %v2765 = vpack.c.b16 %v2755, %v2754
  %v2766 = vpack.c.b16 %v2757, %v2756
  %v2767 = vpack.c.b16 %v2759, %v2758
  %2776 = vmatpush.bf16.msra.mxu0 %v2767
  %2777 = vmatpush.bf16.msra.mxu0 %v2766
  %2778 = vmatpush.bf16.msra.mxu0 %v2765
  %2779 = vmatpush.bf16.msra.mxu0 %v2764
  %2780 = vmatpush.bf16.msra.mxu0 %v2763
  %2781 = vmatpush.bf16.msra.mxu0 %v2762
  %2782 = vmatpush.bf16.msra.mxu0 %v2761
  %2783 = vmatpush.bf16.msra.mxu0 %v2760
  %2784 = vmatmul.bf16.gmra.mxu0 %v2707
  %v2785 = vpop.f32.mrf.mxu0
  %v2786 = vadd.f32 %v2726, %v2785
  %v2787 = vpop.f32.mrf.mxu0
  %v2788 = vadd.f32 %v2726, %v2787
  %2789 = vdwg.mxu0
  %v2790 = vadd.f32 %v2593, %v2786
  %v2791 = vadd.f32 %v2594, %v2788
  %2794 = vrot.lane.b32.xlu0 %v2790, 96
  %v2795 = vpop.permute.xlu0 %2794
  %2796 = vrot.lane.b32.xlu0 %v2791, 96
  %v2797 = vpop.permute.xlu0 %2796
  %vm2800 = vcmask 1048320
  %2801 = vst.msk [vmem:[%s65] sm:$0xff] %vm2800, %v2795
  %2802 = vst.msk [vmem:[%s65 + $0x10] sm:$0xff] %vm2800, %v2797
  %s2803 = scalar_lea.vmem %s41, 1
  %v2804 = vld [vmem:[%s2803] sm:$0x1]
  %s2805 = scalar_lea.vmem %s43, 1
  %v2806 = vld [vmem:[%s2805] sm:$0x1]
  %v2807 = vsel %vm196, %v2790, 0.0
  %2808 = vadd.xlane.f32.xlu0 %v2807
  %v2809 = vpop.xlane.xlu0 %2808
  %v2810 = vsel %vm196, %v2791, 0.0
  %2811 = vadd.xlane.f32.xlu0 %v2810
  %v2812 = vpop.xlane.xlu0 %2811
  %v2813 = vmul.f32 %v2809, %v213
  %v2814 = vmul.f32 %v2812, %v213
  %v2815 = vsub.f32 %v2790, %v2813
  %v2816 = vsub.f32 %v2791, %v2814
  %v2817 = vmul.f32 %v2815, %v2815
  %v2818 = vmul.f32 %v2816, %v2816
  %v2819 = vsel %vm196, %v2817, 0.0
  %2820 = vadd.xlane.f32.xlu0 %v2819
  %v2821 = vpop.xlane.xlu0 %2820
  %v2822 = vsel %vm196, %v2818, 0.0
  %2823 = vadd.xlane.f32.xlu0 %v2822
  %v2824 = vpop.xlane.xlu0 %2823
  %v2825 = vmul.f32 %v2821, %v213
  %v2826 = vmul.f32 %v2824, %v213
  %v2827 = vadd.f32 %v2825, 1e-06
  %v2828 = vadd.f32 %v2826, 1e-06
  %v2829 = vrsqrt.pop %v2827
  %v2830 = vmul.f32 %v2829, %v2827
  %v2831 = vmul.f32 %v2830, %v2829
  %v2832 = vmul.f32 0.5, %v2831
  %v2833 = vsub.f32 1.5, %v2832
  %v2834 = vmul.f32 %v2829, %v2833
  %vm2835 = vweird.f32 %v2827
  %vm2836 = vweird.f32 %v2829
  %vm2837 = vmor %vm2835, %vm2836
  %v2838 = vsel %vm2837, %v2829, %v2834
  %v2839 = vrsqrt.pop %v2828
  %v2840 = vmul.f32 %v2839, %v2828
  %v2841 = vmul.f32 %v2840, %v2839
  %v2842 = vmul.f32 0.5, %v2841
  %v2843 = vsub.f32 1.5, %v2842
  %v2844 = vmul.f32 %v2839, %v2843
  %vm2845 = vweird.f32 %v2828
  %vm2846 = vweird.f32 %v2839
  %vm2847 = vmor %vm2845, %vm2846
  %v2848 = vsel %vm2847, %v2839, %v2844
  %v2849 = vmul.f32 %v2815, %v2838
  %v2850 = vmul.f32 %v2816, %v2848
  %v2852 = vperm.slane %v2804, 0
  %v2854 = vmul.f32 %v2849, %v2852
  %v2855 = vmul.f32 %v2850, %v2852
  %v2857 = vperm.slane %v2806, 0
  %v2859 = vadd.f32 %v2854, %v2857
  %v2860 = vadd.f32 %v2855, %v2857
  %v2861 = vpack.c.bf16 %v2860, %v2859
  %s2862 = scalar_lea.vmem %s45, 16
  %v2863 = vld [vmem:[%s2862] sm:$0xf]
  %v2864 = vld [vmem:[%s2862 + $0x4] sm:$0xf]
  %v2865 = vld [vmem:[%s2862 + $0x8] sm:$0xf]
  %v2866 = vld [vmem:[%s2862 + $0xc] sm:$0xf]
  %s2867 = scalar_lea.vmem %s47, 1
  %v2868 = vld [vmem:[%s2867] sm:$0x1]
  %v2870 = vperm.slane %v2868, 0
  %v2876 = vunpack.c.l.b16 %v2863
  %v2877 = vunpack.c.l.b16 %v2864
  %v2878 = vunpack.c.l.b16 %v2865
  %v2879 = vunpack.c.l.b16 %v2866
  %v2880 = vpack.c.b16 %v2877, %v2876
  %v2881 = vpack.c.b16 %v2879, %v2878
  %v2885 = vsel %vm196, %v2861, 0
  %2887 = vmatpush.bf16.msra.mxu0 0
  %2888 = vmatpush.bf16.msra.mxu0 0
  %2889 = vmatpush.bf16.msra.mxu0 0
  %2890 = vmatpush.bf16.msra.mxu0 0
  %2891 = vmatpush.bf16.msra.mxu0 0
  %2892 = vmatpush.bf16.msra.mxu0 0
  %2893 = vmatpush.bf16.msra.mxu0 %v2881
  %2894 = vmatpush.bf16.msra.mxu0 %v2880
  %2895 = vmatmul.bf16.gmra.mxu0 %v2885
  %v2896 = vpop.f32.mrf.mxu0
  %v2897 = vadd.f32 %v2870, %v2896
  %v2898 = vpop.f32.mrf.mxu0
  %v2899 = vadd.f32 %v2870, %v2898
  %2900 = vdwg.mxu0
  %v2901 = vpack.c.bf16 %v2899, %v2897
  %2903 = vrot.lane.b32.xlu0 %v2901, 96
  %v2904 = vpop.permute.xlu0 %2903
  %v2906 = vsel %vm337, %v2901, 0
  %v2909 = vsel %vm337, %v2904, 0
  %2911 = vmatpush.bf16.xpose.msra.mxu0 0
  %2912 = vmatpush.bf16.xpose.msra.mxu0 0
  %2913 = vmatpush.bf16.xpose.msra.mxu0 0
  %2914 = vmatpush.bf16.xpose.msra.mxu0 0
  %2915 = vmatpush.bf16.xpose.msra.mxu0 0
  %2916 = vmatpush.bf16.xpose.msra.mxu0 0
  %2917 = vmatpush.bf16.xpose.msra.mxu0 0
  %2918 = vmatpush.bf16.xpose.msra.mxu0 %v2909
  %2919 = vmatmul.bf16.gmra.mxu0 %v2906
  %v2920 = vpop.f32.mrf.mxu0
  %v2921 = vadd.f32 0.0, %v2920
  %v2922 = vpop.f32.mrf.mxu0
  %v2923 = vadd.f32 0.0, %v2922
  %2924 = vdwg.mxu0
  %v2925 = vsel %vm337, %v2921, -inf
  %2926 = vmax.xlane.f32.xlu0 %v2925
  %v2927 = vpop.xlane.xlu0 %2926
  %v2928 = vsel %vm337, %v2923, -inf
  %2929 = vmax.xlane.f32.xlu0 %v2928
  %v2930 = vpop.xlane.xlu0 %2929
  %v2931 = vsub.f32 %v2921, %v2927
  %v2932 = vsub.f32 %v2923, %v2930
  %v2933 = vmul.f32 %v2931, 1.442695
  %v2934 = vpow.pop %v2933
  %v2935 = vmul.f32 %v2932, 1.442695
  %v2936 = vpow.pop %v2935
  %v2937 = vsel %vm337, %v2934, 0.0
  %2938 = vadd.xlane.f32.xlu0 %v2937
  %v2939 = vpop.xlane.xlu0 %2938
  %v2940 = vsel %vm337, %v2936, 0.0
  %2941 = vadd.xlane.f32.xlu0 %v2940
  %v2942 = vpop.xlane.xlu0 %2941
  %v2943 = vrcp.pop %v2939
  %v2944 = vrcp.pop %v2942
  %v2945 = vmul.f32 %v2934, %v2943
  %v2946 = vmul.f32 %v2936, %v2944
  %v2947 = vpack.c.bf16 %v2946, %v2945
  %2948 = vrot.lane.b32.xlu0 %v2901, 64
  %v2949 = vpop.permute.xlu0 %2948
  %v2952 = vsel %vm337, %v2947, 0
  %2954 = vmatpush.bf16.msra.mxu0 0
  %2955 = vmatpush.bf16.msra.mxu0 0
  %2956 = vmatpush.bf16.msra.mxu0 0
  %2957 = vmatpush.bf16.msra.mxu0 0
  %2958 = vmatpush.bf16.msra.mxu0 0
  %2959 = vmatpush.bf16.msra.mxu0 0
  %2960 = vmatpush.bf16.msra.mxu0 0
  %2961 = vmatpush.bf16.msra.mxu0 %v2949
  %2962 = vmatmul.bf16.gmra.mxu0 %v2952
  %v2963 = vpop.f32.mrf.mxu0
  %v2964 = vadd.f32 0.0, %v2963
  %v2965 = vpop.f32.mrf.mxu0
  %v2966 = vadd.f32 0.0, %v2965
  %2967 = vdwg.mxu0
  %2968 = vrot.lane.b32.xlu0 %v2901, 112
  %v2969 = vpop.permute.xlu0 %2968
  %2970 = vrot.lane.b32.xlu0 %v2901, 80
  %v2971 = vpop.permute.xlu0 %2970
  %v2973 = vsel %vm337, %v2969, 0
  %v2976 = vsel %vm337, %v2971, 0
  %2978 = vmatpush.bf16.xpose.msra.mxu0 0
  %2979 = vmatpush.bf16.xpose.msra.mxu0 0
  %2980 = vmatpush.bf16.xpose.msra.mxu0 0
  %2981 = vmatpush.bf16.xpose.msra.mxu0 0
  %2982 = vmatpush.bf16.xpose.msra.mxu0 0
  %2983 = vmatpush.bf16.xpose.msra.mxu0 0
  %2984 = vmatpush.bf16.xpose.msra.mxu0 0
  %2985 = vmatpush.bf16.xpose.msra.mxu0 %v2976
  %2986 = vmatmul.bf16.gmra.mxu0 %v2973
  %v2987 = vpop.f32.mrf.mxu0
  %v2988 = vadd.f32 0.0, %v2987
  %v2989 = vpop.f32.mrf.mxu0
  %v2990 = vadd.f32 0.0, %v2989
  %2991 = vdwg.mxu0
  %v2992 = vsel %vm337, %v2988, -inf
  %2993 = vmax.xlane.f32.xlu0 %v2992
  %v2994 = vpop.xlane.xlu0 %2993
  %v2995 = vsel %vm337, %v2990, -inf
  %2996 = vmax.xlane.f32.xlu0 %v2995
  %v2997 = vpop.xlane.xlu0 %2996
  %v2998 = vsub.f32 %v2988, %v2994
  %v2999 = vsub.f32 %v2990, %v2997
  %v3000 = vmul.f32 %v2998, 1.442695
  %v3001 = vpow.pop %v3000
  %v3002 = vmul.f32 %v2999, 1.442695
  %v3003 = vpow.pop %v3002
  %v3004 = vsel %vm337, %v3001, 0.0
  %3005 = vadd.xlane.f32.xlu0 %v3004
  %v3006 = vpop.xlane.xlu0 %3005
  %v3007 = vsel %vm337, %v3003, 0.0
  %3008 = vadd.xlane.f32.xlu0 %v3007
  %v3009 = vpop.xlane.xlu0 %3008
  %v3010 = vrcp.pop %v3006
  %v3011 = vrcp.pop %v3009
  %v3012 = vmul.f32 %v3001, %v3010
  %v3013 = vmul.f32 %v3003, %v3011
  %v3014 = vpack.c.bf16 %v3013, %v3012
  %3015 = vrot.lane.b32.xlu0 %v2901, 48
  %v3016 = vpop.permute.xlu0 %3015
  %v3019 = vsel %vm337, %v3014, 0
  %3021 = vmatpush.bf16.msra.mxu0 0
  %3022 = vmatpush.bf16.msra.mxu0 0
  %3023 = vmatpush.bf16.msra.mxu0 0
  %3024 = vmatpush.bf16.msra.mxu0 0
  %3025 = vmatpush.bf16.msra.mxu0 0
  %3026 = vmatpush.bf16.msra.mxu0 0
  %3027 = vmatpush.bf16.msra.mxu0 0
  %3028 = vmatpush.bf16.msra.mxu0 %v3016
  %3029 = vmatmul.bf16.gmra.mxu0 %v3019
  %v3030 = vpop.f32.mrf.mxu0
  %v3031 = vadd.f32 0.0, %v3030
  %v3032 = vpop.f32.mrf.mxu0
  %v3033 = vadd.f32 0.0, %v3032
  %3034 = vdwg.mxu0
  %s3035 = scalar_lea.vmem %s49, 16
  %v3036 = vld [vmem:[%s3035] sm:$0xf]
  %v3037 = vld [vmem:[%s3035 + $0x4] sm:$0xf]
  %v3038 = vld [vmem:[%s3035 + $0x8] sm:$0xf]
  %v3039 = vld [vmem:[%s3035 + $0xc] sm:$0xf]
  %v3040 = vpack.c.bf16 %v2966, %v2964
  %v3041 = vpack.c.bf16 %v3033, %v3031
  %v3044 = vunpack.c.l.b16 %v3038
  %v3045 = vunpack.c.l.b16 %v3039
  %v3046 = vpack.c.b16 %v3045, %v3044
  %v3049 = vsel %vm337, %v3041, 0
  %3051 = vmatpush.bf16.msra.mxu0 0
  %3052 = vmatpush.bf16.msra.mxu0 0
  %3053 = vmatpush.bf16.msra.mxu0 0
  %3054 = vmatpush.bf16.msra.mxu0 0
  %3055 = vmatpush.bf16.msra.mxu0 0
  %3056 = vmatpush.bf16.msra.mxu0 0
  %3057 = vmatpush.bf16.msra.mxu0 0
  %3058 = vmatpush.bf16.msra.mxu0 %v3046
  %3059 = vmatmul.bf16.gmra.mxu0 %v3049
  %v3060 = vpop.f32.mrf.mxu0
  %v3061 = vadd.f32 0.0, %v3060
  %v3062 = vpop.f32.mrf.mxu0
  %v3063 = vadd.f32 0.0, %v3062
  %3064 = vdwg.mxu0
  %v3067 = vunpack.c.l.b16 %v3036
  %v3068 = vunpack.c.l.b16 %v3037
  %v3069 = vpack.c.b16 %v3068, %v3067
  %v3072 = vsel %vm337, %v3040, 0
  %3074 = vmatpush.bf16.msra.mxu0 0
  %3075 = vmatpush.bf16.msra.mxu0 0
  %3076 = vmatpush.bf16.msra.mxu0 0
  %3077 = vmatpush.bf16.msra.mxu0 0
  %3078 = vmatpush.bf16.msra.mxu0 0
  %3079 = vmatpush.bf16.msra.mxu0 0
  %3080 = vmatpush.bf16.msra.mxu0 0
  %3081 = vmatpush.bf16.msra.mxu0 %v3069
  %3082 = vmatmul.bf16.gmra.mxu0 %v3072
  %v3083 = vpop.f32.mrf.mxu0
  %v3084 = vadd.f32 %v3061, %v3083
  %v3085 = vpop.f32.mrf.mxu0
  %v3086 = vadd.f32 %v3063, %v3085
  %3087 = vdwg.mxu0
  %s3088 = scalar_lea.vmem %s51, 1
  %v3089 = vld [vmem:[%s3088] sm:$0x1]
  %v3091 = vperm.slane %v3089, 0
  %v3093 = vadd.f32 %v3084, %v3091
  %v3094 = vadd.f32 %v3086, %v3091
  %v3095 = vadd.f32 %v2790, %v3093
  %v3096 = vadd.f32 %v2791, %v3094
  %s3097 = scalar_lea.vmem %s53, 1
  %v3098 = vld [vmem:[%s3097] sm:$0x1]
  %s3099 = scalar_lea.vmem %s55, 1
  %v3100 = vld [vmem:[%s3099] sm:$0x1]
  %v3101 = vsel %vm196, %v3095, 0.0
  %3102 = vadd.xlane.f32.xlu0 %v3101
  %v3103 = vpop.xlane.xlu0 %3102
  %v3104 = vsel %vm196, %v3096, 0.0
  %3105 = vadd.xlane.f32.xlu0 %v3104
  %v3106 = vpop.xlane.xlu0 %3105
  %v3107 = vmul.f32 %v3103, %v213
  %v3108 = vmul.f32 %v3106, %v213
  %v3109 = vsub.f32 %v3095, %v3107
  %v3110 = vsub.f32 %v3096, %v3108
  %v3111 = vmul.f32 %v3109, %v3109
  %v3112 = vmul.f32 %v3110, %v3110
  %v3113 = vsel %vm196, %v3111, 0.0
  %3114 = vadd.xlane.f32.xlu0 %v3113
  %v3115 = vpop.xlane.xlu0 %3114
  %v3116 = vsel %vm196, %v3112, 0.0
  %3117 = vadd.xlane.f32.xlu0 %v3116
  %v3118 = vpop.xlane.xlu0 %3117
  %v3119 = vmul.f32 %v3115, %v213
  %v3120 = vmul.f32 %v3118, %v213
  %v3121 = vadd.f32 %v3119, 1e-06
  %v3122 = vadd.f32 %v3120, 1e-06
  %v3123 = vrsqrt.pop %v3121
  %v3124 = vmul.f32 %v3123, %v3121
  %v3125 = vmul.f32 %v3124, %v3123
  %v3126 = vmul.f32 0.5, %v3125
  %v3127 = vsub.f32 1.5, %v3126
  %v3128 = vmul.f32 %v3123, %v3127
  %vm3129 = vweird.f32 %v3121
  %vm3130 = vweird.f32 %v3123
  %vm3131 = vmor %vm3129, %vm3130
  %v3132 = vsel %vm3131, %v3123, %v3128
  %v3133 = vrsqrt.pop %v3122
  %v3134 = vmul.f32 %v3133, %v3122
  %v3135 = vmul.f32 %v3134, %v3133
  %v3136 = vmul.f32 0.5, %v3135
  %v3137 = vsub.f32 1.5, %v3136
  %v3138 = vmul.f32 %v3133, %v3137
  %vm3139 = vweird.f32 %v3122
  %vm3140 = vweird.f32 %v3133
  %vm3141 = vmor %vm3139, %vm3140
  %v3142 = vsel %vm3141, %v3133, %v3138
  %v3143 = vmul.f32 %v3109, %v3132
  %v3144 = vmul.f32 %v3110, %v3142
  %v3146 = vperm.slane %v3098, 0
  %v3148 = vmul.f32 %v3143, %v3146
  %v3149 = vmul.f32 %v3144, %v3146
  %v3151 = vperm.slane %v3100, 0
  %v3153 = vadd.f32 %v3148, %v3151
  %v3154 = vadd.f32 %v3149, %v3151
  %v3155 = vpack.c.bf16 %v3154, %v3153
  %s3156 = scalar_lea.vmem %s57, 16
  %v3157 = vld [vmem:[%s3156] sm:$0xf]
  %v3158 = vld [vmem:[%s3156 + $0x4] sm:$0xf]
  %v3159 = vld [vmem:[%s3156 + $0x8] sm:$0xf]
  %v3160 = vld [vmem:[%s3156 + $0xc] sm:$0xf]
  %s3161 = scalar_lea.vmem %s59, 1
  %v3162 = vld [vmem:[%s3161] sm:$0x1]
  %v3164 = vperm.slane %v3162, 0
  %v3170 = vunpack.c.l.b16 %v3157
  %v3171 = vunpack.c.l.b16 %v3158
  %v3172 = vunpack.c.l.b16 %v3159
  %v3173 = vunpack.c.l.b16 %v3160
  %v3174 = vpack.c.b16 %v3171, %v3170
  %v3175 = vpack.c.b16 %v3173, %v3172
  %v3179 = vsel %vm196, %v3155, 0
  %3181 = vmatpush.bf16.msra.mxu0 0
  %3182 = vmatpush.bf16.msra.mxu0 0
  %3183 = vmatpush.bf16.msra.mxu0 0
  %3184 = vmatpush.bf16.msra.mxu0 0
  %3185 = vmatpush.bf16.msra.mxu0 0
  %3186 = vmatpush.bf16.msra.mxu0 0
  %3187 = vmatpush.bf16.msra.mxu0 %v3175
  %3188 = vmatpush.bf16.msra.mxu0 %v3174
  %3189 = vmatmul.bf16.gmra.mxu0 %v3179
  %v3190 = vpop.f32.mrf.mxu0
  %v3191 = vadd.f32 %v3164, %v3190
  %v3192 = vpop.f32.mrf.mxu0
  %v3193 = vadd.f32 %v3164, %v3192
  %3194 = vdwg.mxu0
  %v3195 = vmul.f32 %v3191, %v3191
  %v3196 = vmul.f32 %v3193, %v3193
  %v3197 = vmul.f32 %v3191, %v3195
  %v3198 = vmul.f32 %v3193, %v3196
  %v3199 = vmul.f32 %v3197, 0.044715
  %v3200 = vmul.f32 %v3198, 0.044715
  %v3201 = vadd.f32 %v3191, %v3199
  %v3202 = vadd.f32 %v3193, %v3200
  %v3203 = vmul.f32 %v3201, 0.7978846
  %v3204 = vmul.f32 %v3202, 0.7978846
  %v3205 = vtanh.pop %v3203
  %v3206 = vtanh.pop %v3204
  %v3207 = vadd.f32 %v3205, 1.0
  %v3208 = vadd.f32 %v3206, 1.0
  %v3209 = vmul.f32 %v3207, 0.5
  %v3210 = vmul.f32 %v3208, 0.5
  %v3211 = vmul.f32 %v3191, %v3209
  %v3212 = vmul.f32 %v3193, %v3210
  %v3213 = vpack.c.bf16 %v3212, %v3211
  %s3214 = scalar_lea.vmem %s61, 64
  %v3215 = vld [vmem:[%s3214] sm:$0xf]
  %v3216 = vld [vmem:[%s3214 + $0x4] sm:$0xf]
  %v3217 = vld [vmem:[%s3214 + $0x8] sm:$0xf]
  %v3218 = vld [vmem:[%s3214 + $0xc] sm:$0xf]
  %v3219 = vld [vmem:[%s3214 + $0x10] sm:$0xf]
  %v3220 = vld [vmem:[%s3214 + $0x14] sm:$0xf]
  %v3221 = vld [vmem:[%s3214 + $0x18] sm:$0xf]
  %v3222 = vld [vmem:[%s3214 + $0x1c] sm:$0xf]
  %v3223 = vld [vmem:[%s3214 + $0x20] sm:$0xf]
  %v3224 = vld [vmem:[%s3214 + $0x24] sm:$0xf]
  %v3225 = vld [vmem:[%s3214 + $0x28] sm:$0xf]
  %v3226 = vld [vmem:[%s3214 + $0x2c] sm:$0xf]
  %v3227 = vld [vmem:[%s3214 + $0x30] sm:$0xf]
  %v3228 = vld [vmem:[%s3214 + $0x34] sm:$0xf]
  %v3229 = vld [vmem:[%s3214 + $0x38] sm:$0xf]
  %v3230 = vld [vmem:[%s3214 + $0x3c] sm:$0xf]
  %s3231 = scalar_lea.vmem %s63, 1
  %v3232 = vld [vmem:[%s3231] sm:$0x1]
  %v3234 = vperm.slane %v3232, 0
  %v3252 = vunpack.c.l.b16 %v3215
  %v3253 = vunpack.c.l.b16 %v3216
  %v3254 = vunpack.c.l.b16 %v3217
  %v3255 = vunpack.c.l.b16 %v3218
  %v3256 = vunpack.c.l.b16 %v3219
  %v3257 = vunpack.c.l.b16 %v3220
  %v3258 = vunpack.c.l.b16 %v3221
  %v3259 = vunpack.c.l.b16 %v3222
  %v3260 = vunpack.c.l.b16 %v3223
  %v3261 = vunpack.c.l.b16 %v3224
  %v3262 = vunpack.c.l.b16 %v3225
  %v3263 = vunpack.c.l.b16 %v3226
  %v3264 = vunpack.c.l.b16 %v3227
  %v3265 = vunpack.c.l.b16 %v3228
  %v3266 = vunpack.c.l.b16 %v3229
  %v3267 = vunpack.c.l.b16 %v3230
  %v3268 = vpack.c.b16 %v3253, %v3252
  %v3269 = vpack.c.b16 %v3255, %v3254
  %v3270 = vpack.c.b16 %v3257, %v3256
  %v3271 = vpack.c.b16 %v3259, %v3258
  %v3272 = vpack.c.b16 %v3261, %v3260
  %v3273 = vpack.c.b16 %v3263, %v3262
  %v3274 = vpack.c.b16 %v3265, %v3264
  %v3275 = vpack.c.b16 %v3267, %v3266
  %3284 = vmatpush.bf16.msra.mxu0 %v3275
  %3285 = vmatpush.bf16.msra.mxu0 %v3274
  %3286 = vmatpush.bf16.msra.mxu0 %v3273
  %3287 = vmatpush.bf16.msra.mxu0 %v3272
  %3288 = vmatpush.bf16.msra.mxu0 %v3271
  %3289 = vmatpush.bf16.msra.mxu0 %v3270
  %3290 = vmatpush.bf16.msra.mxu0 %v3269
  %3291 = vmatpush.bf16.msra.mxu0 %v3268
  %3292 = vmatmul.bf16.gmra.mxu0 %v3213
  %v3293 = vpop.f32.mrf.mxu0
  %v3294 = vadd.f32 %v3234, %v3293
  %v3295 = vpop.f32.mrf.mxu0
  %v3296 = vadd.f32 %v3234, %v3295
  %3297 = vdwg.mxu0
  %v3298 = vadd.f32 %v3095, %v3294
  %v3299 = vadd.f32 %v3096, %v3296
  %3300 = vst.msk [vmem:[%s65 + $0x8] sm:$0xff] %vm196, %v3298
  %3301 = vst.msk [vmem:[%s65 + $0x18] sm:$0xff] %vm196, %v3299
  %s3302 = scalar_lea.vmem %s41, 2
  %v3303 = vld [vmem:[%s3302] sm:$0x1]
  %s3304 = scalar_lea.vmem %s43, 2
  %v3305 = vld [vmem:[%s3304] sm:$0x1]
  %v3306 = vsel %vm196, %v3298, 0.0
  %3307 = vadd.xlane.f32.xlu0 %v3306
  %v3308 = vpop.xlane.xlu0 %3307
  %v3309 = vsel %vm196, %v3299, 0.0
  %3310 = vadd.xlane.f32.xlu0 %v3309
  %v3311 = vpop.xlane.xlu0 %3310
  %v3312 = vmul.f32 %v3308, %v213
  %v3313 = vmul.f32 %v3311, %v213
  %v3314 = vsub.f32 %v3298, %v3312
  %v3315 = vsub.f32 %v3299, %v3313
  %v3316 = vmul.f32 %v3314, %v3314
  %v3317 = vmul.f32 %v3315, %v3315
  %v3318 = vsel %vm196, %v3316, 0.0
  %3319 = vadd.xlane.f32.xlu0 %v3318
  %v3320 = vpop.xlane.xlu0 %3319
  %v3321 = vsel %vm196, %v3317, 0.0
  %3322 = vadd.xlane.f32.xlu0 %v3321
  %v3323 = vpop.xlane.xlu0 %3322
  %v3324 = vmul.f32 %v3320, %v213
  %v3325 = vmul.f32 %v3323, %v213
  %v3326 = vadd.f32 %v3324, 1e-06
  %v3327 = vadd.f32 %v3325, 1e-06
  %v3328 = vrsqrt.pop %v3326
  %v3329 = vmul.f32 %v3328, %v3326
  %v3330 = vmul.f32 %v3329, %v3328
  %v3331 = vmul.f32 0.5, %v3330
  %v3332 = vsub.f32 1.5, %v3331
  %v3333 = vmul.f32 %v3328, %v3332
  %vm3334 = vweird.f32 %v3326
  %vm3335 = vweird.f32 %v3328
  %vm3336 = vmor %vm3334, %vm3335
  %v3337 = vsel %vm3336, %v3328, %v3333
  %v3338 = vrsqrt.pop %v3327
  %v3339 = vmul.f32 %v3338, %v3327
  %v3340 = vmul.f32 %v3339, %v3338
  %v3341 = vmul.f32 0.5, %v3340
  %v3342 = vsub.f32 1.5, %v3341
  %v3343 = vmul.f32 %v3338, %v3342
  %vm3344 = vweird.f32 %v3327
  %vm3345 = vweird.f32 %v3338
  %vm3346 = vmor %vm3344, %vm3345
  %v3347 = vsel %vm3346, %v3338, %v3343
  %v3348 = vmul.f32 %v3314, %v3337
  %v3349 = vmul.f32 %v3315, %v3347
  %v3351 = vperm.slane %v3303, 0
  %v3353 = vmul.f32 %v3348, %v3351
  %v3354 = vmul.f32 %v3349, %v3351
  %v3356 = vperm.slane %v3305, 0
  %v3358 = vadd.f32 %v3353, %v3356
  %v3359 = vadd.f32 %v3354, %v3356
  %v3360 = vpack.c.bf16 %v3359, %v3358
  %s3361 = scalar_lea.vmem %s45, 32
  %v3362 = vld [vmem:[%s3361] sm:$0xf]
  %v3363 = vld [vmem:[%s3361 + $0x4] sm:$0xf]
  %v3364 = vld [vmem:[%s3361 + $0x8] sm:$0xf]
  %v3365 = vld [vmem:[%s3361 + $0xc] sm:$0xf]
  %s3366 = scalar_lea.vmem %s47, 2
  %v3367 = vld [vmem:[%s3366] sm:$0x1]
  %v3369 = vperm.slane %v3367, 0
  %v3375 = vunpack.c.l.b16 %v3362
  %v3376 = vunpack.c.l.b16 %v3363
  %v3377 = vunpack.c.l.b16 %v3364
  %v3378 = vunpack.c.l.b16 %v3365
  %v3379 = vpack.c.b16 %v3376, %v3375
  %v3380 = vpack.c.b16 %v3378, %v3377
  %v3384 = vsel %vm196, %v3360, 0
  %3386 = vmatpush.bf16.msra.mxu0 0
  %3387 = vmatpush.bf16.msra.mxu0 0
  %3388 = vmatpush.bf16.msra.mxu0 0
  %3389 = vmatpush.bf16.msra.mxu0 0
  %3390 = vmatpush.bf16.msra.mxu0 0
  %3391 = vmatpush.bf16.msra.mxu0 0
  %3392 = vmatpush.bf16.msra.mxu0 %v3380
  %3393 = vmatpush.bf16.msra.mxu0 %v3379
  %3394 = vmatmul.bf16.gmra.mxu0 %v3384
  %v3395 = vpop.f32.mrf.mxu0
  %v3396 = vadd.f32 %v3369, %v3395
  %v3397 = vpop.f32.mrf.mxu0
  %v3398 = vadd.f32 %v3369, %v3397
  %3399 = vdwg.mxu0
  %v3400 = vpack.c.bf16 %v3398, %v3396
  %3402 = vrot.lane.b32.xlu0 %v3400, 96
  %v3403 = vpop.permute.xlu0 %3402
  %v3405 = vsel %vm337, %v3400, 0
  %v3408 = vsel %vm337, %v3403, 0
  %3410 = vmatpush.bf16.xpose.msra.mxu0 0
  %3411 = vmatpush.bf16.xpose.msra.mxu0 0
  %3412 = vmatpush.bf16.xpose.msra.mxu0 0
  %3413 = vmatpush.bf16.xpose.msra.mxu0 0
  %3414 = vmatpush.bf16.xpose.msra.mxu0 0
  %3415 = vmatpush.bf16.xpose.msra.mxu0 0
  %3416 = vmatpush.bf16.xpose.msra.mxu0 0
  %3417 = vmatpush.bf16.xpose.msra.mxu0 %v3408
  %3418 = vmatmul.bf16.gmra.mxu0 %v3405
  %v3419 = vpop.f32.mrf.mxu0
  %v3420 = vadd.f32 0.0, %v3419
  %v3421 = vpop.f32.mrf.mxu0
  %v3422 = vadd.f32 0.0, %v3421
  %3423 = vdwg.mxu0
  %v3424 = vsel %vm337, %v3420, -inf
  %3425 = vmax.xlane.f32.xlu0 %v3424
  %v3426 = vpop.xlane.xlu0 %3425
  %v3427 = vsel %vm337, %v3422, -inf
  %3428 = vmax.xlane.f32.xlu0 %v3427
  %v3429 = vpop.xlane.xlu0 %3428
  %v3430 = vsub.f32 %v3420, %v3426
  %v3431 = vsub.f32 %v3422, %v3429
  %v3432 = vmul.f32 %v3430, 1.442695
  %v3433 = vpow.pop %v3432
  %v3434 = vmul.f32 %v3431, 1.442695
  %v3435 = vpow.pop %v3434
  %v3436 = vsel %vm337, %v3433, 0.0
  %3437 = vadd.xlane.f32.xlu0 %v3436
  %v3438 = vpop.xlane.xlu0 %3437
  %v3439 = vsel %vm337, %v3435, 0.0
  %3440 = vadd.xlane.f32.xlu0 %v3439
  %v3441 = vpop.xlane.xlu0 %3440
  %v3442 = vrcp.pop %v3438
  %v3443 = vrcp.pop %v3441
  %v3444 = vmul.f32 %v3433, %v3442
  %v3445 = vmul.f32 %v3435, %v3443
  %v3446 = vpack.c.bf16 %v3445, %v3444
  %3447 = vrot.lane.b32.xlu0 %v3400, 64
  %v3448 = vpop.permute.xlu0 %3447
  %v3451 = vsel %vm337, %v3446, 0
  %3453 = vmatpush.bf16.msra.mxu0 0
  %3454 = vmatpush.bf16.msra.mxu0 0
  %3455 = vmatpush.bf16.msra.mxu0 0
  %3456 = vmatpush.bf16.msra.mxu0 0
  %3457 = vmatpush.bf16.msra.mxu0 0
  %3458 = vmatpush.bf16.msra.mxu0 0
  %3459 = vmatpush.bf16.msra.mxu0 0
  %3460 = vmatpush.bf16.msra.mxu0 %v3448
  %3461 = vmatmul.bf16.gmra.mxu0 %v3451
  %v3462 = vpop.f32.mrf.mxu0
  %v3463 = vadd.f32 0.0, %v3462
  %v3464 = vpop.f32.mrf.mxu0
  %v3465 = vadd.f32 0.0, %v3464
  %3466 = vdwg.mxu0
  %3467 = vrot.lane.b32.xlu0 %v3400, 112
  %v3468 = vpop.permute.xlu0 %3467
  %3469 = vrot.lane.b32.xlu0 %v3400, 80
  %v3470 = vpop.permute.xlu0 %3469
  %v3472 = vsel %vm337, %v3468, 0
  %v3475 = vsel %vm337, %v3470, 0
  %3477 = vmatpush.bf16.xpose.msra.mxu0 0
  %3478 = vmatpush.bf16.xpose.msra.mxu0 0
  %3479 = vmatpush.bf16.xpose.msra.mxu0 0
  %3480 = vmatpush.bf16.xpose.msra.mxu0 0
  %3481 = vmatpush.bf16.xpose.msra.mxu0 0
  %3482 = vmatpush.bf16.xpose.msra.mxu0 0
  %3483 = vmatpush.bf16.xpose.msra.mxu0 0
  %3484 = vmatpush.bf16.xpose.msra.mxu0 %v3475
  %3485 = vmatmul.bf16.gmra.mxu0 %v3472
  %v3486 = vpop.f32.mrf.mxu0
  %v3487 = vadd.f32 0.0, %v3486
  %v3488 = vpop.f32.mrf.mxu0
  %v3489 = vadd.f32 0.0, %v3488
  %3490 = vdwg.mxu0
  %v3491 = vsel %vm337, %v3487, -inf
  %3492 = vmax.xlane.f32.xlu0 %v3491
  %v3493 = vpop.xlane.xlu0 %3492
  %v3494 = vsel %vm337, %v3489, -inf
  %3495 = vmax.xlane.f32.xlu0 %v3494
  %v3496 = vpop.xlane.xlu0 %3495
  %v3497 = vsub.f32 %v3487, %v3493
  %v3498 = vsub.f32 %v3489, %v3496
  %v3499 = vmul.f32 %v3497, 1.442695
  %v3500 = vpow.pop %v3499
  %v3501 = vmul.f32 %v3498, 1.442695
  %v3502 = vpow.pop %v3501
  %v3503 = vsel %vm337, %v3500, 0.0
  %3504 = vadd.xlane.f32.xlu0 %v3503
  %v3505 = vpop.xlane.xlu0 %3504
  %v3506 = vsel %vm337, %v3502, 0.0
  %3507 = vadd.xlane.f32.xlu0 %v3506
  %v3508 = vpop.xlane.xlu0 %3507
  %v3509 = vrcp.pop %v3505
  %v3510 = vrcp.pop %v3508
  %v3511 = vmul.f32 %v3500, %v3509
  %v3512 = vmul.f32 %v3502, %v3510
  %v3513 = vpack.c.bf16 %v3512, %v3511
  %3514 = vrot.lane.b32.xlu0 %v3400, 48
  %v3515 = vpop.permute.xlu0 %3514
  %v3518 = vsel %vm337, %v3513, 0
  %3520 = vmatpush.bf16.msra.mxu0 0
  %3521 = vmatpush.bf16.msra.mxu0 0
  %3522 = vmatpush.bf16.msra.mxu0 0
  %3523 = vmatpush.bf16.msra.mxu0 0
  %3524 = vmatpush.bf16.msra.mxu0 0
  %3525 = vmatpush.bf16.msra.mxu0 0
  %3526 = vmatpush.bf16.msra.mxu0 0
  %3527 = vmatpush.bf16.msra.mxu0 %v3515
  %3528 = vmatmul.bf16.gmra.mxu0 %v3518
  %v3529 = vpop.f32.mrf.mxu0
  %v3530 = vadd.f32 0.0, %v3529
  %v3531 = vpop.f32.mrf.mxu0
  %v3532 = vadd.f32 0.0, %v3531
  %3533 = vdwg.mxu0
  %s3534 = scalar_lea.vmem %s49, 32
  %v3535 = vld [vmem:[%s3534] sm:$0xf]
  %v3536 = vld [vmem:[%s3534 + $0x4] sm:$0xf]
  %v3537 = vld [vmem:[%s3534 + $0x8] sm:$0xf]
  %v3538 = vld [vmem:[%s3534 + $0xc] sm:$0xf]
  %v3539 = vpack.c.bf16 %v3465, %v3463
  %v3540 = vpack.c.bf16 %v3532, %v3530
  %v3543 = vunpack.c.l.b16 %v3537
  %v3544 = vunpack.c.l.b16 %v3538
  %v3545 = vpack.c.b16 %v3544, %v3543
  %v3548 = vsel %vm337, %v3540, 0
  %3550 = vmatpush.bf16.msra.mxu0 0
  %3551 = vmatpush.bf16.msra.mxu0 0
  %3552 = vmatpush.bf16.msra.mxu0 0
  %3553 = vmatpush.bf16.msra.mxu0 0
  %3554 = vmatpush.bf16.msra.mxu0 0
  %3555 = vmatpush.bf16.msra.mxu0 0
  %3556 = vmatpush.bf16.msra.mxu0 0
  %3557 = vmatpush.bf16.msra.mxu0 %v3545
  %3558 = vmatmul.bf16.gmra.mxu0 %v3548
  %v3559 = vpop.f32.mrf.mxu0
  %v3560 = vadd.f32 0.0, %v3559
  %v3561 = vpop.f32.mrf.mxu0
  %v3562 = vadd.f32 0.0, %v3561
  %3563 = vdwg.mxu0
  %v3566 = vunpack.c.l.b16 %v3535
  %v3567 = vunpack.c.l.b16 %v3536
  %v3568 = vpack.c.b16 %v3567, %v3566
  %v3571 = vsel %vm337, %v3539, 0
  %3573 = vmatpush.bf16.msra.mxu0 0
  %3574 = vmatpush.bf16.msra.mxu0 0
  %3575 = vmatpush.bf16.msra.mxu0 0
  %3576 = vmatpush.bf16.msra.mxu0 0
  %3577 = vmatpush.bf16.msra.mxu0 0
  %3578 = vmatpush.bf16.msra.mxu0 0
  %3579 = vmatpush.bf16.msra.mxu0 0
  %3580 = vmatpush.bf16.msra.mxu0 %v3568
  %3581 = vmatmul.bf16.gmra.mxu0 %v3571
  %v3582 = vpop.f32.mrf.mxu0
  %v3583 = vadd.f32 %v3560, %v3582
  %v3584 = vpop.f32.mrf.mxu0
  %v3585 = vadd.f32 %v3562, %v3584
  %3586 = vdwg.mxu0
  %s3587 = scalar_lea.vmem %s51, 2
  %v3588 = vld [vmem:[%s3587] sm:$0x1]
  %v3590 = vperm.slane %v3588, 0
  %v3592 = vadd.f32 %v3583, %v3590
  %v3593 = vadd.f32 %v3585, %v3590
  %v3594 = vadd.f32 %v3298, %v3592
  %v3595 = vadd.f32 %v3299, %v3593
  %s3596 = scalar_lea.vmem %s53, 2
  %v3597 = vld [vmem:[%s3596] sm:$0x1]
  %s3598 = scalar_lea.vmem %s55, 2
  %v3599 = vld [vmem:[%s3598] sm:$0x1]
  %v3600 = vsel %vm196, %v3594, 0.0
  %3601 = vadd.xlane.f32.xlu0 %v3600
  %v3602 = vpop.xlane.xlu0 %3601
  %v3603 = vsel %vm196, %v3595, 0.0
  %3604 = vadd.xlane.f32.xlu0 %v3603
  %v3605 = vpop.xlane.xlu0 %3604
  %v3606 = vmul.f32 %v3602, %v213
  %v3607 = vmul.f32 %v3605, %v213
  %v3608 = vsub.f32 %v3594, %v3606
  %v3609 = vsub.f32 %v3595, %v3607
  %v3610 = vmul.f32 %v3608, %v3608
  %v3611 = vmul.f32 %v3609, %v3609
  %v3612 = vsel %vm196, %v3610, 0.0
  %3613 = vadd.xlane.f32.xlu0 %v3612
  %v3614 = vpop.xlane.xlu0 %3613
  %v3615 = vsel %vm196, %v3611, 0.0
  %3616 = vadd.xlane.f32.xlu0 %v3615
  %v3617 = vpop.xlane.xlu0 %3616
  %v3618 = vmul.f32 %v3614, %v213
  %v3619 = vmul.f32 %v3617, %v213
  %v3620 = vadd.f32 %v3618, 1e-06
  %v3621 = vadd.f32 %v3619, 1e-06
  %v3622 = vrsqrt.pop %v3620
  %v3623 = vmul.f32 %v3622, %v3620
  %v3624 = vmul.f32 %v3623, %v3622
  %v3625 = vmul.f32 0.5, %v3624
  %v3626 = vsub.f32 1.5, %v3625
  %v3627 = vmul.f32 %v3622, %v3626
  %vm3628 = vweird.f32 %v3620
  %vm3629 = vweird.f32 %v3622
  %vm3630 = vmor %vm3628, %vm3629
  %v3631 = vsel %vm3630, %v3622, %v3627
  %v3632 = vrsqrt.pop %v3621
  %v3633 = vmul.f32 %v3632, %v3621
  %v3634 = vmul.f32 %v3633, %v3632
  %v3635 = vmul.f32 0.5, %v3634
  %v3636 = vsub.f32 1.5, %v3635
  %v3637 = vmul.f32 %v3632, %v3636
  %vm3638 = vweird.f32 %v3621
  %vm3639 = vweird.f32 %v3632
  %vm3640 = vmor %vm3638, %vm3639
  %v3641 = vsel %vm3640, %v3632, %v3637
  %v3642 = vmul.f32 %v3608, %v3631
  %v3643 = vmul.f32 %v3609, %v3641
  %v3645 = vperm.slane %v3597, 0
  %v3647 = vmul.f32 %v3642, %v3645
  %v3648 = vmul.f32 %v3643, %v3645
  %v3650 = vperm.slane %v3599, 0
  %v3652 = vadd.f32 %v3647, %v3650
  %v3653 = vadd.f32 %v3648, %v3650
  %v3654 = vpack.c.bf16 %v3653, %v3652
  %s3655 = scalar_lea.vmem %s57, 32
  %v3656 = vld [vmem:[%s3655] sm:$0xf]
  %v3657 = vld [vmem:[%s3655 + $0x4] sm:$0xf]
  %v3658 = vld [vmem:[%s3655 + $0x8] sm:$0xf]
  %v3659 = vld [vmem:[%s3655 + $0xc] sm:$0xf]
  %s3660 = scalar_lea.vmem %s59, 2
  %v3661 = vld [vmem:[%s3660] sm:$0x1]
  %v3663 = vperm.slane %v3661, 0
  %v3669 = vunpack.c.l.b16 %v3656
  %v3670 = vunpack.c.l.b16 %v3657
  %v3671 = vunpack.c.l.b16 %v3658
  %v3672 = vunpack.c.l.b16 %v3659
  %v3673 = vpack.c.b16 %v3670, %v3669
  %v3674 = vpack.c.b16 %v3672, %v3671
  %v3678 = vsel %vm196, %v3654, 0
  %3680 = vmatpush.bf16.msra.mxu0 0
  %3681 = vmatpush.bf16.msra.mxu0 0
  %3682 = vmatpush.bf16.msra.mxu0 0
  %3683 = vmatpush.bf16.msra.mxu0 0
  %3684 = vmatpush.bf16.msra.mxu0 0
  %3685 = vmatpush.bf16.msra.mxu0 0
  %3686 = vmatpush.bf16.msra.mxu0 %v3674
  %3687 = vmatpush.bf16.msra.mxu0 %v3673
  %3688 = vmatmul.bf16.gmra.mxu0 %v3678
  %v3689 = vpop.f32.mrf.mxu0
  %v3690 = vadd.f32 %v3663, %v3689
  %v3691 = vpop.f32.mrf.mxu0
  %v3692 = vadd.f32 %v3663, %v3691
  %3693 = vdwg.mxu0
  %v3694 = vmul.f32 %v3690, %v3690
  %v3695 = vmul.f32 %v3692, %v3692
  %v3696 = vmul.f32 %v3690, %v3694
  %v3697 = vmul.f32 %v3692, %v3695
  %v3698 = vmul.f32 %v3696, 0.044715
  %v3699 = vmul.f32 %v3697, 0.044715
  %v3700 = vadd.f32 %v3690, %v3698
  %v3701 = vadd.f32 %v3692, %v3699
  %v3702 = vmul.f32 %v3700, 0.7978846
  %v3703 = vmul.f32 %v3701, 0.7978846
  %v3704 = vtanh.pop %v3702
  %v3705 = vtanh.pop %v3703
  %v3706 = vadd.f32 %v3704, 1.0
  %v3707 = vadd.f32 %v3705, 1.0
  %v3708 = vmul.f32 %v3706, 0.5
  %v3709 = vmul.f32 %v3707, 0.5
  %v3710 = vmul.f32 %v3690, %v3708
  %v3711 = vmul.f32 %v3692, %v3709
  %v3712 = vpack.c.bf16 %v3711, %v3710
  %s3713 = scalar_lea.vmem %s61, 128
  %v3714 = vld [vmem:[%s3713] sm:$0xf]
  %v3715 = vld [vmem:[%s3713 + $0x4] sm:$0xf]
  %v3716 = vld [vmem:[%s3713 + $0x8] sm:$0xf]
  %v3717 = vld [vmem:[%s3713 + $0xc] sm:$0xf]
  %v3718 = vld [vmem:[%s3713 + $0x10] sm:$0xf]
  %v3719 = vld [vmem:[%s3713 + $0x14] sm:$0xf]
  %v3720 = vld [vmem:[%s3713 + $0x18] sm:$0xf]
  %v3721 = vld [vmem:[%s3713 + $0x1c] sm:$0xf]
  %v3722 = vld [vmem:[%s3713 + $0x20] sm:$0xf]
  %v3723 = vld [vmem:[%s3713 + $0x24] sm:$0xf]
  %v3724 = vld [vmem:[%s3713 + $0x28] sm:$0xf]
  %v3725 = vld [vmem:[%s3713 + $0x2c] sm:$0xf]
  %v3726 = vld [vmem:[%s3713 + $0x30] sm:$0xf]
  %v3727 = vld [vmem:[%s3713 + $0x34] sm:$0xf]
  %v3728 = vld [vmem:[%s3713 + $0x38] sm:$0xf]
  %v3729 = vld [vmem:[%s3713 + $0x3c] sm:$0xf]
  %s3730 = scalar_lea.vmem %s63, 2
  %v3731 = vld [vmem:[%s3730] sm:$0x1]
  %v3733 = vperm.slane %v3731, 0
  %v3751 = vunpack.c.l.b16 %v3714
  %v3752 = vunpack.c.l.b16 %v3715
  %v3753 = vunpack.c.l.b16 %v3716
  %v3754 = vunpack.c.l.b16 %v3717
  %v3755 = vunpack.c.l.b16 %v3718
  %v3756 = vunpack.c.l.b16 %v3719
  %v3757 = vunpack.c.l.b16 %v3720
  %v3758 = vunpack.c.l.b16 %v3721
  %v3759 = vunpack.c.l.b16 %v3722
  %v3760 = vunpack.c.l.b16 %v3723
  %v3761 = vunpack.c.l.b16 %v3724
  %v3762 = vunpack.c.l.b16 %v3725
  %v3763 = vunpack.c.l.b16 %v3726
  %v3764 = vunpack.c.l.b16 %v3727
  %v3765 = vunpack.c.l.b16 %v3728
  %v3766 = vunpack.c.l.b16 %v3729
  %v3767 = vpack.c.b16 %v3752, %v3751
  %v3768 = vpack.c.b16 %v3754, %v3753
  %v3769 = vpack.c.b16 %v3756, %v3755
  %v3770 = vpack.c.b16 %v3758, %v3757
  %v3771 = vpack.c.b16 %v3760, %v3759
  %v3772 = vpack.c.b16 %v3762, %v3761
  %v3773 = vpack.c.b16 %v3764, %v3763
  %v3774 = vpack.c.b16 %v3766, %v3765
  %3783 = vmatpush.bf16.msra.mxu0 %v3774
  %3784 = vmatpush.bf16.msra.mxu0 %v3773
  %3785 = vmatpush.bf16.msra.mxu0 %v3772
  %3786 = vmatpush.bf16.msra.mxu0 %v3771
  %3787 = vmatpush.bf16.msra.mxu0 %v3770
  %3788 = vmatpush.bf16.msra.mxu0 %v3769
  %3789 = vmatpush.bf16.msra.mxu0 %v3768
  %3790 = vmatpush.bf16.msra.mxu0 %v3767
  %3791 = vmatmul.bf16.gmra.mxu0 %v3712
  %v3792 = vpop.f32.mrf.mxu0
  %v3793 = vadd.f32 %v3733, %v3792
  %v3794 = vpop.f32.mrf.mxu0
  %v3795 = vadd.f32 %v3733, %v3794
  %3796 = vdwg.mxu0
  %v3797 = vadd.f32 %v3594, %v3793
  %v3798 = vadd.f32 %v3595, %v3795
  %3801 = vrot.lane.b32.xlu0 %v3797, 32
  %v3802 = vpop.permute.xlu0 %3801
  %3803 = vrot.lane.b32.xlu0 %v3798, 32
  %v3804 = vpop.permute.xlu0 %3803
  %3807 = vst.msk [vmem:[%s65 + $0x8] sm:$0xff] %vm1547, %v3802
  %3808 = vst.msk [vmem:[%s65 + $0x18] sm:$0xff] %vm1547, %v3804
  %s3809 = scalar_lea.vmem %s65, 32
  %3810 = vst.msk [vmem:[%s3809 + $0x8] sm:$0xff] %vm135, 0.0
  %3811 = vst.msk [vmem:[%s3809 + $0x18] sm:$0xff] %vm135, 0.0
  %s3812 = scalar_lea.vmem %s1, 16
  %v3813 = vld [vmem:[%s3812] sm:$0xff]
  %v3814 = vld [vmem:[%s3812 + $0x8] sm:$0xff]
  %v3815 = vpack.c.bf16 %v3814, %v3813
  %v3816 = vld [vmem:[%s3] sm:$0xf]
  %v3817 = vld [vmem:[%s3 + $0x4] sm:$0xf]
  %v3818 = vld [vmem:[%s3 + $0x8] sm:$0xf]
  %v3819 = vld [vmem:[%s3 + $0xc] sm:$0xf]
  %v3820 = vld [vmem:[%s3 + $0x10] sm:$0xf]
  %v3821 = vld [vmem:[%s3 + $0x14] sm:$0xf]
  %v3822 = vld [vmem:[%s5] sm:$0x1]
  %v3824 = vperm.slane %v3822, 0
  %v3832 = vunpack.c.l.b16 %v3816
  %v3833 = vunpack.c.l.b16 %v3817
  %v3834 = vunpack.c.l.b16 %v3818
  %v3835 = vunpack.c.l.b16 %v3819
  %v3836 = vunpack.c.l.b16 %v3820
  %v3837 = vunpack.c.l.b16 %v3821
  %v3838 = vpack.c.b16 %v3833, %v3832
  %v3839 = vpack.c.b16 %v3835, %v3834
  %v3840 = vpack.c.b16 %v3837, %v3836
  %v3845 = vsel %vm169, %v3815, 0
  %3847 = vmatpush.bf16.msra.mxu0 0
  %3848 = vmatpush.bf16.msra.mxu0 0
  %3849 = vmatpush.bf16.msra.mxu0 0
  %3850 = vmatpush.bf16.msra.mxu0 0
  %3851 = vmatpush.bf16.msra.mxu0 0
  %3852 = vmatpush.bf16.msra.mxu0 %v3840
  %3853 = vmatpush.bf16.msra.mxu0 %v3839
  %3854 = vmatpush.bf16.msra.mxu0 %v3838
  %3855 = vmatmul.bf16.gmra.mxu0 %v3845
  %v3856 = vpop.f32.mrf.mxu0
  %v3857 = vadd.f32 %v3824, %v3856
  %v3858 = vpop.f32.mrf.mxu0
  %v3859 = vadd.f32 %v3824, %v3858
  %3860 = vdwg.mxu0
  %v3861 = vld [vmem:[%s7] sm:$0x1]
  %v3862 = vld [vmem:[%s9] sm:$0xff]
  %v3863 = vld [vmem:[%s9 + $0x8] sm:$0xff]
  %v3864 = vld [vmem:[%s9 + $0x10] sm:$0x1]
  %v3865 = vadd.f32 %v3857, %v3862
  %v3866 = vadd.f32 %v3859, %v3863
  %v3867 = vadd.f32 %v3861, %v3864
  %v3868 = vld [vmem:[%s11] sm:$0x1]
  %v3869 = vld [vmem:[%s13] sm:$0x1]
  %v3870 = vsel %vm196, %v3865, 0.0
  %3871 = vadd.xlane.f32.xlu0 %v3870
  %v3872 = vpop.xlane.xlu0 %3871
  %v3873 = vsel %vm196, %v3866, 0.0
  %3874 = vadd.xlane.f32.xlu0 %v3873
  %v3875 = vpop.xlane.xlu0 %3874
  %v3876 = vsel %vm203, %v3867, 0.0
  %3877 = vadd.xlane.f32.xlu0 %v3876
  %v3878 = vpop.xlane.xlu0 %3877
  %v3879 = vmul.f32 %v3872, %v213
  %v3880 = vmul.f32 %v3875, %v213
  %v3881 = vmul.f32 %v3878, %v213
  %v3882 = vsub.f32 %v3865, %v3879
  %v3883 = vsub.f32 %v3866, %v3880
  %v3884 = vsub.f32 %v3867, %v3881
  %v3885 = vmul.f32 %v3882, %v3882
  %v3886 = vmul.f32 %v3883, %v3883
  %v3887 = vmul.f32 %v3884, %v3884
  %v3888 = vsel %vm196, %v3885, 0.0
  %3889 = vadd.xlane.f32.xlu0 %v3888
  %v3890 = vpop.xlane.xlu0 %3889
  %v3891 = vsel %vm196, %v3886, 0.0
  %3892 = vadd.xlane.f32.xlu0 %v3891
  %v3893 = vpop.xlane.xlu0 %3892
  %v3894 = vsel %vm203, %v3887, 0.0
  %3895 = vadd.xlane.f32.xlu0 %v3894
  %v3896 = vpop.xlane.xlu0 %3895
  %v3897 = vmul.f32 %v3890, %v213
  %v3898 = vmul.f32 %v3893, %v213
  %v3899 = vmul.f32 %v3896, %v213
  %v3900 = vadd.f32 %v3897, 1e-06
  %v3901 = vadd.f32 %v3898, 1e-06
  %v3902 = vadd.f32 %v3899, 1e-06
  %v3903 = vrsqrt.pop %v3900
  %v3904 = vmul.f32 %v3903, %v3900
  %v3905 = vmul.f32 %v3904, %v3903
  %v3906 = vmul.f32 0.5, %v3905
  %v3907 = vsub.f32 1.5, %v3906
  %v3908 = vmul.f32 %v3903, %v3907
  %vm3909 = vweird.f32 %v3900
  %vm3910 = vweird.f32 %v3903
  %vm3911 = vmor %vm3909, %vm3910
  %v3912 = vsel %vm3911, %v3903, %v3908
  %v3913 = vrsqrt.pop %v3901
  %v3914 = vmul.f32 %v3913, %v3901
  %v3915 = vmul.f32 %v3914, %v3913
  %v3916 = vmul.f32 0.5, %v3915
  %v3917 = vsub.f32 1.5, %v3916
  %v3918 = vmul.f32 %v3913, %v3917
  %vm3919 = vweird.f32 %v3901
  %vm3920 = vweird.f32 %v3913
  %vm3921 = vmor %vm3919, %vm3920
  %v3922 = vsel %vm3921, %v3913, %v3918
  %v3923 = vrsqrt.pop %v3902
  %v3924 = vmul.f32 %v3923, %v3902
  %v3925 = vmul.f32 %v3924, %v3923
  %v3926 = vmul.f32 0.5, %v3925
  %v3927 = vsub.f32 1.5, %v3926
  %v3928 = vmul.f32 %v3923, %v3927
  %vm3929 = vweird.f32 %v3902
  %vm3930 = vweird.f32 %v3923
  %vm3931 = vmor %vm3929, %vm3930
  %v3932 = vsel %vm3931, %v3923, %v3928
  %v3933 = vmul.f32 %v3882, %v3912
  %v3934 = vmul.f32 %v3883, %v3922
  %v3935 = vmul.f32 %v3884, %v3932
  %v3937 = vperm.slane %v3868, 0
  %v3939 = vmul.f32 %v3933, %v3937
  %v3940 = vmul.f32 %v3934, %v3937
  %v3941 = vmul.f32 %v3935, %v3937
  %v3943 = vperm.slane %v3869, 0
  %v3945 = vadd.f32 %v3939, %v3943
  %v3946 = vadd.f32 %v3940, %v3943
  %v3947 = vadd.f32 %v3941, %v3943
  %v3948 = vpack.c.bf16 %v3946, %v3945
  %v3949 = vpack.c.bf16 %v3947, %v3947
  %v3950 = vld [vmem:[%s15] sm:$0xf]
  %v3951 = vld [vmem:[%s15 + $0x4] sm:$0xf]
  %v3952 = vld [vmem:[%s15 + $0x8] sm:$0xf]
  %v3953 = vld [vmem:[%s15 + $0xc] sm:$0xf]
  %v3954 = vld [vmem:[%s17] sm:$0x1]
  %v3956 = vperm.slane %v3954, 0
  %v3962 = vunpack.c.l.b16 %v3950
  %v3963 = vunpack.c.l.b16 %v3951
  %v3964 = vunpack.c.l.b16 %v3952
  %v3965 = vunpack.c.l.b16 %v3953
  %v3966 = vpack.c.b16 %v3963, %v3962
  %v3967 = vpack.c.b16 %v3965, %v3964
  %v3971 = vsel %vm196, %v3948, 0
  %v3974 = vsel %vm196, %v3949, 0
  %3976 = vmatpush.bf16.msra.mxu0 0
  %3977 = vmatpush.bf16.msra.mxu0 0
  %3978 = vmatpush.bf16.msra.mxu0 0
  %3979 = vmatpush.bf16.msra.mxu0 0
  %3980 = vmatpush.bf16.msra.mxu0 0
  %3981 = vmatpush.bf16.msra.mxu0 0
  %3982 = vmatpush.bf16.msra.mxu0 %v3967
  %3983 = vmatpush.bf16.msra.mxu0 %v3966
  %3984 = vmatmul.bf16.gmra.mxu0 %v3971
  %v3985 = vpop.f32.mrf.mxu0
  %v3986 = vadd.f32 %v3956, %v3985
  %v3987 = vpop.f32.mrf.mxu0
  %v3988 = vadd.f32 %v3956, %v3987
  %3989 = vmatmul.bf16.gmra.mxu0 %v3974
  %v3990 = vpop.f32.mrf.mxu0
  %v3991 = vadd.f32 %v3956, %v3990
  %v3992 = vpop.f32.mrf.mxu0
  %3993 = vdwg.mxu0
  %v3994 = vpack.c.bf16 %v3988, %v3986
  %v3995 = vpack.c.bf16 %v3991, %v3991
  %3998 = vrot.lane.b32.xlu0 %v3994, 96
  %v3999 = vpop.permute.xlu0 %3998
  %4000 = vrot.lane.b32.xlu0 %v3995, 96
  %v4001 = vpop.permute.xlu0 %4000
  %v4003 = vsel %vm337, %v3994, 0
  %v4006 = vsel %vm337, %v3995, 0
  %v4009 = vsel %vm337, %v3999, 0
  %v4012 = vsel %vm337, %v4001, 0
  %4014 = vmatpush.bf16.xpose.msra.mxu0 0
  %4015 = vmatpush.bf16.xpose.msra.mxu0 0
  %4016 = vmatpush.bf16.xpose.msra.mxu0 0
  %4017 = vmatpush.bf16.xpose.msra.mxu0 0
  %4018 = vmatpush.bf16.xpose.msra.mxu0 0
  %4019 = vmatpush.bf16.xpose.msra.mxu0 0
  %4020 = vmatpush.bf16.xpose.msra.mxu0 %v4012
  %4021 = vmatpush.bf16.xpose.msra.mxu0 %v4009
  %4022 = vmatmul.bf16.gmra.mxu0 %v4003
  %v4023 = vpop.f32.mrf.mxu0
  %v4024 = vadd.f32 0.0, %v4023
  %v4025 = vpop.f32.mrf.mxu0
  %v4026 = vadd.f32 0.0, %v4025
  %4027 = vmatmul.bf16.gmra.mxu0 %v4006
  %v4028 = vpop.f32.mrf.mxu0
  %v4029 = vadd.f32 0.0, %v4028
  %v4030 = vpop.f32.mrf.mxu0
  %4031 = vdwg.mxu0
  %v4032 = vsel %vm368, %v4024, -inf
  %4033 = vmax.xlane.f32.xlu0 %v4032
  %v4034 = vpop.xlane.xlu0 %4033
  %v4035 = vsel %vm368, %v4026, -inf
  %4036 = vmax.xlane.f32.xlu0 %v4035
  %v4037 = vpop.xlane.xlu0 %4036
  %v4038 = vsel %vm375, %v4029, -inf
  %4039 = vmax.xlane.f32.xlu0 %v4038
  %v4040 = vpop.xlane.xlu0 %4039
  %v4041 = vsub.f32 %v4024, %v4034
  %v4042 = vsub.f32 %v4026, %v4037
  %v4043 = vsub.f32 %v4029, %v4040
  %v4044 = vmul.f32 %v4041, 1.442695
  %v4045 = vpow.pop %v4044
  %v4046 = vmul.f32 %v4042, 1.442695
  %v4047 = vpow.pop %v4046
  %v4048 = vmul.f32 %v4043, 1.442695
  %v4049 = vpow.pop %v4048
  %v4050 = vsel %vm368, %v4045, 0.0
  %4051 = vadd.xlane.f32.xlu0 %v4050
  %v4052 = vpop.xlane.xlu0 %4051
  %v4053 = vsel %vm368, %v4047, 0.0
  %4054 = vadd.xlane.f32.xlu0 %v4053
  %v4055 = vpop.xlane.xlu0 %4054
  %v4056 = vsel %vm375, %v4049, 0.0
  %4057 = vadd.xlane.f32.xlu0 %v4056
  %v4058 = vpop.xlane.xlu0 %4057
  %v4059 = vrcp.pop %v4052
  %v4060 = vrcp.pop %v4055
  %v4061 = vrcp.pop %v4058
  %v4062 = vmul.f32 %v4045, %v4059
  %v4063 = vmul.f32 %v4047, %v4060
  %v4064 = vmul.f32 %v4049, %v4061
  %v4065 = vpack.c.bf16 %v4063, %v4062
  %v4066 = vpack.c.bf16 %v4064, %v4064
  %4067 = vrot.lane.b32.xlu0 %v3994, 64
  %v4068 = vpop.permute.xlu0 %4067
  %4069 = vrot.lane.b32.xlu0 %v3995, 64
  %v4070 = vpop.permute.xlu0 %4069
  %v4073 = vsel %vm368, %v4065, 0
  %v4076 = vsel %vm368, %v4066, 0
  %v4079 = vand.u32 %v4070, %v418
  %4081 = vmatpush.bf16.msra.mxu0 0
  %4082 = vmatpush.bf16.msra.mxu0 0
  %4083 = vmatpush.bf16.msra.mxu0 0
  %4084 = vmatpush.bf16.msra.mxu0 0
  %4085 = vmatpush.bf16.msra.mxu0 0
  %4086 = vmatpush.bf16.msra.mxu0 0
  %4087 = vmatpush.bf16.msra.mxu0 %v4079
  %4088 = vmatpush.bf16.msra.mxu0 %v4068
  %4089 = vmatmul.bf16.gmra.mxu0 %v4073
  %v4090 = vpop.f32.mrf.mxu0
  %v4091 = vadd.f32 0.0, %v4090
  %v4092 = vpop.f32.mrf.mxu0
  %v4093 = vadd.f32 0.0, %v4092
  %4094 = vmatmul.bf16.gmra.mxu0 %v4076
  %v4095 = vpop.f32.mrf.mxu0
  %v4096 = vadd.f32 0.0, %v4095
  %v4097 = vpop.f32.mrf.mxu0
  %4098 = vdwg.mxu0
  %4099 = vrot.lane.b32.xlu0 %v3994, 112
  %v4100 = vpop.permute.xlu0 %4099
  %4101 = vrot.lane.b32.xlu0 %v3995, 112
  %v4102 = vpop.permute.xlu0 %4101
  %4103 = vrot.lane.b32.xlu0 %v3994, 80
  %v4104 = vpop.permute.xlu0 %4103
  %4105 = vrot.lane.b32.xlu0 %v3995, 80
  %v4106 = vpop.permute.xlu0 %4105
  %v4108 = vsel %vm337, %v4100, 0
  %v4111 = vsel %vm337, %v4102, 0
  %v4114 = vsel %vm337, %v4104, 0
  %v4117 = vsel %vm337, %v4106, 0
  %4119 = vmatpush.bf16.xpose.msra.mxu0 0
  %4120 = vmatpush.bf16.xpose.msra.mxu0 0
  %4121 = vmatpush.bf16.xpose.msra.mxu0 0
  %4122 = vmatpush.bf16.xpose.msra.mxu0 0
  %4123 = vmatpush.bf16.xpose.msra.mxu0 0
  %4124 = vmatpush.bf16.xpose.msra.mxu0 0
  %4125 = vmatpush.bf16.xpose.msra.mxu0 %v4117
  %4126 = vmatpush.bf16.xpose.msra.mxu0 %v4114
  %4127 = vmatmul.bf16.gmra.mxu0 %v4108
  %v4128 = vpop.f32.mrf.mxu0
  %v4129 = vadd.f32 0.0, %v4128
  %v4130 = vpop.f32.mrf.mxu0
  %v4131 = vadd.f32 0.0, %v4130
  %4132 = vmatmul.bf16.gmra.mxu0 %v4111
  %v4133 = vpop.f32.mrf.mxu0
  %v4134 = vadd.f32 0.0, %v4133
  %v4135 = vpop.f32.mrf.mxu0
  %4136 = vdwg.mxu0
  %v4137 = vsel %vm368, %v4129, -inf
  %4138 = vmax.xlane.f32.xlu0 %v4137
  %v4139 = vpop.xlane.xlu0 %4138
  %v4140 = vsel %vm368, %v4131, -inf
  %4141 = vmax.xlane.f32.xlu0 %v4140
  %v4142 = vpop.xlane.xlu0 %4141
  %v4143 = vsel %vm375, %v4134, -inf
  %4144 = vmax.xlane.f32.xlu0 %v4143
  %v4145 = vpop.xlane.xlu0 %4144
  %v4146 = vsub.f32 %v4129, %v4139
  %v4147 = vsub.f32 %v4131, %v4142
  %v4148 = vsub.f32 %v4134, %v4145
  %v4149 = vmul.f32 %v4146, 1.442695
  %v4150 = vpow.pop %v4149
  %v4151 = vmul.f32 %v4147, 1.442695
  %v4152 = vpow.pop %v4151
  %v4153 = vmul.f32 %v4148, 1.442695
  %v4154 = vpow.pop %v4153
  %v4155 = vsel %vm368, %v4150, 0.0
  %4156 = vadd.xlane.f32.xlu0 %v4155
  %v4157 = vpop.xlane.xlu0 %4156
  %v4158 = vsel %vm368, %v4152, 0.0
  %4159 = vadd.xlane.f32.xlu0 %v4158
  %v4160 = vpop.xlane.xlu0 %4159
  %v4161 = vsel %vm375, %v4154, 0.0
  %4162 = vadd.xlane.f32.xlu0 %v4161
  %v4163 = vpop.xlane.xlu0 %4162
  %v4164 = vrcp.pop %v4157
  %v4165 = vrcp.pop %v4160
  %v4166 = vrcp.pop %v4163
  %v4167 = vmul.f32 %v4150, %v4164
  %v4168 = vmul.f32 %v4152, %v4165
  %v4169 = vmul.f32 %v4154, %v4166
  %v4170 = vpack.c.bf16 %v4168, %v4167
  %v4171 = vpack.c.bf16 %v4169, %v4169
  %4172 = vrot.lane.b32.xlu0 %v3994, 48
  %v4173 = vpop.permute.xlu0 %4172
  %4174 = vrot.lane.b32.xlu0 %v3995, 48
  %v4175 = vpop.permute.xlu0 %4174
  %v4178 = vsel %vm368, %v4170, 0
  %v4181 = vsel %vm368, %v4171, 0
  %v4184 = vand.u32 %v4175, %v418
  %4186 = vmatpush.bf16.msra.mxu0 0
  %4187 = vmatpush.bf16.msra.mxu0 0
  %4188 = vmatpush.bf16.msra.mxu0 0
  %4189 = vmatpush.bf16.msra.mxu0 0
  %4190 = vmatpush.bf16.msra.mxu0 0
  %4191 = vmatpush.bf16.msra.mxu0 0
  %4192 = vmatpush.bf16.msra.mxu0 %v4184
  %4193 = vmatpush.bf16.msra.mxu0 %v4173
  %4194 = vmatmul.bf16.gmra.mxu0 %v4178
  %v4195 = vpop.f32.mrf.mxu0
  %v4196 = vadd.f32 0.0, %v4195
  %v4197 = vpop.f32.mrf.mxu0
  %v4198 = vadd.f32 0.0, %v4197
  %4199 = vmatmul.bf16.gmra.mxu0 %v4181
  %v4200 = vpop.f32.mrf.mxu0
  %v4201 = vadd.f32 0.0, %v4200
  %v4202 = vpop.f32.mrf.mxu0
  %4203 = vdwg.mxu0
  %v4204 = vld [vmem:[%s19] sm:$0xf]
  %v4205 = vld [vmem:[%s19 + $0x4] sm:$0xf]
  %v4206 = vld [vmem:[%s19 + $0x8] sm:$0xf]
  %v4207 = vld [vmem:[%s19 + $0xc] sm:$0xf]
  %v4208 = vpack.c.bf16 %v4093, %v4091
  %v4209 = vpack.c.bf16 %v4096, %v4096
  %v4210 = vpack.c.bf16 %v4198, %v4196
  %v4211 = vpack.c.bf16 %v4201, %v4201
  %v4214 = vunpack.c.l.b16 %v4206
  %v4215 = vunpack.c.l.b16 %v4207
  %v4216 = vpack.c.b16 %v4215, %v4214
  %v4219 = vsel %vm337, %v4210, 0
  %v4222 = vsel %vm337, %v4211, 0
  %4224 = vmatpush.bf16.msra.mxu0 0
  %4225 = vmatpush.bf16.msra.mxu0 0
  %4226 = vmatpush.bf16.msra.mxu0 0
  %4227 = vmatpush.bf16.msra.mxu0 0
  %4228 = vmatpush.bf16.msra.mxu0 0
  %4229 = vmatpush.bf16.msra.mxu0 0
  %4230 = vmatpush.bf16.msra.mxu0 0
  %4231 = vmatpush.bf16.msra.mxu0 %v4216
  %4232 = vmatmul.bf16.gmra.mxu0 %v4219
  %v4233 = vpop.f32.mrf.mxu0
  %v4234 = vadd.f32 0.0, %v4233
  %v4235 = vpop.f32.mrf.mxu0
  %v4236 = vadd.f32 0.0, %v4235
  %4237 = vmatmul.bf16.gmra.mxu0 %v4222
  %v4238 = vpop.f32.mrf.mxu0
  %v4239 = vadd.f32 0.0, %v4238
  %v4240 = vpop.f32.mrf.mxu0
  %4241 = vdwg.mxu0
  %v4244 = vunpack.c.l.b16 %v4204
  %v4245 = vunpack.c.l.b16 %v4205
  %v4246 = vpack.c.b16 %v4245, %v4244
  %v4249 = vsel %vm337, %v4208, 0
  %v4252 = vsel %vm337, %v4209, 0
  %4254 = vmatpush.bf16.msra.mxu0 0
  %4255 = vmatpush.bf16.msra.mxu0 0
  %4256 = vmatpush.bf16.msra.mxu0 0
  %4257 = vmatpush.bf16.msra.mxu0 0
  %4258 = vmatpush.bf16.msra.mxu0 0
  %4259 = vmatpush.bf16.msra.mxu0 0
  %4260 = vmatpush.bf16.msra.mxu0 0
  %4261 = vmatpush.bf16.msra.mxu0 %v4246
  %4262 = vmatmul.bf16.gmra.mxu0 %v4249
  %v4263 = vpop.f32.mrf.mxu0
  %v4264 = vadd.f32 %v4234, %v4263
  %v4265 = vpop.f32.mrf.mxu0
  %v4266 = vadd.f32 %v4236, %v4265
  %4267 = vmatmul.bf16.gmra.mxu0 %v4252
  %v4268 = vpop.f32.mrf.mxu0
  %v4269 = vadd.f32 %v4239, %v4268
  %v4270 = vpop.f32.mrf.mxu0
  %4271 = vdwg.mxu0
  %v4272 = vld [vmem:[%s21] sm:$0x1]
  %v4274 = vperm.slane %v4272, 0
  %v4276 = vadd.f32 %v4264, %v4274
  %v4277 = vadd.f32 %v4266, %v4274
  %v4278 = vadd.f32 %v4269, %v4274
  %v4279 = vadd.f32 %v3865, %v4276
  %v4280 = vadd.f32 %v3866, %v4277
  %v4281 = vadd.f32 %v3867, %v4278
  %v4282 = vld [vmem:[%s23] sm:$0x1]
  %v4283 = vld [vmem:[%s25] sm:$0x1]
  %v4284 = vsel %vm196, %v4279, 0.0
  %4285 = vadd.xlane.f32.xlu0 %v4284
  %v4286 = vpop.xlane.xlu0 %4285
  %v4287 = vsel %vm196, %v4280, 0.0
  %4288 = vadd.xlane.f32.xlu0 %v4287
  %v4289 = vpop.xlane.xlu0 %4288
  %v4290 = vsel %vm203, %v4281, 0.0
  %4291 = vadd.xlane.f32.xlu0 %v4290
  %v4292 = vpop.xlane.xlu0 %4291
  %v4293 = vmul.f32 %v4286, %v213
  %v4294 = vmul.f32 %v4289, %v213
  %v4295 = vmul.f32 %v4292, %v213
  %v4296 = vsub.f32 %v4279, %v4293
  %v4297 = vsub.f32 %v4280, %v4294
  %v4298 = vsub.f32 %v4281, %v4295
  %v4299 = vmul.f32 %v4296, %v4296
  %v4300 = vmul.f32 %v4297, %v4297
  %v4301 = vmul.f32 %v4298, %v4298
  %v4302 = vsel %vm196, %v4299, 0.0
  %4303 = vadd.xlane.f32.xlu0 %v4302
  %v4304 = vpop.xlane.xlu0 %4303
  %v4305 = vsel %vm196, %v4300, 0.0
  %4306 = vadd.xlane.f32.xlu0 %v4305
  %v4307 = vpop.xlane.xlu0 %4306
  %v4308 = vsel %vm203, %v4301, 0.0
  %4309 = vadd.xlane.f32.xlu0 %v4308
  %v4310 = vpop.xlane.xlu0 %4309
  %v4311 = vmul.f32 %v4304, %v213
  %v4312 = vmul.f32 %v4307, %v213
  %v4313 = vmul.f32 %v4310, %v213
  %v4314 = vadd.f32 %v4311, 1e-06
  %v4315 = vadd.f32 %v4312, 1e-06
  %v4316 = vadd.f32 %v4313, 1e-06
  %v4317 = vrsqrt.pop %v4314
  %v4318 = vmul.f32 %v4317, %v4314
  %v4319 = vmul.f32 %v4318, %v4317
  %v4320 = vmul.f32 0.5, %v4319
  %v4321 = vsub.f32 1.5, %v4320
  %v4322 = vmul.f32 %v4317, %v4321
  %vm4323 = vweird.f32 %v4314
  %vm4324 = vweird.f32 %v4317
  %vm4325 = vmor %vm4323, %vm4324
  %v4326 = vsel %vm4325, %v4317, %v4322
  %v4327 = vrsqrt.pop %v4315
  %v4328 = vmul.f32 %v4327, %v4315
  %v4329 = vmul.f32 %v4328, %v4327
  %v4330 = vmul.f32 0.5, %v4329
  %v4331 = vsub.f32 1.5, %v4330
  %v4332 = vmul.f32 %v4327, %v4331
  %vm4333 = vweird.f32 %v4315
  %vm4334 = vweird.f32 %v4327
  %vm4335 = vmor %vm4333, %vm4334
  %v4336 = vsel %vm4335, %v4327, %v4332
  %v4337 = vrsqrt.pop %v4316
  %v4338 = vmul.f32 %v4337, %v4316
  %v4339 = vmul.f32 %v4338, %v4337
  %v4340 = vmul.f32 0.5, %v4339
  %v4341 = vsub.f32 1.5, %v4340
  %v4342 = vmul.f32 %v4337, %v4341
  %vm4343 = vweird.f32 %v4316
  %vm4344 = vweird.f32 %v4337
  %vm4345 = vmor %vm4343, %vm4344
  %v4346 = vsel %vm4345, %v4337, %v4342
  %v4347 = vmul.f32 %v4296, %v4326
  %v4348 = vmul.f32 %v4297, %v4336
  %v4349 = vmul.f32 %v4298, %v4346
  %v4351 = vperm.slane %v4282, 0
  %v4353 = vmul.f32 %v4347, %v4351
  %v4354 = vmul.f32 %v4348, %v4351
  %v4355 = vmul.f32 %v4349, %v4351
  %v4357 = vperm.slane %v4283, 0
  %v4359 = vadd.f32 %v4353, %v4357
  %v4360 = vadd.f32 %v4354, %v4357
  %v4361 = vadd.f32 %v4355, %v4357
  %v4362 = vpack.c.bf16 %v4360, %v4359
  %v4363 = vpack.c.bf16 %v4361, %v4361
  %v4364 = vld [vmem:[%s27] sm:$0xf]
  %v4365 = vld [vmem:[%s27 + $0x4] sm:$0xf]
  %v4366 = vld [vmem:[%s27 + $0x8] sm:$0xf]
  %v4367 = vld [vmem:[%s27 + $0xc] sm:$0xf]
  %v4368 = vld [vmem:[%s29] sm:$0x1]
  %v4370 = vperm.slane %v4368, 0
  %v4376 = vunpack.c.l.b16 %v4364
  %v4377 = vunpack.c.l.b16 %v4365
  %v4378 = vunpack.c.l.b16 %v4366
  %v4379 = vunpack.c.l.b16 %v4367
  %v4380 = vpack.c.b16 %v4377, %v4376
  %v4381 = vpack.c.b16 %v4379, %v4378
  %v4385 = vsel %vm196, %v4362, 0
  %v4388 = vsel %vm196, %v4363, 0
  %4390 = vmatpush.bf16.msra.mxu0 0
  %4391 = vmatpush.bf16.msra.mxu0 0
  %4392 = vmatpush.bf16.msra.mxu0 0
  %4393 = vmatpush.bf16.msra.mxu0 0
  %4394 = vmatpush.bf16.msra.mxu0 0
  %4395 = vmatpush.bf16.msra.mxu0 0
  %4396 = vmatpush.bf16.msra.mxu0 %v4381
  %4397 = vmatpush.bf16.msra.mxu0 %v4380
  %4398 = vmatmul.bf16.gmra.mxu0 %v4385
  %v4399 = vpop.f32.mrf.mxu0
  %v4400 = vadd.f32 %v4370, %v4399
  %v4401 = vpop.f32.mrf.mxu0
  %v4402 = vadd.f32 %v4370, %v4401
  %4403 = vmatmul.bf16.gmra.mxu0 %v4388
  %v4404 = vpop.f32.mrf.mxu0
  %v4405 = vadd.f32 %v4370, %v4404
  %v4406 = vpop.f32.mrf.mxu0
  %4407 = vdwg.mxu0
  %v4408 = vmul.f32 %v4400, %v4400
  %v4409 = vmul.f32 %v4402, %v4402
  %v4410 = vmul.f32 %v4405, %v4405
  %v4411 = vmul.f32 %v4400, %v4408
  %v4412 = vmul.f32 %v4402, %v4409
  %v4413 = vmul.f32 %v4405, %v4410
  %v4414 = vmul.f32 %v4411, 0.044715
  %v4415 = vmul.f32 %v4412, 0.044715
  %v4416 = vmul.f32 %v4413, 0.044715
  %v4417 = vadd.f32 %v4400, %v4414
  %v4418 = vadd.f32 %v4402, %v4415
  %v4419 = vadd.f32 %v4405, %v4416
  %v4420 = vmul.f32 %v4417, 0.7978846
  %v4421 = vmul.f32 %v4418, 0.7978846
  %v4422 = vmul.f32 %v4419, 0.7978846
  %v4423 = vtanh.pop %v4420
  %v4424 = vtanh.pop %v4421
  %v4425 = vtanh.pop %v4422
  %v4426 = vadd.f32 %v4423, 1.0
  %v4427 = vadd.f32 %v4424, 1.0
  %v4428 = vadd.f32 %v4425, 1.0
  %v4429 = vmul.f32 %v4426, 0.5
  %v4430 = vmul.f32 %v4427, 0.5
  %v4431 = vmul.f32 %v4428, 0.5
  %v4432 = vmul.f32 %v4400, %v4429
  %v4433 = vmul.f32 %v4402, %v4430
  %v4434 = vmul.f32 %v4405, %v4431
  %v4435 = vpack.c.bf16 %v4433, %v4432
  %v4436 = vpack.c.bf16 %v4434, %v4434
  %v4437 = vld [vmem:[%s31] sm:$0xf]
  %v4438 = vld [vmem:[%s31 + $0x4] sm:$0xf]
  %v4439 = vld [vmem:[%s31 + $0x8] sm:$0xf]
  %v4440 = vld [vmem:[%s31 + $0xc] sm:$0xf]
  %v4441 = vld [vmem:[%s31 + $0x10] sm:$0xf]
  %v4442 = vld [vmem:[%s31 + $0x14] sm:$0xf]
  %v4443 = vld [vmem:[%s31 + $0x18] sm:$0xf]
  %v4444 = vld [vmem:[%s31 + $0x1c] sm:$0xf]
  %v4445 = vld [vmem:[%s31 + $0x20] sm:$0xf]
  %v4446 = vld [vmem:[%s31 + $0x24] sm:$0xf]
  %v4447 = vld [vmem:[%s31 + $0x28] sm:$0xf]
  %v4448 = vld [vmem:[%s31 + $0x2c] sm:$0xf]
  %v4449 = vld [vmem:[%s31 + $0x30] sm:$0xf]
  %v4450 = vld [vmem:[%s31 + $0x34] sm:$0xf]
  %v4451 = vld [vmem:[%s31 + $0x38] sm:$0xf]
  %v4452 = vld [vmem:[%s31 + $0x3c] sm:$0xf]
  %v4453 = vld [vmem:[%s33] sm:$0x1]
  %v4455 = vperm.slane %v4453, 0
  %v4473 = vunpack.c.l.b16 %v4437
  %v4474 = vunpack.c.l.b16 %v4438
  %v4475 = vunpack.c.l.b16 %v4439
  %v4476 = vunpack.c.l.b16 %v4440
  %v4477 = vunpack.c.l.b16 %v4441
  %v4478 = vunpack.c.l.b16 %v4442
  %v4479 = vunpack.c.l.b16 %v4443
  %v4480 = vunpack.c.l.b16 %v4444
  %v4481 = vunpack.c.l.b16 %v4445
  %v4482 = vunpack.c.l.b16 %v4446
  %v4483 = vunpack.c.l.b16 %v4447
  %v4484 = vunpack.c.l.b16 %v4448
  %v4485 = vunpack.c.l.b16 %v4449
  %v4486 = vunpack.c.l.b16 %v4450
  %v4487 = vunpack.c.l.b16 %v4451
  %v4488 = vunpack.c.l.b16 %v4452
  %v4489 = vpack.c.b16 %v4474, %v4473
  %v4490 = vpack.c.b16 %v4476, %v4475
  %v4491 = vpack.c.b16 %v4478, %v4477
  %v4492 = vpack.c.b16 %v4480, %v4479
  %v4493 = vpack.c.b16 %v4482, %v4481
  %v4494 = vpack.c.b16 %v4484, %v4483
  %v4495 = vpack.c.b16 %v4486, %v4485
  %v4496 = vpack.c.b16 %v4488, %v4487
  %4505 = vmatpush.bf16.msra.mxu0 %v4496
  %4506 = vmatpush.bf16.msra.mxu0 %v4495
  %4507 = vmatpush.bf16.msra.mxu0 %v4494
  %4508 = vmatpush.bf16.msra.mxu0 %v4493
  %4509 = vmatpush.bf16.msra.mxu0 %v4492
  %4510 = vmatpush.bf16.msra.mxu0 %v4491
  %4511 = vmatpush.bf16.msra.mxu0 %v4490
  %4512 = vmatpush.bf16.msra.mxu0 %v4489
  %4513 = vmatmul.bf16.gmra.mxu0 %v4435
  %v4514 = vpop.f32.mrf.mxu0
  %v4515 = vadd.f32 %v4455, %v4514
  %v4516 = vpop.f32.mrf.mxu0
  %v4517 = vadd.f32 %v4455, %v4516
  %4518 = vmatmul.bf16.gmra.mxu0 %v4436
  %v4519 = vpop.f32.mrf.mxu0
  %v4520 = vadd.f32 %v4455, %v4519
  %v4521 = vpop.f32.mrf.mxu0
  %4522 = vdwg.mxu0
  %v4523 = vadd.f32 %v4279, %v4515
  %v4524 = vadd.f32 %v4280, %v4517
  %v4525 = vadd.f32 %v4281, %v4520
  %4526 = vst.msk [vmem:[%s3809] sm:$0xff] %vm196, %v4523
  %4527 = vst.msk [vmem:[%s3809 + $0x10] sm:$0xff] %vm196, %v4524
  %v4528 = vld [vmem:[%s869] sm:$0x1]
  %v4529 = vld [vmem:[%s871] sm:$0x1]
  %v4530 = vsel %vm196, %v4523, 0.0
  %4531 = vadd.xlane.f32.xlu0 %v4530
  %v4532 = vpop.xlane.xlu0 %4531
  %v4533 = vsel %vm196, %v4524, 0.0
  %4534 = vadd.xlane.f32.xlu0 %v4533
  %v4535 = vpop.xlane.xlu0 %4534
  %v4536 = vsel %vm203, %v4525, 0.0
  %4537 = vadd.xlane.f32.xlu0 %v4536
  %v4538 = vpop.xlane.xlu0 %4537
  %v4539 = vmul.f32 %v4532, %v213
  %v4540 = vmul.f32 %v4535, %v213
  %v4541 = vmul.f32 %v4538, %v213
  %v4542 = vsub.f32 %v4523, %v4539
  %v4543 = vsub.f32 %v4524, %v4540
  %v4544 = vsub.f32 %v4525, %v4541
  %v4545 = vmul.f32 %v4542, %v4542
  %v4546 = vmul.f32 %v4543, %v4543
  %v4547 = vmul.f32 %v4544, %v4544
  %v4548 = vsel %vm196, %v4545, 0.0
  %4549 = vadd.xlane.f32.xlu0 %v4548
  %v4550 = vpop.xlane.xlu0 %4549
  %v4551 = vsel %vm196, %v4546, 0.0
  %4552 = vadd.xlane.f32.xlu0 %v4551
  %v4553 = vpop.xlane.xlu0 %4552
  %v4554 = vsel %vm203, %v4547, 0.0
  %4555 = vadd.xlane.f32.xlu0 %v4554
  %v4556 = vpop.xlane.xlu0 %4555
  %v4557 = vmul.f32 %v4550, %v213
  %v4558 = vmul.f32 %v4553, %v213
  %v4559 = vmul.f32 %v4556, %v213
  %v4560 = vadd.f32 %v4557, 1e-06
  %v4561 = vadd.f32 %v4558, 1e-06
  %v4562 = vadd.f32 %v4559, 1e-06
  %v4563 = vrsqrt.pop %v4560
  %v4564 = vmul.f32 %v4563, %v4560
  %v4565 = vmul.f32 %v4564, %v4563
  %v4566 = vmul.f32 0.5, %v4565
  %v4567 = vsub.f32 1.5, %v4566
  %v4568 = vmul.f32 %v4563, %v4567
  %vm4569 = vweird.f32 %v4560
  %vm4570 = vweird.f32 %v4563
  %vm4571 = vmor %vm4569, %vm4570
  %v4572 = vsel %vm4571, %v4563, %v4568
  %v4573 = vrsqrt.pop %v4561
  %v4574 = vmul.f32 %v4573, %v4561
  %v4575 = vmul.f32 %v4574, %v4573
  %v4576 = vmul.f32 0.5, %v4575
  %v4577 = vsub.f32 1.5, %v4576
  %v4578 = vmul.f32 %v4573, %v4577
  %vm4579 = vweird.f32 %v4561
  %vm4580 = vweird.f32 %v4573
  %vm4581 = vmor %vm4579, %vm4580
  %v4582 = vsel %vm4581, %v4573, %v4578
  %v4583 = vrsqrt.pop %v4562
  %v4584 = vmul.f32 %v4583, %v4562
  %v4585 = vmul.f32 %v4584, %v4583
  %v4586 = vmul.f32 0.5, %v4585
  %v4587 = vsub.f32 1.5, %v4586
  %v4588 = vmul.f32 %v4583, %v4587
  %vm4589 = vweird.f32 %v4562
  %vm4590 = vweird.f32 %v4583
  %vm4591 = vmor %vm4589, %vm4590
  %v4592 = vsel %vm4591, %v4583, %v4588
  %v4593 = vmul.f32 %v4542, %v4572
  %v4594 = vmul.f32 %v4543, %v4582
  %v4595 = vmul.f32 %v4544, %v4592
  %v4597 = vperm.slane %v4528, 0
  %v4599 = vmul.f32 %v4593, %v4597
  %v4600 = vmul.f32 %v4594, %v4597
  %v4601 = vmul.f32 %v4595, %v4597
  %v4603 = vperm.slane %v4529, 0
  %v4605 = vadd.f32 %v4599, %v4603
  %v4606 = vadd.f32 %v4600, %v4603
  %v4607 = vadd.f32 %v4601, %v4603
  %v4608 = vpack.c.bf16 %v4606, %v4605
  %v4609 = vpack.c.bf16 %v4607, %v4607
  %v4610 = vld [vmem:[%s953] sm:$0xf]
  %v4611 = vld [vmem:[%s953 + $0x4] sm:$0xf]
  %v4612 = vld [vmem:[%s953 + $0x8] sm:$0xf]
  %v4613 = vld [vmem:[%s953 + $0xc] sm:$0xf]
  %v4614 = vld [vmem:[%s958] sm:$0x1]
  %v4616 = vperm.slane %v4614, 0
  %v4622 = vunpack.c.l.b16 %v4610
  %v4623 = vunpack.c.l.b16 %v4611
  %v4624 = vunpack.c.l.b16 %v4612
  %v4625 = vunpack.c.l.b16 %v4613
  %v4626 = vpack.c.b16 %v4623, %v4622
  %v4627 = vpack.c.b16 %v4625, %v4624
  %v4631 = vsel %vm196, %v4608, 0
  %v4634 = vsel %vm196, %v4609, 0
  %4636 = vmatpush.bf16.msra.mxu0 0
  %4637 = vmatpush.bf16.msra.mxu0 0
  %4638 = vmatpush.bf16.msra.mxu0 0
  %4639 = vmatpush.bf16.msra.mxu0 0
  %4640 = vmatpush.bf16.msra.mxu0 0
  %4641 = vmatpush.bf16.msra.mxu0 0
  %4642 = vmatpush.bf16.msra.mxu0 %v4627
  %4643 = vmatpush.bf16.msra.mxu0 %v4626
  %4644 = vmatmul.bf16.gmra.mxu0 %v4631
  %v4645 = vpop.f32.mrf.mxu0
  %v4646 = vadd.f32 %v4616, %v4645
  %v4647 = vpop.f32.mrf.mxu0
  %v4648 = vadd.f32 %v4616, %v4647
  %4649 = vmatmul.bf16.gmra.mxu0 %v4634
  %v4650 = vpop.f32.mrf.mxu0
  %v4651 = vadd.f32 %v4616, %v4650
  %v4652 = vpop.f32.mrf.mxu0
  %4653 = vdwg.mxu0
  %v4654 = vpack.c.bf16 %v4648, %v4646
  %v4655 = vpack.c.bf16 %v4651, %v4651
  %4658 = vrot.lane.b32.xlu0 %v4654, 96
  %v4659 = vpop.permute.xlu0 %4658
  %4660 = vrot.lane.b32.xlu0 %v4655, 96
  %v4661 = vpop.permute.xlu0 %4660
  %v4663 = vsel %vm337, %v4654, 0
  %v4666 = vsel %vm337, %v4655, 0
  %v4669 = vsel %vm337, %v4659, 0
  %v4672 = vsel %vm337, %v4661, 0
  %4674 = vmatpush.bf16.xpose.msra.mxu0 0
  %4675 = vmatpush.bf16.xpose.msra.mxu0 0
  %4676 = vmatpush.bf16.xpose.msra.mxu0 0
  %4677 = vmatpush.bf16.xpose.msra.mxu0 0
  %4678 = vmatpush.bf16.xpose.msra.mxu0 0
  %4679 = vmatpush.bf16.xpose.msra.mxu0 0
  %4680 = vmatpush.bf16.xpose.msra.mxu0 %v4672
  %4681 = vmatpush.bf16.xpose.msra.mxu0 %v4669
  %4682 = vmatmul.bf16.gmra.mxu0 %v4663
  %v4683 = vpop.f32.mrf.mxu0
  %v4684 = vadd.f32 0.0, %v4683
  %v4685 = vpop.f32.mrf.mxu0
  %v4686 = vadd.f32 0.0, %v4685
  %4687 = vmatmul.bf16.gmra.mxu0 %v4666
  %v4688 = vpop.f32.mrf.mxu0
  %v4689 = vadd.f32 0.0, %v4688
  %v4690 = vpop.f32.mrf.mxu0
  %4691 = vdwg.mxu0
  %v4692 = vsel %vm368, %v4684, -inf
  %4693 = vmax.xlane.f32.xlu0 %v4692
  %v4694 = vpop.xlane.xlu0 %4693
  %v4695 = vsel %vm368, %v4686, -inf
  %4696 = vmax.xlane.f32.xlu0 %v4695
  %v4697 = vpop.xlane.xlu0 %4696
  %v4698 = vsel %vm375, %v4689, -inf
  %4699 = vmax.xlane.f32.xlu0 %v4698
  %v4700 = vpop.xlane.xlu0 %4699
  %v4701 = vsub.f32 %v4684, %v4694
  %v4702 = vsub.f32 %v4686, %v4697
  %v4703 = vsub.f32 %v4689, %v4700
  %v4704 = vmul.f32 %v4701, 1.442695
  %v4705 = vpow.pop %v4704
  %v4706 = vmul.f32 %v4702, 1.442695
  %v4707 = vpow.pop %v4706
  %v4708 = vmul.f32 %v4703, 1.442695
  %v4709 = vpow.pop %v4708
  %v4710 = vsel %vm368, %v4705, 0.0
  %4711 = vadd.xlane.f32.xlu0 %v4710
  %v4712 = vpop.xlane.xlu0 %4711
  %v4713 = vsel %vm368, %v4707, 0.0
  %4714 = vadd.xlane.f32.xlu0 %v4713
  %v4715 = vpop.xlane.xlu0 %4714
  %v4716 = vsel %vm375, %v4709, 0.0
  %4717 = vadd.xlane.f32.xlu0 %v4716
  %v4718 = vpop.xlane.xlu0 %4717
  %v4719 = vrcp.pop %v4712
  %v4720 = vrcp.pop %v4715
  %v4721 = vrcp.pop %v4718
  %v4722 = vmul.f32 %v4705, %v4719
  %v4723 = vmul.f32 %v4707, %v4720
  %v4724 = vmul.f32 %v4709, %v4721
  %v4725 = vpack.c.bf16 %v4723, %v4722
  %v4726 = vpack.c.bf16 %v4724, %v4724
  %4727 = vrot.lane.b32.xlu0 %v4654, 64
  %v4728 = vpop.permute.xlu0 %4727
  %4729 = vrot.lane.b32.xlu0 %v4655, 64
  %v4730 = vpop.permute.xlu0 %4729
  %v4733 = vsel %vm368, %v4725, 0
  %v4736 = vsel %vm368, %v4726, 0
  %v4739 = vand.u32 %v4730, %v418
  %4741 = vmatpush.bf16.msra.mxu0 0
  %4742 = vmatpush.bf16.msra.mxu0 0
  %4743 = vmatpush.bf16.msra.mxu0 0
  %4744 = vmatpush.bf16.msra.mxu0 0
  %4745 = vmatpush.bf16.msra.mxu0 0
  %4746 = vmatpush.bf16.msra.mxu0 0
  %4747 = vmatpush.bf16.msra.mxu0 %v4739
  %4748 = vmatpush.bf16.msra.mxu0 %v4728
  %4749 = vmatmul.bf16.gmra.mxu0 %v4733
  %v4750 = vpop.f32.mrf.mxu0
  %v4751 = vadd.f32 0.0, %v4750
  %v4752 = vpop.f32.mrf.mxu0
  %v4753 = vadd.f32 0.0, %v4752
  %4754 = vmatmul.bf16.gmra.mxu0 %v4736
  %v4755 = vpop.f32.mrf.mxu0
  %v4756 = vadd.f32 0.0, %v4755
  %v4757 = vpop.f32.mrf.mxu0
  %4758 = vdwg.mxu0
  %4759 = vrot.lane.b32.xlu0 %v4654, 112
  %v4760 = vpop.permute.xlu0 %4759
  %4761 = vrot.lane.b32.xlu0 %v4655, 112
  %v4762 = vpop.permute.xlu0 %4761
  %4763 = vrot.lane.b32.xlu0 %v4654, 80
  %v4764 = vpop.permute.xlu0 %4763
  %4765 = vrot.lane.b32.xlu0 %v4655, 80
  %v4766 = vpop.permute.xlu0 %4765
  %v4768 = vsel %vm337, %v4760, 0
  %v4771 = vsel %vm337, %v4762, 0
  %v4774 = vsel %vm337, %v4764, 0
  %v4777 = vsel %vm337, %v4766, 0
  %4779 = vmatpush.bf16.xpose.msra.mxu0 0
  %4780 = vmatpush.bf16.xpose.msra.mxu0 0
  %4781 = vmatpush.bf16.xpose.msra.mxu0 0
  %4782 = vmatpush.bf16.xpose.msra.mxu0 0
  %4783 = vmatpush.bf16.xpose.msra.mxu0 0
  %4784 = vmatpush.bf16.xpose.msra.mxu0 0
  %4785 = vmatpush.bf16.xpose.msra.mxu0 %v4777
  %4786 = vmatpush.bf16.xpose.msra.mxu0 %v4774
  %4787 = vmatmul.bf16.gmra.mxu0 %v4768
  %v4788 = vpop.f32.mrf.mxu0
  %v4789 = vadd.f32 0.0, %v4788
  %v4790 = vpop.f32.mrf.mxu0
  %v4791 = vadd.f32 0.0, %v4790
  %4792 = vmatmul.bf16.gmra.mxu0 %v4771
  %v4793 = vpop.f32.mrf.mxu0
  %v4794 = vadd.f32 0.0, %v4793
  %v4795 = vpop.f32.mrf.mxu0
  %4796 = vdwg.mxu0
  %v4797 = vsel %vm368, %v4789, -inf
  %4798 = vmax.xlane.f32.xlu0 %v4797
  %v4799 = vpop.xlane.xlu0 %4798
  %v4800 = vsel %vm368, %v4791, -inf
  %4801 = vmax.xlane.f32.xlu0 %v4800
  %v4802 = vpop.xlane.xlu0 %4801
  %v4803 = vsel %vm375, %v4794, -inf
  %4804 = vmax.xlane.f32.xlu0 %v4803
  %v4805 = vpop.xlane.xlu0 %4804
  %v4806 = vsub.f32 %v4789, %v4799
  %v4807 = vsub.f32 %v4791, %v4802
  %v4808 = vsub.f32 %v4794, %v4805
  %v4809 = vmul.f32 %v4806, 1.442695
  %v4810 = vpow.pop %v4809
  %v4811 = vmul.f32 %v4807, 1.442695
  %v4812 = vpow.pop %v4811
  %v4813 = vmul.f32 %v4808, 1.442695
  %v4814 = vpow.pop %v4813
  %v4815 = vsel %vm368, %v4810, 0.0
  %4816 = vadd.xlane.f32.xlu0 %v4815
  %v4817 = vpop.xlane.xlu0 %4816
  %v4818 = vsel %vm368, %v4812, 0.0
  %4819 = vadd.xlane.f32.xlu0 %v4818
  %v4820 = vpop.xlane.xlu0 %4819
  %v4821 = vsel %vm375, %v4814, 0.0
  %4822 = vadd.xlane.f32.xlu0 %v4821
  %v4823 = vpop.xlane.xlu0 %4822
  %v4824 = vrcp.pop %v4817
  %v4825 = vrcp.pop %v4820
  %v4826 = vrcp.pop %v4823
  %v4827 = vmul.f32 %v4810, %v4824
  %v4828 = vmul.f32 %v4812, %v4825
  %v4829 = vmul.f32 %v4814, %v4826
  %v4830 = vpack.c.bf16 %v4828, %v4827
  %v4831 = vpack.c.bf16 %v4829, %v4829
  %4832 = vrot.lane.b32.xlu0 %v4654, 48
  %v4833 = vpop.permute.xlu0 %4832
  %4834 = vrot.lane.b32.xlu0 %v4655, 48
  %v4835 = vpop.permute.xlu0 %4834
  %v4838 = vsel %vm368, %v4830, 0
  %v4841 = vsel %vm368, %v4831, 0
  %v4844 = vand.u32 %v4835, %v418
  %4846 = vmatpush.bf16.msra.mxu0 0
  %4847 = vmatpush.bf16.msra.mxu0 0
  %4848 = vmatpush.bf16.msra.mxu0 0
  %4849 = vmatpush.bf16.msra.mxu0 0
  %4850 = vmatpush.bf16.msra.mxu0 0
  %4851 = vmatpush.bf16.msra.mxu0 0
  %4852 = vmatpush.bf16.msra.mxu0 %v4844
  %4853 = vmatpush.bf16.msra.mxu0 %v4833
  %4854 = vmatmul.bf16.gmra.mxu0 %v4838
  %v4855 = vpop.f32.mrf.mxu0
  %v4856 = vadd.f32 0.0, %v4855
  %v4857 = vpop.f32.mrf.mxu0
  %v4858 = vadd.f32 0.0, %v4857
  %4859 = vmatmul.bf16.gmra.mxu0 %v4841
  %v4860 = vpop.f32.mrf.mxu0
  %v4861 = vadd.f32 0.0, %v4860
  %v4862 = vpop.f32.mrf.mxu0
  %4863 = vdwg.mxu0
  %v4864 = vld [vmem:[%s1209] sm:$0xf]
  %v4865 = vld [vmem:[%s1209 + $0x4] sm:$0xf]
  %v4866 = vld [vmem:[%s1209 + $0x8] sm:$0xf]
  %v4867 = vld [vmem:[%s1209 + $0xc] sm:$0xf]
  %v4868 = vpack.c.bf16 %v4753, %v4751
  %v4869 = vpack.c.bf16 %v4756, %v4756
  %v4870 = vpack.c.bf16 %v4858, %v4856
  %v4871 = vpack.c.bf16 %v4861, %v4861
  %v4874 = vunpack.c.l.b16 %v4866
  %v4875 = vunpack.c.l.b16 %v4867
  %v4876 = vpack.c.b16 %v4875, %v4874
  %v4879 = vsel %vm337, %v4870, 0
  %v4882 = vsel %vm337, %v4871, 0
  %4884 = vmatpush.bf16.msra.mxu0 0
  %4885 = vmatpush.bf16.msra.mxu0 0
  %4886 = vmatpush.bf16.msra.mxu0 0
  %4887 = vmatpush.bf16.msra.mxu0 0
  %4888 = vmatpush.bf16.msra.mxu0 0
  %4889 = vmatpush.bf16.msra.mxu0 0
  %4890 = vmatpush.bf16.msra.mxu0 0
  %4891 = vmatpush.bf16.msra.mxu0 %v4876
  %4892 = vmatmul.bf16.gmra.mxu0 %v4879
  %v4893 = vpop.f32.mrf.mxu0
  %v4894 = vadd.f32 0.0, %v4893
  %v4895 = vpop.f32.mrf.mxu0
  %v4896 = vadd.f32 0.0, %v4895
  %4897 = vmatmul.bf16.gmra.mxu0 %v4882
  %v4898 = vpop.f32.mrf.mxu0
  %v4899 = vadd.f32 0.0, %v4898
  %v4900 = vpop.f32.mrf.mxu0
  %4901 = vdwg.mxu0
  %v4904 = vunpack.c.l.b16 %v4864
  %v4905 = vunpack.c.l.b16 %v4865
  %v4906 = vpack.c.b16 %v4905, %v4904
  %v4909 = vsel %vm337, %v4868, 0
  %v4912 = vsel %vm337, %v4869, 0
  %4914 = vmatpush.bf16.msra.mxu0 0
  %4915 = vmatpush.bf16.msra.mxu0 0
  %4916 = vmatpush.bf16.msra.mxu0 0
  %4917 = vmatpush.bf16.msra.mxu0 0
  %4918 = vmatpush.bf16.msra.mxu0 0
  %4919 = vmatpush.bf16.msra.mxu0 0
  %4920 = vmatpush.bf16.msra.mxu0 0
  %4921 = vmatpush.bf16.msra.mxu0 %v4906
  %4922 = vmatmul.bf16.gmra.mxu0 %v4909
  %v4923 = vpop.f32.mrf.mxu0
  %v4924 = vadd.f32 %v4894, %v4923
  %v4925 = vpop.f32.mrf.mxu0
  %v4926 = vadd.f32 %v4896, %v4925
  %4927 = vmatmul.bf16.gmra.mxu0 %v4912
  %v4928 = vpop.f32.mrf.mxu0
  %v4929 = vadd.f32 %v4899, %v4928
  %v4930 = vpop.f32.mrf.mxu0
  %4931 = vdwg.mxu0
  %v4932 = vld [vmem:[%s1278] sm:$0x1]
  %v4934 = vperm.slane %v4932, 0
  %v4936 = vadd.f32 %v4924, %v4934
  %v4937 = vadd.f32 %v4926, %v4934
  %v4938 = vadd.f32 %v4929, %v4934
  %v4939 = vadd.f32 %v4523, %v4936
  %v4940 = vadd.f32 %v4524, %v4937
  %v4941 = vadd.f32 %v4525, %v4938
  %v4942 = vld [vmem:[%s1289] sm:$0x1]
  %v4943 = vld [vmem:[%s1291] sm:$0x1]
  %v4944 = vsel %vm196, %v4939, 0.0
  %4945 = vadd.xlane.f32.xlu0 %v4944
  %v4946 = vpop.xlane.xlu0 %4945
  %v4947 = vsel %vm196, %v4940, 0.0
  %4948 = vadd.xlane.f32.xlu0 %v4947
  %v4949 = vpop.xlane.xlu0 %4948
  %v4950 = vsel %vm203, %v4941, 0.0
  %4951 = vadd.xlane.f32.xlu0 %v4950
  %v4952 = vpop.xlane.xlu0 %4951
  %v4953 = vmul.f32 %v4946, %v213
  %v4954 = vmul.f32 %v4949, %v213
  %v4955 = vmul.f32 %v4952, %v213
  %v4956 = vsub.f32 %v4939, %v4953
  %v4957 = vsub.f32 %v4940, %v4954
  %v4958 = vsub.f32 %v4941, %v4955
  %v4959 = vmul.f32 %v4956, %v4956
  %v4960 = vmul.f32 %v4957, %v4957
  %v4961 = vmul.f32 %v4958, %v4958
  %v4962 = vsel %vm196, %v4959, 0.0
  %4963 = vadd.xlane.f32.xlu0 %v4962
  %v4964 = vpop.xlane.xlu0 %4963
  %v4965 = vsel %vm196, %v4960, 0.0
  %4966 = vadd.xlane.f32.xlu0 %v4965
  %v4967 = vpop.xlane.xlu0 %4966
  %v4968 = vsel %vm203, %v4961, 0.0
  %4969 = vadd.xlane.f32.xlu0 %v4968
  %v4970 = vpop.xlane.xlu0 %4969
  %v4971 = vmul.f32 %v4964, %v213
  %v4972 = vmul.f32 %v4967, %v213
  %v4973 = vmul.f32 %v4970, %v213
  %v4974 = vadd.f32 %v4971, 1e-06
  %v4975 = vadd.f32 %v4972, 1e-06
  %v4976 = vadd.f32 %v4973, 1e-06
  %v4977 = vrsqrt.pop %v4974
  %v4978 = vmul.f32 %v4977, %v4974
  %v4979 = vmul.f32 %v4978, %v4977
  %v4980 = vmul.f32 0.5, %v4979
  %v4981 = vsub.f32 1.5, %v4980
  %v4982 = vmul.f32 %v4977, %v4981
  %vm4983 = vweird.f32 %v4974
  %vm4984 = vweird.f32 %v4977
  %vm4985 = vmor %vm4983, %vm4984
  %v4986 = vsel %vm4985, %v4977, %v4982
  %v4987 = vrsqrt.pop %v4975
  %v4988 = vmul.f32 %v4987, %v4975
  %v4989 = vmul.f32 %v4988, %v4987
  %v4990 = vmul.f32 0.5, %v4989
  %v4991 = vsub.f32 1.5, %v4990
  %v4992 = vmul.f32 %v4987, %v4991
  %vm4993 = vweird.f32 %v4975
  %vm4994 = vweird.f32 %v4987
  %vm4995 = vmor %vm4993, %vm4994
  %v4996 = vsel %vm4995, %v4987, %v4992
  %v4997 = vrsqrt.pop %v4976
  %v4998 = vmul.f32 %v4997, %v4976
  %v4999 = vmul.f32 %v4998, %v4997
  %v5000 = vmul.f32 0.5, %v4999
  %v5001 = vsub.f32 1.5, %v5000
  %v5002 = vmul.f32 %v4997, %v5001
  %vm5003 = vweird.f32 %v4976
  %vm5004 = vweird.f32 %v4997
  %vm5005 = vmor %vm5003, %vm5004
  %v5006 = vsel %vm5005, %v4997, %v5002
  %v5007 = vmul.f32 %v4956, %v4986
  %v5008 = vmul.f32 %v4957, %v4996
  %v5009 = vmul.f32 %v4958, %v5006
  %v5011 = vperm.slane %v4942, 0
  %v5013 = vmul.f32 %v5007, %v5011
  %v5014 = vmul.f32 %v5008, %v5011
  %v5015 = vmul.f32 %v5009, %v5011
  %v5017 = vperm.slane %v4943, 0
  %v5019 = vadd.f32 %v5013, %v5017
  %v5020 = vadd.f32 %v5014, %v5017
  %v5021 = vadd.f32 %v5015, %v5017
  %v5022 = vpack.c.bf16 %v5020, %v5019
  %v5023 = vpack.c.bf16 %v5021, %v5021
  %v5024 = vld [vmem:[%s1373] sm:$0xf]
  %v5025 = vld [vmem:[%s1373 + $0x4] sm:$0xf]
  %v5026 = vld [vmem:[%s1373 + $0x8] sm:$0xf]
  %v5027 = vld [vmem:[%s1373 + $0xc] sm:$0xf]
  %v5028 = vld [vmem:[%s1378] sm:$0x1]
  %v5030 = vperm.slane %v5028, 0
  %v5036 = vunpack.c.l.b16 %v5024
  %v5037 = vunpack.c.l.b16 %v5025
  %v5038 = vunpack.c.l.b16 %v5026
  %v5039 = vunpack.c.l.b16 %v5027
  %v5040 = vpack.c.b16 %v5037, %v5036
  %v5041 = vpack.c.b16 %v5039, %v5038
  %v5045 = vsel %vm196, %v5022, 0
  %v5048 = vsel %vm196, %v5023, 0
  %5050 = vmatpush.bf16.msra.mxu0 0
  %5051 = vmatpush.bf16.msra.mxu0 0
  %5052 = vmatpush.bf16.msra.mxu0 0
  %5053 = vmatpush.bf16.msra.mxu0 0
  %5054 = vmatpush.bf16.msra.mxu0 0
  %5055 = vmatpush.bf16.msra.mxu0 0
  %5056 = vmatpush.bf16.msra.mxu0 %v5041
  %5057 = vmatpush.bf16.msra.mxu0 %v5040
  %5058 = vmatmul.bf16.gmra.mxu0 %v5045
  %v5059 = vpop.f32.mrf.mxu0
  %v5060 = vadd.f32 %v5030, %v5059
  %v5061 = vpop.f32.mrf.mxu0
  %v5062 = vadd.f32 %v5030, %v5061
  %5063 = vmatmul.bf16.gmra.mxu0 %v5048
  %v5064 = vpop.f32.mrf.mxu0
  %v5065 = vadd.f32 %v5030, %v5064
  %v5066 = vpop.f32.mrf.mxu0
  %5067 = vdwg.mxu0
  %v5068 = vmul.f32 %v5060, %v5060
  %v5069 = vmul.f32 %v5062, %v5062
  %v5070 = vmul.f32 %v5065, %v5065
  %v5071 = vmul.f32 %v5060, %v5068
  %v5072 = vmul.f32 %v5062, %v5069
  %v5073 = vmul.f32 %v5065, %v5070
  %v5074 = vmul.f32 %v5071, 0.044715
  %v5075 = vmul.f32 %v5072, 0.044715
  %v5076 = vmul.f32 %v5073, 0.044715
  %v5077 = vadd.f32 %v5060, %v5074
  %v5078 = vadd.f32 %v5062, %v5075
  %v5079 = vadd.f32 %v5065, %v5076
  %v5080 = vmul.f32 %v5077, 0.7978846
  %v5081 = vmul.f32 %v5078, 0.7978846
  %v5082 = vmul.f32 %v5079, 0.7978846
  %v5083 = vtanh.pop %v5080
  %v5084 = vtanh.pop %v5081
  %v5085 = vtanh.pop %v5082
  %v5086 = vadd.f32 %v5083, 1.0
  %v5087 = vadd.f32 %v5084, 1.0
  %v5088 = vadd.f32 %v5085, 1.0
  %v5089 = vmul.f32 %v5086, 0.5
  %v5090 = vmul.f32 %v5087, 0.5
  %v5091 = vmul.f32 %v5088, 0.5
  %v5092 = vmul.f32 %v5060, %v5089
  %v5093 = vmul.f32 %v5062, %v5090
  %v5094 = vmul.f32 %v5065, %v5091
  %v5095 = vpack.c.bf16 %v5093, %v5092
  %v5096 = vpack.c.bf16 %v5094, %v5094
  %v5097 = vld [vmem:[%s1448] sm:$0xf]
  %v5098 = vld [vmem:[%s1448 + $0x4] sm:$0xf]
  %v5099 = vld [vmem:[%s1448 + $0x8] sm:$0xf]
  %v5100 = vld [vmem:[%s1448 + $0xc] sm:$0xf]
  %v5101 = vld [vmem:[%s1448 + $0x10] sm:$0xf]
  %v5102 = vld [vmem:[%s1448 + $0x14] sm:$0xf]
  %v5103 = vld [vmem:[%s1448 + $0x18] sm:$0xf]
  %v5104 = vld [vmem:[%s1448 + $0x1c] sm:$0xf]
  %v5105 = vld [vmem:[%s1448 + $0x20] sm:$0xf]
  %v5106 = vld [vmem:[%s1448 + $0x24] sm:$0xf]
  %v5107 = vld [vmem:[%s1448 + $0x28] sm:$0xf]
  %v5108 = vld [vmem:[%s1448 + $0x2c] sm:$0xf]
  %v5109 = vld [vmem:[%s1448 + $0x30] sm:$0xf]
  %v5110 = vld [vmem:[%s1448 + $0x34] sm:$0xf]
  %v5111 = vld [vmem:[%s1448 + $0x38] sm:$0xf]
  %v5112 = vld [vmem:[%s1448 + $0x3c] sm:$0xf]
  %v5113 = vld [vmem:[%s1465] sm:$0x1]
  %v5115 = vperm.slane %v5113, 0
  %v5133 = vunpack.c.l.b16 %v5097
  %v5134 = vunpack.c.l.b16 %v5098
  %v5135 = vunpack.c.l.b16 %v5099
  %v5136 = vunpack.c.l.b16 %v5100
  %v5137 = vunpack.c.l.b16 %v5101
  %v5138 = vunpack.c.l.b16 %v5102
  %v5139 = vunpack.c.l.b16 %v5103
  %v5140 = vunpack.c.l.b16 %v5104
  %v5141 = vunpack.c.l.b16 %v5105
  %v5142 = vunpack.c.l.b16 %v5106
  %v5143 = vunpack.c.l.b16 %v5107
  %v5144 = vunpack.c.l.b16 %v5108
  %v5145 = vunpack.c.l.b16 %v5109
  %v5146 = vunpack.c.l.b16 %v5110
  %v5147 = vunpack.c.l.b16 %v5111
  %v5148 = vunpack.c.l.b16 %v5112
  %v5149 = vpack.c.b16 %v5134, %v5133
  %v5150 = vpack.c.b16 %v5136, %v5135
  %v5151 = vpack.c.b16 %v5138, %v5137
  %v5152 = vpack.c.b16 %v5140, %v5139
  %v5153 = vpack.c.b16 %v5142, %v5141
  %v5154 = vpack.c.b16 %v5144, %v5143
  %v5155 = vpack.c.b16 %v5146, %v5145
  %v5156 = vpack.c.b16 %v5148, %v5147
  %5165 = vmatpush.bf16.msra.mxu0 %v5156
  %5166 = vmatpush.bf16.msra.mxu0 %v5155
  %5167 = vmatpush.bf16.msra.mxu0 %v5154
  %5168 = vmatpush.bf16.msra.mxu0 %v5153
  %5169 = vmatpush.bf16.msra.mxu0 %v5152
  %5170 = vmatpush.bf16.msra.mxu0 %v5151
  %5171 = vmatpush.bf16.msra.mxu0 %v5150
  %5172 = vmatpush.bf16.msra.mxu0 %v5149
  %5173 = vmatmul.bf16.gmra.mxu0 %v5095
  %v5174 = vpop.f32.mrf.mxu0
  %v5175 = vadd.f32 %v5115, %v5174
  %v5176 = vpop.f32.mrf.mxu0
  %v5177 = vadd.f32 %v5115, %v5176
  %5178 = vmatmul.bf16.gmra.mxu0 %v5096
  %v5179 = vpop.f32.mrf.mxu0
  %v5180 = vadd.f32 %v5115, %v5179
  %v5181 = vpop.f32.mrf.mxu0
  %5182 = vdwg.mxu0
  %v5183 = vadd.f32 %v4939, %v5175
  %v5184 = vadd.f32 %v4940, %v5177
  %v5185 = vadd.f32 %v4941, %v5180
  %5188 = vrot.lane.b32.xlu0 %v5183, 32
  %v5189 = vpop.permute.xlu0 %5188
  %5190 = vrot.lane.b32.xlu0 %v5184, 32
  %v5191 = vpop.permute.xlu0 %5190
  %5194 = vst.msk [vmem:[%s3809] sm:$0xff] %vm1547, %v5189
  %5195 = vst.msk [vmem:[%s3809 + $0x10] sm:$0xff] %vm1547, %v5191
  %v5196 = vld [vmem:[%s1550] sm:$0x1]
  %v5197 = vld [vmem:[%s1552] sm:$0x1]
  %v5198 = vsel %vm196, %v5183, 0.0
  %5199 = vadd.xlane.f32.xlu0 %v5198
  %v5200 = vpop.xlane.xlu0 %5199
  %v5201 = vsel %vm196, %v5184, 0.0
  %5202 = vadd.xlane.f32.xlu0 %v5201
  %v5203 = vpop.xlane.xlu0 %5202
  %v5204 = vsel %vm203, %v5185, 0.0
  %5205 = vadd.xlane.f32.xlu0 %v5204
  %v5206 = vpop.xlane.xlu0 %5205
  %v5207 = vmul.f32 %v5200, %v213
  %v5208 = vmul.f32 %v5203, %v213
  %v5209 = vmul.f32 %v5206, %v213
  %v5210 = vsub.f32 %v5183, %v5207
  %v5211 = vsub.f32 %v5184, %v5208
  %v5212 = vsub.f32 %v5185, %v5209
  %v5213 = vmul.f32 %v5210, %v5210
  %v5214 = vmul.f32 %v5211, %v5211
  %v5215 = vmul.f32 %v5212, %v5212
  %v5216 = vsel %vm196, %v5213, 0.0
  %5217 = vadd.xlane.f32.xlu0 %v5216
  %v5218 = vpop.xlane.xlu0 %5217
  %v5219 = vsel %vm196, %v5214, 0.0
  %5220 = vadd.xlane.f32.xlu0 %v5219
  %v5221 = vpop.xlane.xlu0 %5220
  %v5222 = vsel %vm203, %v5215, 0.0
  %5223 = vadd.xlane.f32.xlu0 %v5222
  %v5224 = vpop.xlane.xlu0 %5223
  %v5225 = vmul.f32 %v5218, %v213
  %v5226 = vmul.f32 %v5221, %v213
  %v5227 = vmul.f32 %v5224, %v213
  %v5228 = vadd.f32 %v5225, 1e-06
  %v5229 = vadd.f32 %v5226, 1e-06
  %v5230 = vadd.f32 %v5227, 1e-06
  %v5231 = vrsqrt.pop %v5228
  %v5232 = vmul.f32 %v5231, %v5228
  %v5233 = vmul.f32 %v5232, %v5231
  %v5234 = vmul.f32 0.5, %v5233
  %v5235 = vsub.f32 1.5, %v5234
  %v5236 = vmul.f32 %v5231, %v5235
  %vm5237 = vweird.f32 %v5228
  %vm5238 = vweird.f32 %v5231
  %vm5239 = vmor %vm5237, %vm5238
  %v5240 = vsel %vm5239, %v5231, %v5236
  %v5241 = vrsqrt.pop %v5229
  %v5242 = vmul.f32 %v5241, %v5229
  %v5243 = vmul.f32 %v5242, %v5241
  %v5244 = vmul.f32 0.5, %v5243
  %v5245 = vsub.f32 1.5, %v5244
  %v5246 = vmul.f32 %v5241, %v5245
  %vm5247 = vweird.f32 %v5229
  %vm5248 = vweird.f32 %v5241
  %vm5249 = vmor %vm5247, %vm5248
  %v5250 = vsel %vm5249, %v5241, %v5246
  %v5251 = vrsqrt.pop %v5230
  %v5252 = vmul.f32 %v5251, %v5230
  %v5253 = vmul.f32 %v5252, %v5251
  %v5254 = vmul.f32 0.5, %v5253
  %v5255 = vsub.f32 1.5, %v5254
  %v5256 = vmul.f32 %v5251, %v5255
  %vm5257 = vweird.f32 %v5230
  %vm5258 = vweird.f32 %v5251
  %vm5259 = vmor %vm5257, %vm5258
  %v5260 = vsel %vm5259, %v5251, %v5256
  %v5261 = vmul.f32 %v5210, %v5240
  %v5262 = vmul.f32 %v5211, %v5250
  %v5263 = vmul.f32 %v5212, %v5260
  %v5265 = vperm.slane %v5196, 0
  %v5267 = vmul.f32 %v5261, %v5265
  %v5268 = vmul.f32 %v5262, %v5265
  %v5269 = vmul.f32 %v5263, %v5265
  %v5271 = vperm.slane %v5197, 0
  %v5273 = vadd.f32 %v5267, %v5271
  %v5274 = vadd.f32 %v5268, %v5271
  %v5275 = vadd.f32 %v5269, %v5271
  %v5276 = vpack.c.bf16 %v5274, %v5273
  %v5277 = vpack.c.bf16 %v5275, %v5275
  %v5278 = vld [vmem:[%s1634] sm:$0xf]
  %v5279 = vld [vmem:[%s1634 + $0x4] sm:$0xf]
  %v5280 = vld [vmem:[%s1634 + $0x8] sm:$0xf]
  %v5281 = vld [vmem:[%s1634 + $0xc] sm:$0xf]
  %v5282 = vld [vmem:[%s1639] sm:$0x1]
  %v5284 = vperm.slane %v5282, 0
  %v5290 = vunpack.c.l.b16 %v5278
  %v5291 = vunpack.c.l.b16 %v5279
  %v5292 = vunpack.c.l.b16 %v5280
  %v5293 = vunpack.c.l.b16 %v5281
  %v5294 = vpack.c.b16 %v5291, %v5290
  %v5295 = vpack.c.b16 %v5293, %v5292
  %v5299 = vsel %vm196, %v5276, 0
  %v5302 = vsel %vm196, %v5277, 0
  %5304 = vmatpush.bf16.msra.mxu0 0
  %5305 = vmatpush.bf16.msra.mxu0 0
  %5306 = vmatpush.bf16.msra.mxu0 0
  %5307 = vmatpush.bf16.msra.mxu0 0
  %5308 = vmatpush.bf16.msra.mxu0 0
  %5309 = vmatpush.bf16.msra.mxu0 0
  %5310 = vmatpush.bf16.msra.mxu0 %v5295
  %5311 = vmatpush.bf16.msra.mxu0 %v5294
  %5312 = vmatmul.bf16.gmra.mxu0 %v5299
  %v5313 = vpop.f32.mrf.mxu0
  %v5314 = vadd.f32 %v5284, %v5313
  %v5315 = vpop.f32.mrf.mxu0
  %v5316 = vadd.f32 %v5284, %v5315
  %5317 = vmatmul.bf16.gmra.mxu0 %v5302
  %v5318 = vpop.f32.mrf.mxu0
  %v5319 = vadd.f32 %v5284, %v5318
  %v5320 = vpop.f32.mrf.mxu0
  %5321 = vdwg.mxu0
  %v5322 = vpack.c.bf16 %v5316, %v5314
  %v5323 = vpack.c.bf16 %v5319, %v5319
  %5326 = vrot.lane.b32.xlu0 %v5322, 96
  %v5327 = vpop.permute.xlu0 %5326
  %5328 = vrot.lane.b32.xlu0 %v5323, 96
  %v5329 = vpop.permute.xlu0 %5328
  %v5331 = vsel %vm337, %v5322, 0
  %v5334 = vsel %vm337, %v5323, 0
  %v5337 = vsel %vm337, %v5327, 0
  %v5340 = vsel %vm337, %v5329, 0
  %5342 = vmatpush.bf16.xpose.msra.mxu0 0
  %5343 = vmatpush.bf16.xpose.msra.mxu0 0
  %5344 = vmatpush.bf16.xpose.msra.mxu0 0
  %5345 = vmatpush.bf16.xpose.msra.mxu0 0
  %5346 = vmatpush.bf16.xpose.msra.mxu0 0
  %5347 = vmatpush.bf16.xpose.msra.mxu0 0
  %5348 = vmatpush.bf16.xpose.msra.mxu0 %v5340
  %5349 = vmatpush.bf16.xpose.msra.mxu0 %v5337
  %5350 = vmatmul.bf16.gmra.mxu0 %v5331
  %v5351 = vpop.f32.mrf.mxu0
  %v5352 = vadd.f32 0.0, %v5351
  %v5353 = vpop.f32.mrf.mxu0
  %v5354 = vadd.f32 0.0, %v5353
  %5355 = vmatmul.bf16.gmra.mxu0 %v5334
  %v5356 = vpop.f32.mrf.mxu0
  %v5357 = vadd.f32 0.0, %v5356
  %v5358 = vpop.f32.mrf.mxu0
  %5359 = vdwg.mxu0
  %v5360 = vsel %vm368, %v5352, -inf
  %5361 = vmax.xlane.f32.xlu0 %v5360
  %v5362 = vpop.xlane.xlu0 %5361
  %v5363 = vsel %vm368, %v5354, -inf
  %5364 = vmax.xlane.f32.xlu0 %v5363
  %v5365 = vpop.xlane.xlu0 %5364
  %v5366 = vsel %vm375, %v5357, -inf
  %5367 = vmax.xlane.f32.xlu0 %v5366
  %v5368 = vpop.xlane.xlu0 %5367
  %v5369 = vsub.f32 %v5352, %v5362
  %v5370 = vsub.f32 %v5354, %v5365
  %v5371 = vsub.f32 %v5357, %v5368
  %v5372 = vmul.f32 %v5369, 1.442695
  %v5373 = vpow.pop %v5372
  %v5374 = vmul.f32 %v5370, 1.442695
  %v5375 = vpow.pop %v5374
  %v5376 = vmul.f32 %v5371, 1.442695
  %v5377 = vpow.pop %v5376
  %v5378 = vsel %vm368, %v5373, 0.0
  %5379 = vadd.xlane.f32.xlu0 %v5378
  %v5380 = vpop.xlane.xlu0 %5379
  %v5381 = vsel %vm368, %v5375, 0.0
  %5382 = vadd.xlane.f32.xlu0 %v5381
  %v5383 = vpop.xlane.xlu0 %5382
  %v5384 = vsel %vm375, %v5377, 0.0
  %5385 = vadd.xlane.f32.xlu0 %v5384
  %v5386 = vpop.xlane.xlu0 %5385
  %v5387 = vrcp.pop %v5380
  %v5388 = vrcp.pop %v5383
  %v5389 = vrcp.pop %v5386
  %v5390 = vmul.f32 %v5373, %v5387
  %v5391 = vmul.f32 %v5375, %v5388
  %v5392 = vmul.f32 %v5377, %v5389
  %v5393 = vpack.c.bf16 %v5391, %v5390
  %v5394 = vpack.c.bf16 %v5392, %v5392
  %5395 = vrot.lane.b32.xlu0 %v5322, 64
  %v5396 = vpop.permute.xlu0 %5395
  %5397 = vrot.lane.b32.xlu0 %v5323, 64
  %v5398 = vpop.permute.xlu0 %5397
  %v5401 = vsel %vm368, %v5393, 0
  %v5404 = vsel %vm368, %v5394, 0
  %v5407 = vand.u32 %v5398, %v418
  %5409 = vmatpush.bf16.msra.mxu0 0
  %5410 = vmatpush.bf16.msra.mxu0 0
  %5411 = vmatpush.bf16.msra.mxu0 0
  %5412 = vmatpush.bf16.msra.mxu0 0
  %5413 = vmatpush.bf16.msra.mxu0 0
  %5414 = vmatpush.bf16.msra.mxu0 0
  %5415 = vmatpush.bf16.msra.mxu0 %v5407
  %5416 = vmatpush.bf16.msra.mxu0 %v5396
  %5417 = vmatmul.bf16.gmra.mxu0 %v5401
  %v5418 = vpop.f32.mrf.mxu0
  %v5419 = vadd.f32 0.0, %v5418
  %v5420 = vpop.f32.mrf.mxu0
  %v5421 = vadd.f32 0.0, %v5420
  %5422 = vmatmul.bf16.gmra.mxu0 %v5404
  %v5423 = vpop.f32.mrf.mxu0
  %v5424 = vadd.f32 0.0, %v5423
  %v5425 = vpop.f32.mrf.mxu0
  %5426 = vdwg.mxu0
  %5427 = vrot.lane.b32.xlu0 %v5322, 112
  %v5428 = vpop.permute.xlu0 %5427
  %5429 = vrot.lane.b32.xlu0 %v5323, 112
  %v5430 = vpop.permute.xlu0 %5429
  %5431 = vrot.lane.b32.xlu0 %v5322, 80
  %v5432 = vpop.permute.xlu0 %5431
  %5433 = vrot.lane.b32.xlu0 %v5323, 80
  %v5434 = vpop.permute.xlu0 %5433
  %v5436 = vsel %vm337, %v5428, 0
  %v5439 = vsel %vm337, %v5430, 0
  %v5442 = vsel %vm337, %v5432, 0
  %v5445 = vsel %vm337, %v5434, 0
  %5447 = vmatpush.bf16.xpose.msra.mxu0 0
  %5448 = vmatpush.bf16.xpose.msra.mxu0 0
  %5449 = vmatpush.bf16.xpose.msra.mxu0 0
  %5450 = vmatpush.bf16.xpose.msra.mxu0 0
  %5451 = vmatpush.bf16.xpose.msra.mxu0 0
  %5452 = vmatpush.bf16.xpose.msra.mxu0 0
  %5453 = vmatpush.bf16.xpose.msra.mxu0 %v5445
  %5454 = vmatpush.bf16.xpose.msra.mxu0 %v5442
  %5455 = vmatmul.bf16.gmra.mxu0 %v5436
  %v5456 = vpop.f32.mrf.mxu0
  %v5457 = vadd.f32 0.0, %v5456
  %v5458 = vpop.f32.mrf.mxu0
  %v5459 = vadd.f32 0.0, %v5458
  %5460 = vmatmul.bf16.gmra.mxu0 %v5439
  %v5461 = vpop.f32.mrf.mxu0
  %v5462 = vadd.f32 0.0, %v5461
  %v5463 = vpop.f32.mrf.mxu0
  %5464 = vdwg.mxu0
  %v5465 = vsel %vm368, %v5457, -inf
  %5466 = vmax.xlane.f32.xlu0 %v5465
  %v5467 = vpop.xlane.xlu0 %5466
  %v5468 = vsel %vm368, %v5459, -inf
  %5469 = vmax.xlane.f32.xlu0 %v5468
  %v5470 = vpop.xlane.xlu0 %5469
  %v5471 = vsel %vm375, %v5462, -inf
  %5472 = vmax.xlane.f32.xlu0 %v5471
  %v5473 = vpop.xlane.xlu0 %5472
  %v5474 = vsub.f32 %v5457, %v5467
  %v5475 = vsub.f32 %v5459, %v5470
  %v5476 = vsub.f32 %v5462, %v5473
  %v5477 = vmul.f32 %v5474, 1.442695
  %v5478 = vpow.pop %v5477
  %v5479 = vmul.f32 %v5475, 1.442695
  %v5480 = vpow.pop %v5479
  %v5481 = vmul.f32 %v5476, 1.442695
  %v5482 = vpow.pop %v5481
  %v5483 = vsel %vm368, %v5478, 0.0
  %5484 = vadd.xlane.f32.xlu0 %v5483
  %v5485 = vpop.xlane.xlu0 %5484
  %v5486 = vsel %vm368, %v5480, 0.0
  %5487 = vadd.xlane.f32.xlu0 %v5486
  %v5488 = vpop.xlane.xlu0 %5487
  %v5489 = vsel %vm375, %v5482, 0.0
  %5490 = vadd.xlane.f32.xlu0 %v5489
  %v5491 = vpop.xlane.xlu0 %5490
  %v5492 = vrcp.pop %v5485
  %v5493 = vrcp.pop %v5488
  %v5494 = vrcp.pop %v5491
  %v5495 = vmul.f32 %v5478, %v5492
  %v5496 = vmul.f32 %v5480, %v5493
  %v5497 = vmul.f32 %v5482, %v5494
  %v5498 = vpack.c.bf16 %v5496, %v5495
  %v5499 = vpack.c.bf16 %v5497, %v5497
  %5500 = vrot.lane.b32.xlu0 %v5322, 48
  %v5501 = vpop.permute.xlu0 %5500
  %5502 = vrot.lane.b32.xlu0 %v5323, 48
  %v5503 = vpop.permute.xlu0 %5502
  %v5506 = vsel %vm368, %v5498, 0
  %v5509 = vsel %vm368, %v5499, 0
  %v5512 = vand.u32 %v5503, %v418
  %5514 = vmatpush.bf16.msra.mxu0 0
  %5515 = vmatpush.bf16.msra.mxu0 0
  %5516 = vmatpush.bf16.msra.mxu0 0
  %5517 = vmatpush.bf16.msra.mxu0 0
  %5518 = vmatpush.bf16.msra.mxu0 0
  %5519 = vmatpush.bf16.msra.mxu0 0
  %5520 = vmatpush.bf16.msra.mxu0 %v5512
  %5521 = vmatpush.bf16.msra.mxu0 %v5501
  %5522 = vmatmul.bf16.gmra.mxu0 %v5506
  %v5523 = vpop.f32.mrf.mxu0
  %v5524 = vadd.f32 0.0, %v5523
  %v5525 = vpop.f32.mrf.mxu0
  %v5526 = vadd.f32 0.0, %v5525
  %5527 = vmatmul.bf16.gmra.mxu0 %v5509
  %v5528 = vpop.f32.mrf.mxu0
  %v5529 = vadd.f32 0.0, %v5528
  %v5530 = vpop.f32.mrf.mxu0
  %5531 = vdwg.mxu0
  %v5532 = vld [vmem:[%s1890] sm:$0xf]
  %v5533 = vld [vmem:[%s1890 + $0x4] sm:$0xf]
  %v5534 = vld [vmem:[%s1890 + $0x8] sm:$0xf]
  %v5535 = vld [vmem:[%s1890 + $0xc] sm:$0xf]
  %v5536 = vpack.c.bf16 %v5421, %v5419
  %v5537 = vpack.c.bf16 %v5424, %v5424
  %v5538 = vpack.c.bf16 %v5526, %v5524
  %v5539 = vpack.c.bf16 %v5529, %v5529
  %v5542 = vunpack.c.l.b16 %v5534
  %v5543 = vunpack.c.l.b16 %v5535
  %v5544 = vpack.c.b16 %v5543, %v5542
  %v5547 = vsel %vm337, %v5538, 0
  %v5550 = vsel %vm337, %v5539, 0
  %5552 = vmatpush.bf16.msra.mxu0 0
  %5553 = vmatpush.bf16.msra.mxu0 0
  %5554 = vmatpush.bf16.msra.mxu0 0
  %5555 = vmatpush.bf16.msra.mxu0 0
  %5556 = vmatpush.bf16.msra.mxu0 0
  %5557 = vmatpush.bf16.msra.mxu0 0
  %5558 = vmatpush.bf16.msra.mxu0 0
  %5559 = vmatpush.bf16.msra.mxu0 %v5544
  %5560 = vmatmul.bf16.gmra.mxu0 %v5547
  %v5561 = vpop.f32.mrf.mxu0
  %v5562 = vadd.f32 0.0, %v5561
  %v5563 = vpop.f32.mrf.mxu0
  %v5564 = vadd.f32 0.0, %v5563
  %5565 = vmatmul.bf16.gmra.mxu0 %v5550
  %v5566 = vpop.f32.mrf.mxu0
  %v5567 = vadd.f32 0.0, %v5566
  %v5568 = vpop.f32.mrf.mxu0
  %5569 = vdwg.mxu0
  %v5572 = vunpack.c.l.b16 %v5532
  %v5573 = vunpack.c.l.b16 %v5533
  %v5574 = vpack.c.b16 %v5573, %v5572
  %v5577 = vsel %vm337, %v5536, 0
  %v5580 = vsel %vm337, %v5537, 0
  %5582 = vmatpush.bf16.msra.mxu0 0
  %5583 = vmatpush.bf16.msra.mxu0 0
  %5584 = vmatpush.bf16.msra.mxu0 0
  %5585 = vmatpush.bf16.msra.mxu0 0
  %5586 = vmatpush.bf16.msra.mxu0 0
  %5587 = vmatpush.bf16.msra.mxu0 0
  %5588 = vmatpush.bf16.msra.mxu0 0
  %5589 = vmatpush.bf16.msra.mxu0 %v5574
  %5590 = vmatmul.bf16.gmra.mxu0 %v5577
  %v5591 = vpop.f32.mrf.mxu0
  %v5592 = vadd.f32 %v5562, %v5591
  %v5593 = vpop.f32.mrf.mxu0
  %v5594 = vadd.f32 %v5564, %v5593
  %5595 = vmatmul.bf16.gmra.mxu0 %v5580
  %v5596 = vpop.f32.mrf.mxu0
  %v5597 = vadd.f32 %v5567, %v5596
  %v5598 = vpop.f32.mrf.mxu0
  %5599 = vdwg.mxu0
  %v5600 = vld [vmem:[%s1959] sm:$0x1]
  %v5602 = vperm.slane %v5600, 0
  %v5604 = vadd.f32 %v5592, %v5602
  %v5605 = vadd.f32 %v5594, %v5602
  %v5606 = vadd.f32 %v5597, %v5602
  %v5607 = vadd.f32 %v5183, %v5604
  %v5608 = vadd.f32 %v5184, %v5605
  %v5609 = vadd.f32 %v5185, %v5606
  %v5610 = vld [vmem:[%s1970] sm:$0x1]
  %v5611 = vld [vmem:[%s1972] sm:$0x1]
  %v5612 = vsel %vm196, %v5607, 0.0
  %5613 = vadd.xlane.f32.xlu0 %v5612
  %v5614 = vpop.xlane.xlu0 %5613
  %v5615 = vsel %vm196, %v5608, 0.0
  %5616 = vadd.xlane.f32.xlu0 %v5615
  %v5617 = vpop.xlane.xlu0 %5616
  %v5618 = vsel %vm203, %v5609, 0.0
  %5619 = vadd.xlane.f32.xlu0 %v5618
  %v5620 = vpop.xlane.xlu0 %5619
  %v5621 = vmul.f32 %v5614, %v213
  %v5622 = vmul.f32 %v5617, %v213
  %v5623 = vmul.f32 %v5620, %v213
  %v5624 = vsub.f32 %v5607, %v5621
  %v5625 = vsub.f32 %v5608, %v5622
  %v5626 = vsub.f32 %v5609, %v5623
  %v5627 = vmul.f32 %v5624, %v5624
  %v5628 = vmul.f32 %v5625, %v5625
  %v5629 = vmul.f32 %v5626, %v5626
  %v5630 = vsel %vm196, %v5627, 0.0
  %5631 = vadd.xlane.f32.xlu0 %v5630
  %v5632 = vpop.xlane.xlu0 %5631
  %v5633 = vsel %vm196, %v5628, 0.0
  %5634 = vadd.xlane.f32.xlu0 %v5633
  %v5635 = vpop.xlane.xlu0 %5634
  %v5636 = vsel %vm203, %v5629, 0.0
  %5637 = vadd.xlane.f32.xlu0 %v5636
  %v5638 = vpop.xlane.xlu0 %5637
  %v5639 = vmul.f32 %v5632, %v213
  %v5640 = vmul.f32 %v5635, %v213
  %v5641 = vmul.f32 %v5638, %v213
  %v5642 = vadd.f32 %v5639, 1e-06
  %v5643 = vadd.f32 %v5640, 1e-06
  %v5644 = vadd.f32 %v5641, 1e-06
  %v5645 = vrsqrt.pop %v5642
  %v5646 = vmul.f32 %v5645, %v5642
  %v5647 = vmul.f32 %v5646, %v5645
  %v5648 = vmul.f32 0.5, %v5647
  %v5649 = vsub.f32 1.5, %v5648
  %v5650 = vmul.f32 %v5645, %v5649
  %vm5651 = vweird.f32 %v5642
  %vm5652 = vweird.f32 %v5645
  %vm5653 = vmor %vm5651, %vm5652
  %v5654 = vsel %vm5653, %v5645, %v5650
  %v5655 = vrsqrt.pop %v5643
  %v5656 = vmul.f32 %v5655, %v5643
  %v5657 = vmul.f32 %v5656, %v5655
  %v5658 = vmul.f32 0.5, %v5657
  %v5659 = vsub.f32 1.5, %v5658
  %v5660 = vmul.f32 %v5655, %v5659
  %vm5661 = vweird.f32 %v5643
  %vm5662 = vweird.f32 %v5655
  %vm5663 = vmor %vm5661, %vm5662
  %v5664 = vsel %vm5663, %v5655, %v5660
  %v5665 = vrsqrt.pop %v5644
  %v5666 = vmul.f32 %v5665, %v5644
  %v5667 = vmul.f32 %v5666, %v5665
  %v5668 = vmul.f32 0.5, %v5667
  %v5669 = vsub.f32 1.5, %v5668
  %v5670 = vmul.f32 %v5665, %v5669
  %vm5671 = vweird.f32 %v5644
  %vm5672 = vweird.f32 %v5665
  %vm5673 = vmor %vm5671, %vm5672
  %v5674 = vsel %vm5673, %v5665, %v5670
  %v5675 = vmul.f32 %v5624, %v5654
  %v5676 = vmul.f32 %v5625, %v5664
  %v5677 = vmul.f32 %v5626, %v5674
  %v5679 = vperm.slane %v5610, 0
  %v5681 = vmul.f32 %v5675, %v5679
  %v5682 = vmul.f32 %v5676, %v5679
  %v5683 = vmul.f32 %v5677, %v5679
  %v5685 = vperm.slane %v5611, 0
  %v5687 = vadd.f32 %v5681, %v5685
  %v5688 = vadd.f32 %v5682, %v5685
  %v5689 = vadd.f32 %v5683, %v5685
  %v5690 = vpack.c.bf16 %v5688, %v5687
  %v5691 = vpack.c.bf16 %v5689, %v5689
  %v5692 = vld [vmem:[%s2054] sm:$0xf]
  %v5693 = vld [vmem:[%s2054 + $0x4] sm:$0xf]
  %v5694 = vld [vmem:[%s2054 + $0x8] sm:$0xf]
  %v5695 = vld [vmem:[%s2054 + $0xc] sm:$0xf]
  %v5696 = vld [vmem:[%s2059] sm:$0x1]
  %v5698 = vperm.slane %v5696, 0
  %v5704 = vunpack.c.l.b16 %v5692
  %v5705 = vunpack.c.l.b16 %v5693
  %v5706 = vunpack.c.l.b16 %v5694
  %v5707 = vunpack.c.l.b16 %v5695
  %v5708 = vpack.c.b16 %v5705, %v5704
  %v5709 = vpack.c.b16 %v5707, %v5706
  %v5713 = vsel %vm196, %v5690, 0
  %v5716 = vsel %vm196, %v5691, 0
  %5718 = vmatpush.bf16.msra.mxu0 0
  %5719 = vmatpush.bf16.msra.mxu0 0
  %5720 = vmatpush.bf16.msra.mxu0 0
  %5721 = vmatpush.bf16.msra.mxu0 0
  %5722 = vmatpush.bf16.msra.mxu0 0
  %5723 = vmatpush.bf16.msra.mxu0 0
  %5724 = vmatpush.bf16.msra.mxu0 %v5709
  %5725 = vmatpush.bf16.msra.mxu0 %v5708
  %5726 = vmatmul.bf16.gmra.mxu0 %v5713
  %v5727 = vpop.f32.mrf.mxu0
  %v5728 = vadd.f32 %v5698, %v5727
  %v5729 = vpop.f32.mrf.mxu0
  %v5730 = vadd.f32 %v5698, %v5729
  %5731 = vmatmul.bf16.gmra.mxu0 %v5716
  %v5732 = vpop.f32.mrf.mxu0
  %v5733 = vadd.f32 %v5698, %v5732
  %v5734 = vpop.f32.mrf.mxu0
  %5735 = vdwg.mxu0
  %v5736 = vmul.f32 %v5728, %v5728
  %v5737 = vmul.f32 %v5730, %v5730
  %v5738 = vmul.f32 %v5733, %v5733
  %v5739 = vmul.f32 %v5728, %v5736
  %v5740 = vmul.f32 %v5730, %v5737
  %v5741 = vmul.f32 %v5733, %v5738
  %v5742 = vmul.f32 %v5739, 0.044715
  %v5743 = vmul.f32 %v5740, 0.044715
  %v5744 = vmul.f32 %v5741, 0.044715
  %v5745 = vadd.f32 %v5728, %v5742
  %v5746 = vadd.f32 %v5730, %v5743
  %v5747 = vadd.f32 %v5733, %v5744
  %v5748 = vmul.f32 %v5745, 0.7978846
  %v5749 = vmul.f32 %v5746, 0.7978846
  %v5750 = vmul.f32 %v5747, 0.7978846
  %v5751 = vtanh.pop %v5748
  %v5752 = vtanh.pop %v5749
  %v5753 = vtanh.pop %v5750
  %v5754 = vadd.f32 %v5751, 1.0
  %v5755 = vadd.f32 %v5752, 1.0
  %v5756 = vadd.f32 %v5753, 1.0
  %v5757 = vmul.f32 %v5754, 0.5
  %v5758 = vmul.f32 %v5755, 0.5
  %v5759 = vmul.f32 %v5756, 0.5
  %v5760 = vmul.f32 %v5728, %v5757
  %v5761 = vmul.f32 %v5730, %v5758
  %v5762 = vmul.f32 %v5733, %v5759
  %v5763 = vpack.c.bf16 %v5761, %v5760
  %v5764 = vpack.c.bf16 %v5762, %v5762
  %v5765 = vld [vmem:[%s2129] sm:$0xf]
  %v5766 = vld [vmem:[%s2129 + $0x4] sm:$0xf]
  %v5767 = vld [vmem:[%s2129 + $0x8] sm:$0xf]
  %v5768 = vld [vmem:[%s2129 + $0xc] sm:$0xf]
  %v5769 = vld [vmem:[%s2129 + $0x10] sm:$0xf]
  %v5770 = vld [vmem:[%s2129 + $0x14] sm:$0xf]
  %v5771 = vld [vmem:[%s2129 + $0x18] sm:$0xf]
  %v5772 = vld [vmem:[%s2129 + $0x1c] sm:$0xf]
  %v5773 = vld [vmem:[%s2129 + $0x20] sm:$0xf]
  %v5774 = vld [vmem:[%s2129 + $0x24] sm:$0xf]
  %v5775 = vld [vmem:[%s2129 + $0x28] sm:$0xf]
  %v5776 = vld [vmem:[%s2129 + $0x2c] sm:$0xf]
  %v5777 = vld [vmem:[%s2129 + $0x30] sm:$0xf]
  %v5778 = vld [vmem:[%s2129 + $0x34] sm:$0xf]
  %v5779 = vld [vmem:[%s2129 + $0x38] sm:$0xf]
  %v5780 = vld [vmem:[%s2129 + $0x3c] sm:$0xf]
  %v5781 = vld [vmem:[%s2146] sm:$0x1]
  %v5783 = vperm.slane %v5781, 0
  %v5801 = vunpack.c.l.b16 %v5765
  %v5802 = vunpack.c.l.b16 %v5766
  %v5803 = vunpack.c.l.b16 %v5767
  %v5804 = vunpack.c.l.b16 %v5768
  %v5805 = vunpack.c.l.b16 %v5769
  %v5806 = vunpack.c.l.b16 %v5770
  %v5807 = vunpack.c.l.b16 %v5771
  %v5808 = vunpack.c.l.b16 %v5772
  %v5809 = vunpack.c.l.b16 %v5773
  %v5810 = vunpack.c.l.b16 %v5774
  %v5811 = vunpack.c.l.b16 %v5775
  %v5812 = vunpack.c.l.b16 %v5776
  %v5813 = vunpack.c.l.b16 %v5777
  %v5814 = vunpack.c.l.b16 %v5778
  %v5815 = vunpack.c.l.b16 %v5779
  %v5816 = vunpack.c.l.b16 %v5780
  %v5817 = vpack.c.b16 %v5802, %v5801
  %v5818 = vpack.c.b16 %v5804, %v5803
  %v5819 = vpack.c.b16 %v5806, %v5805
  %v5820 = vpack.c.b16 %v5808, %v5807
  %v5821 = vpack.c.b16 %v5810, %v5809
  %v5822 = vpack.c.b16 %v5812, %v5811
  %v5823 = vpack.c.b16 %v5814, %v5813
  %v5824 = vpack.c.b16 %v5816, %v5815
  %5833 = vmatpush.bf16.msra.mxu0 %v5824
  %5834 = vmatpush.bf16.msra.mxu0 %v5823
  %5835 = vmatpush.bf16.msra.mxu0 %v5822
  %5836 = vmatpush.bf16.msra.mxu0 %v5821
  %5837 = vmatpush.bf16.msra.mxu0 %v5820
  %5838 = vmatpush.bf16.msra.mxu0 %v5819
  %5839 = vmatpush.bf16.msra.mxu0 %v5818
  %5840 = vmatpush.bf16.msra.mxu0 %v5817
  %5841 = vmatmul.bf16.gmra.mxu0 %v5763
  %v5842 = vpop.f32.mrf.mxu0
  %v5843 = vadd.f32 %v5783, %v5842
  %v5844 = vpop.f32.mrf.mxu0
  %v5845 = vadd.f32 %v5783, %v5844
  %5846 = vmatmul.bf16.gmra.mxu0 %v5764
  %v5847 = vpop.f32.mrf.mxu0
  %v5848 = vpop.f32.mrf.mxu0
  %5849 = vdwg.mxu0
  %v5850 = vadd.f32 %v5607, %v5843
  %v5851 = vadd.f32 %v5608, %v5845
  %5854 = vrot.lane.b32.xlu0 %v5850, 64
  %v5855 = vpop.permute.xlu0 %5854
  %5856 = vrot.lane.b32.xlu0 %v5851, 64
  %v5857 = vpop.permute.xlu0 %5856
  %5860 = vst.msk [vmem:[%s3809] sm:$0xff] %vm2226, %v5855
  %5861 = vst.msk [vmem:[%s3809 + $0x10] sm:$0xff] %vm2226, %v5857
  %v5862 = vpack.c.bf16 %v5184, %v5183
  %v5863 = vld [vmem:[%s35] sm:$0xf]
  %v5864 = vld [vmem:[%s35 + $0x4] sm:$0xf]
  %v5865 = vld [vmem:[%s35 + $0x8] sm:$0xf]
  %v5866 = vld [vmem:[%s35 + $0xc] sm:$0xf]
  %v5867 = vpack.c.bf16 %v5851, %v5850
  %v5868 = vld [vmem:[%s35 + $0x10] sm:$0xf]
  %v5869 = vld [vmem:[%s35 + $0x14] sm:$0xf]
  %v5870 = vld [vmem:[%s35 + $0x18] sm:$0xf]
  %v5871 = vld [vmem:[%s35 + $0x1c] sm:$0xf]
  %v5876 = vunpack.c.l.b16 %v5868
  %v5877 = vunpack.c.l.b16 %v5869
  %v5878 = vunpack.c.l.b16 %v5870
  %v5879 = vunpack.c.l.b16 %v5871
  %v5880 = vpack.c.b16 %v5877, %v5876
  %v5881 = vpack.c.b16 %v5879, %v5878
  %v5885 = vsel %vm196, %v5867, 0
  %5887 = vmatpush.bf16.msra.mxu0 0
  %5888 = vmatpush.bf16.msra.mxu0 0
  %5889 = vmatpush.bf16.msra.mxu0 0
  %5890 = vmatpush.bf16.msra.mxu0 0
  %5891 = vmatpush.bf16.msra.mxu0 0
  %5892 = vmatpush.bf16.msra.mxu0 0
  %5893 = vmatpush.bf16.msra.mxu0 %v5881
  %5894 = vmatpush.bf16.msra.mxu0 %v5880
  %5895 = vmatmul.bf16.gmra.mxu0 %v5885
  %v5896 = vpop.f32.mrf.mxu0
  %v5897 = vadd.f32 0.0, %v5896
  %v5898 = vpop.f32.mrf.mxu0
  %v5899 = vadd.f32 0.0, %v5898
  %5900 = vdwg.mxu0
  %v5905 = vunpack.c.l.b16 %v5863
  %v5906 = vunpack.c.l.b16 %v5864
  %v5907 = vunpack.c.l.b16 %v5865
  %v5908 = vunpack.c.l.b16 %v5866
  %v5909 = vpack.c.b16 %v5906, %v5905
  %v5910 = vpack.c.b16 %v5908, %v5907
  %v5914 = vsel %vm196, %v5862, 0
  %5916 = vmatpush.bf16.msra.mxu0 0
  %5917 = vmatpush.bf16.msra.mxu0 0
  %5918 = vmatpush.bf16.msra.mxu0 0
  %5919 = vmatpush.bf16.msra.mxu0 0
  %5920 = vmatpush.bf16.msra.mxu0 0
  %5921 = vmatpush.bf16.msra.mxu0 0
  %5922 = vmatpush.bf16.msra.mxu0 %v5910
  %5923 = vmatpush.bf16.msra.mxu0 %v5909
  %5924 = vmatmul.bf16.gmra.mxu0 %v5914
  %v5925 = vpop.f32.mrf.mxu0
  %v5926 = vadd.f32 %v5897, %v5925
  %v5927 = vpop.f32.mrf.mxu0
  %v5928 = vadd.f32 %v5899, %v5927
  %5929 = vdwg.mxu0
  %v5930 = vld [vmem:[%s37] sm:$0x1]
  %v5932 = vperm.slane %v5930, 0
  %v5934 = vadd.f32 %v5926, %v5932
  %v5935 = vadd.f32 %v5928, %v5932
  %v5936 = vld [vmem:[%s39] sm:$0xff]
  %v5937 = vld [vmem:[%s39 + $0x8] sm:$0xff]
  %v5938 = vadd.f32 %v5934, %v5936
  %v5939 = vadd.f32 %v5935, %v5937
  %v5940 = vld [vmem:[%s41] sm:$0x1]
  %v5941 = vld [vmem:[%s43] sm:$0x1]
  %v5942 = vsel %vm196, %v5938, 0.0
  %5943 = vadd.xlane.f32.xlu0 %v5942
  %v5944 = vpop.xlane.xlu0 %5943
  %v5945 = vsel %vm196, %v5939, 0.0
  %5946 = vadd.xlane.f32.xlu0 %v5945
  %v5947 = vpop.xlane.xlu0 %5946
  %v5948 = vmul.f32 %v5944, %v213
  %v5949 = vmul.f32 %v5947, %v213
  %v5950 = vsub.f32 %v5938, %v5948
  %v5951 = vsub.f32 %v5939, %v5949
  %v5952 = vmul.f32 %v5950, %v5950
  %v5953 = vmul.f32 %v5951, %v5951
  %v5954 = vsel %vm196, %v5952, 0.0
  %5955 = vadd.xlane.f32.xlu0 %v5954
  %v5956 = vpop.xlane.xlu0 %5955
  %v5957 = vsel %vm196, %v5953, 0.0
  %5958 = vadd.xlane.f32.xlu0 %v5957
  %v5959 = vpop.xlane.xlu0 %5958
  %v5960 = vmul.f32 %v5956, %v213
  %v5961 = vmul.f32 %v5959, %v213
  %v5962 = vadd.f32 %v5960, 1e-06
  %v5963 = vadd.f32 %v5961, 1e-06
  %v5964 = vrsqrt.pop %v5962
  %v5965 = vmul.f32 %v5964, %v5962
  %v5966 = vmul.f32 %v5965, %v5964
  %v5967 = vmul.f32 0.5, %v5966
  %v5968 = vsub.f32 1.5, %v5967
  %v5969 = vmul.f32 %v5964, %v5968
  %vm5970 = vweird.f32 %v5962
  %vm5971 = vweird.f32 %v5964
  %vm5972 = vmor %vm5970, %vm5971
  %v5973 = vsel %vm5972, %v5964, %v5969
  %v5974 = vrsqrt.pop %v5963
  %v5975 = vmul.f32 %v5974, %v5963
  %v5976 = vmul.f32 %v5975, %v5974
  %v5977 = vmul.f32 0.5, %v5976
  %v5978 = vsub.f32 1.5, %v5977
  %v5979 = vmul.f32 %v5974, %v5978
  %vm5980 = vweird.f32 %v5963
  %vm5981 = vweird.f32 %v5974
  %vm5982 = vmor %vm5980, %vm5981
  %v5983 = vsel %vm5982, %v5974, %v5979
  %v5984 = vmul.f32 %v5950, %v5973
  %v5985 = vmul.f32 %v5951, %v5983
  %v5987 = vperm.slane %v5940, 0
  %v5989 = vmul.f32 %v5984, %v5987
  %v5990 = vmul.f32 %v5985, %v5987
  %v5992 = vperm.slane %v5941, 0
  %v5994 = vadd.f32 %v5989, %v5992
  %v5995 = vadd.f32 %v5990, %v5992
  %v5996 = vpack.c.bf16 %v5995, %v5994
  %v5997 = vld [vmem:[%s45] sm:$0xf]
  %v5998 = vld [vmem:[%s45 + $0x4] sm:$0xf]
  %v5999 = vld [vmem:[%s45 + $0x8] sm:$0xf]
  %v6000 = vld [vmem:[%s45 + $0xc] sm:$0xf]
  %v6001 = vld [vmem:[%s47] sm:$0x1]
  %v6003 = vperm.slane %v6001, 0
  %v6009 = vunpack.c.l.b16 %v5997
  %v6010 = vunpack.c.l.b16 %v5998
  %v6011 = vunpack.c.l.b16 %v5999
  %v6012 = vunpack.c.l.b16 %v6000
  %v6013 = vpack.c.b16 %v6010, %v6009
  %v6014 = vpack.c.b16 %v6012, %v6011
  %v6018 = vsel %vm196, %v5996, 0
  %6020 = vmatpush.bf16.msra.mxu0 0
  %6021 = vmatpush.bf16.msra.mxu0 0
  %6022 = vmatpush.bf16.msra.mxu0 0
  %6023 = vmatpush.bf16.msra.mxu0 0
  %6024 = vmatpush.bf16.msra.mxu0 0
  %6025 = vmatpush.bf16.msra.mxu0 0
  %6026 = vmatpush.bf16.msra.mxu0 %v6014
  %6027 = vmatpush.bf16.msra.mxu0 %v6013
  %6028 = vmatmul.bf16.gmra.mxu0 %v6018
  %v6029 = vpop.f32.mrf.mxu0
  %v6030 = vadd.f32 %v6003, %v6029
  %v6031 = vpop.f32.mrf.mxu0
  %v6032 = vadd.f32 %v6003, %v6031
  %6033 = vdwg.mxu0
  %v6034 = vpack.c.bf16 %v6032, %v6030
  %6036 = vrot.lane.b32.xlu0 %v6034, 96
  %v6037 = vpop.permute.xlu0 %6036
  %v6039 = vsel %vm337, %v6034, 0
  %v6042 = vsel %vm337, %v6037, 0
  %6044 = vmatpush.bf16.xpose.msra.mxu0 0
  %6045 = vmatpush.bf16.xpose.msra.mxu0 0
  %6046 = vmatpush.bf16.xpose.msra.mxu0 0
  %6047 = vmatpush.bf16.xpose.msra.mxu0 0
  %6048 = vmatpush.bf16.xpose.msra.mxu0 0
  %6049 = vmatpush.bf16.xpose.msra.mxu0 0
  %6050 = vmatpush.bf16.xpose.msra.mxu0 0
  %6051 = vmatpush.bf16.xpose.msra.mxu0 %v6042
  %6052 = vmatmul.bf16.gmra.mxu0 %v6039
  %v6053 = vpop.f32.mrf.mxu0
  %v6054 = vadd.f32 0.0, %v6053
  %v6055 = vpop.f32.mrf.mxu0
  %v6056 = vadd.f32 0.0, %v6055
  %6057 = vdwg.mxu0
  %v6058 = vsel %vm337, %v6054, -inf
  %6059 = vmax.xlane.f32.xlu0 %v6058
  %v6060 = vpop.xlane.xlu0 %6059
  %v6061 = vsel %vm337, %v6056, -inf
  %6062 = vmax.xlane.f32.xlu0 %v6061
  %v6063 = vpop.xlane.xlu0 %6062
  %v6064 = vsub.f32 %v6054, %v6060
  %v6065 = vsub.f32 %v6056, %v6063
  %v6066 = vmul.f32 %v6064, 1.442695
  %v6067 = vpow.pop %v6066
  %v6068 = vmul.f32 %v6065, 1.442695
  %v6069 = vpow.pop %v6068
  %v6070 = vsel %vm337, %v6067, 0.0
  %6071 = vadd.xlane.f32.xlu0 %v6070
  %v6072 = vpop.xlane.xlu0 %6071
  %v6073 = vsel %vm337, %v6069, 0.0
  %6074 = vadd.xlane.f32.xlu0 %v6073
  %v6075 = vpop.xlane.xlu0 %6074
  %v6076 = vrcp.pop %v6072
  %v6077 = vrcp.pop %v6075
  %v6078 = vmul.f32 %v6067, %v6076
  %v6079 = vmul.f32 %v6069, %v6077
  %v6080 = vpack.c.bf16 %v6079, %v6078
  %6081 = vrot.lane.b32.xlu0 %v6034, 64
  %v6082 = vpop.permute.xlu0 %6081
  %v6085 = vsel %vm337, %v6080, 0
  %6087 = vmatpush.bf16.msra.mxu0 0
  %6088 = vmatpush.bf16.msra.mxu0 0
  %6089 = vmatpush.bf16.msra.mxu0 0
  %6090 = vmatpush.bf16.msra.mxu0 0
  %6091 = vmatpush.bf16.msra.mxu0 0
  %6092 = vmatpush.bf16.msra.mxu0 0
  %6093 = vmatpush.bf16.msra.mxu0 0
  %6094 = vmatpush.bf16.msra.mxu0 %v6082
  %6095 = vmatmul.bf16.gmra.mxu0 %v6085
  %v6096 = vpop.f32.mrf.mxu0
  %v6097 = vadd.f32 0.0, %v6096
  %v6098 = vpop.f32.mrf.mxu0
  %v6099 = vadd.f32 0.0, %v6098
  %6100 = vdwg.mxu0
  %6101 = vrot.lane.b32.xlu0 %v6034, 112
  %v6102 = vpop.permute.xlu0 %6101
  %6103 = vrot.lane.b32.xlu0 %v6034, 80
  %v6104 = vpop.permute.xlu0 %6103
  %v6106 = vsel %vm337, %v6102, 0
  %v6109 = vsel %vm337, %v6104, 0
  %6111 = vmatpush.bf16.xpose.msra.mxu0 0
  %6112 = vmatpush.bf16.xpose.msra.mxu0 0
  %6113 = vmatpush.bf16.xpose.msra.mxu0 0
  %6114 = vmatpush.bf16.xpose.msra.mxu0 0
  %6115 = vmatpush.bf16.xpose.msra.mxu0 0
  %6116 = vmatpush.bf16.xpose.msra.mxu0 0
  %6117 = vmatpush.bf16.xpose.msra.mxu0 0
  %6118 = vmatpush.bf16.xpose.msra.mxu0 %v6109
  %6119 = vmatmul.bf16.gmra.mxu0 %v6106
  %v6120 = vpop.f32.mrf.mxu0
  %v6121 = vadd.f32 0.0, %v6120
  %v6122 = vpop.f32.mrf.mxu0
  %v6123 = vadd.f32 0.0, %v6122
  %6124 = vdwg.mxu0
  %v6125 = vsel %vm337, %v6121, -inf
  %6126 = vmax.xlane.f32.xlu0 %v6125
  %v6127 = vpop.xlane.xlu0 %6126
  %v6128 = vsel %vm337, %v6123, -inf
  %6129 = vmax.xlane.f32.xlu0 %v6128
  %v6130 = vpop.xlane.xlu0 %6129
  %v6131 = vsub.f32 %v6121, %v6127
  %v6132 = vsub.f32 %v6123, %v6130
  %v6133 = vmul.f32 %v6131, 1.442695
  %v6134 = vpow.pop %v6133
  %v6135 = vmul.f32 %v6132, 1.442695
  %v6136 = vpow.pop %v6135
  %v6137 = vsel %vm337, %v6134, 0.0
  %6138 = vadd.xlane.f32.xlu0 %v6137
  %v6139 = vpop.xlane.xlu0 %6138
  %v6140 = vsel %vm337, %v6136, 0.0
  %6141 = vadd.xlane.f32.xlu0 %v6140
  %v6142 = vpop.xlane.xlu0 %6141
  %v6143 = vrcp.pop %v6139
  %v6144 = vrcp.pop %v6142
  %v6145 = vmul.f32 %v6134, %v6143
  %v6146 = vmul.f32 %v6136, %v6144
  %v6147 = vpack.c.bf16 %v6146, %v6145
  %6148 = vrot.lane.b32.xlu0 %v6034, 48
  %v6149 = vpop.permute.xlu0 %6148
  %v6152 = vsel %vm337, %v6147, 0
  %6154 = vmatpush.bf16.msra.mxu0 0
  %6155 = vmatpush.bf16.msra.mxu0 0
  %6156 = vmatpush.bf16.msra.mxu0 0
  %6157 = vmatpush.bf16.msra.mxu0 0
  %6158 = vmatpush.bf16.msra.mxu0 0
  %6159 = vmatpush.bf16.msra.mxu0 0
  %6160 = vmatpush.bf16.msra.mxu0 0
  %6161 = vmatpush.bf16.msra.mxu0 %v6149
  %6162 = vmatmul.bf16.gmra.mxu0 %v6152
  %v6163 = vpop.f32.mrf.mxu0
  %v6164 = vadd.f32 0.0, %v6163
  %v6165 = vpop.f32.mrf.mxu0
  %v6166 = vadd.f32 0.0, %v6165
  %6167 = vdwg.mxu0
  %v6168 = vld [vmem:[%s49] sm:$0xf]
  %v6169 = vld [vmem:[%s49 + $0x4] sm:$0xf]
  %v6170 = vld [vmem:[%s49 + $0x8] sm:$0xf]
  %v6171 = vld [vmem:[%s49 + $0xc] sm:$0xf]
  %v6172 = vpack.c.bf16 %v6099, %v6097
  %v6173 = vpack.c.bf16 %v6166, %v6164
  %v6176 = vunpack.c.l.b16 %v6170
  %v6177 = vunpack.c.l.b16 %v6171
  %v6178 = vpack.c.b16 %v6177, %v6176
  %v6181 = vsel %vm337, %v6173, 0
  %6183 = vmatpush.bf16.msra.mxu0 0
  %6184 = vmatpush.bf16.msra.mxu0 0
  %6185 = vmatpush.bf16.msra.mxu0 0
  %6186 = vmatpush.bf16.msra.mxu0 0
  %6187 = vmatpush.bf16.msra.mxu0 0
  %6188 = vmatpush.bf16.msra.mxu0 0
  %6189 = vmatpush.bf16.msra.mxu0 0
  %6190 = vmatpush.bf16.msra.mxu0 %v6178
  %6191 = vmatmul.bf16.gmra.mxu0 %v6181
  %v6192 = vpop.f32.mrf.mxu0
  %v6193 = vadd.f32 0.0, %v6192
  %v6194 = vpop.f32.mrf.mxu0
  %v6195 = vadd.f32 0.0, %v6194
  %6196 = vdwg.mxu0
  %v6199 = vunpack.c.l.b16 %v6168
  %v6200 = vunpack.c.l.b16 %v6169
  %v6201 = vpack.c.b16 %v6200, %v6199
  %v6204 = vsel %vm337, %v6172, 0
  %6206 = vmatpush.bf16.msra.mxu0 0
  %6207 = vmatpush.bf16.msra.mxu0 0
  %6208 = vmatpush.bf16.msra.mxu0 0
  %6209 = vmatpush.bf16.msra.mxu0 0
  %6210 = vmatpush.bf16.msra.mxu0 0
  %6211 = vmatpush.bf16.msra.mxu0 0
  %6212 = vmatpush.bf16.msra.mxu0 0
  %6213 = vmatpush.bf16.msra.mxu0 %v6201
  %6214 = vmatmul.bf16.gmra.mxu0 %v6204
  %v6215 = vpop.f32.mrf.mxu0
  %v6216 = vadd.f32 %v6193, %v6215
  %v6217 = vpop.f32.mrf.mxu0
  %v6218 = vadd.f32 %v6195, %v6217
  %6219 = vdwg.mxu0
  %v6220 = vld [vmem:[%s51] sm:$0x1]
  %v6222 = vperm.slane %v6220, 0
  %v6224 = vadd.f32 %v6216, %v6222
  %v6225 = vadd.f32 %v6218, %v6222
  %v6226 = vadd.f32 %v5938, %v6224
  %v6227 = vadd.f32 %v5939, %v6225
  %v6228 = vld [vmem:[%s53] sm:$0x1]
  %v6229 = vld [vmem:[%s55] sm:$0x1]
  %v6230 = vsel %vm196, %v6226, 0.0
  %6231 = vadd.xlane.f32.xlu0 %v6230
  %v6232 = vpop.xlane.xlu0 %6231
  %v6233 = vsel %vm196, %v6227, 0.0
  %6234 = vadd.xlane.f32.xlu0 %v6233
  %v6235 = vpop.xlane.xlu0 %6234
  %v6236 = vmul.f32 %v6232, %v213
  %v6237 = vmul.f32 %v6235, %v213
  %v6238 = vsub.f32 %v6226, %v6236
  %v6239 = vsub.f32 %v6227, %v6237
  %v6240 = vmul.f32 %v6238, %v6238
  %v6241 = vmul.f32 %v6239, %v6239
  %v6242 = vsel %vm196, %v6240, 0.0
  %6243 = vadd.xlane.f32.xlu0 %v6242
  %v6244 = vpop.xlane.xlu0 %6243
  %v6245 = vsel %vm196, %v6241, 0.0
  %6246 = vadd.xlane.f32.xlu0 %v6245
  %v6247 = vpop.xlane.xlu0 %6246
  %v6248 = vmul.f32 %v6244, %v213
  %v6249 = vmul.f32 %v6247, %v213
  %v6250 = vadd.f32 %v6248, 1e-06
  %v6251 = vadd.f32 %v6249, 1e-06
  %v6252 = vrsqrt.pop %v6250
  %v6253 = vmul.f32 %v6252, %v6250
  %v6254 = vmul.f32 %v6253, %v6252
  %v6255 = vmul.f32 0.5, %v6254
  %v6256 = vsub.f32 1.5, %v6255
  %v6257 = vmul.f32 %v6252, %v6256
  %vm6258 = vweird.f32 %v6250
  %vm6259 = vweird.f32 %v6252
  %vm6260 = vmor %vm6258, %vm6259
  %v6261 = vsel %vm6260, %v6252, %v6257
  %v6262 = vrsqrt.pop %v6251
  %v6263 = vmul.f32 %v6262, %v6251
  %v6264 = vmul.f32 %v6263, %v6262
  %v6265 = vmul.f32 0.5, %v6264
  %v6266 = vsub.f32 1.5, %v6265
  %v6267 = vmul.f32 %v6262, %v6266
  %vm6268 = vweird.f32 %v6251
  %vm6269 = vweird.f32 %v6262
  %vm6270 = vmor %vm6268, %vm6269
  %v6271 = vsel %vm6270, %v6262, %v6267
  %v6272 = vmul.f32 %v6238, %v6261
  %v6273 = vmul.f32 %v6239, %v6271
  %v6275 = vperm.slane %v6228, 0
  %v6277 = vmul.f32 %v6272, %v6275
  %v6278 = vmul.f32 %v6273, %v6275
  %v6280 = vperm.slane %v6229, 0
  %v6282 = vadd.f32 %v6277, %v6280
  %v6283 = vadd.f32 %v6278, %v6280
  %v6284 = vpack.c.bf16 %v6283, %v6282
  %v6285 = vld [vmem:[%s57] sm:$0xf]
  %v6286 = vld [vmem:[%s57 + $0x4] sm:$0xf]
  %v6287 = vld [vmem:[%s57 + $0x8] sm:$0xf]
  %v6288 = vld [vmem:[%s57 + $0xc] sm:$0xf]
  %v6289 = vld [vmem:[%s59] sm:$0x1]
  %v6291 = vperm.slane %v6289, 0
  %v6297 = vunpack.c.l.b16 %v6285
  %v6298 = vunpack.c.l.b16 %v6286
  %v6299 = vunpack.c.l.b16 %v6287
  %v6300 = vunpack.c.l.b16 %v6288
  %v6301 = vpack.c.b16 %v6298, %v6297
  %v6302 = vpack.c.b16 %v6300, %v6299
  %v6306 = vsel %vm196, %v6284, 0
  %6308 = vmatpush.bf16.msra.mxu0 0
  %6309 = vmatpush.bf16.msra.mxu0 0
  %6310 = vmatpush.bf16.msra.mxu0 0
  %6311 = vmatpush.bf16.msra.mxu0 0
  %6312 = vmatpush.bf16.msra.mxu0 0
  %6313 = vmatpush.bf16.msra.mxu0 0
  %6314 = vmatpush.bf16.msra.mxu0 %v6302
  %6315 = vmatpush.bf16.msra.mxu0 %v6301
  %6316 = vmatmul.bf16.gmra.mxu0 %v6306
  %v6317 = vpop.f32.mrf.mxu0
  %v6318 = vadd.f32 %v6291, %v6317
  %v6319 = vpop.f32.mrf.mxu0
  %v6320 = vadd.f32 %v6291, %v6319
  %6321 = vdwg.mxu0
  %v6322 = vmul.f32 %v6318, %v6318
  %v6323 = vmul.f32 %v6320, %v6320
  %v6324 = vmul.f32 %v6318, %v6322
  %v6325 = vmul.f32 %v6320, %v6323
  %v6326 = vmul.f32 %v6324, 0.044715
  %v6327 = vmul.f32 %v6325, 0.044715
  %v6328 = vadd.f32 %v6318, %v6326
  %v6329 = vadd.f32 %v6320, %v6327
  %v6330 = vmul.f32 %v6328, 0.7978846
  %v6331 = vmul.f32 %v6329, 0.7978846
  %v6332 = vtanh.pop %v6330
  %v6333 = vtanh.pop %v6331
  %v6334 = vadd.f32 %v6332, 1.0
  %v6335 = vadd.f32 %v6333, 1.0
  %v6336 = vmul.f32 %v6334, 0.5
  %v6337 = vmul.f32 %v6335, 0.5
  %v6338 = vmul.f32 %v6318, %v6336
  %v6339 = vmul.f32 %v6320, %v6337
  %v6340 = vpack.c.bf16 %v6339, %v6338
  %v6341 = vld [vmem:[%s61] sm:$0xf]
  %v6342 = vld [vmem:[%s61 + $0x4] sm:$0xf]
  %v6343 = vld [vmem:[%s61 + $0x8] sm:$0xf]
  %v6344 = vld [vmem:[%s61 + $0xc] sm:$0xf]
  %v6345 = vld [vmem:[%s61 + $0x10] sm:$0xf]
  %v6346 = vld [vmem:[%s61 + $0x14] sm:$0xf]
  %v6347 = vld [vmem:[%s61 + $0x18] sm:$0xf]
  %v6348 = vld [vmem:[%s61 + $0x1c] sm:$0xf]
  %v6349 = vld [vmem:[%s61 + $0x20] sm:$0xf]
  %v6350 = vld [vmem:[%s61 + $0x24] sm:$0xf]
  %v6351 = vld [vmem:[%s61 + $0x28] sm:$0xf]
  %v6352 = vld [vmem:[%s61 + $0x2c] sm:$0xf]
  %v6353 = vld [vmem:[%s61 + $0x30] sm:$0xf]
  %v6354 = vld [vmem:[%s61 + $0x34] sm:$0xf]
  %v6355 = vld [vmem:[%s61 + $0x38] sm:$0xf]
  %v6356 = vld [vmem:[%s61 + $0x3c] sm:$0xf]
  %v6357 = vld [vmem:[%s63] sm:$0x1]
  %v6359 = vperm.slane %v6357, 0
  %v6377 = vunpack.c.l.b16 %v6341
  %v6378 = vunpack.c.l.b16 %v6342
  %v6379 = vunpack.c.l.b16 %v6343
  %v6380 = vunpack.c.l.b16 %v6344
  %v6381 = vunpack.c.l.b16 %v6345
  %v6382 = vunpack.c.l.b16 %v6346
  %v6383 = vunpack.c.l.b16 %v6347
  %v6384 = vunpack.c.l.b16 %v6348
  %v6385 = vunpack.c.l.b16 %v6349
  %v6386 = vunpack.c.l.b16 %v6350
  %v6387 = vunpack.c.l.b16 %v6351
  %v6388 = vunpack.c.l.b16 %v6352
  %v6389 = vunpack.c.l.b16 %v6353
  %v6390 = vunpack.c.l.b16 %v6354
  %v6391 = vunpack.c.l.b16 %v6355
  %v6392 = vunpack.c.l.b16 %v6356
  %v6393 = vpack.c.b16 %v6378, %v6377
  %v6394 = vpack.c.b16 %v6380, %v6379
  %v6395 = vpack.c.b16 %v6382, %v6381
  %v6396 = vpack.c.b16 %v6384, %v6383
  %v6397 = vpack.c.b16 %v6386, %v6385
  %v6398 = vpack.c.b16 %v6388, %v6387
  %v6399 = vpack.c.b16 %v6390, %v6389
  %v6400 = vpack.c.b16 %v6392, %v6391
  %6409 = vmatpush.bf16.msra.mxu0 %v6400
  %6410 = vmatpush.bf16.msra.mxu0 %v6399
  %6411 = vmatpush.bf16.msra.mxu0 %v6398
  %6412 = vmatpush.bf16.msra.mxu0 %v6397
  %6413 = vmatpush.bf16.msra.mxu0 %v6396
  %6414 = vmatpush.bf16.msra.mxu0 %v6395
  %6415 = vmatpush.bf16.msra.mxu0 %v6394
  %6416 = vmatpush.bf16.msra.mxu0 %v6393
  %6417 = vmatmul.bf16.gmra.mxu0 %v6340
  %v6418 = vpop.f32.mrf.mxu0
  %v6419 = vadd.f32 %v6359, %v6418
  %v6420 = vpop.f32.mrf.mxu0
  %v6421 = vadd.f32 %v6359, %v6420
  %6422 = vdwg.mxu0
  %v6423 = vadd.f32 %v6226, %v6419
  %v6424 = vadd.f32 %v6227, %v6421
  %6427 = vrot.lane.b32.xlu0 %v6423, 96
  %v6428 = vpop.permute.xlu0 %6427
  %6429 = vrot.lane.b32.xlu0 %v6424, 96
  %v6430 = vpop.permute.xlu0 %6429
  %6433 = vst.msk [vmem:[%s3809] sm:$0xff] %vm2800, %v6428
  %6434 = vst.msk [vmem:[%s3809 + $0x10] sm:$0xff] %vm2800, %v6430
  %v6435 = vld [vmem:[%s2803] sm:$0x1]
  %v6436 = vld [vmem:[%s2805] sm:$0x1]
  %v6437 = vsel %vm196, %v6423, 0.0
  %6438 = vadd.xlane.f32.xlu0 %v6437
  %v6439 = vpop.xlane.xlu0 %6438
  %v6440 = vsel %vm196, %v6424, 0.0
  %6441 = vadd.xlane.f32.xlu0 %v6440
  %v6442 = vpop.xlane.xlu0 %6441
  %v6443 = vmul.f32 %v6439, %v213
  %v6444 = vmul.f32 %v6442, %v213
  %v6445 = vsub.f32 %v6423, %v6443
  %v6446 = vsub.f32 %v6424, %v6444
  %v6447 = vmul.f32 %v6445, %v6445
  %v6448 = vmul.f32 %v6446, %v6446
  %v6449 = vsel %vm196, %v6447, 0.0
  %6450 = vadd.xlane.f32.xlu0 %v6449
  %v6451 = vpop.xlane.xlu0 %6450
  %v6452 = vsel %vm196, %v6448, 0.0
  %6453 = vadd.xlane.f32.xlu0 %v6452
  %v6454 = vpop.xlane.xlu0 %6453
  %v6455 = vmul.f32 %v6451, %v213
  %v6456 = vmul.f32 %v6454, %v213
  %v6457 = vadd.f32 %v6455, 1e-06
  %v6458 = vadd.f32 %v6456, 1e-06
  %v6459 = vrsqrt.pop %v6457
  %v6460 = vmul.f32 %v6459, %v6457
  %v6461 = vmul.f32 %v6460, %v6459
  %v6462 = vmul.f32 0.5, %v6461
  %v6463 = vsub.f32 1.5, %v6462
  %v6464 = vmul.f32 %v6459, %v6463
  %vm6465 = vweird.f32 %v6457
  %vm6466 = vweird.f32 %v6459
  %vm6467 = vmor %vm6465, %vm6466
  %v6468 = vsel %vm6467, %v6459, %v6464
  %v6469 = vrsqrt.pop %v6458
  %v6470 = vmul.f32 %v6469, %v6458
  %v6471 = vmul.f32 %v6470, %v6469
  %v6472 = vmul.f32 0.5, %v6471
  %v6473 = vsub.f32 1.5, %v6472
  %v6474 = vmul.f32 %v6469, %v6473
  %vm6475 = vweird.f32 %v6458
  %vm6476 = vweird.f32 %v6469
  %vm6477 = vmor %vm6475, %vm6476
  %v6478 = vsel %vm6477, %v6469, %v6474
  %v6479 = vmul.f32 %v6445, %v6468
  %v6480 = vmul.f32 %v6446, %v6478
  %v6482 = vperm.slane %v6435, 0
  %v6484 = vmul.f32 %v6479, %v6482
  %v6485 = vmul.f32 %v6480, %v6482
  %v6487 = vperm.slane %v6436, 0
  %v6489 = vadd.f32 %v6484, %v6487
  %v6490 = vadd.f32 %v6485, %v6487
  %v6491 = vpack.c.bf16 %v6490, %v6489
  %v6492 = vld [vmem:[%s2862] sm:$0xf]
  %v6493 = vld [vmem:[%s2862 + $0x4] sm:$0xf]
  %v6494 = vld [vmem:[%s2862 + $0x8] sm:$0xf]
  %v6495 = vld [vmem:[%s2862 + $0xc] sm:$0xf]
  %v6496 = vld [vmem:[%s2867] sm:$0x1]
  %v6498 = vperm.slane %v6496, 0
  %v6504 = vunpack.c.l.b16 %v6492
  %v6505 = vunpack.c.l.b16 %v6493
  %v6506 = vunpack.c.l.b16 %v6494
  %v6507 = vunpack.c.l.b16 %v6495
  %v6508 = vpack.c.b16 %v6505, %v6504
  %v6509 = vpack.c.b16 %v6507, %v6506
  %v6513 = vsel %vm196, %v6491, 0
  %6515 = vmatpush.bf16.msra.mxu0 0
  %6516 = vmatpush.bf16.msra.mxu0 0
  %6517 = vmatpush.bf16.msra.mxu0 0
  %6518 = vmatpush.bf16.msra.mxu0 0
  %6519 = vmatpush.bf16.msra.mxu0 0
  %6520 = vmatpush.bf16.msra.mxu0 0
  %6521 = vmatpush.bf16.msra.mxu0 %v6509
  %6522 = vmatpush.bf16.msra.mxu0 %v6508
  %6523 = vmatmul.bf16.gmra.mxu0 %v6513
  %v6524 = vpop.f32.mrf.mxu0
  %v6525 = vadd.f32 %v6498, %v6524
  %v6526 = vpop.f32.mrf.mxu0
  %v6527 = vadd.f32 %v6498, %v6526
  %6528 = vdwg.mxu0
  %v6529 = vpack.c.bf16 %v6527, %v6525
  %6531 = vrot.lane.b32.xlu0 %v6529, 96
  %v6532 = vpop.permute.xlu0 %6531
  %v6534 = vsel %vm337, %v6529, 0
  %v6537 = vsel %vm337, %v6532, 0
  %6539 = vmatpush.bf16.xpose.msra.mxu0 0
  %6540 = vmatpush.bf16.xpose.msra.mxu0 0
  %6541 = vmatpush.bf16.xpose.msra.mxu0 0
  %6542 = vmatpush.bf16.xpose.msra.mxu0 0
  %6543 = vmatpush.bf16.xpose.msra.mxu0 0
  %6544 = vmatpush.bf16.xpose.msra.mxu0 0
  %6545 = vmatpush.bf16.xpose.msra.mxu0 0
  %6546 = vmatpush.bf16.xpose.msra.mxu0 %v6537
  %6547 = vmatmul.bf16.gmra.mxu0 %v6534
  %v6548 = vpop.f32.mrf.mxu0
  %v6549 = vadd.f32 0.0, %v6548
  %v6550 = vpop.f32.mrf.mxu0
  %v6551 = vadd.f32 0.0, %v6550
  %6552 = vdwg.mxu0
  %v6553 = vsel %vm337, %v6549, -inf
  %6554 = vmax.xlane.f32.xlu0 %v6553
  %v6555 = vpop.xlane.xlu0 %6554
  %v6556 = vsel %vm337, %v6551, -inf
  %6557 = vmax.xlane.f32.xlu0 %v6556
  %v6558 = vpop.xlane.xlu0 %6557
  %v6559 = vsub.f32 %v6549, %v6555
  %v6560 = vsub.f32 %v6551, %v6558
  %v6561 = vmul.f32 %v6559, 1.442695
  %v6562 = vpow.pop %v6561
  %v6563 = vmul.f32 %v6560, 1.442695
  %v6564 = vpow.pop %v6563
  %v6565 = vsel %vm337, %v6562, 0.0
  %6566 = vadd.xlane.f32.xlu0 %v6565
  %v6567 = vpop.xlane.xlu0 %6566
  %v6568 = vsel %vm337, %v6564, 0.0
  %6569 = vadd.xlane.f32.xlu0 %v6568
  %v6570 = vpop.xlane.xlu0 %6569
  %v6571 = vrcp.pop %v6567
  %v6572 = vrcp.pop %v6570
  %v6573 = vmul.f32 %v6562, %v6571
  %v6574 = vmul.f32 %v6564, %v6572
  %v6575 = vpack.c.bf16 %v6574, %v6573
  %6576 = vrot.lane.b32.xlu0 %v6529, 64
  %v6577 = vpop.permute.xlu0 %6576
  %v6580 = vsel %vm337, %v6575, 0
  %6582 = vmatpush.bf16.msra.mxu0 0
  %6583 = vmatpush.bf16.msra.mxu0 0
  %6584 = vmatpush.bf16.msra.mxu0 0
  %6585 = vmatpush.bf16.msra.mxu0 0
  %6586 = vmatpush.bf16.msra.mxu0 0
  %6587 = vmatpush.bf16.msra.mxu0 0
  %6588 = vmatpush.bf16.msra.mxu0 0
  %6589 = vmatpush.bf16.msra.mxu0 %v6577
  %6590 = vmatmul.bf16.gmra.mxu0 %v6580
  %v6591 = vpop.f32.mrf.mxu0
  %v6592 = vadd.f32 0.0, %v6591
  %v6593 = vpop.f32.mrf.mxu0
  %v6594 = vadd.f32 0.0, %v6593
  %6595 = vdwg.mxu0
  %6596 = vrot.lane.b32.xlu0 %v6529, 112
  %v6597 = vpop.permute.xlu0 %6596
  %6598 = vrot.lane.b32.xlu0 %v6529, 80
  %v6599 = vpop.permute.xlu0 %6598
  %v6601 = vsel %vm337, %v6597, 0
  %v6604 = vsel %vm337, %v6599, 0
  %6606 = vmatpush.bf16.xpose.msra.mxu0 0
  %6607 = vmatpush.bf16.xpose.msra.mxu0 0
  %6608 = vmatpush.bf16.xpose.msra.mxu0 0
  %6609 = vmatpush.bf16.xpose.msra.mxu0 0
  %6610 = vmatpush.bf16.xpose.msra.mxu0 0
  %6611 = vmatpush.bf16.xpose.msra.mxu0 0
  %6612 = vmatpush.bf16.xpose.msra.mxu0 0
  %6613 = vmatpush.bf16.xpose.msra.mxu0 %v6604
  %6614 = vmatmul.bf16.gmra.mxu0 %v6601
  %v6615 = vpop.f32.mrf.mxu0
  %v6616 = vadd.f32 0.0, %v6615
  %v6617 = vpop.f32.mrf.mxu0
  %v6618 = vadd.f32 0.0, %v6617
  %6619 = vdwg.mxu0
  %v6620 = vsel %vm337, %v6616, -inf
  %6621 = vmax.xlane.f32.xlu0 %v6620
  %v6622 = vpop.xlane.xlu0 %6621
  %v6623 = vsel %vm337, %v6618, -inf
  %6624 = vmax.xlane.f32.xlu0 %v6623
  %v6625 = vpop.xlane.xlu0 %6624
  %v6626 = vsub.f32 %v6616, %v6622
  %v6627 = vsub.f32 %v6618, %v6625
  %v6628 = vmul.f32 %v6626, 1.442695
  %v6629 = vpow.pop %v6628
  %v6630 = vmul.f32 %v6627, 1.442695
  %v6631 = vpow.pop %v6630
  %v6632 = vsel %vm337, %v6629, 0.0
  %6633 = vadd.xlane.f32.xlu0 %v6632
  %v6634 = vpop.xlane.xlu0 %6633
  %v6635 = vsel %vm337, %v6631, 0.0
  %6636 = vadd.xlane.f32.xlu0 %v6635
  %v6637 = vpop.xlane.xlu0 %6636
  %v6638 = vrcp.pop %v6634
  %v6639 = vrcp.pop %v6637
  %v6640 = vmul.f32 %v6629, %v6638
  %v6641 = vmul.f32 %v6631, %v6639
  %v6642 = vpack.c.bf16 %v6641, %v6640
  %6643 = vrot.lane.b32.xlu0 %v6529, 48
  %v6644 = vpop.permute.xlu0 %6643
  %v6647 = vsel %vm337, %v6642, 0
  %6649 = vmatpush.bf16.msra.mxu0 0
  %6650 = vmatpush.bf16.msra.mxu0 0
  %6651 = vmatpush.bf16.msra.mxu0 0
  %6652 = vmatpush.bf16.msra.mxu0 0
  %6653 = vmatpush.bf16.msra.mxu0 0
  %6654 = vmatpush.bf16.msra.mxu0 0
  %6655 = vmatpush.bf16.msra.mxu0 0
  %6656 = vmatpush.bf16.msra.mxu0 %v6644
  %6657 = vmatmul.bf16.gmra.mxu0 %v6647
  %v6658 = vpop.f32.mrf.mxu0
  %v6659 = vadd.f32 0.0, %v6658
  %v6660 = vpop.f32.mrf.mxu0
  %v6661 = vadd.f32 0.0, %v6660
  %6662 = vdwg.mxu0
  %v6663 = vld [vmem:[%s3035] sm:$0xf]
  %v6664 = vld [vmem:[%s3035 + $0x4] sm:$0xf]
  %v6665 = vld [vmem:[%s3035 + $0x8] sm:$0xf]
  %v6666 = vld [vmem:[%s3035 + $0xc] sm:$0xf]
  %v6667 = vpack.c.bf16 %v6594, %v6592
  %v6668 = vpack.c.bf16 %v6661, %v6659
  %v6671 = vunpack.c.l.b16 %v6665
  %v6672 = vunpack.c.l.b16 %v6666
  %v6673 = vpack.c.b16 %v6672, %v6671
  %v6676 = vsel %vm337, %v6668, 0
  %6678 = vmatpush.bf16.msra.mxu0 0
  %6679 = vmatpush.bf16.msra.mxu0 0
  %6680 = vmatpush.bf16.msra.mxu0 0
  %6681 = vmatpush.bf16.msra.mxu0 0
  %6682 = vmatpush.bf16.msra.mxu0 0
  %6683 = vmatpush.bf16.msra.mxu0 0
  %6684 = vmatpush.bf16.msra.mxu0 0
  %6685 = vmatpush.bf16.msra.mxu0 %v6673
  %6686 = vmatmul.bf16.gmra.mxu0 %v6676
  %v6687 = vpop.f32.mrf.mxu0
  %v6688 = vadd.f32 0.0, %v6687
  %v6689 = vpop.f32.mrf.mxu0
  %v6690 = vadd.f32 0.0, %v6689
  %6691 = vdwg.mxu0
  %v6694 = vunpack.c.l.b16 %v6663
  %v6695 = vunpack.c.l.b16 %v6664
  %v6696 = vpack.c.b16 %v6695, %v6694
  %v6699 = vsel %vm337, %v6667, 0
  %6701 = vmatpush.bf16.msra.mxu0 0
  %6702 = vmatpush.bf16.msra.mxu0 0
  %6703 = vmatpush.bf16.msra.mxu0 0
  %6704 = vmatpush.bf16.msra.mxu0 0
  %6705 = vmatpush.bf16.msra.mxu0 0
  %6706 = vmatpush.bf16.msra.mxu0 0
  %6707 = vmatpush.bf16.msra.mxu0 0
  %6708 = vmatpush.bf16.msra.mxu0 %v6696
  %6709 = vmatmul.bf16.gmra.mxu0 %v6699
  %v6710 = vpop.f32.mrf.mxu0
  %v6711 = vadd.f32 %v6688, %v6710
  %v6712 = vpop.f32.mrf.mxu0
  %v6713 = vadd.f32 %v6690, %v6712
  %6714 = vdwg.mxu0
  %v6715 = vld [vmem:[%s3088] sm:$0x1]
  %v6717 = vperm.slane %v6715, 0
  %v6719 = vadd.f32 %v6711, %v6717
  %v6720 = vadd.f32 %v6713, %v6717
  %v6721 = vadd.f32 %v6423, %v6719
  %v6722 = vadd.f32 %v6424, %v6720
  %v6723 = vld [vmem:[%s3097] sm:$0x1]
  %v6724 = vld [vmem:[%s3099] sm:$0x1]
  %v6725 = vsel %vm196, %v6721, 0.0
  %6726 = vadd.xlane.f32.xlu0 %v6725
  %v6727 = vpop.xlane.xlu0 %6726
  %v6728 = vsel %vm196, %v6722, 0.0
  %6729 = vadd.xlane.f32.xlu0 %v6728
  %v6730 = vpop.xlane.xlu0 %6729
  %v6731 = vmul.f32 %v6727, %v213
  %v6732 = vmul.f32 %v6730, %v213
  %v6733 = vsub.f32 %v6721, %v6731
  %v6734 = vsub.f32 %v6722, %v6732
  %v6735 = vmul.f32 %v6733, %v6733
  %v6736 = vmul.f32 %v6734, %v6734
  %v6737 = vsel %vm196, %v6735, 0.0
  %6738 = vadd.xlane.f32.xlu0 %v6737
  %v6739 = vpop.xlane.xlu0 %6738
  %v6740 = vsel %vm196, %v6736, 0.0
  %6741 = vadd.xlane.f32.xlu0 %v6740
  %v6742 = vpop.xlane.xlu0 %6741
  %v6743 = vmul.f32 %v6739, %v213
  %v6744 = vmul.f32 %v6742, %v213
  %v6745 = vadd.f32 %v6743, 1e-06
  %v6746 = vadd.f32 %v6744, 1e-06
  %v6747 = vrsqrt.pop %v6745
  %v6748 = vmul.f32 %v6747, %v6745
  %v6749 = vmul.f32 %v6748, %v6747
  %v6750 = vmul.f32 0.5, %v6749
  %v6751 = vsub.f32 1.5, %v6750
  %v6752 = vmul.f32 %v6747, %v6751
  %vm6753 = vweird.f32 %v6745
  %vm6754 = vweird.f32 %v6747
  %vm6755 = vmor %vm6753, %vm6754
  %v6756 = vsel %vm6755, %v6747, %v6752
  %v6757 = vrsqrt.pop %v6746
  %v6758 = vmul.f32 %v6757, %v6746
  %v6759 = vmul.f32 %v6758, %v6757
  %v6760 = vmul.f32 0.5, %v6759
  %v6761 = vsub.f32 1.5, %v6760
  %v6762 = vmul.f32 %v6757, %v6761
  %vm6763 = vweird.f32 %v6746
  %vm6764 = vweird.f32 %v6757
  %vm6765 = vmor %vm6763, %vm6764
  %v6766 = vsel %vm6765, %v6757, %v6762
  %v6767 = vmul.f32 %v6733, %v6756
  %v6768 = vmul.f32 %v6734, %v6766
  %v6770 = vperm.slane %v6723, 0
  %v6772 = vmul.f32 %v6767, %v6770
  %v6773 = vmul.f32 %v6768, %v6770
  %v6775 = vperm.slane %v6724, 0
  %v6777 = vadd.f32 %v6772, %v6775
  %v6778 = vadd.f32 %v6773, %v6775
  %v6779 = vpack.c.bf16 %v6778, %v6777
  %v6780 = vld [vmem:[%s3156] sm:$0xf]
  %v6781 = vld [vmem:[%s3156 + $0x4] sm:$0xf]
  %v6782 = vld [vmem:[%s3156 + $0x8] sm:$0xf]
  %v6783 = vld [vmem:[%s3156 + $0xc] sm:$0xf]
  %v6784 = vld [vmem:[%s3161] sm:$0x1]
  %v6786 = vperm.slane %v6784, 0
  %v6792 = vunpack.c.l.b16 %v6780
  %v6793 = vunpack.c.l.b16 %v6781
  %v6794 = vunpack.c.l.b16 %v6782
  %v6795 = vunpack.c.l.b16 %v6783
  %v6796 = vpack.c.b16 %v6793, %v6792
  %v6797 = vpack.c.b16 %v6795, %v6794
  %v6801 = vsel %vm196, %v6779, 0
  %6803 = vmatpush.bf16.msra.mxu0 0
  %6804 = vmatpush.bf16.msra.mxu0 0
  %6805 = vmatpush.bf16.msra.mxu0 0
  %6806 = vmatpush.bf16.msra.mxu0 0
  %6807 = vmatpush.bf16.msra.mxu0 0
  %6808 = vmatpush.bf16.msra.mxu0 0
  %6809 = vmatpush.bf16.msra.mxu0 %v6797
  %6810 = vmatpush.bf16.msra.mxu0 %v6796
  %6811 = vmatmul.bf16.gmra.mxu0 %v6801
  %v6812 = vpop.f32.mrf.mxu0
  %v6813 = vadd.f32 %v6786, %v6812
  %v6814 = vpop.f32.mrf.mxu0
  %v6815 = vadd.f32 %v6786, %v6814
  %6816 = vdwg.mxu0
  %v6817 = vmul.f32 %v6813, %v6813
  %v6818 = vmul.f32 %v6815, %v6815
  %v6819 = vmul.f32 %v6813, %v6817
  %v6820 = vmul.f32 %v6815, %v6818
  %v6821 = vmul.f32 %v6819, 0.044715
  %v6822 = vmul.f32 %v6820, 0.044715
  %v6823 = vadd.f32 %v6813, %v6821
  %v6824 = vadd.f32 %v6815, %v6822
  %v6825 = vmul.f32 %v6823, 0.7978846
  %v6826 = vmul.f32 %v6824, 0.7978846
  %v6827 = vtanh.pop %v6825
  %v6828 = vtanh.pop %v6826
  %v6829 = vadd.f32 %v6827, 1.0
  %v6830 = vadd.f32 %v6828, 1.0
  %v6831 = vmul.f32 %v6829, 0.5
  %v6832 = vmul.f32 %v6830, 0.5
  %v6833 = vmul.f32 %v6813, %v6831
  %v6834 = vmul.f32 %v6815, %v6832
  %v6835 = vpack.c.bf16 %v6834, %v6833
  %v6836 = vld [vmem:[%s3214] sm:$0xf]
  %v6837 = vld [vmem:[%s3214 + $0x4] sm:$0xf]
  %v6838 = vld [vmem:[%s3214 + $0x8] sm:$0xf]
  %v6839 = vld [vmem:[%s3214 + $0xc] sm:$0xf]
  %v6840 = vld [vmem:[%s3214 + $0x10] sm:$0xf]
  %v6841 = vld [vmem:[%s3214 + $0x14] sm:$0xf]
  %v6842 = vld [vmem:[%s3214 + $0x18] sm:$0xf]
  %v6843 = vld [vmem:[%s3214 + $0x1c] sm:$0xf]
  %v6844 = vld [vmem:[%s3214 + $0x20] sm:$0xf]
  %v6845 = vld [vmem:[%s3214 + $0x24] sm:$0xf]
  %v6846 = vld [vmem:[%s3214 + $0x28] sm:$0xf]
  %v6847 = vld [vmem:[%s3214 + $0x2c] sm:$0xf]
  %v6848 = vld [vmem:[%s3214 + $0x30] sm:$0xf]
  %v6849 = vld [vmem:[%s3214 + $0x34] sm:$0xf]
  %v6850 = vld [vmem:[%s3214 + $0x38] sm:$0xf]
  %v6851 = vld [vmem:[%s3214 + $0x3c] sm:$0xf]
  %v6852 = vld [vmem:[%s3231] sm:$0x1]
  %v6854 = vperm.slane %v6852, 0
  %v6872 = vunpack.c.l.b16 %v6836
  %v6873 = vunpack.c.l.b16 %v6837
  %v6874 = vunpack.c.l.b16 %v6838
  %v6875 = vunpack.c.l.b16 %v6839
  %v6876 = vunpack.c.l.b16 %v6840
  %v6877 = vunpack.c.l.b16 %v6841
  %v6878 = vunpack.c.l.b16 %v6842
  %v6879 = vunpack.c.l.b16 %v6843
  %v6880 = vunpack.c.l.b16 %v6844
  %v6881 = vunpack.c.l.b16 %v6845
  %v6882 = vunpack.c.l.b16 %v6846
  %v6883 = vunpack.c.l.b16 %v6847
  %v6884 = vunpack.c.l.b16 %v6848
  %v6885 = vunpack.c.l.b16 %v6849
  %v6886 = vunpack.c.l.b16 %v6850
  %v6887 = vunpack.c.l.b16 %v6851
  %v6888 = vpack.c.b16 %v6873, %v6872
  %v6889 = vpack.c.b16 %v6875, %v6874
  %v6890 = vpack.c.b16 %v6877, %v6876
  %v6891 = vpack.c.b16 %v6879, %v6878
  %v6892 = vpack.c.b16 %v6881, %v6880
  %v6893 = vpack.c.b16 %v6883, %v6882
  %v6894 = vpack.c.b16 %v6885, %v6884
  %v6895 = vpack.c.b16 %v6887, %v6886
  %6904 = vmatpush.bf16.msra.mxu0 %v6895
  %6905 = vmatpush.bf16.msra.mxu0 %v6894
  %6906 = vmatpush.bf16.msra.mxu0 %v6893
  %6907 = vmatpush.bf16.msra.mxu0 %v6892
  %6908 = vmatpush.bf16.msra.mxu0 %v6891
  %6909 = vmatpush.bf16.msra.mxu0 %v6890
  %6910 = vmatpush.bf16.msra.mxu0 %v6889
  %6911 = vmatpush.bf16.msra.mxu0 %v6888
  %6912 = vmatmul.bf16.gmra.mxu0 %v6835
  %v6913 = vpop.f32.mrf.mxu0
  %v6914 = vadd.f32 %v6854, %v6913
  %v6915 = vpop.f32.mrf.mxu0
  %v6916 = vadd.f32 %v6854, %v6915
  %6917 = vdwg.mxu0
  %v6918 = vadd.f32 %v6721, %v6914
  %v6919 = vadd.f32 %v6722, %v6916
  %6920 = vst.msk [vmem:[%s3809 + $0x8] sm:$0xff] %vm196, %v6918
  %6921 = vst.msk [vmem:[%s3809 + $0x18] sm:$0xff] %vm196, %v6919
  %v6922 = vld [vmem:[%s3302] sm:$0x1]
  %v6923 = vld [vmem:[%s3304] sm:$0x1]
  %v6924 = vsel %vm196, %v6918, 0.0
  %6925 = vadd.xlane.f32.xlu0 %v6924
  %v6926 = vpop.xlane.xlu0 %6925
  %v6927 = vsel %vm196, %v6919, 0.0
  %6928 = vadd.xlane.f32.xlu0 %v6927
  %v6929 = vpop.xlane.xlu0 %6928
  %v6930 = vmul.f32 %v6926, %v213
  %v6931 = vmul.f32 %v6929, %v213
  %v6932 = vsub.f32 %v6918, %v6930
  %v6933 = vsub.f32 %v6919, %v6931
  %v6934 = vmul.f32 %v6932, %v6932
  %v6935 = vmul.f32 %v6933, %v6933
  %v6936 = vsel %vm196, %v6934, 0.0
  %6937 = vadd.xlane.f32.xlu0 %v6936
  %v6938 = vpop.xlane.xlu0 %6937
  %v6939 = vsel %vm196, %v6935, 0.0
  %6940 = vadd.xlane.f32.xlu0 %v6939
  %v6941 = vpop.xlane.xlu0 %6940
  %v6942 = vmul.f32 %v6938, %v213
  %v6943 = vmul.f32 %v6941, %v213
  %v6944 = vadd.f32 %v6942, 1e-06
  %v6945 = vadd.f32 %v6943, 1e-06
  %v6946 = vrsqrt.pop %v6944
  %v6947 = vmul.f32 %v6946, %v6944
  %v6948 = vmul.f32 %v6947, %v6946
  %v6949 = vmul.f32 0.5, %v6948
  %v6950 = vsub.f32 1.5, %v6949
  %v6951 = vmul.f32 %v6946, %v6950
  %vm6952 = vweird.f32 %v6944
  %vm6953 = vweird.f32 %v6946
  %vm6954 = vmor %vm6952, %vm6953
  %v6955 = vsel %vm6954, %v6946, %v6951
  %v6956 = vrsqrt.pop %v6945
  %v6957 = vmul.f32 %v6956, %v6945
  %v6958 = vmul.f32 %v6957, %v6956
  %v6959 = vmul.f32 0.5, %v6958
  %v6960 = vsub.f32 1.5, %v6959
  %v6961 = vmul.f32 %v6956, %v6960
  %vm6962 = vweird.f32 %v6945
  %vm6963 = vweird.f32 %v6956
  %vm6964 = vmor %vm6962, %vm6963
  %v6965 = vsel %vm6964, %v6956, %v6961
  %v6966 = vmul.f32 %v6932, %v6955
  %v6967 = vmul.f32 %v6933, %v6965
  %v6969 = vperm.slane %v6922, 0
  %v6971 = vmul.f32 %v6966, %v6969
  %v6972 = vmul.f32 %v6967, %v6969
  %v6974 = vperm.slane %v6923, 0
  %v6976 = vadd.f32 %v6971, %v6974
  %v6977 = vadd.f32 %v6972, %v6974
  %v6978 = vpack.c.bf16 %v6977, %v6976
  %v6979 = vld [vmem:[%s3361] sm:$0xf]
  %v6980 = vld [vmem:[%s3361 + $0x4] sm:$0xf]
  %v6981 = vld [vmem:[%s3361 + $0x8] sm:$0xf]
  %v6982 = vld [vmem:[%s3361 + $0xc] sm:$0xf]
  %v6983 = vld [vmem:[%s3366] sm:$0x1]
  %v6985 = vperm.slane %v6983, 0
  %v6991 = vunpack.c.l.b16 %v6979
  %v6992 = vunpack.c.l.b16 %v6980
  %v6993 = vunpack.c.l.b16 %v6981
  %v6994 = vunpack.c.l.b16 %v6982
  %v6995 = vpack.c.b16 %v6992, %v6991
  %v6996 = vpack.c.b16 %v6994, %v6993
  %v7000 = vsel %vm196, %v6978, 0
  %7002 = vmatpush.bf16.msra.mxu0 0
  %7003 = vmatpush.bf16.msra.mxu0 0
  %7004 = vmatpush.bf16.msra.mxu0 0
  %7005 = vmatpush.bf16.msra.mxu0 0
  %7006 = vmatpush.bf16.msra.mxu0 0
  %7007 = vmatpush.bf16.msra.mxu0 0
  %7008 = vmatpush.bf16.msra.mxu0 %v6996
  %7009 = vmatpush.bf16.msra.mxu0 %v6995
  %7010 = vmatmul.bf16.gmra.mxu0 %v7000
  %v7011 = vpop.f32.mrf.mxu0
  %v7012 = vadd.f32 %v6985, %v7011
  %v7013 = vpop.f32.mrf.mxu0
  %v7014 = vadd.f32 %v6985, %v7013
  %7015 = vdwg.mxu0
  %v7016 = vpack.c.bf16 %v7014, %v7012
  %7018 = vrot.lane.b32.xlu0 %v7016, 96
  %v7019 = vpop.permute.xlu0 %7018
  %v7021 = vsel %vm337, %v7016, 0
  %v7024 = vsel %vm337, %v7019, 0
  %7026 = vmatpush.bf16.xpose.msra.mxu0 0
  %7027 = vmatpush.bf16.xpose.msra.mxu0 0
  %7028 = vmatpush.bf16.xpose.msra.mxu0 0
  %7029 = vmatpush.bf16.xpose.msra.mxu0 0
  %7030 = vmatpush.bf16.xpose.msra.mxu0 0
  %7031 = vmatpush.bf16.xpose.msra.mxu0 0
  %7032 = vmatpush.bf16.xpose.msra.mxu0 0
  %7033 = vmatpush.bf16.xpose.msra.mxu0 %v7024
  %7034 = vmatmul.bf16.gmra.mxu0 %v7021
  %v7035 = vpop.f32.mrf.mxu0
  %v7036 = vadd.f32 0.0, %v7035
  %v7037 = vpop.f32.mrf.mxu0
  %v7038 = vadd.f32 0.0, %v7037
  %7039 = vdwg.mxu0
  %v7040 = vsel %vm337, %v7036, -inf
  %7041 = vmax.xlane.f32.xlu0 %v7040
  %v7042 = vpop.xlane.xlu0 %7041
  %v7043 = vsel %vm337, %v7038, -inf
  %7044 = vmax.xlane.f32.xlu0 %v7043
  %v7045 = vpop.xlane.xlu0 %7044
  %v7046 = vsub.f32 %v7036, %v7042
  %v7047 = vsub.f32 %v7038, %v7045
  %v7048 = vmul.f32 %v7046, 1.442695
  %v7049 = vpow.pop %v7048
  %v7050 = vmul.f32 %v7047, 1.442695
  %v7051 = vpow.pop %v7050
  %v7052 = vsel %vm337, %v7049, 0.0
  %7053 = vadd.xlane.f32.xlu0 %v7052
  %v7054 = vpop.xlane.xlu0 %7053
  %v7055 = vsel %vm337, %v7051, 0.0
  %7056 = vadd.xlane.f32.xlu0 %v7055
  %v7057 = vpop.xlane.xlu0 %7056
  %v7058 = vrcp.pop %v7054
  %v7059 = vrcp.pop %v7057
  %v7060 = vmul.f32 %v7049, %v7058
  %v7061 = vmul.f32 %v7051, %v7059
  %v7062 = vpack.c.bf16 %v7061, %v7060
  %7063 = vrot.lane.b32.xlu0 %v7016, 64
  %v7064 = vpop.permute.xlu0 %7063
  %v7067 = vsel %vm337, %v7062, 0
  %7069 = vmatpush.bf16.msra.mxu0 0
  %7070 = vmatpush.bf16.msra.mxu0 0
  %7071 = vmatpush.bf16.msra.mxu0 0
  %7072 = vmatpush.bf16.msra.mxu0 0
  %7073 = vmatpush.bf16.msra.mxu0 0
  %7074 = vmatpush.bf16.msra.mxu0 0
  %7075 = vmatpush.bf16.msra.mxu0 0
  %7076 = vmatpush.bf16.msra.mxu0 %v7064
  %7077 = vmatmul.bf16.gmra.mxu0 %v7067
  %v7078 = vpop.f32.mrf.mxu0
  %v7079 = vadd.f32 0.0, %v7078
  %v7080 = vpop.f32.mrf.mxu0
  %v7081 = vadd.f32 0.0, %v7080
  %7082 = vdwg.mxu0
  %7083 = vrot.lane.b32.xlu0 %v7016, 112
  %v7084 = vpop.permute.xlu0 %7083
  %7085 = vrot.lane.b32.xlu0 %v7016, 80
  %v7086 = vpop.permute.xlu0 %7085
  %v7088 = vsel %vm337, %v7084, 0
  %v7091 = vsel %vm337, %v7086, 0
  %7093 = vmatpush.bf16.xpose.msra.mxu0 0
  %7094 = vmatpush.bf16.xpose.msra.mxu0 0
  %7095 = vmatpush.bf16.xpose.msra.mxu0 0
  %7096 = vmatpush.bf16.xpose.msra.mxu0 0
  %7097 = vmatpush.bf16.xpose.msra.mxu0 0
  %7098 = vmatpush.bf16.xpose.msra.mxu0 0
  %7099 = vmatpush.bf16.xpose.msra.mxu0 0
  %7100 = vmatpush.bf16.xpose.msra.mxu0 %v7091
  %7101 = vmatmul.bf16.gmra.mxu0 %v7088
  %v7102 = vpop.f32.mrf.mxu0
  %v7103 = vadd.f32 0.0, %v7102
  %v7104 = vpop.f32.mrf.mxu0
  %v7105 = vadd.f32 0.0, %v7104
  %7106 = vdwg.mxu0
  %v7107 = vsel %vm337, %v7103, -inf
  %7108 = vmax.xlane.f32.xlu0 %v7107
  %v7109 = vpop.xlane.xlu0 %7108
  %v7110 = vsel %vm337, %v7105, -inf
  %7111 = vmax.xlane.f32.xlu0 %v7110
  %v7112 = vpop.xlane.xlu0 %7111
  %v7113 = vsub.f32 %v7103, %v7109
  %v7114 = vsub.f32 %v7105, %v7112
  %v7115 = vmul.f32 %v7113, 1.442695
  %v7116 = vpow.pop %v7115
  %v7117 = vmul.f32 %v7114, 1.442695
  %v7118 = vpow.pop %v7117
  %v7119 = vsel %vm337, %v7116, 0.0
  %7120 = vadd.xlane.f32.xlu0 %v7119
  %v7121 = vpop.xlane.xlu0 %7120
  %v7122 = vsel %vm337, %v7118, 0.0
  %7123 = vadd.xlane.f32.xlu0 %v7122
  %v7124 = vpop.xlane.xlu0 %7123
  %v7125 = vrcp.pop %v7121
  %v7126 = vrcp.pop %v7124
  %v7127 = vmul.f32 %v7116, %v7125
  %v7128 = vmul.f32 %v7118, %v7126
  %v7129 = vpack.c.bf16 %v7128, %v7127
  %7130 = vrot.lane.b32.xlu0 %v7016, 48
  %v7131 = vpop.permute.xlu0 %7130
  %v7134 = vsel %vm337, %v7129, 0
  %7136 = vmatpush.bf16.msra.mxu0 0
  %7137 = vmatpush.bf16.msra.mxu0 0
  %7138 = vmatpush.bf16.msra.mxu0 0
  %7139 = vmatpush.bf16.msra.mxu0 0
  %7140 = vmatpush.bf16.msra.mxu0 0
  %7141 = vmatpush.bf16.msra.mxu0 0
  %7142 = vmatpush.bf16.msra.mxu0 0
  %7143 = vmatpush.bf16.msra.mxu0 %v7131
  %7144 = vmatmul.bf16.gmra.mxu0 %v7134
  %v7145 = vpop.f32.mrf.mxu0
  %v7146 = vadd.f32 0.0, %v7145
  %v7147 = vpop.f32.mrf.mxu0
  %v7148 = vadd.f32 0.0, %v7147
  %7149 = vdwg.mxu0
  %v7150 = vld [vmem:[%s3534] sm:$0xf]
  %v7151 = vld [vmem:[%s3534 + $0x4] sm:$0xf]
  %v7152 = vld [vmem:[%s3534 + $0x8] sm:$0xf]
  %v7153 = vld [vmem:[%s3534 + $0xc] sm:$0xf]
  %v7154 = vpack.c.bf16 %v7081, %v7079
  %v7155 = vpack.c.bf16 %v7148, %v7146
  %v7158 = vunpack.c.l.b16 %v7152
  %v7159 = vunpack.c.l.b16 %v7153
  %v7160 = vpack.c.b16 %v7159, %v7158
  %v7163 = vsel %vm337, %v7155, 0
  %7165 = vmatpush.bf16.msra.mxu0 0
  %7166 = vmatpush.bf16.msra.mxu0 0
  %7167 = vmatpush.bf16.msra.mxu0 0
  %7168 = vmatpush.bf16.msra.mxu0 0
  %7169 = vmatpush.bf16.msra.mxu0 0
  %7170 = vmatpush.bf16.msra.mxu0 0
  %7171 = vmatpush.bf16.msra.mxu0 0
  %7172 = vmatpush.bf16.msra.mxu0 %v7160
  %7173 = vmatmul.bf16.gmra.mxu0 %v7163
  %v7174 = vpop.f32.mrf.mxu0
  %v7175 = vadd.f32 0.0, %v7174
  %v7176 = vpop.f32.mrf.mxu0
  %v7177 = vadd.f32 0.0, %v7176
  %7178 = vdwg.mxu0
  %v7181 = vunpack.c.l.b16 %v7150
  %v7182 = vunpack.c.l.b16 %v7151
  %v7183 = vpack.c.b16 %v7182, %v7181
  %v7186 = vsel %vm337, %v7154, 0
  %7188 = vmatpush.bf16.msra.mxu0 0
  %7189 = vmatpush.bf16.msra.mxu0 0
  %7190 = vmatpush.bf16.msra.mxu0 0
  %7191 = vmatpush.bf16.msra.mxu0 0
  %7192 = vmatpush.bf16.msra.mxu0 0
  %7193 = vmatpush.bf16.msra.mxu0 0
  %7194 = vmatpush.bf16.msra.mxu0 0
  %7195 = vmatpush.bf16.msra.mxu0 %v7183
  %7196 = vmatmul.bf16.gmra.mxu0 %v7186
  %v7197 = vpop.f32.mrf.mxu0
  %v7198 = vadd.f32 %v7175, %v7197
  %v7199 = vpop.f32.mrf.mxu0
  %v7200 = vadd.f32 %v7177, %v7199
  %7201 = vdwg.mxu0
  %v7202 = vld [vmem:[%s3587] sm:$0x1]
  %v7204 = vperm.slane %v7202, 0
  %v7206 = vadd.f32 %v7198, %v7204
  %v7207 = vadd.f32 %v7200, %v7204
  %v7208 = vadd.f32 %v6918, %v7206
  %v7209 = vadd.f32 %v6919, %v7207
  %v7210 = vld [vmem:[%s3596] sm:$0x1]
  %v7211 = vld [vmem:[%s3598] sm:$0x1]
  %v7212 = vsel %vm196, %v7208, 0.0
  %7213 = vadd.xlane.f32.xlu0 %v7212
  %v7214 = vpop.xlane.xlu0 %7213
  %v7215 = vsel %vm196, %v7209, 0.0
  %7216 = vadd.xlane.f32.xlu0 %v7215
  %v7217 = vpop.xlane.xlu0 %7216
  %v7218 = vmul.f32 %v7214, %v213
  %v7219 = vmul.f32 %v7217, %v213
  %v7220 = vsub.f32 %v7208, %v7218
  %v7221 = vsub.f32 %v7209, %v7219
  %v7222 = vmul.f32 %v7220, %v7220
  %v7223 = vmul.f32 %v7221, %v7221
  %v7224 = vsel %vm196, %v7222, 0.0
  %7225 = vadd.xlane.f32.xlu0 %v7224
  %v7226 = vpop.xlane.xlu0 %7225
  %v7227 = vsel %vm196, %v7223, 0.0
  %7228 = vadd.xlane.f32.xlu0 %v7227
  %v7229 = vpop.xlane.xlu0 %7228
  %v7230 = vmul.f32 %v7226, %v213
  %v7231 = vmul.f32 %v7229, %v213
  %v7232 = vadd.f32 %v7230, 1e-06
  %v7233 = vadd.f32 %v7231, 1e-06
  %v7234 = vrsqrt.pop %v7232
  %v7235 = vmul.f32 %v7234, %v7232
  %v7236 = vmul.f32 %v7235, %v7234
  %v7237 = vmul.f32 0.5, %v7236
  %v7238 = vsub.f32 1.5, %v7237
  %v7239 = vmul.f32 %v7234, %v7238
  %vm7240 = vweird.f32 %v7232
  %vm7241 = vweird.f32 %v7234
  %vm7242 = vmor %vm7240, %vm7241
  %v7243 = vsel %vm7242, %v7234, %v7239
  %v7244 = vrsqrt.pop %v7233
  %v7245 = vmul.f32 %v7244, %v7233
  %v7246 = vmul.f32 %v7245, %v7244
  %v7247 = vmul.f32 0.5, %v7246
  %v7248 = vsub.f32 1.5, %v7247
  %v7249 = vmul.f32 %v7244, %v7248
  %vm7250 = vweird.f32 %v7233
  %vm7251 = vweird.f32 %v7244
  %vm7252 = vmor %vm7250, %vm7251
  %v7253 = vsel %vm7252, %v7244, %v7249
  %v7254 = vmul.f32 %v7220, %v7243
  %v7255 = vmul.f32 %v7221, %v7253
  %v7257 = vperm.slane %v7210, 0
  %v7259 = vmul.f32 %v7254, %v7257
  %v7260 = vmul.f32 %v7255, %v7257
  %v7262 = vperm.slane %v7211, 0
  %v7264 = vadd.f32 %v7259, %v7262
  %v7265 = vadd.f32 %v7260, %v7262
  %v7266 = vpack.c.bf16 %v7265, %v7264
  %v7267 = vld [vmem:[%s3655] sm:$0xf]
  %v7268 = vld [vmem:[%s3655 + $0x4] sm:$0xf]
  %v7269 = vld [vmem:[%s3655 + $0x8] sm:$0xf]
  %v7270 = vld [vmem:[%s3655 + $0xc] sm:$0xf]
  %v7271 = vld [vmem:[%s3660] sm:$0x1]
  %v7273 = vperm.slane %v7271, 0
  %v7279 = vunpack.c.l.b16 %v7267
  %v7280 = vunpack.c.l.b16 %v7268
  %v7281 = vunpack.c.l.b16 %v7269
  %v7282 = vunpack.c.l.b16 %v7270
  %v7283 = vpack.c.b16 %v7280, %v7279
  %v7284 = vpack.c.b16 %v7282, %v7281
  %v7288 = vsel %vm196, %v7266, 0
  %7290 = vmatpush.bf16.msra.mxu0 0
  %7291 = vmatpush.bf16.msra.mxu0 0
  %7292 = vmatpush.bf16.msra.mxu0 0
  %7293 = vmatpush.bf16.msra.mxu0 0
  %7294 = vmatpush.bf16.msra.mxu0 0
  %7295 = vmatpush.bf16.msra.mxu0 0
  %7296 = vmatpush.bf16.msra.mxu0 %v7284
  %7297 = vmatpush.bf16.msra.mxu0 %v7283
  %7298 = vmatmul.bf16.gmra.mxu0 %v7288
  %v7299 = vpop.f32.mrf.mxu0
  %v7300 = vadd.f32 %v7273, %v7299
  %v7301 = vpop.f32.mrf.mxu0
  %v7302 = vadd.f32 %v7273, %v7301
  %7303 = vdwg.mxu0
  %v7304 = vmul.f32 %v7300, %v7300
  %v7305 = vmul.f32 %v7302, %v7302
  %v7306 = vmul.f32 %v7300, %v7304
  %v7307 = vmul.f32 %v7302, %v7305
  %v7308 = vmul.f32 %v7306, 0.044715
  %v7309 = vmul.f32 %v7307, 0.044715
  %v7310 = vadd.f32 %v7300, %v7308
  %v7311 = vadd.f32 %v7302, %v7309
  %v7312 = vmul.f32 %v7310, 0.7978846
  %v7313 = vmul.f32 %v7311, 0.7978846
  %v7314 = vtanh.pop %v7312
  %v7315 = vtanh.pop %v7313
  %v7316 = vadd.f32 %v7314, 1.0
  %v7317 = vadd.f32 %v7315, 1.0
  %v7318 = vmul.f32 %v7316, 0.5
  %v7319 = vmul.f32 %v7317, 0.5
  %v7320 = vmul.f32 %v7300, %v7318
  %v7321 = vmul.f32 %v7302, %v7319
  %v7322 = vpack.c.bf16 %v7321, %v7320
  %v7323 = vld [vmem:[%s3713] sm:$0xf]
  %v7324 = vld [vmem:[%s3713 + $0x4] sm:$0xf]
  %v7325 = vld [vmem:[%s3713 + $0x8] sm:$0xf]
  %v7326 = vld [vmem:[%s3713 + $0xc] sm:$0xf]
  %v7327 = vld [vmem:[%s3713 + $0x10] sm:$0xf]
  %v7328 = vld [vmem:[%s3713 + $0x14] sm:$0xf]
  %v7329 = vld [vmem:[%s3713 + $0x18] sm:$0xf]
  %v7330 = vld [vmem:[%s3713 + $0x1c] sm:$0xf]
  %v7331 = vld [vmem:[%s3713 + $0x20] sm:$0xf]
  %v7332 = vld [vmem:[%s3713 + $0x24] sm:$0xf]
  %v7333 = vld [vmem:[%s3713 + $0x28] sm:$0xf]
  %v7334 = vld [vmem:[%s3713 + $0x2c] sm:$0xf]
  %v7335 = vld [vmem:[%s3713 + $0x30] sm:$0xf]
  %v7336 = vld [vmem:[%s3713 + $0x34] sm:$0xf]
  %v7337 = vld [vmem:[%s3713 + $0x38] sm:$0xf]
  %v7338 = vld [vmem:[%s3713 + $0x3c] sm:$0xf]
  %v7339 = vld [vmem:[%s3730] sm:$0x1]
  %v7341 = vperm.slane %v7339, 0
  %v7359 = vunpack.c.l.b16 %v7323
  %v7360 = vunpack.c.l.b16 %v7324
  %v7361 = vunpack.c.l.b16 %v7325
  %v7362 = vunpack.c.l.b16 %v7326
  %v7363 = vunpack.c.l.b16 %v7327
  %v7364 = vunpack.c.l.b16 %v7328
  %v7365 = vunpack.c.l.b16 %v7329
  %v7366 = vunpack.c.l.b16 %v7330
  %v7367 = vunpack.c.l.b16 %v7331
  %v7368 = vunpack.c.l.b16 %v7332
  %v7369 = vunpack.c.l.b16 %v7333
  %v7370 = vunpack.c.l.b16 %v7334
  %v7371 = vunpack.c.l.b16 %v7335
  %v7372 = vunpack.c.l.b16 %v7336
  %v7373 = vunpack.c.l.b16 %v7337
  %v7374 = vunpack.c.l.b16 %v7338
  %v7375 = vpack.c.b16 %v7360, %v7359
  %v7376 = vpack.c.b16 %v7362, %v7361
  %v7377 = vpack.c.b16 %v7364, %v7363
  %v7378 = vpack.c.b16 %v7366, %v7365
  %v7379 = vpack.c.b16 %v7368, %v7367
  %v7380 = vpack.c.b16 %v7370, %v7369
  %v7381 = vpack.c.b16 %v7372, %v7371
  %v7382 = vpack.c.b16 %v7374, %v7373
  %7391 = vmatpush.bf16.msra.mxu0 %v7382
  %7392 = vmatpush.bf16.msra.mxu0 %v7381
  %7393 = vmatpush.bf16.msra.mxu0 %v7380
  %7394 = vmatpush.bf16.msra.mxu0 %v7379
  %7395 = vmatpush.bf16.msra.mxu0 %v7378
  %7396 = vmatpush.bf16.msra.mxu0 %v7377
  %7397 = vmatpush.bf16.msra.mxu0 %v7376
  %7398 = vmatpush.bf16.msra.mxu0 %v7375
  %7399 = vmatmul.bf16.gmra.mxu0 %v7322
  %v7400 = vpop.f32.mrf.mxu0
  %v7401 = vadd.f32 %v7341, %v7400
  %v7402 = vpop.f32.mrf.mxu0
  %v7403 = vadd.f32 %v7341, %v7402
  %7404 = vdwg.mxu0
  %v7405 = vadd.f32 %v7208, %v7401
  %v7406 = vadd.f32 %v7209, %v7403
  %7409 = vrot.lane.b32.xlu0 %v7405, 32
  %v7410 = vpop.permute.xlu0 %7409
  %7411 = vrot.lane.b32.xlu0 %v7406, 32
  %v7412 = vpop.permute.xlu0 %7411
  %7415 = vst.msk [vmem:[%s3809 + $0x8] sm:$0xff] %vm1547, %v7410
  %7416 = vst.msk [vmem:[%s3809 + $0x18] sm:$0xff] %vm1547, %v7412
  // Predicated region
  $region130: #{vitad_forward.1} parent=0 // pred_check
    _
  $region131: #{vitad_forward.1} parent=0 // pred_check_branch
    %7418 = sbr.rel (0) target = $region133
  $region132: #{vitad_forward.1} parent=0 // pred_region
    _
  $region133: #{vitad_forward.1} parent=0 // pred_fallthru
    _
  // Predicated region
  $region134: #{vitad_forward.1} parent=0 // pred_check
    _
  $region135: #{vitad_forward.1} parent=0 // pred_check_branch
    %7420 = sbr.rel (0) target = $region137
  $region136: #{vitad_forward.1} parent=0 // pred_region
    _
  $region137: #{vitad_forward.1} parent=0 // pred_fallthru
    _

</llo_original>
